<compile_context>
chip_gen: v5e
topology: v5e:2x2
jax: 0.10.0
libtpu: 0.0.40
codegen_flags: <defaults>
</compile_context>

<pallas_src>
import functools

import jax
import jax.numpy as jnp
from jax.experimental import pallas as pl
from jax.experimental.pallas import tpu as pltpu

HIDDEN = 768
N_HIGHWAY = 4


def _round_up(x, m):
    return (x + m - 1) // m * m


def _regression_kernel(h1_ref, h2_ref, whc_ref, bhc_ref, wo_ref, bo_ref,
                       out_ref, acc_ref, *, n_highway, inv_denom):
    """Grid axis 0 tiles the sequence dimension (reduction axis)."""
    s = pl.program_id(0)

    @pl.when(s == 0)
    def _init():
        acc_ref[...] = jnp.zeros_like(acc_ref)

    # Accumulate sequence-tile sums of both sentence encodings.
    # h*_ref: (B_pad, seq_tile, H) f32 -> (B_pad, H)
    acc_ref[...] += (jnp.sum(h1_ref[...], axis=1)
                     + jnp.sum(h2_ref[...], axis=1))

    @pl.when(s == pl.num_programs(0) - 1)
    def _finalize():
        # (mean1 + mean2) / 2 == (sum1 + sum2) / (2*S); scale exactly once.
        x = acc_ref[...] * inv_denom                      # (B_pad, H) f32

        whc = whc_ref[...]                                # (H, 2H) bf16
        # Hoist the bias broadcast out of the unrolled highway loop.
        bhc = jnp.broadcast_to(bhc_ref[...], (x.shape[0], 2 * HIDDEN))

        # n_highway applications of the *same* HighwayBlock (shared weights),
        # transform + gate fused into a single MXU matmul per iteration.
        for _ in range(n_highway):
            y = jnp.dot(x.astype(jnp.bfloat16), whc,
                        preferred_element_type=jnp.float32) + bhc
            h = jnp.maximum(y[:, :HIDDEN], 0.0)           # transform (relu), f32
            t = jax.nn.sigmoid(y[:, HIDDEN:])             # gate (EUP), f32
            x = x + t * (h - x)                           # highway combine

        # linear_model: Dropout (identity) + Linear(768, 1) as VPU mul + reduce.
        head = jnp.sum(x * wo_ref[...], axis=-1, keepdims=True) + bo_ref[...]
        # Lane-dense store; wrapper slices [:, :1].
        out_ref[...] = jnp.broadcast_to(head, out_ref.shape)


def bert_regression_head(h1, h2, params, n_highway=N_HIGHWAY,
                         vmem_budget_per_buffer=8 * 1024 * 1024):
    """Pooling + highway stack + linear head in one pipelined Pallas kernel."""
    B, S, H = h1.shape
    assert H == HIDDEN

    B_pad = _round_up(B, 8)   # sublane-aligned matmul M / clean stores
    # Largest multiple-of-8 sequence tile whose double-buffered f32 copy stays
    # inside the per-buffer budget (sized conservatively for v7x's 64 MiB VMEM).
    max_tile = max(8, (vmem_budget_per_buffer // (B_pad * H * 4)) // 8 * 8)
    seq_tile = min(_round_up(S, 8), max_tile)
    S_pad = _round_up(S, seq_tile)

    def _pad(h):
        return jnp.pad(h.astype(jnp.float32),
                       ((0, B_pad - B), (0, S_pad - S), (0, 0)))

    h1p, h2p = _pad(h1), _pad(h2)

    # Fuse the highway transform + gate weights: one (H, 2H) bf16 matmul/iter.
    whc = jnp.concatenate([params["wh"], params["wt"]],
                          axis=1).astype(jnp.bfloat16)                 # (H, 2H)
    bhc = jnp.concatenate([params["bh"], params["bt"]],
                          axis=1).astype(jnp.float32)                  # (1, 2H)
    wo_row = params["wo"].reshape(1, HIDDEN).astype(jnp.float32)       # (1, H)
    bo = params["bo"].reshape(1, 1).astype(jnp.float32)                # (1, 1)

    n_tiles = S_pad // seq_tile
    kernel = functools.partial(_regression_kernel, n_highway=n_highway,
                               inv_denom=1.0 / (2.0 * S))

    out = pl.pallas_call(
        kernel,
        out_shape=jax.ShapeDtypeStruct((B_pad, 128), jnp.float32),
        grid_spec=pltpu.PrefetchScalarGridSpec(
            num_scalar_prefetch=0,
            grid=(n_tiles,),
            in_specs=[
                pl.BlockSpec((B_pad, seq_tile, H), lambda s: (0, s, 0)),  # h1
                pl.BlockSpec((B_pad, seq_tile, H), lambda s: (0, s, 0)),  # h2
                pl.BlockSpec((H, 2 * H), lambda s: (0, 0)),               # Wh|Wt
                pl.BlockSpec((1, 2 * H), lambda s: (0, 0)),               # bh|bt
                pl.BlockSpec((1, H), lambda s: (0, 0)),                   # wo row
                pl.BlockSpec((1, 1), lambda s: (0, 0)),                   # bo
            ],
            out_specs=pl.BlockSpec((B_pad, 128), lambda s: (0, 0)),
            scratch_shapes=[pltpu.VMEM((B_pad, HIDDEN), jnp.float32)],
        ),
        compiler_params=pltpu.CompilerParams(
            dimension_semantics=("arbitrary",),   # sequence axis is a reduction
            vmem_limit_bytes=48 * 1024 * 1024,
        ),
    )(h1p, h2p, whc, bhc, wo_row, bo)

    return out[:B, :1]


def xavier_normal(key, shape):
    fan_in, fan_out = shape[0], shape[1]
    std = jnp.sqrt(2.0 / (fan_in + fan_out))
    return std * jax.random.normal(key, shape, dtype=jnp.float32)


def init_params(key):
    k_wh, k_wt, k_wo, k_emb = jax.random.split(key, 4)
    return {
        # HighwayBlock(768): transform + gate linears (xavier_normal weights)
        "wh": xavier_normal(k_wh, (HIDDEN, HIDDEN)),
        "bh": jnp.zeros((1, HIDDEN), jnp.float32),
        "wt": xavier_normal(k_wt, (HIDDEN, HIDDEN)),
        "bt": jnp.full((1, HIDDEN), -1.0, jnp.float32),   # common highway gate bias
        # linear_model: Linear(768, 1)
        "wo": xavier_normal(k_wo, (HIDDEN, 1)),
        "bo": jnp.zeros((1, 1), jnp.float32),
        # stand-in "BERT" embedding table
        "emb": 0.02 * jax.random.normal(k_emb, (100, HIDDEN), jnp.float32),
    }


def bert_standin(token_ids, masks, emb_table):
    """Stand-in for the external BERT_base: embedding lookup -> (B, S, 768).

    The original forward does not mask the sequence mean, so `masks` is
    accepted for signature parity but not applied here.
    """
    del masks
    return jnp.take(emb_table, token_ids, axis=0).astype(jnp.float32)


def bert_regression_forward(token_ids, masks, token_ids2, masks2, params):
    h1 = bert_standin(token_ids, masks, params["emb"])     # (B, S, 768)
    h2 = bert_standin(token_ids2, masks2, params["emb"])   # (B, S, 768)
    return bert_regression_head(h1, h2, params)            # (B, 1)


def _reference(h1, h2, p, n_highway=N_HIGHWAY):
    """Pure-JAX reference mirroring the kernel math (bf16 MXU, f32 acc)."""
    x = (h1.mean(1) + h2.mean(1)) * 0.5
    whc = jnp.concatenate([p["wh"], p["wt"]], axis=1).astype(jnp.bfloat16)
    bhc = jnp.concatenate([p["bh"], p["bt"]], axis=1)
    for _ in range(n_highway):
        y = jnp.dot(x.astype(jnp.bfloat16), whc,
                    preferred_element_type=jnp.float32) + bhc
        h = jnp.maximum(y[:, :HIDDEN], 0.0)
        t = jax.nn.sigmoid(y[:, HIDDEN:])
        x = x + t * (h - x)
    return x @ p["wo"] + p["bo"]


if __name__ == "__main__":
    key = jax.random.PRNGKey(0)
    k_params, k_t1, k_t2 = jax.random.split(key, 3)

    B, S = 2, 8
    params = init_params(k_params)
    token_ids = jax.random.randint(k_t1, (B, S), 0, 100, dtype=jnp.int32)
    token_ids2 = jax.random.randint(k_t2, (B, S), 0, 100, dtype=jnp.int32)
    masks = jnp.ones((B, S), jnp.int32)
    masks2 = jnp.ones((B, S), jnp.int32)

    out = bert_regression_forward(token_ids, masks, token_ids2, masks2, params)
    out = jax.block_until_ready(out)

    # Sanity: compare against a pure-JAX reference of the same math.
    h1 = bert_standin(token_ids, masks, params["emb"])
    h2 = bert_standin(token_ids2, masks2, params["emb"])
    expected = _reference(h1, h2, params)

    assert out.shape == (B, 1)
    assert jnp.allclose(out, expected, atol=1e-3, rtol=1e-3), (
        f"mismatch: {out} vs {expected}")

    print("KERNEL_OK")
</pallas_src>

<mosaic_0001>
module attributes {stable_mosaic.version = 11 : i64} {
  func.func @_regression_kernel(%arg0: i32, %arg1: memref<8x8x768xf32, #tpu.memory_space<vmem>>, %arg2: memref<8x8x768xf32, #tpu.memory_space<vmem>>, %arg3: memref<768x1536xbf16, #tpu.memory_space<vmem>>, %arg4: memref<1x1536xf32, #tpu.memory_space<vmem>>, %arg5: memref<1x768xf32, #tpu.memory_space<vmem>>, %arg6: memref<1x1xf32, #tpu.memory_space<vmem>>, %arg7: memref<8x128xf32, #tpu.memory_space<vmem>>, %arg8: memref<8x768xf32, #tpu.memory_space<vmem>>) attributes {dimension_semantics = [#tpu.dimension_semantics<arbitrary>], iteration_bounds = array<i64: 1>, scalar_prefetch = 0 : i64, scratch_operands = 1 : i64, tpu.core_type = #tpu.core_type<tc>, window_params = [{transform_indices = @transform_0, window_bounds = array<i64: 8, 8, 768>}, {transform_indices = @transform_1, window_bounds = array<i64: 8, 8, 768>}, {pipeline_mode = #tpu.pipeline_mode<synchronous>, transform_indices = @transform_2, window_bounds = array<i64: 768, 1536>}, {pipeline_mode = #tpu.pipeline_mode<synchronous>, transform_indices = @transform_3, window_bounds = array<i64: 1, 1536>}, {pipeline_mode = #tpu.pipeline_mode<synchronous>, transform_indices = @transform_4, window_bounds = array<i64: 1, 768>}, {pipeline_mode = #tpu.pipeline_mode<synchronous>, transform_indices = @transform_5, window_bounds = array<i64: 1, 1>}, {pipeline_mode = #tpu.pipeline_mode<synchronous>, transform_indices = @transform_6, window_bounds = array<i64: 8, 128>}]} {
    %c0_i32 = arith.constant 0 : i32
    %0 = arith.cmpi eq, %arg0, %c0_i32 : i32
    %1 = arith.extui %0 : i1 to i32
    %c0_i32_0 = arith.constant 0 : i32
    %2 = arith.cmpi ne, %1, %c0_i32_0 : i32
    scf.if %2 {
      %cst_13 = arith.constant 0.000000e+00 : f32
      %14 = vector.broadcast %cst_13 : f32 to vector<8x768xf32>
      %c0_14 = arith.constant 0 : index
      %c0_15 = arith.constant 0 : index
      %15 = vector.load %arg8[%c0_14, %c0_15] : memref<8x768xf32, #tpu.memory_space<vmem>>, vector<8x768xf32>
      tpu.vector_store %arg8[%c0_14, %c0_15], %14 {strides = array<i32>} : memref<8x768xf32, #tpu.memory_space<vmem>>, vector<8x768xf32>,
    } else {
    }
    %c0 = arith.constant 0 : index
    %c0_1 = arith.constant 0 : index
    %3 = vector.load %arg8[%c0, %c0_1] : memref<8x768xf32, #tpu.memory_space<vmem>>, vector<8x768xf32>
    %c0_2 = arith.constant 0 : index
    %c0_3 = arith.constant 0 : index
    %c0_4 = arith.constant 0 : index
    %4 = vector.load %arg1[%c0_2, %c0_3, %c0_4] : memref<8x8x768xf32, #tpu.memory_space<vmem>>, vector<8x8x768xf32>
    %cst = arith.constant dense<0.000000e+00> : vector<8x768xf32>
    %5 = vector.multi_reduction <add>, %4, %cst [1] : vector<8x8x768xf32> to vector<8x768xf32>
    %c0_5 = arith.constant 0 : index
    %c0_6 = arith.constant 0 : index
    %c0_7 = arith.constant 0 : index
    %6 = vector.load %arg2[%c0_5, %c0_6, %c0_7] : memref<8x8x768xf32, #tpu.memory_space<vmem>>, vector<8x8x768xf32>
    %cst_8 = arith.constant dense<0.000000e+00> : vector<8x768xf32>
    %7 = vector.multi_reduction <add>, %6, %cst_8 [1] : vector<8x8x768xf32> to vector<8x768xf32>
    %8 = arith.addf %5, %7 : vector<8x768xf32>
    %9 = arith.addf %3, %8 : vector<8x768xf32>
    %c0_9 = arith.constant 0 : index
    %c0_10 = arith.constant 0 : index
    %10 = vector.load %arg8[%c0_9, %c0_10] : memref<8x768xf32, #tpu.memory_space<vmem>>, vector<8x768xf32>
    tpu.vector_store %arg8[%c0_9, %c0_10], %9 {strides = array<i32>} : memref<8x768xf32, #tpu.memory_space<vmem>>, vector<8x768xf32>,
    %c0_i32_11 = arith.constant 0 : i32
    %11 = arith.cmpi eq, %arg0, %c0_i32_11 : i32
    %12 = arith.extui %11 : i1 to i32
    %c0_i32_12 = arith.constant 0 : i32
    %13 = arith.cmpi ne, %12, %c0_i32_12 : i32
    scf.if %13 {
      %c0_13 = arith.constant 0 : index
      %c0_14 = arith.constant 0 : index
      %14 = vector.load %arg8[%c0_13, %c0_14] : memref<8x768xf32, #tpu.memory_space<vmem>>, vector<8x768xf32>
      %cst_15 = arith.constant 6.250000e-02 : f32
      %15 = vector.broadcast %cst_15 : f32 to vector<8x768xf32>
      %16 = arith.mulf %14, %15 : vector<8x768xf32>
      %c0_16 = arith.constant 0 : index
      %c0_17 = arith.constant 0 : index
      %17 = vector.load %arg3[%c0_16, %c0_17] : memref<768x1536xbf16, #tpu.memory_space<vmem>>, vector<768x1536xbf16>
      %c0_18 = arith.constant 0 : index
      %c0_19 = arith.constant 0 : index
      %18 = vector.load %arg4[%c0_18, %c0_19] : memref<1x1536xf32, #tpu.memory_space<vmem>>, vector<1x1536xf32>
      %19 = vector.shape_cast %18 : vector<1x1536xf32> to vector<1x1536xf32>
      %20 = vector.broadcast %19 : vector<1x1536xf32> to vector<8x1536xf32>
      %21 = arith.truncf %16 : vector<8x768xf32> to vector<8x768xbf16>
      %cst_20 = arith.constant dense<0.000000e+00> : vector<8x1536xf32>
      %22 = tpu.matmul %21, %17, %cst_20 {dimension_numbers = #tpu.dot_dimension_numbers<[1], [0], [0], [1], [0, 0, 1, 1], [], []>} : vector<8x768xbf16>, vector<768x1536xbf16>, vector<8x1536xf32> -> vector<8x1536xf32>
      %23 = arith.addf %22, %20 : vector<8x1536xf32>
      %24 = vector.extract_strided_slice %23 {offsets = [0, 0], sizes = [8, 768], strides = [1, 1]} : vector<8x1536xf32> to vector<8x768xf32>
      %cst_21 = arith.constant 0.000000e+00 : f32
      %25 = vector.broadcast %cst_21 : f32 to vector<8x768xf32>
      %26 = arith.maximumf %24, %25 : vector<8x768xf32>
      %27 = vector.extract_strided_slice %23 {offsets = [0, 768], sizes = [8, 768], strides = [1, 1]} : vector<8x1536xf32> to vector<8x768xf32>
      %28 = arith.negf %27 : vector<8x768xf32>
      %29 = math.exp %28 : vector<8x768xf32>
      %cst_22 = arith.constant 1.000000e+00 : f32
      %30 = vector.broadcast %cst_22 : f32 to vector<8x768xf32>
      %31 = arith.addf %30, %29 : vector<8x768xf32>
      %32 = arith.divf %30, %31 : vector<8x768xf32>
      %33 = arith.subf %26, %16 : vector<8x768xf32>
      %34 = arith.mulf %32, %33 : vector<8x768xf32>
      %35 = arith.addf %16, %34 : vector<8x768xf32>
      %36 = arith.truncf %35 : vector<8x768xf32> to vector<8x768xbf16>
      %cst_23 = arith.constant dense<0.000000e+00> : vector<8x1536xf32>
      %37 = tpu.matmul %36, %17, %cst_23 {dimension_numbers = #tpu.dot_dimension_numbers<[1], [0], [0], [1], [0, 0, 1, 1], [], []>} : vector<8x768xbf16>, vector<768x1536xbf16>, vector<8x1536xf32> -> vector<8x1536xf32>
      %38 = arith.addf %37, %20 : vector<8x1536xf32>
      %39 = vector.extract_strided_slice %38 {offsets = [0, 0], sizes = [8, 768], strides = [1, 1]} : vector<8x1536xf32> to vector<8x768xf32>
      %cst_24 = arith.constant 0.000000e+00 : f32
      %40 = vector.broadcast %cst_24 : f32 to vector<8x768xf32>
      %41 = arith.maximumf %39, %40 : vector<8x768xf32>
      %42 = vector.extract_strided_slice %38 {offsets = [0, 768], sizes = [8, 768], strides = [1, 1]} : vector<8x1536xf32> to vector<8x768xf32>
      %43 = arith.negf %42 : vector<8x768xf32>
      %44 = math.exp %43 : vector<8x768xf32>
      %cst_25 = arith.constant 1.000000e+00 : f32
      %45 = vector.broadcast %cst_25 : f32 to vector<8x768xf32>
      %46 = arith.addf %45, %44 : vector<8x768xf32>
      %47 = arith.divf %45, %46 : vector<8x768xf32>
      %48 = arith.subf %41, %35 : vector<8x768xf32>
      %49 = arith.mulf %47, %48 : vector<8x768xf32>
      %50 = arith.addf %35, %49 : vector<8x768xf32>
      %51 = arith.truncf %50 : vector<8x768xf32> to vector<8x768xbf16>
      %cst_26 = arith.constant dense<0.000000e+00> : vector<8x1536xf32>
      %52 = tpu.matmul %51, %17, %cst_26 {dimension_numbers = #tpu.dot_dimension_numbers<[1], [0], [0], [1], [0, 0, 1, 1], [], []>} : vector<8x768xbf16>, vector<768x1536xbf16>, vector<8x1536xf32> -> vector<8x1536xf32>
      %53 = arith.addf %52, %20 : vector<8x1536xf32>
      %54 = vector.extract_strided_slice %53 {offsets = [0, 0], sizes = [8, 768], strides = [1, 1]} : vector<8x1536xf32> to vector<8x768xf32>
      %cst_27 = arith.constant 0.000000e+00 : f32
      %55 = vector.broadcast %cst_27 : f32 to vector<8x768xf32>
      %56 = arith.maximumf %54, %55 : vector<8x768xf32>
      %57 = vector.extract_strided_slice %53 {offsets = [0, 768], sizes = [8, 768], strides = [1, 1]} : vector<8x1536xf32> to vector<8x768xf32>
      %58 = arith.negf %57 : vector<8x768xf32>
      %59 = math.exp %58 : vector<8x768xf32>
      %cst_28 = arith.constant 1.000000e+00 : f32
      %60 = vector.broadcast %cst_28 : f32 to vector<8x768xf32>
      %61 = arith.addf %60, %59 : vector<8x768xf32>
      %62 = arith.divf %60, %61 : vector<8x768xf32>
      %63 = arith.subf %56, %50 : vector<8x768xf32>
      %64 = arith.mulf %62, %63 : vector<8x768xf32>
      %65 = arith.addf %50, %64 : vector<8x768xf32>
      %66 = arith.truncf %65 : vector<8x768xf32> to vector<8x768xbf16>
      %cst_29 = arith.constant dense<0.000000e+00> : vector<8x1536xf32>
      %67 = tpu.matmul %66, %17, %cst_29 {dimension_numbers = #tpu.dot_dimension_numbers<[1], [0], [0], [1], [0, 0, 1, 1], [], []>} : vector<8x768xbf16>, vector<768x1536xbf16>, vector<8x1536xf32> -> vector<8x1536xf32>
      %68 = arith.addf %67, %20 : vector<8x1536xf32>
      %69 = vector.extract_strided_slice %68 {offsets = [0, 0], sizes = [8, 768], strides = [1, 1]} : vector<8x1536xf32> to vector<8x768xf32>
      %cst_30 = arith.constant 0.000000e+00 : f32
      %70 = vector.broadcast %cst_30 : f32 to vector<8x768xf32>
      %71 = arith.maximumf %69, %70 : vector<8x768xf32>
      %72 = vector.extract_strided_slice %68 {offsets = [0, 768], sizes = [8, 768], strides = [1, 1]} : vector<8x1536xf32> to vector<8x768xf32>
      %73 = arith.negf %72 : vector<8x768xf32>
      %74 = math.exp %73 : vector<8x768xf32>
      %cst_31 = arith.constant 1.000000e+00 : f32
      %75 = vector.broadcast %cst_31 : f32 to vector<8x768xf32>
      %76 = arith.addf %75, %74 : vector<8x768xf32>
      %77 = arith.divf %75, %76 : vector<8x768xf32>
      %78 = arith.subf %71, %65 : vector<8x768xf32>
      %79 = arith.mulf %77, %78 : vector<8x768xf32>
      %80 = arith.addf %65, %79 : vector<8x768xf32>
      %c0_32 = arith.constant 0 : index
      %c0_33 = arith.constant 0 : index
      %81 = vector.load %arg5[%c0_32, %c0_33] : memref<1x768xf32, #tpu.memory_space<vmem>>, vector<1x768xf32>
      %82 = vector.broadcast %81 : vector<1x768xf32> to vector<8x768xf32>
      %83 = arith.mulf %80, %82 : vector<8x768xf32>
      %cst_34 = arith.constant dense<0.000000e+00> : vector<8xf32>
      %84 = vector.multi_reduction <add>, %83, %cst_34 [1] : vector<8x768xf32> to vector<8xf32>
      %85 = vector.shape_cast %84 : vector<8xf32> to vector<8x1xf32>
      %c0_35 = arith.constant 0 : index
      %c0_36 = arith.constant 0 : index
      %86 = vector.load %arg6[%c0_35, %c0_36] : memref<1x1xf32, #tpu.memory_space<vmem>>, vector<1x1xf32>
      %87 = vector.broadcast %86 : vector<1x1xf32> to vector<8x1xf32>
      %88 = arith.addf %85, %87 : vector<8x1xf32>
      %89 = vector.shape_cast %88 : vector<8x1xf32> to vector<8x1xf32>
      %90 = vector.broadcast %89 : vector<8x1xf32> to vector<8x128xf32>
      %c0_37 = arith.constant 0 : index
      %c0_38 = arith.constant 0 : index
      %91 = vector.load %arg7[%c0_37, %c0_38] : memref<8x128xf32, #tpu.memory_space<vmem>>, vector<8x128xf32>
      tpu.vector_store %arg7[%c0_37, %c0_38], %90 {strides = array<i32>} : memref<8x128xf32, #tpu.memory_space<vmem>>, vector<8x128xf32>,
    } else {
    }
    return
  }
  func.func @transform_0(%arg0: i32) -> (i32, i32, i32) {
    %c0_i32 = arith.constant 0 : i32
    %c0_i32_0 = arith.constant 0 : i32
    %c0_i32_1 = arith.constant 0 : i32
    return %c0_i32, %arg0, %c0_i32_0 : i32, i32, i32
  }
  func.func @transform_1(%arg0: i32) -> (i32, i32, i32) {
    %c0_i32 = arith.constant 0 : i32
    %c0_i32_0 = arith.constant 0 : i32
    %c0_i32_1 = arith.constant 0 : i32
    return %c0_i32, %arg0, %c0_i32_0 : i32, i32, i32
  }
  func.func @transform_2(%arg0: i32) -> (i32, i32) {
    %c0_i32 = arith.constant 0 : i32
    %c0_i32_0 = arith.constant 0 : i32
    %c0_i32_1 = arith.constant 0 : i32
    return %c0_i32, %c0_i32_0 : i32, i32
  }
  func.func @transform_3(%arg0: i32) -> (i32, i32) {
    %c0_i32 = arith.constant 0 : i32
    %c0_i32_0 = arith.constant 0 : i32
    %c0_i32_1 = arith.constant 0 : i32
    return %c0_i32, %c0_i32_0 : i32, i32
  }
  func.func @transform_4(%arg0: i32) -> (i32, i32) {
    %c0_i32 = arith.constant 0 : i32
    %c0_i32_0 = arith.constant 0 : i32
    %c0_i32_1 = arith.constant 0 : i32
    return %c0_i32, %c0_i32_0 : i32, i32
  }
  func.func @transform_5(%arg0: i32) -> (i32, i32) {
    %c0_i32 = arith.constant 0 : i32
    %c0_i32_0 = arith.constant 0 : i32
    %c0_i32_1 = arith.constant 0 : i32
    return %c0_i32, %c0_i32_0 : i32, i32
  }
  func.func @transform_6(%arg0: i32) -> (i32, i32) {
    %c0_i32 = arith.constant 0 : i32
    %c0_i32_0 = arith.constant 0 : i32
    %c0_i32_1 = arith.constant 0 : i32
    return %c0_i32, %c0_i32_0 : i32, i32
  }
}

</mosaic_0001>

<llo_original>
// kernel: tpu_custom_call.1
$region0: #{tpu_custom_call.1}
  #allocation0 [shape = 'u32[]', space=smem, size = 0x4, offset = 0x4, fixed_abs, tag = 'smem constant byte address 0x4 - core index']
  #allocation1 [shape = 'u32[72,128]{1,0:T(1,128)}', space=vmem, size = 0x9000, scoped, tag = 'internal scratch']
  #allocation2 [shape = 'f32[8,768]{1,0:T(8,128)}', space=vmem, size = 0x6000, scoped, tag = 'scratch operand']
  #allocation3 [shape = 'f32[1,1]{1,0:T(1,128)S(1)}', space=vmem, size = 0x200, scoped, tag = 'scoped memory for tpu_custom_call.1']
  %s0 = inlined_call_operand.hbm [shape: f32[8,8,768], index: 0, kind: input, shape index: {}]
  %s1 = inlined_call_operand.hbm [shape: f32[8,8,768], index: 1, kind: input, shape index: {}]
  %s2 = inlined_call_operand.hbm [shape: bf16[768,1536], index: 2, kind: input, shape index: {}]
  %s3 = inlined_call_operand.hbm [shape: f32[1,1536], index: 3, kind: input, shape index: {}]
  %s4 = inlined_call_operand.hbm [shape: f32[1,768], index: 4, kind: input, shape index: {}]
  %s5 = inlined_call_operand.<no memory space> [shape: f32[1,1], index: 5, kind: input, shape index: {}]
  %s6 = inlined_call_operand.hbm [shape: f32[8,128], index: 6, kind: output, shape index: {}]
  %s7 = sld [smem:[#allocation0]]
  $region62: #{tpu_custom_call.1} parent=0
    _
  %s9 = ssub.s32 1, %s7
  %s10 = scalar_select 0, %s9, %s7
  %v11 = vstv %s5
  %12 = vst [vmem:[#allocation3] sm:$0x1] %v11
  $region1: #{tpu_custom_call.1} parent=0
    #allocation4 [shape = 'u8[196608]{0}', space=vmem, size = 0x30000, scoped, tag = 'input window, operand 0, single buffered']
    #allocation5 [shape = 's32[1]{0}', space=sflag, size = 0x4, scoped, tag = 'scoped memory for tpu_custom_call.1']
    #allocation6 [shape = 's32[1]{0}', space=sflag, size = 0x4, scoped, tag = 'scoped memory for tpu_custom_call.1']
    #allocation7 [shape = 'u8[196608]{0}', space=vmem, size = 0x30000, scoped, tag = 'input window, operand 1, single buffered']
    #allocation8 [shape = 's32[1]{0}', space=sflag, size = 0x4, scoped, tag = 'scoped memory for tpu_custom_call.1']
    #allocation9 [shape = 'u8[2359296]{0}', space=vmem, size = 0x240000, scoped, tag = 'input window, operand 2, single buffered']
    #allocation10 [shape = 'u8[6144]{0}', space=vmem, size = 0x1800, scoped, tag = 'input window, operand 3, single buffered']
    #allocation11 [shape = 's32[1]{0}', space=sflag, size = 0x4, scoped, tag = 'scoped memory for tpu_custom_call.1']
    #allocation12 [shape = 'u8[3072]{0}', space=vmem, size = 0xc00, scoped, tag = 'input window, operand 4, single buffered']
    #allocation13 [shape = 'u8[4096]{0}', space=vmem, size = 0x1000, scoped, tag = 'output window, operand 0, single buffered']
    %13 = vsyncpa [#allocation5], 0
    %14 = vsyncpa [#allocation8], 0
    %15 = vsyncpa [#allocation11], 0
    %16 = vsyncpa [#allocation6], 0
    // Predicated region
    $region2: #{tpu_custom_call.1} parent=1 // pred_check
      _
    $region3: #{tpu_custom_call.1} parent=1 // pred_check_branch
      %18 = sbr.rel (0) target = $region5
    $region4: #{tpu_custom_call.1} parent=1 // pred_region
      %20 = vsyncadd [#allocation5], 0
      %s21 = sshll.u32 %s0, 4
      %s22 = int_to_ptr.hbm [resolvable:$true] %s21
      %s23 = sshll.u32 [#allocation4], 4
      %s24 = int_to_ptr.vmem [resolvable:$true] %s23
      %29 = dma.hbm_to_vmem [thread:$0]  %s22, 6144, %s24, [#allocation5], 768, 768, 48
    $region5: #{tpu_custom_call.1} parent=1 // pred_fallthru
      _
    // Predicated region
    $region6: #{tpu_custom_call.1} parent=1 // pred_check
      _
    $region7: #{tpu_custom_call.1} parent=1 // pred_check_branch
      %31 = sbr.rel (0) target = $region9
    $region8: #{tpu_custom_call.1} parent=1 // pred_region
      %33 = vsyncadd [#allocation8], 0
      %s34 = sshll.u32 %s1, 4
      %s35 = int_to_ptr.hbm [resolvable:$true] %s34
      %s36 = sshll.u32 [#allocation7], 4
      %s37 = int_to_ptr.vmem [resolvable:$true] %s36
      %42 = dma.hbm_to_vmem [thread:$0]  %s35, 6144, %s37, [#allocation8], 768, 768, 48
    $region9: #{tpu_custom_call.1} parent=1 // pred_fallthru
      _
    // Predicated region
    $region10: #{tpu_custom_call.1} parent=1 // pred_check
      _
    $region11: #{tpu_custom_call.1} parent=1 // pred_check_branch
      %44 = sbr.rel (0) target = $region13
    $region12: #{tpu_custom_call.1} parent=1 // pred_region
      %46 = vsyncadd [#allocation8], 0
      %s47 = sshll.u32 %s2, 4
      %s48 = int_to_ptr.hbm [resolvable:$true] %s47
      %s49 = sshll.u32 [#allocation9], 4
      %s50 = int_to_ptr.vmem [resolvable:$true] %s49
      %55 = dma.hbm_to_vmem [thread:$0]  %s48, 73728, %s50, [#allocation8], 768, 768, 48
    $region13: #{tpu_custom_call.1} parent=1 // pred_fallthru
      _
    // Predicated region
    $region14: #{tpu_custom_call.1} parent=1 // pred_check
      _
    $region15: #{tpu_custom_call.1} parent=1 // pred_check_branch
      %57 = sbr.rel (0) target = $region17
    $region16: #{tpu_custom_call.1} parent=1 // pred_region
      %59 = vsyncadd [#allocation11], 0
      %s61 = sshll.u32 %s3, 4
      %s62 = int_to_ptr.hbm [resolvable:$true] %s61
      %s63 = sshll.u32 [#allocation10], 4
      %s64 = int_to_ptr.vmem [resolvable:$true] %s63
      %66 = dma.hbm_to_vmem [thread:$0]  %s62, 192, %s64, [#allocation11]
    $region17: #{tpu_custom_call.1} parent=1 // pred_fallthru
      _
    // Predicated region
    $region18: #{tpu_custom_call.1} parent=1 // pred_check
      _
    $region19: #{tpu_custom_call.1} parent=1 // pred_check_branch
      %68 = sbr.rel (0) target = $region21
    $region20: #{tpu_custom_call.1} parent=1 // pred_region
      %70 = vsyncadd [#allocation11], 0
      %s72 = sshll.u32 %s4, 4
      %s73 = int_to_ptr.hbm [resolvable:$true] %s72
      %s74 = sshll.u32 [#allocation12], 4
      %s75 = int_to_ptr.vmem [resolvable:$true] %s74
      %77 = dma.hbm_to_vmem [thread:$0]  %s73, 96, %s75, [#allocation11]
    $region21: #{tpu_custom_call.1} parent=1 // pred_fallthru
      _
    // Predicated region
    $region22: #{tpu_custom_call.1} parent=1 // pred_check
      _
    $region23: #{tpu_custom_call.1} parent=1 // pred_check_branch
      %79 = sbr.rel (0) target = $region25
    $region24: #{tpu_custom_call.1} parent=1 // pred_region
      _
    $region25: #{tpu_custom_call.1} parent=1 // pred_fallthru
      _
    // Predicated region
    $region26: #{tpu_custom_call.1} parent=1 // pred_check
      _
    $region27: #{tpu_custom_call.1} parent=1 // pred_check_branch
      %81 = sbr.rel (0) target = $region29
    $region28: #{tpu_custom_call.1} parent=1 // pred_region
      %83 = dma.done [#allocation5], 6144
    $region29: #{tpu_custom_call.1} parent=1 // pred_fallthru
      _
    // Predicated region
    $region30: #{tpu_custom_call.1} parent=1 // pred_check
      _
    $region31: #{tpu_custom_call.1} parent=1 // pred_check_branch
      %85 = sbr.rel (0) target = $region33
    $region32: #{tpu_custom_call.1} parent=1 // pred_region
      %87 = dma.done [#allocation8], 6144
    $region33: #{tpu_custom_call.1} parent=1 // pred_fallthru
      _
    // Predicated region
    $region34: #{tpu_custom_call.1} parent=1 // pred_check
      _
    $region35: #{tpu_custom_call.1} parent=1 // pred_check_branch
      %89 = sbr.rel (0) target = $region37
    $region36: #{tpu_custom_call.1} parent=1 // pred_region
      %91 = dma.done [#allocation8], 73728
    $region37: #{tpu_custom_call.1} parent=1 // pred_fallthru
      _
    // Predicated region
    $region38: #{tpu_custom_call.1} parent=1 // pred_check
      _
    $region39: #{tpu_custom_call.1} parent=1 // pred_check_branch
      %93 = sbr.rel (0) target = $region41
    $region40: #{tpu_custom_call.1} parent=1 // pred_region
      %95 = dma.done [#allocation11], 192
    $region41: #{tpu_custom_call.1} parent=1 // pred_fallthru
      _
    // Predicated region
    $region42: #{tpu_custom_call.1} parent=1 // pred_check
      _
    $region43: #{tpu_custom_call.1} parent=1 // pred_check_branch
      %97 = sbr.rel (0) target = $region45
    $region44: #{tpu_custom_call.1} parent=1 // pred_region
      %99 = dma.done [#allocation11], 96
    $region45: #{tpu_custom_call.1} parent=1 // pred_fallthru
      _
    %p100 = scmp.eq.s32.totalorder 0, 0
    // Predicated region
    $region46: #{tpu_custom_call.1} parent=1 // pred_check
      %p101 = pneg %p100
    $region47: #{tpu_custom_call.1} parent=1 // pred_check_branch
      %103 = sbr.rel (%p101) target = $region49
    $region48: #{tpu_custom_call.1} parent=1 // pred_region
      %104 = vst [vmem:[#allocation2] sm:$0xff] 0.0
      %105 = vst [vmem:[#allocation2 + $0x8] sm:$0xff] 0.0
      %106 = vst [vmem:[#allocation2 + $0x10] sm:$0xff] 0.0
      %107 = vst [vmem:[#allocation2 + $0x18] sm:$0xff] 0.0
      %108 = vst [vmem:[#allocation2 + $0x20] sm:$0xff] 0.0
      %109 = vst [vmem:[#allocation2 + $0x28] sm:$0xff] 0.0
    $region49: #{tpu_custom_call.1} parent=1 // pred_fallthru
      _
    %v110 = vld [vmem:[#allocation2] sm:$0xff]
    %v111 = vld [vmem:[#allocation2 + $0x8] sm:$0xff]
    %v112 = vld [vmem:[#allocation2 + $0x10] sm:$0xff]
    %v113 = vld [vmem:[#allocation2 + $0x18] sm:$0xff]
    %v114 = vld [vmem:[#allocation2 + $0x20] sm:$0xff]
    %v115 = vld [vmem:[#allocation2 + $0x28] sm:$0xff]
    %v116 = vld [vmem:[#allocation4] sm:$0xff]
    %v117 = vld [vmem:[#allocation4 + $0x8] sm:$0xff]
    %v118 = vld [vmem:[#allocation4 + $0x10] sm:$0xff]
    %v119 = vld [vmem:[#allocation4 + $0x18] sm:$0xff]
    %v120 = vld [vmem:[#allocation4 + $0x20] sm:$0xff]
    %v121 = vld [vmem:[#allocation4 + $0x28] sm:$0xff]
    %v122 = vld [vmem:[#allocation4 + $0x30] sm:$0xff]
    %v123 = vld [vmem:[#allocation4 + $0x38] sm:$0xff]
    %v124 = vld [vmem:[#allocation4 + $0x40] sm:$0xff]
    %v125 = vld [vmem:[#allocation4 + $0x48] sm:$0xff]
    %v126 = vld [vmem:[#allocation4 + $0x50] sm:$0xff]
    %v127 = vld [vmem:[#allocation4 + $0x58] sm:$0xff]
    %v128 = vld [vmem:[#allocation4 + $0x60] sm:$0xff]
    %v129 = vld [vmem:[#allocation4 + $0x68] sm:$0xff]
    %v130 = vld [vmem:[#allocation4 + $0x70] sm:$0xff]
    %v131 = vld [vmem:[#allocation4 + $0x78] sm:$0xff]
    %v132 = vld [vmem:[#allocation4 + $0x80] sm:$0xff]
    %v133 = vld [vmem:[#allocation4 + $0x88] sm:$0xff]
    %v134 = vld [vmem:[#allocation4 + $0x90] sm:$0xff]
    %v135 = vld [vmem:[#allocation4 + $0x98] sm:$0xff]
    %v136 = vld [vmem:[#allocation4 + $0xa0] sm:$0xff]
    %v137 = vld [vmem:[#allocation4 + $0xa8] sm:$0xff]
    %v138 = vld [vmem:[#allocation4 + $0xb0] sm:$0xff]
    %v139 = vld [vmem:[#allocation4 + $0xb8] sm:$0xff]
    %v140 = vld [vmem:[#allocation4 + $0xc0] sm:$0xff]
    %v141 = vld [vmem:[#allocation4 + $0xc8] sm:$0xff]
    %v142 = vld [vmem:[#allocation4 + $0xd0] sm:$0xff]
    %v143 = vld [vmem:[#allocation4 + $0xd8] sm:$0xff]
    %v144 = vld [vmem:[#allocation4 + $0xe0] sm:$0xff]
    %v145 = vld [vmem:[#allocation4 + $0xe8] sm:$0xff]
    %v146 = vld [vmem:[#allocation4 + $0xf0] sm:$0xff]
    %v147 = vld [vmem:[#allocation4 + $0xf8] sm:$0xff]
    %v148 = vld [vmem:[#allocation4 + $0x100] sm:$0xff]
    %v149 = vld [vmem:[#allocation4 + $0x108] sm:$0xff]
    %v150 = vld [vmem:[#allocation4 + $0x110] sm:$0xff]
    %v151 = vld [vmem:[#allocation4 + $0x118] sm:$0xff]
    %v152 = vld [vmem:[#allocation4 + $0x120] sm:$0xff]
    %v153 = vld [vmem:[#allocation4 + $0x128] sm:$0xff]
    %v154 = vld [vmem:[#allocation4 + $0x130] sm:$0xff]
    %v155 = vld [vmem:[#allocation4 + $0x138] sm:$0xff]
    %v156 = vld [vmem:[#allocation4 + $0x140] sm:$0xff]
    %v157 = vld [vmem:[#allocation4 + $0x148] sm:$0xff]
    %v158 = vld [vmem:[#allocation4 + $0x150] sm:$0xff]
    %v159 = vld [vmem:[#allocation4 + $0x158] sm:$0xff]
    %v160 = vld [vmem:[#allocation4 + $0x160] sm:$0xff]
    %v161 = vld [vmem:[#allocation4 + $0x168] sm:$0xff]
    %v162 = vld [vmem:[#allocation4 + $0x170] sm:$0xff]
    %v163 = vld [vmem:[#allocation4 + $0x178] sm:$0xff]
    %v164 = vrot.slane %v116, 4
    %v165 = vadd.f32 %v116, %v164
    %v166 = vrot.slane %v165, 2
    %v167 = vadd.f32 %v165, %v166
    %v168 = vrot.slane %v167, 1
    %v169 = vadd.f32 %v167, %v168
    %v170 = vrot.slane %v117, 4
    %v171 = vadd.f32 %v117, %v170
    %v172 = vrot.slane %v171, 2
    %v173 = vadd.f32 %v171, %v172
    %v174 = vrot.slane %v173, 1
    %v175 = vadd.f32 %v173, %v174
    %v176 = vrot.slane %v118, 4
    %v177 = vadd.f32 %v118, %v176
    %v178 = vrot.slane %v177, 2
    %v179 = vadd.f32 %v177, %v178
    %v180 = vrot.slane %v179, 1
    %v181 = vadd.f32 %v179, %v180
    %v182 = vrot.slane %v119, 4
    %v183 = vadd.f32 %v119, %v182
    %v184 = vrot.slane %v183, 2
    %v185 = vadd.f32 %v183, %v184
    %v186 = vrot.slane %v185, 1
    %v187 = vadd.f32 %v185, %v186
    %v188 = vrot.slane %v120, 4
    %v189 = vadd.f32 %v120, %v188
    %v190 = vrot.slane %v189, 2
    %v191 = vadd.f32 %v189, %v190
    %v192 = vrot.slane %v191, 1
    %v193 = vadd.f32 %v191, %v192
    %v194 = vrot.slane %v121, 4
    %v195 = vadd.f32 %v121, %v194
    %v196 = vrot.slane %v195, 2
    %v197 = vadd.f32 %v195, %v196
    %v198 = vrot.slane %v197, 1
    %v199 = vadd.f32 %v197, %v198
    %v200 = vrot.slane %v122, 4
    %v201 = vadd.f32 %v122, %v200
    %v202 = vrot.slane %v201, 2
    %v203 = vadd.f32 %v201, %v202
    %v204 = vrot.slane %v203, 1
    %v205 = vadd.f32 %v203, %v204
    %v206 = vrot.slane %v123, 4
    %v207 = vadd.f32 %v123, %v206
    %v208 = vrot.slane %v207, 2
    %v209 = vadd.f32 %v207, %v208
    %v210 = vrot.slane %v209, 1
    %v211 = vadd.f32 %v209, %v210
    %v212 = vrot.slane %v124, 4
    %v213 = vadd.f32 %v124, %v212
    %v214 = vrot.slane %v213, 2
    %v215 = vadd.f32 %v213, %v214
    %v216 = vrot.slane %v215, 1
    %v217 = vadd.f32 %v215, %v216
    %v218 = vrot.slane %v125, 4
    %v219 = vadd.f32 %v125, %v218
    %v220 = vrot.slane %v219, 2
    %v221 = vadd.f32 %v219, %v220
    %v222 = vrot.slane %v221, 1
    %v223 = vadd.f32 %v221, %v222
    %v224 = vrot.slane %v126, 4
    %v225 = vadd.f32 %v126, %v224
    %v226 = vrot.slane %v225, 2
    %v227 = vadd.f32 %v225, %v226
    %v228 = vrot.slane %v227, 1
    %v229 = vadd.f32 %v227, %v228
    %v230 = vrot.slane %v127, 4
    %v231 = vadd.f32 %v127, %v230
    %v232 = vrot.slane %v231, 2
    %v233 = vadd.f32 %v231, %v232
    %v234 = vrot.slane %v233, 1
    %v235 = vadd.f32 %v233, %v234
    %v236 = vrot.slane %v128, 4
    %v237 = vadd.f32 %v128, %v236
    %v238 = vrot.slane %v237, 2
    %v239 = vadd.f32 %v237, %v238
    %v240 = vrot.slane %v239, 1
    %v241 = vadd.f32 %v239, %v240
    %v242 = vrot.slane %v129, 4
    %v243 = vadd.f32 %v129, %v242
    %v244 = vrot.slane %v243, 2
    %v245 = vadd.f32 %v243, %v244
    %v246 = vrot.slane %v245, 1
    %v247 = vadd.f32 %v245, %v246
    %v248 = vrot.slane %v130, 4
    %v249 = vadd.f32 %v130, %v248
    %v250 = vrot.slane %v249, 2
    %v251 = vadd.f32 %v249, %v250
    %v252 = vrot.slane %v251, 1
    %v253 = vadd.f32 %v251, %v252
    %v254 = vrot.slane %v131, 4
    %v255 = vadd.f32 %v131, %v254
    %v256 = vrot.slane %v255, 2
    %v257 = vadd.f32 %v255, %v256
    %v258 = vrot.slane %v257, 1
    %v259 = vadd.f32 %v257, %v258
    %v260 = vrot.slane %v132, 4
    %v261 = vadd.f32 %v132, %v260
    %v262 = vrot.slane %v261, 2
    %v263 = vadd.f32 %v261, %v262
    %v264 = vrot.slane %v263, 1
    %v265 = vadd.f32 %v263, %v264
    %v266 = vrot.slane %v133, 4
    %v267 = vadd.f32 %v133, %v266
    %v268 = vrot.slane %v267, 2
    %v269 = vadd.f32 %v267, %v268
    %v270 = vrot.slane %v269, 1
    %v271 = vadd.f32 %v269, %v270
    %v272 = vrot.slane %v134, 4
    %v273 = vadd.f32 %v134, %v272
    %v274 = vrot.slane %v273, 2
    %v275 = vadd.f32 %v273, %v274
    %v276 = vrot.slane %v275, 1
    %v277 = vadd.f32 %v275, %v276
    %v278 = vrot.slane %v135, 4
    %v279 = vadd.f32 %v135, %v278
    %v280 = vrot.slane %v279, 2
    %v281 = vadd.f32 %v279, %v280
    %v282 = vrot.slane %v281, 1
    %v283 = vadd.f32 %v281, %v282
    %v284 = vrot.slane %v136, 4
    %v285 = vadd.f32 %v136, %v284
    %v286 = vrot.slane %v285, 2
    %v287 = vadd.f32 %v285, %v286
    %v288 = vrot.slane %v287, 1
    %v289 = vadd.f32 %v287, %v288
    %v290 = vrot.slane %v137, 4
    %v291 = vadd.f32 %v137, %v290
    %v292 = vrot.slane %v291, 2
    %v293 = vadd.f32 %v291, %v292
    %v294 = vrot.slane %v293, 1
    %v295 = vadd.f32 %v293, %v294
    %v296 = vrot.slane %v138, 4
    %v297 = vadd.f32 %v138, %v296
    %v298 = vrot.slane %v297, 2
    %v299 = vadd.f32 %v297, %v298
    %v300 = vrot.slane %v299, 1
    %v301 = vadd.f32 %v299, %v300
    %v302 = vrot.slane %v139, 4
    %v303 = vadd.f32 %v139, %v302
    %v304 = vrot.slane %v303, 2
    %v305 = vadd.f32 %v303, %v304
    %v306 = vrot.slane %v305, 1
    %v307 = vadd.f32 %v305, %v306
    %v308 = vrot.slane %v140, 4
    %v309 = vadd.f32 %v140, %v308
    %v310 = vrot.slane %v309, 2
    %v311 = vadd.f32 %v309, %v310
    %v312 = vrot.slane %v311, 1
    %v313 = vadd.f32 %v311, %v312
    %v314 = vrot.slane %v141, 4
    %v315 = vadd.f32 %v141, %v314
    %v316 = vrot.slane %v315, 2
    %v317 = vadd.f32 %v315, %v316
    %v318 = vrot.slane %v317, 1
    %v319 = vadd.f32 %v317, %v318
    %v320 = vrot.slane %v142, 4
    %v321 = vadd.f32 %v142, %v320
    %v322 = vrot.slane %v321, 2
    %v323 = vadd.f32 %v321, %v322
    %v324 = vrot.slane %v323, 1
    %v325 = vadd.f32 %v323, %v324
    %v326 = vrot.slane %v143, 4
    %v327 = vadd.f32 %v143, %v326
    %v328 = vrot.slane %v327, 2
    %v329 = vadd.f32 %v327, %v328
    %v330 = vrot.slane %v329, 1
    %v331 = vadd.f32 %v329, %v330
    %v332 = vrot.slane %v144, 4
    %v333 = vadd.f32 %v144, %v332
    %v334 = vrot.slane %v333, 2
    %v335 = vadd.f32 %v333, %v334
    %v336 = vrot.slane %v335, 1
    %v337 = vadd.f32 %v335, %v336
    %v338 = vrot.slane %v145, 4
    %v339 = vadd.f32 %v145, %v338
    %v340 = vrot.slane %v339, 2
    %v341 = vadd.f32 %v339, %v340
    %v342 = vrot.slane %v341, 1
    %v343 = vadd.f32 %v341, %v342
    %v344 = vrot.slane %v146, 4
    %v345 = vadd.f32 %v146, %v344
    %v346 = vrot.slane %v345, 2
    %v347 = vadd.f32 %v345, %v346
    %v348 = vrot.slane %v347, 1
    %v349 = vadd.f32 %v347, %v348
    %v350 = vrot.slane %v147, 4
    %v351 = vadd.f32 %v147, %v350
    %v352 = vrot.slane %v351, 2
    %v353 = vadd.f32 %v351, %v352
    %v354 = vrot.slane %v353, 1
    %v355 = vadd.f32 %v353, %v354
    %v356 = vrot.slane %v148, 4
    %v357 = vadd.f32 %v148, %v356
    %v358 = vrot.slane %v357, 2
    %v359 = vadd.f32 %v357, %v358
    %v360 = vrot.slane %v359, 1
    %v361 = vadd.f32 %v359, %v360
    %v362 = vrot.slane %v149, 4
    %v363 = vadd.f32 %v149, %v362
    %v364 = vrot.slane %v363, 2
    %v365 = vadd.f32 %v363, %v364
    %v366 = vrot.slane %v365, 1
    %v367 = vadd.f32 %v365, %v366
    %v368 = vrot.slane %v150, 4
    %v369 = vadd.f32 %v150, %v368
    %v370 = vrot.slane %v369, 2
    %v371 = vadd.f32 %v369, %v370
    %v372 = vrot.slane %v371, 1
    %v373 = vadd.f32 %v371, %v372
    %v374 = vrot.slane %v151, 4
    %v375 = vadd.f32 %v151, %v374
    %v376 = vrot.slane %v375, 2
    %v377 = vadd.f32 %v375, %v376
    %v378 = vrot.slane %v377, 1
    %v379 = vadd.f32 %v377, %v378
    %v380 = vrot.slane %v152, 4
    %v381 = vadd.f32 %v152, %v380
    %v382 = vrot.slane %v381, 2
    %v383 = vadd.f32 %v381, %v382
    %v384 = vrot.slane %v383, 1
    %v385 = vadd.f32 %v383, %v384
    %v386 = vrot.slane %v153, 4
    %v387 = vadd.f32 %v153, %v386
    %v388 = vrot.slane %v387, 2
    %v389 = vadd.f32 %v387, %v388
    %v390 = vrot.slane %v389, 1
    %v391 = vadd.f32 %v389, %v390
    %v392 = vrot.slane %v154, 4
    %v393 = vadd.f32 %v154, %v392
    %v394 = vrot.slane %v393, 2
    %v395 = vadd.f32 %v393, %v394
    %v396 = vrot.slane %v395, 1
    %v397 = vadd.f32 %v395, %v396
    %v398 = vrot.slane %v155, 4
    %v399 = vadd.f32 %v155, %v398
    %v400 = vrot.slane %v399, 2
    %v401 = vadd.f32 %v399, %v400
    %v402 = vrot.slane %v401, 1
    %v403 = vadd.f32 %v401, %v402
    %v404 = vrot.slane %v156, 4
    %v405 = vadd.f32 %v156, %v404
    %v406 = vrot.slane %v405, 2
    %v407 = vadd.f32 %v405, %v406
    %v408 = vrot.slane %v407, 1
    %v409 = vadd.f32 %v407, %v408
    %v410 = vrot.slane %v157, 4
    %v411 = vadd.f32 %v157, %v410
    %v412 = vrot.slane %v411, 2
    %v413 = vadd.f32 %v411, %v412
    %v414 = vrot.slane %v413, 1
    %v415 = vadd.f32 %v413, %v414
    %v416 = vrot.slane %v158, 4
    %v417 = vadd.f32 %v158, %v416
    %v418 = vrot.slane %v417, 2
    %v419 = vadd.f32 %v417, %v418
    %v420 = vrot.slane %v419, 1
    %v421 = vadd.f32 %v419, %v420
    %v422 = vrot.slane %v159, 4
    %v423 = vadd.f32 %v159, %v422
    %v424 = vrot.slane %v423, 2
    %v425 = vadd.f32 %v423, %v424
    %v426 = vrot.slane %v425, 1
    %v427 = vadd.f32 %v425, %v426
    %v428 = vrot.slane %v160, 4
    %v429 = vadd.f32 %v160, %v428
    %v430 = vrot.slane %v429, 2
    %v431 = vadd.f32 %v429, %v430
    %v432 = vrot.slane %v431, 1
    %v433 = vadd.f32 %v431, %v432
    %v434 = vrot.slane %v161, 4
    %v435 = vadd.f32 %v161, %v434
    %v436 = vrot.slane %v435, 2
    %v437 = vadd.f32 %v435, %v436
    %v438 = vrot.slane %v437, 1
    %v439 = vadd.f32 %v437, %v438
    %v440 = vrot.slane %v162, 4
    %v441 = vadd.f32 %v162, %v440
    %v442 = vrot.slane %v441, 2
    %v443 = vadd.f32 %v441, %v442
    %v444 = vrot.slane %v443, 1
    %v445 = vadd.f32 %v443, %v444
    %v446 = vrot.slane %v163, 4
    %v447 = vadd.f32 %v163, %v446
    %v448 = vrot.slane %v447, 2
    %v449 = vadd.f32 %v447, %v448
    %v450 = vrot.slane %v449, 1
    %v451 = vadd.f32 %v449, %v450
    %v452 = vld [vmem:[#allocation7] sm:$0xff]
    %v453 = vld [vmem:[#allocation7 + $0x8] sm:$0xff]
    %v454 = vld [vmem:[#allocation7 + $0x10] sm:$0xff]
    %v455 = vld [vmem:[#allocation7 + $0x18] sm:$0xff]
    %v456 = vld [vmem:[#allocation7 + $0x20] sm:$0xff]
    %v457 = vld [vmem:[#allocation7 + $0x28] sm:$0xff]
    %v458 = vld [vmem:[#allocation7 + $0x30] sm:$0xff]
    %v459 = vld [vmem:[#allocation7 + $0x38] sm:$0xff]
    %v460 = vld [vmem:[#allocation7 + $0x40] sm:$0xff]
    %v461 = vld [vmem:[#allocation7 + $0x48] sm:$0xff]
    %v462 = vld [vmem:[#allocation7 + $0x50] sm:$0xff]
    %v463 = vld [vmem:[#allocation7 + $0x58] sm:$0xff]
    %v464 = vld [vmem:[#allocation7 + $0x60] sm:$0xff]
    %v465 = vld [vmem:[#allocation7 + $0x68] sm:$0xff]
    %v466 = vld [vmem:[#allocation7 + $0x70] sm:$0xff]
    %v467 = vld [vmem:[#allocation7 + $0x78] sm:$0xff]
    %v468 = vld [vmem:[#allocation7 + $0x80] sm:$0xff]
    %v469 = vld [vmem:[#allocation7 + $0x88] sm:$0xff]
    %v470 = vld [vmem:[#allocation7 + $0x90] sm:$0xff]
    %v471 = vld [vmem:[#allocation7 + $0x98] sm:$0xff]
    %v472 = vld [vmem:[#allocation7 + $0xa0] sm:$0xff]
    %v473 = vld [vmem:[#allocation7 + $0xa8] sm:$0xff]
    %v474 = vld [vmem:[#allocation7 + $0xb0] sm:$0xff]
    %v475 = vld [vmem:[#allocation7 + $0xb8] sm:$0xff]
    %v476 = vld [vmem:[#allocation7 + $0xc0] sm:$0xff]
    %v477 = vld [vmem:[#allocation7 + $0xc8] sm:$0xff]
    %v478 = vld [vmem:[#allocation7 + $0xd0] sm:$0xff]
    %v479 = vld [vmem:[#allocation7 + $0xd8] sm:$0xff]
    %v480 = vld [vmem:[#allocation7 + $0xe0] sm:$0xff]
    %v481 = vld [vmem:[#allocation7 + $0xe8] sm:$0xff]
    %v482 = vld [vmem:[#allocation7 + $0xf0] sm:$0xff]
    %v483 = vld [vmem:[#allocation7 + $0xf8] sm:$0xff]
    %v484 = vld [vmem:[#allocation7 + $0x100] sm:$0xff]
    %v485 = vld [vmem:[#allocation7 + $0x108] sm:$0xff]
    %v486 = vld [vmem:[#allocation7 + $0x110] sm:$0xff]
    %v487 = vld [vmem:[#allocation7 + $0x118] sm:$0xff]
    %v488 = vld [vmem:[#allocation7 + $0x120] sm:$0xff]
    %v489 = vld [vmem:[#allocation7 + $0x128] sm:$0xff]
    %v490 = vld [vmem:[#allocation7 + $0x130] sm:$0xff]
    %v491 = vld [vmem:[#allocation7 + $0x138] sm:$0xff]
    %v492 = vld [vmem:[#allocation7 + $0x140] sm:$0xff]
    %v493 = vld [vmem:[#allocation7 + $0x148] sm:$0xff]
    %v494 = vld [vmem:[#allocation7 + $0x150] sm:$0xff]
    %v495 = vld [vmem:[#allocation7 + $0x158] sm:$0xff]
    %v496 = vld [vmem:[#allocation7 + $0x160] sm:$0xff]
    %v497 = vld [vmem:[#allocation7 + $0x168] sm:$0xff]
    %v498 = vld [vmem:[#allocation7 + $0x170] sm:$0xff]
    %v499 = vld [vmem:[#allocation7 + $0x178] sm:$0xff]
    %v500 = vrot.slane %v452, 4
    %v501 = vadd.f32 %v452, %v500
    %v502 = vrot.slane %v501, 2
    %v503 = vadd.f32 %v501, %v502
    %v504 = vrot.slane %v503, 1
    %v505 = vadd.f32 %v503, %v504
    %v506 = vrot.slane %v453, 4
    %v507 = vadd.f32 %v453, %v506
    %v508 = vrot.slane %v507, 2
    %v509 = vadd.f32 %v507, %v508
    %v510 = vrot.slane %v509, 1
    %v511 = vadd.f32 %v509, %v510
    %v512 = vrot.slane %v454, 4
    %v513 = vadd.f32 %v454, %v512
    %v514 = vrot.slane %v513, 2
    %v515 = vadd.f32 %v513, %v514
    %v516 = vrot.slane %v515, 1
    %v517 = vadd.f32 %v515, %v516
    %v518 = vrot.slane %v455, 4
    %v519 = vadd.f32 %v455, %v518
    %v520 = vrot.slane %v519, 2
    %v521 = vadd.f32 %v519, %v520
    %v522 = vrot.slane %v521, 1
    %v523 = vadd.f32 %v521, %v522
    %v524 = vrot.slane %v456, 4
    %v525 = vadd.f32 %v456, %v524
    %v526 = vrot.slane %v525, 2
    %v527 = vadd.f32 %v525, %v526
    %v528 = vrot.slane %v527, 1
    %v529 = vadd.f32 %v527, %v528
    %v530 = vrot.slane %v457, 4
    %v531 = vadd.f32 %v457, %v530
    %v532 = vrot.slane %v531, 2
    %v533 = vadd.f32 %v531, %v532
    %v534 = vrot.slane %v533, 1
    %v535 = vadd.f32 %v533, %v534
    %v536 = vrot.slane %v458, 4
    %v537 = vadd.f32 %v458, %v536
    %v538 = vrot.slane %v537, 2
    %v539 = vadd.f32 %v537, %v538
    %v540 = vrot.slane %v539, 1
    %v541 = vadd.f32 %v539, %v540
    %v542 = vrot.slane %v459, 4
    %v543 = vadd.f32 %v459, %v542
    %v544 = vrot.slane %v543, 2
    %v545 = vadd.f32 %v543, %v544
    %v546 = vrot.slane %v545, 1
    %v547 = vadd.f32 %v545, %v546
    %v548 = vrot.slane %v460, 4
    %v549 = vadd.f32 %v460, %v548
    %v550 = vrot.slane %v549, 2
    %v551 = vadd.f32 %v549, %v550
    %v552 = vrot.slane %v551, 1
    %v553 = vadd.f32 %v551, %v552
    %v554 = vrot.slane %v461, 4
    %v555 = vadd.f32 %v461, %v554
    %v556 = vrot.slane %v555, 2
    %v557 = vadd.f32 %v555, %v556
    %v558 = vrot.slane %v557, 1
    %v559 = vadd.f32 %v557, %v558
    %v560 = vrot.slane %v462, 4
    %v561 = vadd.f32 %v462, %v560
    %v562 = vrot.slane %v561, 2
    %v563 = vadd.f32 %v561, %v562
    %v564 = vrot.slane %v563, 1
    %v565 = vadd.f32 %v563, %v564
    %v566 = vrot.slane %v463, 4
    %v567 = vadd.f32 %v463, %v566
    %v568 = vrot.slane %v567, 2
    %v569 = vadd.f32 %v567, %v568
    %v570 = vrot.slane %v569, 1
    %v571 = vadd.f32 %v569, %v570
    %v572 = vrot.slane %v464, 4
    %v573 = vadd.f32 %v464, %v572
    %v574 = vrot.slane %v573, 2
    %v575 = vadd.f32 %v573, %v574
    %v576 = vrot.slane %v575, 1
    %v577 = vadd.f32 %v575, %v576
    %v578 = vrot.slane %v465, 4
    %v579 = vadd.f32 %v465, %v578
    %v580 = vrot.slane %v579, 2
    %v581 = vadd.f32 %v579, %v580
    %v582 = vrot.slane %v581, 1
    %v583 = vadd.f32 %v581, %v582
    %v584 = vrot.slane %v466, 4
    %v585 = vadd.f32 %v466, %v584
    %v586 = vrot.slane %v585, 2
    %v587 = vadd.f32 %v585, %v586
    %v588 = vrot.slane %v587, 1
    %v589 = vadd.f32 %v587, %v588
    %v590 = vrot.slane %v467, 4
    %v591 = vadd.f32 %v467, %v590
    %v592 = vrot.slane %v591, 2
    %v593 = vadd.f32 %v591, %v592
    %v594 = vrot.slane %v593, 1
    %v595 = vadd.f32 %v593, %v594
    %v596 = vrot.slane %v468, 4
    %v597 = vadd.f32 %v468, %v596
    %v598 = vrot.slane %v597, 2
    %v599 = vadd.f32 %v597, %v598
    %v600 = vrot.slane %v599, 1
    %v601 = vadd.f32 %v599, %v600
    %v602 = vrot.slane %v469, 4
    %v603 = vadd.f32 %v469, %v602
    %v604 = vrot.slane %v603, 2
    %v605 = vadd.f32 %v603, %v604
    %v606 = vrot.slane %v605, 1
    %v607 = vadd.f32 %v605, %v606
    %v608 = vrot.slane %v470, 4
    %v609 = vadd.f32 %v470, %v608
    %v610 = vrot.slane %v609, 2
    %v611 = vadd.f32 %v609, %v610
    %v612 = vrot.slane %v611, 1
    %v613 = vadd.f32 %v611, %v612
    %v614 = vrot.slane %v471, 4
    %v615 = vadd.f32 %v471, %v614
    %v616 = vrot.slane %v615, 2
    %v617 = vadd.f32 %v615, %v616
    %v618 = vrot.slane %v617, 1
    %v619 = vadd.f32 %v617, %v618
    %v620 = vrot.slane %v472, 4
    %v621 = vadd.f32 %v472, %v620
    %v622 = vrot.slane %v621, 2
    %v623 = vadd.f32 %v621, %v622
    %v624 = vrot.slane %v623, 1
    %v625 = vadd.f32 %v623, %v624
    %v626 = vrot.slane %v473, 4
    %v627 = vadd.f32 %v473, %v626
    %v628 = vrot.slane %v627, 2
    %v629 = vadd.f32 %v627, %v628
    %v630 = vrot.slane %v629, 1
    %v631 = vadd.f32 %v629, %v630
    %v632 = vrot.slane %v474, 4
    %v633 = vadd.f32 %v474, %v632
    %v634 = vrot.slane %v633, 2
    %v635 = vadd.f32 %v633, %v634
    %v636 = vrot.slane %v635, 1
    %v637 = vadd.f32 %v635, %v636
    %v638 = vrot.slane %v475, 4
    %v639 = vadd.f32 %v475, %v638
    %v640 = vrot.slane %v639, 2
    %v641 = vadd.f32 %v639, %v640
    %v642 = vrot.slane %v641, 1
    %v643 = vadd.f32 %v641, %v642
    %v644 = vrot.slane %v476, 4
    %v645 = vadd.f32 %v476, %v644
    %v646 = vrot.slane %v645, 2
    %v647 = vadd.f32 %v645, %v646
    %v648 = vrot.slane %v647, 1
    %v649 = vadd.f32 %v647, %v648
    %v650 = vrot.slane %v477, 4
    %v651 = vadd.f32 %v477, %v650
    %v652 = vrot.slane %v651, 2
    %v653 = vadd.f32 %v651, %v652
    %v654 = vrot.slane %v653, 1
    %v655 = vadd.f32 %v653, %v654
    %v656 = vrot.slane %v478, 4
    %v657 = vadd.f32 %v478, %v656
    %v658 = vrot.slane %v657, 2
    %v659 = vadd.f32 %v657, %v658
    %v660 = vrot.slane %v659, 1
    %v661 = vadd.f32 %v659, %v660
    %v662 = vrot.slane %v479, 4
    %v663 = vadd.f32 %v479, %v662
    %v664 = vrot.slane %v663, 2
    %v665 = vadd.f32 %v663, %v664
    %v666 = vrot.slane %v665, 1
    %v667 = vadd.f32 %v665, %v666
    %v668 = vrot.slane %v480, 4
    %v669 = vadd.f32 %v480, %v668
    %v670 = vrot.slane %v669, 2
    %v671 = vadd.f32 %v669, %v670
    %v672 = vrot.slane %v671, 1
    %v673 = vadd.f32 %v671, %v672
    %v674 = vrot.slane %v481, 4
    %v675 = vadd.f32 %v481, %v674
    %v676 = vrot.slane %v675, 2
    %v677 = vadd.f32 %v675, %v676
    %v678 = vrot.slane %v677, 1
    %v679 = vadd.f32 %v677, %v678
    %v680 = vrot.slane %v482, 4
    %v681 = vadd.f32 %v482, %v680
    %v682 = vrot.slane %v681, 2
    %v683 = vadd.f32 %v681, %v682
    %v684 = vrot.slane %v683, 1
    %v685 = vadd.f32 %v683, %v684
    %v686 = vrot.slane %v483, 4
    %v687 = vadd.f32 %v483, %v686
    %v688 = vrot.slane %v687, 2
    %v689 = vadd.f32 %v687, %v688
    %v690 = vrot.slane %v689, 1
    %v691 = vadd.f32 %v689, %v690
    %v692 = vrot.slane %v484, 4
    %v693 = vadd.f32 %v484, %v692
    %v694 = vrot.slane %v693, 2
    %v695 = vadd.f32 %v693, %v694
    %v696 = vrot.slane %v695, 1
    %v697 = vadd.f32 %v695, %v696
    %v698 = vrot.slane %v485, 4
    %v699 = vadd.f32 %v485, %v698
    %v700 = vrot.slane %v699, 2
    %v701 = vadd.f32 %v699, %v700
    %v702 = vrot.slane %v701, 1
    %v703 = vadd.f32 %v701, %v702
    %v704 = vrot.slane %v486, 4
    %v705 = vadd.f32 %v486, %v704
    %v706 = vrot.slane %v705, 2
    %v707 = vadd.f32 %v705, %v706
    %v708 = vrot.slane %v707, 1
    %v709 = vadd.f32 %v707, %v708
    %v710 = vrot.slane %v487, 4
    %v711 = vadd.f32 %v487, %v710
    %v712 = vrot.slane %v711, 2
    %v713 = vadd.f32 %v711, %v712
    %v714 = vrot.slane %v713, 1
    %v715 = vadd.f32 %v713, %v714
    %v716 = vrot.slane %v488, 4
    %v717 = vadd.f32 %v488, %v716
    %v718 = vrot.slane %v717, 2
    %v719 = vadd.f32 %v717, %v718
    %v720 = vrot.slane %v719, 1
    %v721 = vadd.f32 %v719, %v720
    %v722 = vrot.slane %v489, 4
    %v723 = vadd.f32 %v489, %v722
    %v724 = vrot.slane %v723, 2
    %v725 = vadd.f32 %v723, %v724
    %v726 = vrot.slane %v725, 1
    %v727 = vadd.f32 %v725, %v726
    %v728 = vrot.slane %v490, 4
    %v729 = vadd.f32 %v490, %v728
    %v730 = vrot.slane %v729, 2
    %v731 = vadd.f32 %v729, %v730
    %v732 = vrot.slane %v731, 1
    %v733 = vadd.f32 %v731, %v732
    %v734 = vrot.slane %v491, 4
    %v735 = vadd.f32 %v491, %v734
    %v736 = vrot.slane %v735, 2
    %v737 = vadd.f32 %v735, %v736
    %v738 = vrot.slane %v737, 1
    %v739 = vadd.f32 %v737, %v738
    %v740 = vrot.slane %v492, 4
    %v741 = vadd.f32 %v492, %v740
    %v742 = vrot.slane %v741, 2
    %v743 = vadd.f32 %v741, %v742
    %v744 = vrot.slane %v743, 1
    %v745 = vadd.f32 %v743, %v744
    %v746 = vrot.slane %v493, 4
    %v747 = vadd.f32 %v493, %v746
    %v748 = vrot.slane %v747, 2
    %v749 = vadd.f32 %v747, %v748
    %v750 = vrot.slane %v749, 1
    %v751 = vadd.f32 %v749, %v750
    %v752 = vrot.slane %v494, 4
    %v753 = vadd.f32 %v494, %v752
    %v754 = vrot.slane %v753, 2
    %v755 = vadd.f32 %v753, %v754
    %v756 = vrot.slane %v755, 1
    %v757 = vadd.f32 %v755, %v756
    %v758 = vrot.slane %v495, 4
    %v759 = vadd.f32 %v495, %v758
    %v760 = vrot.slane %v759, 2
    %v761 = vadd.f32 %v759, %v760
    %v762 = vrot.slane %v761, 1
    %v763 = vadd.f32 %v761, %v762
    %v764 = vrot.slane %v496, 4
    %v765 = vadd.f32 %v496, %v764
    %v766 = vrot.slane %v765, 2
    %v767 = vadd.f32 %v765, %v766
    %v768 = vrot.slane %v767, 1
    %v769 = vadd.f32 %v767, %v768
    %v770 = vrot.slane %v497, 4
    %v771 = vadd.f32 %v497, %v770
    %v772 = vrot.slane %v771, 2
    %v773 = vadd.f32 %v771, %v772
    %v774 = vrot.slane %v773, 1
    %v775 = vadd.f32 %v773, %v774
    %v776 = vrot.slane %v498, 4
    %v777 = vadd.f32 %v498, %v776
    %v778 = vrot.slane %v777, 2
    %v779 = vadd.f32 %v777, %v778
    %v780 = vrot.slane %v779, 1
    %v781 = vadd.f32 %v779, %v780
    %v782 = vrot.slane %v499, 4
    %v783 = vadd.f32 %v499, %v782
    %v784 = vrot.slane %v783, 2
    %v785 = vadd.f32 %v783, %v784
    %v786 = vrot.slane %v785, 1
    %v787 = vadd.f32 %v785, %v786
    %v788 = vadd.f32 %v169, %v505
    %v789 = vadd.f32 %v175, %v511
    %v790 = vadd.f32 %v181, %v517
    %v791 = vadd.f32 %v187, %v523
    %v792 = vadd.f32 %v193, %v529
    %v793 = vadd.f32 %v199, %v535
    %v794 = vadd.f32 %v205, %v541
    %v795 = vadd.f32 %v211, %v547
    %v796 = vadd.f32 %v217, %v553
    %v797 = vadd.f32 %v223, %v559
    %v798 = vadd.f32 %v229, %v565
    %v799 = vadd.f32 %v235, %v571
    %v800 = vadd.f32 %v241, %v577
    %v801 = vadd.f32 %v247, %v583
    %v802 = vadd.f32 %v253, %v589
    %v803 = vadd.f32 %v259, %v595
    %v804 = vadd.f32 %v265, %v601
    %v805 = vadd.f32 %v271, %v607
    %v806 = vadd.f32 %v277, %v613
    %v807 = vadd.f32 %v283, %v619
    %v808 = vadd.f32 %v289, %v625
    %v809 = vadd.f32 %v295, %v631
    %v810 = vadd.f32 %v301, %v637
    %v811 = vadd.f32 %v307, %v643
    %v812 = vadd.f32 %v313, %v649
    %v813 = vadd.f32 %v319, %v655
    %v814 = vadd.f32 %v325, %v661
    %v815 = vadd.f32 %v331, %v667
    %v816 = vadd.f32 %v337, %v673
    %v817 = vadd.f32 %v343, %v679
    %v818 = vadd.f32 %v349, %v685
    %v819 = vadd.f32 %v355, %v691
    %v820 = vadd.f32 %v361, %v697
    %v821 = vadd.f32 %v367, %v703
    %v822 = vadd.f32 %v373, %v709
    %v823 = vadd.f32 %v379, %v715
    %v824 = vadd.f32 %v385, %v721
    %v825 = vadd.f32 %v391, %v727
    %v826 = vadd.f32 %v397, %v733
    %v827 = vadd.f32 %v403, %v739
    %v828 = vadd.f32 %v409, %v745
    %v829 = vadd.f32 %v415, %v751
    %v830 = vadd.f32 %v421, %v757
    %v831 = vadd.f32 %v427, %v763
    %v832 = vadd.f32 %v433, %v769
    %v833 = vadd.f32 %v439, %v775
    %v834 = vadd.f32 %v445, %v781
    %v835 = vadd.f32 %v451, %v787
    %vm884 = vcmask 1041409
    %v885 = vsel %vm884, %v794, %v788
    %vm886 = vcmask 1042434
    %v887 = vsel %vm886, %v800, %v885
    %vm888 = vcmask 1043459
    %v889 = vsel %vm888, %v806, %v887
    %vm890 = vcmask 1044484
    %v891 = vsel %vm890, %v812, %v889
    %vm892 = vcmask 1045509
    %v893 = vsel %vm892, %v818, %v891
    %vm894 = vcmask 1046534
    %v895 = vsel %vm894, %v824, %v893
    %vm896 = vcmask 1047559
    %v897 = vsel %vm896, %v830, %v895
    %v898 = vsel %vm884, %v795, %v789
    %v899 = vsel %vm886, %v801, %v898
    %v900 = vsel %vm888, %v807, %v899
    %v901 = vsel %vm890, %v813, %v900
    %v902 = vsel %vm892, %v819, %v901
    %v903 = vsel %vm894, %v825, %v902
    %v904 = vsel %vm896, %v831, %v903
    %v905 = vsel %vm884, %v796, %v790
    %v906 = vsel %vm886, %v802, %v905
    %v907 = vsel %vm888, %v808, %v906
    %v908 = vsel %vm890, %v814, %v907
    %v909 = vsel %vm892, %v820, %v908
    %v910 = vsel %vm894, %v826, %v909
    %v911 = vsel %vm896, %v832, %v910
    %v912 = vsel %vm884, %v797, %v791
    %v913 = vsel %vm886, %v803, %v912
    %v914 = vsel %vm888, %v809, %v913
    %v915 = vsel %vm890, %v815, %v914
    %v916 = vsel %vm892, %v821, %v915
    %v917 = vsel %vm894, %v827, %v916
    %v918 = vsel %vm896, %v833, %v917
    %v919 = vsel %vm884, %v798, %v792
    %v920 = vsel %vm886, %v804, %v919
    %v921 = vsel %vm888, %v810, %v920
    %v922 = vsel %vm890, %v816, %v921
    %v923 = vsel %vm892, %v822, %v922
    %v924 = vsel %vm894, %v828, %v923
    %v925 = vsel %vm896, %v834, %v924
    %v926 = vsel %vm884, %v799, %v793
    %v927 = vsel %vm886, %v805, %v926
    %v928 = vsel %vm888, %v811, %v927
    %v929 = vsel %vm890, %v817, %v928
    %v930 = vsel %vm892, %v823, %v929
    %v931 = vsel %vm894, %v829, %v930
    %v932 = vsel %vm896, %v835, %v931
    %v939 = vadd.f32 %v110, %v897
    %v940 = vadd.f32 %v111, %v904
    %v941 = vadd.f32 %v112, %v911
    %v942 = vadd.f32 %v113, %v918
    %v943 = vadd.f32 %v114, %v925
    %v944 = vadd.f32 %v115, %v932
    %945 = vst [vmem:[#allocation2] sm:$0xff] %v939
    %946 = vst [vmem:[#allocation2 + $0x8] sm:$0xff] %v940
    %947 = vst [vmem:[#allocation2 + $0x10] sm:$0xff] %v941
    %948 = vst [vmem:[#allocation2 + $0x18] sm:$0xff] %v942
    %949 = vst [vmem:[#allocation2 + $0x20] sm:$0xff] %v943
    %950 = vst [vmem:[#allocation2 + $0x28] sm:$0xff] %v944
    // Predicated region
    $region50: #{tpu_custom_call.1} parent=1 // pred_check
      %p951 = pneg %p100
    $region51: #{tpu_custom_call.1} parent=1 // pred_check_branch
      %953 = sbr.rel (%p951) target = $region53
    $region52: #{tpu_custom_call.1} parent=1 // pred_region
      %v954 = vld [vmem:[#allocation2] sm:$0xff]
      %v955 = vld [vmem:[#allocation2 + $0x8] sm:$0xff]
      %v956 = vld [vmem:[#allocation2 + $0x10] sm:$0xff]
      %v957 = vld [vmem:[#allocation2 + $0x18] sm:$0xff]
      %v958 = vld [vmem:[#allocation2 + $0x20] sm:$0xff]
      %v959 = vld [vmem:[#allocation2 + $0x28] sm:$0xff]
      %v960 = vmul.f32 %v954, 0.0625
      %v961 = vmul.f32 %v955, 0.0625
      %v962 = vmul.f32 %v956, 0.0625
      %v963 = vmul.f32 %v957, 0.0625
      %v964 = vmul.f32 %v958, 0.0625
      %v965 = vmul.f32 %v959, 0.0625
      %v966 = vld [vmem:[#allocation9] sm:$0xff]
      %v967 = vld [vmem:[#allocation9 + $0x8] sm:$0xff]
      %v968 = vld [vmem:[#allocation9 + $0x10] sm:$0xff]
      %v969 = vld [vmem:[#allocation9 + $0x18] sm:$0xff]
      %v970 = vld [vmem:[#allocation9 + $0x20] sm:$0xff]
      %v971 = vld [vmem:[#allocation9 + $0x28] sm:$0xff]
      %v972 = vld [vmem:[#allocation9 + $0x30] sm:$0xff]
      %v973 = vld [vmem:[#allocation9 + $0x38] sm:$0xff]
      %v974 = vld [vmem:[#allocation9 + $0x40] sm:$0xff]
      %v975 = vld [vmem:[#allocation9 + $0x48] sm:$0xff]
      %v976 = vld [vmem:[#allocation9 + $0x50] sm:$0xff]
      %v977 = vld [vmem:[#allocation9 + $0x58] sm:$0xff]
      %v978 = vld [vmem:[#allocation9 + $0x60] sm:$0xff]
      %v979 = vld [vmem:[#allocation9 + $0x68] sm:$0xff]
      %v980 = vld [vmem:[#allocation9 + $0x70] sm:$0xff]
      %v981 = vld [vmem:[#allocation9 + $0x78] sm:$0xff]
      %v982 = vld [vmem:[#allocation9 + $0x80] sm:$0xff]
      %v983 = vld [vmem:[#allocation9 + $0x88] sm:$0xff]
      %v984 = vld [vmem:[#allocation9 + $0x90] sm:$0xff]
      %v985 = vld [vmem:[#allocation9 + $0x98] sm:$0xff]
      %v986 = vld [vmem:[#allocation9 + $0xa0] sm:$0xff]
      %v987 = vld [vmem:[#allocation9 + $0xa8] sm:$0xff]
      %v988 = vld [vmem:[#allocation9 + $0xb0] sm:$0xff]
      %v989 = vld [vmem:[#allocation9 + $0xb8] sm:$0xff]
      %v990 = vld [vmem:[#allocation9 + $0xc0] sm:$0xff]
      %v991 = vld [vmem:[#allocation9 + $0xc8] sm:$0xff]
      %v992 = vld [vmem:[#allocation9 + $0xd0] sm:$0xff]
      %v993 = vld [vmem:[#allocation9 + $0xd8] sm:$0xff]
      %v994 = vld [vmem:[#allocation9 + $0xe0] sm:$0xff]
      %v995 = vld [vmem:[#allocation9 + $0xe8] sm:$0xff]
      %v996 = vld [vmem:[#allocation9 + $0xf0] sm:$0xff]
      %v997 = vld [vmem:[#allocation9 + $0xf8] sm:$0xff]
      %v998 = vld [vmem:[#allocation9 + $0x100] sm:$0xff]
      %v999 = vld [vmem:[#allocation9 + $0x108] sm:$0xff]
      %v1000 = vld [vmem:[#allocation9 + $0x110] sm:$0xff]
      %v1001 = vld [vmem:[#allocation9 + $0x118] sm:$0xff]
      %v1002 = vld [vmem:[#allocation9 + $0x120] sm:$0xff]
      %v1003 = vld [vmem:[#allocation9 + $0x128] sm:$0xff]
      %v1004 = vld [vmem:[#allocation9 + $0x130] sm:$0xff]
      %v1005 = vld [vmem:[#allocation9 + $0x138] sm:$0xff]
      %v1006 = vld [vmem:[#allocation9 + $0x140] sm:$0xff]
      %v1007 = vld [vmem:[#allocation9 + $0x148] sm:$0xff]
      %v1008 = vld [vmem:[#allocation9 + $0x150] sm:$0xff]
      %v1009 = vld [vmem:[#allocation9 + $0x158] sm:$0xff]
      %v1010 = vld [vmem:[#allocation9 + $0x160] sm:$0xff]
      %v1011 = vld [vmem:[#allocation9 + $0x168] sm:$0xff]
      %v1012 = vld [vmem:[#allocation9 + $0x170] sm:$0xff]
      %v1013 = vld [vmem:[#allocation9 + $0x178] sm:$0xff]
      %v1014 = vld [vmem:[#allocation9 + $0x180] sm:$0xff]
      %v1015 = vld [vmem:[#allocation9 + $0x188] sm:$0xff]
      %v1016 = vld [vmem:[#allocation9 + $0x190] sm:$0xff]
      %v1017 = vld [vmem:[#allocation9 + $0x198] sm:$0xff]
      %v1018 = vld [vmem:[#allocation9 + $0x1a0] sm:$0xff]
      %v1019 = vld [vmem:[#allocation9 + $0x1a8] sm:$0xff]
      %v1020 = vld [vmem:[#allocation9 + $0x1b0] sm:$0xff]
      %v1021 = vld [vmem:[#allocation9 + $0x1b8] sm:$0xff]
      %v1022 = vld [vmem:[#allocation9 + $0x1c0] sm:$0xff]
      %v1023 = vld [vmem:[#allocation9 + $0x1c8] sm:$0xff]
      %v1024 = vld [vmem:[#allocation9 + $0x1d0] sm:$0xff]
      %v1025 = vld [vmem:[#allocation9 + $0x1d8] sm:$0xff]
      %v1026 = vld [vmem:[#allocation9 + $0x1e0] sm:$0xff]
      %v1027 = vld [vmem:[#allocation9 + $0x1e8] sm:$0xff]
      %v1028 = vld [vmem:[#allocation9 + $0x1f0] sm:$0xff]
      %v1029 = vld [vmem:[#allocation9 + $0x1f8] sm:$0xff]
      %v1030 = vld [vmem:[#allocation9 + $0x200] sm:$0xff]
      %v1031 = vld [vmem:[#allocation9 + $0x208] sm:$0xff]
      %v1032 = vld [vmem:[#allocation9 + $0x210] sm:$0xff]
      %v1033 = vld [vmem:[#allocation9 + $0x218] sm:$0xff]
      %v1034 = vld [vmem:[#allocation9 + $0x220] sm:$0xff]
      %v1035 = vld [vmem:[#allocation9 + $0x228] sm:$0xff]
      %v1036 = vld [vmem:[#allocation9 + $0x230] sm:$0xff]
      %v1037 = vld [vmem:[#allocation9 + $0x238] sm:$0xff]
      %v1038 = vld [vmem:[#allocation9 + $0x240] sm:$0xff]
      %v1039 = vld [vmem:[#allocation9 + $0x248] sm:$0xff]
      %v1040 = vld [vmem:[#allocation9 + $0x250] sm:$0xff]
      %v1041 = vld [vmem:[#allocation9 + $0x258] sm:$0xff]
      %v1042 = vld [vmem:[#allocation9 + $0x260] sm:$0xff]
      %v1043 = vld [vmem:[#allocation9 + $0x268] sm:$0xff]
      %v1044 = vld [vmem:[#allocation9 + $0x270] sm:$0xff]
      %v1045 = vld [vmem:[#allocation9 + $0x278] sm:$0xff]
      %v1046 = vld [vmem:[#allocation9 + $0x280] sm:$0xff]
      %v1047 = vld [vmem:[#allocation9 + $0x288] sm:$0xff]
      %v1048 = vld [vmem:[#allocation9 + $0x290] sm:$0xff]
      %v1049 = vld [vmem:[#allocation9 + $0x298] sm:$0xff]
      %v1050 = vld [vmem:[#allocation9 + $0x2a0] sm:$0xff]
      %v1051 = vld [vmem:[#allocation9 + $0x2a8] sm:$0xff]
      %v1052 = vld [vmem:[#allocation9 + $0x2b0] sm:$0xff]
      %v1053 = vld [vmem:[#allocation9 + $0x2b8] sm:$0xff]
      %v1054 = vld [vmem:[#allocation9 + $0x2c0] sm:$0xff]
      %v1055 = vld [vmem:[#allocation9 + $0x2c8] sm:$0xff]
      %v1056 = vld [vmem:[#allocation9 + $0x2d0] sm:$0xff]
      %v1057 = vld [vmem:[#allocation9 + $0x2d8] sm:$0xff]
      %v1058 = vld [vmem:[#allocation9 + $0x2e0] sm:$0xff]
      %v1059 = vld [vmem:[#allocation9 + $0x2e8] sm:$0xff]
      %v1060 = vld [vmem:[#allocation9 + $0x2f0] sm:$0xff]
      %v1061 = vld [vmem:[#allocation9 + $0x2f8] sm:$0xff]
      %v1062 = vld [vmem:[#allocation9 + $0x300] sm:$0xff]
      %v1063 = vld [vmem:[#allocation9 + $0x308] sm:$0xff]
      %v1064 = vld [vmem:[#allocation9 + $0x310] sm:$0xff]
      %v1065 = vld [vmem:[#allocation9 + $0x318] sm:$0xff]
      %v1066 = vld [vmem:[#allocation9 + $0x320] sm:$0xff]
      %v1067 = vld [vmem:[#allocation9 + $0x328] sm:$0xff]
      %v1068 = vld [vmem:[#allocation9 + $0x330] sm:$0xff]
      %v1069 = vld [vmem:[#allocation9 + $0x338] sm:$0xff]
      %v1070 = vld [vmem:[#allocation9 + $0x340] sm:$0xff]
      %v1071 = vld [vmem:[#allocation9 + $0x348] sm:$0xff]
      %v1072 = vld [vmem:[#allocation9 + $0x350] sm:$0xff]
      %v1073 = vld [vmem:[#allocation9 + $0x358] sm:$0xff]
      %v1074 = vld [vmem:[#allocation9 + $0x360] sm:$0xff]
      %v1075 = vld [vmem:[#allocation9 + $0x368] sm:$0xff]
      %v1076 = vld [vmem:[#allocation9 + $0x370] sm:$0xff]
      %v1077 = vld [vmem:[#allocation9 + $0x378] sm:$0xff]
      %v1078 = vld [vmem:[#allocation9 + $0x380] sm:$0xff]
      %v1079 = vld [vmem:[#allocation9 + $0x388] sm:$0xff]
      %v1080 = vld [vmem:[#allocation9 + $0x390] sm:$0xff]
      %v1081 = vld [vmem:[#allocation9 + $0x398] sm:$0xff]
      %v1082 = vld [vmem:[#allocation9 + $0x3a0] sm:$0xff]
      %v1083 = vld [vmem:[#allocation9 + $0x3a8] sm:$0xff]
      %v1084 = vld [vmem:[#allocation9 + $0x3b0] sm:$0xff]
      %v1085 = vld [vmem:[#allocation9 + $0x3b8] sm:$0xff]
      %v1086 = vld [vmem:[#allocation9 + $0x3c0] sm:$0xff]
      %v1087 = vld [vmem:[#allocation9 + $0x3c8] sm:$0xff]
      %v1088 = vld [vmem:[#allocation9 + $0x3d0] sm:$0xff]
      %v1089 = vld [vmem:[#allocation9 + $0x3d8] sm:$0xff]
      %v1090 = vld [vmem:[#allocation9 + $0x3e0] sm:$0xff]
      %v1091 = vld [vmem:[#allocation9 + $0x3e8] sm:$0xff]
      %v1092 = vld [vmem:[#allocation9 + $0x3f0] sm:$0xff]
      %v1093 = vld [vmem:[#allocation9 + $0x3f8] sm:$0xff]
      %v1094 = vld [vmem:[#allocation9 + $0x400] sm:$0xff]
      %v1095 = vld [vmem:[#allocation9 + $0x408] sm:$0xff]
      %v1096 = vld [vmem:[#allocation9 + $0x410] sm:$0xff]
      %v1097 = vld [vmem:[#allocation9 + $0x418] sm:$0xff]
      %v1098 = vld [vmem:[#allocation9 + $0x420] sm:$0xff]
      %v1099 = vld [vmem:[#allocation9 + $0x428] sm:$0xff]
      %v1100 = vld [vmem:[#allocation9 + $0x430] sm:$0xff]
      %v1101 = vld [vmem:[#allocation9 + $0x438] sm:$0xff]
      %v1102 = vld [vmem:[#allocation9 + $0x440] sm:$0xff]
      %v1103 = vld [vmem:[#allocation9 + $0x448] sm:$0xff]
      %v1104 = vld [vmem:[#allocation9 + $0x450] sm:$0xff]
      %v1105 = vld [vmem:[#allocation9 + $0x458] sm:$0xff]
      %v1106 = vld [vmem:[#allocation9 + $0x460] sm:$0xff]
      %v1107 = vld [vmem:[#allocation9 + $0x468] sm:$0xff]
      %v1108 = vld [vmem:[#allocation9 + $0x470] sm:$0xff]
      %v1109 = vld [vmem:[#allocation9 + $0x478] sm:$0xff]
      %v1110 = vld [vmem:[#allocation9 + $0x480] sm:$0xff]
      %v1111 = vld [vmem:[#allocation9 + $0x488] sm:$0xff]
      %v1112 = vld [vmem:[#allocation9 + $0x490] sm:$0xff]
      %v1113 = vld [vmem:[#allocation9 + $0x498] sm:$0xff]
      %v1114 = vld [vmem:[#allocation9 + $0x4a0] sm:$0xff]
      %v1115 = vld [vmem:[#allocation9 + $0x4a8] sm:$0xff]
      %v1116 = vld [vmem:[#allocation9 + $0x4b0] sm:$0xff]
      %v1117 = vld [vmem:[#allocation9 + $0x4b8] sm:$0xff]
      %v1118 = vld [vmem:[#allocation9 + $0x4c0] sm:$0xff]
      %v1119 = vld [vmem:[#allocation9 + $0x4c8] sm:$0xff]
      %v1120 = vld [vmem:[#allocation9 + $0x4d0] sm:$0xff]
      %v1121 = vld [vmem:[#allocation9 + $0x4d8] sm:$0xff]
      %v1122 = vld [vmem:[#allocation9 + $0x4e0] sm:$0xff]
      %v1123 = vld [vmem:[#allocation9 + $0x4e8] sm:$0xff]
      %v1124 = vld [vmem:[#allocation9 + $0x4f0] sm:$0xff]
      %v1125 = vld [vmem:[#allocation9 + $0x4f8] sm:$0xff]
      %v1126 = vld [vmem:[#allocation9 + $0x500] sm:$0xff]
      %v1127 = vld [vmem:[#allocation9 + $0x508] sm:$0xff]
      %v1128 = vld [vmem:[#allocation9 + $0x510] sm:$0xff]
      %v1129 = vld [vmem:[#allocation9 + $0x518] sm:$0xff]
      %v1130 = vld [vmem:[#allocation9 + $0x520] sm:$0xff]
      %v1131 = vld [vmem:[#allocation9 + $0x528] sm:$0xff]
      %v1132 = vld [vmem:[#allocation9 + $0x530] sm:$0xff]
      %v1133 = vld [vmem:[#allocation9 + $0x538] sm:$0xff]
      %v1134 = vld [vmem:[#allocation9 + $0x540] sm:$0xff]
      %v1135 = vld [vmem:[#allocation9 + $0x548] sm:$0xff]
      %v1136 = vld [vmem:[#allocation9 + $0x550] sm:$0xff]
      %v1137 = vld [vmem:[#allocation9 + $0x558] sm:$0xff]
      %v1138 = vld [vmem:[#allocation9 + $0x560] sm:$0xff]
      %v1139 = vld [vmem:[#allocation9 + $0x568] sm:$0xff]
      %v1140 = vld [vmem:[#allocation9 + $0x570] sm:$0xff]
      %v1141 = vld [vmem:[#allocation9 + $0x578] sm:$0xff]
      %v1142 = vld [vmem:[#allocation9 + $0x580] sm:$0xff]
      %v1143 = vld [vmem:[#allocation9 + $0x588] sm:$0xff]
      %v1144 = vld [vmem:[#allocation9 + $0x590] sm:$0xff]
      %v1145 = vld [vmem:[#allocation9 + $0x598] sm:$0xff]
      %v1146 = vld [vmem:[#allocation9 + $0x5a0] sm:$0xff]
      %v1147 = vld [vmem:[#allocation9 + $0x5a8] sm:$0xff]
      %v1148 = vld [vmem:[#allocation9 + $0x5b0] sm:$0xff]
      %v1149 = vld [vmem:[#allocation9 + $0x5b8] sm:$0xff]
      %v1150 = vld [vmem:[#allocation9 + $0x5c0] sm:$0xff]
      %v1151 = vld [vmem:[#allocation9 + $0x5c8] sm:$0xff]
      %v1152 = vld [vmem:[#allocation9 + $0x5d0] sm:$0xff]
      %v1153 = vld [vmem:[#allocation9 + $0x5d8] sm:$0xff]
      %v1154 = vld [vmem:[#allocation9 + $0x5e0] sm:$0xff]
      %v1155 = vld [vmem:[#allocation9 + $0x5e8] sm:$0xff]
      %v1156 = vld [vmem:[#allocation9 + $0x5f0] sm:$0xff]
      %v1157 = vld [vmem:[#allocation9 + $0x5f8] sm:$0xff]
      %v1158 = vld [vmem:[#allocation9 + $0x600] sm:$0xff]
      %v1159 = vld [vmem:[#allocation9 + $0x608] sm:$0xff]
      %v1160 = vld [vmem:[#allocation9 + $0x610] sm:$0xff]
      %v1161 = vld [vmem:[#allocation9 + $0x618] sm:$0xff]
      %v1162 = vld [vmem:[#allocation9 + $0x620] sm:$0xff]
      %v1163 = vld [vmem:[#allocation9 + $0x628] sm:$0xff]
      %v1164 = vld [vmem:[#allocation9 + $0x630] sm:$0xff]
      %v1165 = vld [vmem:[#allocation9 + $0x638] sm:$0xff]
      %v1166 = vld [vmem:[#allocation9 + $0x640] sm:$0xff]
      %v1167 = vld [vmem:[#allocation9 + $0x648] sm:$0xff]
      %v1168 = vld [vmem:[#allocation9 + $0x650] sm:$0xff]
      %v1169 = vld [vmem:[#allocation9 + $0x658] sm:$0xff]
      %v1170 = vld [vmem:[#allocation9 + $0x660] sm:$0xff]
      %v1171 = vld [vmem:[#allocation9 + $0x668] sm:$0xff]
      %v1172 = vld [vmem:[#allocation9 + $0x670] sm:$0xff]
      %v1173 = vld [vmem:[#allocation9 + $0x678] sm:$0xff]
      %v1174 = vld [vmem:[#allocation9 + $0x680] sm:$0xff]
      %v1175 = vld [vmem:[#allocation9 + $0x688] sm:$0xff]
      %v1176 = vld [vmem:[#allocation9 + $0x690] sm:$0xff]
      %v1177 = vld [vmem:[#allocation9 + $0x698] sm:$0xff]
      %v1178 = vld [vmem:[#allocation9 + $0x6a0] sm:$0xff]
      %v1179 = vld [vmem:[#allocation9 + $0x6a8] sm:$0xff]
      %v1180 = vld [vmem:[#allocation9 + $0x6b0] sm:$0xff]
      %v1181 = vld [vmem:[#allocation9 + $0x6b8] sm:$0xff]
      %v1182 = vld [vmem:[#allocation9 + $0x6c0] sm:$0xff]
      %v1183 = vld [vmem:[#allocation9 + $0x6c8] sm:$0xff]
      %v1184 = vld [vmem:[#allocation9 + $0x6d0] sm:$0xff]
      %v1185 = vld [vmem:[#allocation9 + $0x6d8] sm:$0xff]
      %v1186 = vld [vmem:[#allocation9 + $0x6e0] sm:$0xff]
      %v1187 = vld [vmem:[#allocation9 + $0x6e8] sm:$0xff]
      %v1188 = vld [vmem:[#allocation9 + $0x6f0] sm:$0xff]
      %v1189 = vld [vmem:[#allocation9 + $0x6f8] sm:$0xff]
      %v1190 = vld [vmem:[#allocation9 + $0x700] sm:$0xff]
      %v1191 = vld [vmem:[#allocation9 + $0x708] sm:$0xff]
      %v1192 = vld [vmem:[#allocation9 + $0x710] sm:$0xff]
      %v1193 = vld [vmem:[#allocation9 + $0x718] sm:$0xff]
      %v1194 = vld [vmem:[#allocation9 + $0x720] sm:$0xff]
      %v1195 = vld [vmem:[#allocation9 + $0x728] sm:$0xff]
      %v1196 = vld [vmem:[#allocation9 + $0x730] sm:$0xff]
      %v1197 = vld [vmem:[#allocation9 + $0x738] sm:$0xff]
      %v1198 = vld [vmem:[#allocation9 + $0x740] sm:$0xff]
      %v1199 = vld [vmem:[#allocation9 + $0x748] sm:$0xff]
      %v1200 = vld [vmem:[#allocation9 + $0x750] sm:$0xff]
      %v1201 = vld [vmem:[#allocation9 + $0x758] sm:$0xff]
      %v1202 = vld [vmem:[#allocation9 + $0x760] sm:$0xff]
      %v1203 = vld [vmem:[#allocation9 + $0x768] sm:$0xff]
      %v1204 = vld [vmem:[#allocation9 + $0x770] sm:$0xff]
      %v1205 = vld [vmem:[#allocation9 + $0x778] sm:$0xff]
      %v1206 = vld [vmem:[#allocation9 + $0x780] sm:$0xff]
      %v1207 = vld [vmem:[#allocation9 + $0x788] sm:$0xff]
      %v1208 = vld [vmem:[#allocation9 + $0x790] sm:$0xff]
      %v1209 = vld [vmem:[#allocation9 + $0x798] sm:$0xff]
      %v1210 = vld [vmem:[#allocation9 + $0x7a0] sm:$0xff]
      %v1211 = vld [vmem:[#allocation9 + $0x7a8] sm:$0xff]
      %v1212 = vld [vmem:[#allocation9 + $0x7b0] sm:$0xff]
      %v1213 = vld [vmem:[#allocation9 + $0x7b8] sm:$0xff]
      %v1214 = vld [vmem:[#allocation9 + $0x7c0] sm:$0xff]
      %v1215 = vld [vmem:[#allocation9 + $0x7c8] sm:$0xff]
      %v1216 = vld [vmem:[#allocation9 + $0x7d0] sm:$0xff]
      %v1217 = vld [vmem:[#allocation9 + $0x7d8] sm:$0xff]
      %v1218 = vld [vmem:[#allocation9 + $0x7e0] sm:$0xff]
      %v1219 = vld [vmem:[#allocation9 + $0x7e8] sm:$0xff]
      %v1220 = vld [vmem:[#allocation9 + $0x7f0] sm:$0xff]
      %v1221 = vld [vmem:[#allocation9 + $0x7f8] sm:$0xff]
      %v1222 = vld [vmem:[#allocation9 + $0x800] sm:$0xff]
      %v1223 = vld [vmem:[#allocation9 + $0x808] sm:$0xff]
      %v1224 = vld [vmem:[#allocation9 + $0x810] sm:$0xff]
      %v1225 = vld [vmem:[#allocation9 + $0x818] sm:$0xff]
      %v1226 = vld [vmem:[#allocation9 + $0x820] sm:$0xff]
      %v1227 = vld [vmem:[#allocation9 + $0x828] sm:$0xff]
      %v1228 = vld [vmem:[#allocation9 + $0x830] sm:$0xff]
      %v1229 = vld [vmem:[#allocation9 + $0x838] sm:$0xff]
      %v1230 = vld [vmem:[#allocation9 + $0x840] sm:$0xff]
      %v1231 = vld [vmem:[#allocation9 + $0x848] sm:$0xff]
      %v1232 = vld [vmem:[#allocation9 + $0x850] sm:$0xff]
      %v1233 = vld [vmem:[#allocation9 + $0x858] sm:$0xff]
      %v1234 = vld [vmem:[#allocation9 + $0x860] sm:$0xff]
      %v1235 = vld [vmem:[#allocation9 + $0x868] sm:$0xff]
      %v1236 = vld [vmem:[#allocation9 + $0x870] sm:$0xff]
      %v1237 = vld [vmem:[#allocation9 + $0x878] sm:$0xff]
      %v1238 = vld [vmem:[#allocation9 + $0x880] sm:$0xff]
      %v1239 = vld [vmem:[#allocation9 + $0x888] sm:$0xff]
      %v1240 = vld [vmem:[#allocation9 + $0x890] sm:$0xff]
      %v1241 = vld [vmem:[#allocation9 + $0x898] sm:$0xff]
      %v1242 = vld [vmem:[#allocation9 + $0x8a0] sm:$0xff]
      %v1243 = vld [vmem:[#allocation9 + $0x8a8] sm:$0xff]
      %v1244 = vld [vmem:[#allocation9 + $0x8b0] sm:$0xff]
      %v1245 = vld [vmem:[#allocation9 + $0x8b8] sm:$0xff]
      %v1246 = vld [vmem:[#allocation9 + $0x8c0] sm:$0xff]
      %v1247 = vld [vmem:[#allocation9 + $0x8c8] sm:$0xff]
      %v1248 = vld [vmem:[#allocation9 + $0x8d0] sm:$0xff]
      %v1249 = vld [vmem:[#allocation9 + $0x8d8] sm:$0xff]
      %v1250 = vld [vmem:[#allocation9 + $0x8e0] sm:$0xff]
      %v1251 = vld [vmem:[#allocation9 + $0x8e8] sm:$0xff]
      %v1252 = vld [vmem:[#allocation9 + $0x8f0] sm:$0xff]
      %v1253 = vld [vmem:[#allocation9 + $0x8f8] sm:$0xff]
      %v1254 = vld [vmem:[#allocation9 + $0x900] sm:$0xff]
      %v1255 = vld [vmem:[#allocation9 + $0x908] sm:$0xff]
      %v1256 = vld [vmem:[#allocation9 + $0x910] sm:$0xff]
      %v1257 = vld [vmem:[#allocation9 + $0x918] sm:$0xff]
      %v1258 = vld [vmem:[#allocation9 + $0x920] sm:$0xff]
      %v1259 = vld [vmem:[#allocation9 + $0x928] sm:$0xff]
      %v1260 = vld [vmem:[#allocation9 + $0x930] sm:$0xff]
      %v1261 = vld [vmem:[#allocation9 + $0x938] sm:$0xff]
      %v1262 = vld [vmem:[#allocation9 + $0x940] sm:$0xff]
      %v1263 = vld [vmem:[#allocation9 + $0x948] sm:$0xff]
      %v1264 = vld [vmem:[#allocation9 + $0x950] sm:$0xff]
      %v1265 = vld [vmem:[#allocation9 + $0x958] sm:$0xff]
      %v1266 = vld [vmem:[#allocation9 + $0x960] sm:$0xff]
      %v1267 = vld [vmem:[#allocation9 + $0x968] sm:$0xff]
      %v1268 = vld [vmem:[#allocation9 + $0x970] sm:$0xff]
      %v1269 = vld [vmem:[#allocation9 + $0x978] sm:$0xff]
      %v1270 = vld [vmem:[#allocation9 + $0x980] sm:$0xff]
      %v1271 = vld [vmem:[#allocation9 + $0x988] sm:$0xff]
      %v1272 = vld [vmem:[#allocation9 + $0x990] sm:$0xff]
      %v1273 = vld [vmem:[#allocation9 + $0x998] sm:$0xff]
      %v1274 = vld [vmem:[#allocation9 + $0x9a0] sm:$0xff]
      %v1275 = vld [vmem:[#allocation9 + $0x9a8] sm:$0xff]
      %v1276 = vld [vmem:[#allocation9 + $0x9b0] sm:$0xff]
      %v1277 = vld [vmem:[#allocation9 + $0x9b8] sm:$0xff]
      %v1278 = vld [vmem:[#allocation9 + $0x9c0] sm:$0xff]
      %v1279 = vld [vmem:[#allocation9 + $0x9c8] sm:$0xff]
      %v1280 = vld [vmem:[#allocation9 + $0x9d0] sm:$0xff]
      %v1281 = vld [vmem:[#allocation9 + $0x9d8] sm:$0xff]
      %v1282 = vld [vmem:[#allocation9 + $0x9e0] sm:$0xff]
      %v1283 = vld [vmem:[#allocation9 + $0x9e8] sm:$0xff]
      %v1284 = vld [vmem:[#allocation9 + $0x9f0] sm:$0xff]
      %v1285 = vld [vmem:[#allocation9 + $0x9f8] sm:$0xff]
      %v1286 = vld [vmem:[#allocation9 + $0xa00] sm:$0xff]
      %v1287 = vld [vmem:[#allocation9 + $0xa08] sm:$0xff]
      %v1288 = vld [vmem:[#allocation9 + $0xa10] sm:$0xff]
      %v1289 = vld [vmem:[#allocation9 + $0xa18] sm:$0xff]
      %v1290 = vld [vmem:[#allocation9 + $0xa20] sm:$0xff]
      %v1291 = vld [vmem:[#allocation9 + $0xa28] sm:$0xff]
      %v1292 = vld [vmem:[#allocation9 + $0xa30] sm:$0xff]
      %v1293 = vld [vmem:[#allocation9 + $0xa38] sm:$0xff]
      %v1294 = vld [vmem:[#allocation9 + $0xa40] sm:$0xff]
      %v1295 = vld [vmem:[#allocation9 + $0xa48] sm:$0xff]
      %v1296 = vld [vmem:[#allocation9 + $0xa50] sm:$0xff]
      %v1297 = vld [vmem:[#allocation9 + $0xa58] sm:$0xff]
      %v1298 = vld [vmem:[#allocation9 + $0xa60] sm:$0xff]
      %v1299 = vld [vmem:[#allocation9 + $0xa68] sm:$0xff]
      %v1300 = vld [vmem:[#allocation9 + $0xa70] sm:$0xff]
      %v1301 = vld [vmem:[#allocation9 + $0xa78] sm:$0xff]
      %v1302 = vld [vmem:[#allocation9 + $0xa80] sm:$0xff]
      %v1303 = vld [vmem:[#allocation9 + $0xa88] sm:$0xff]
      %v1304 = vld [vmem:[#allocation9 + $0xa90] sm:$0xff]
      %v1305 = vld [vmem:[#allocation9 + $0xa98] sm:$0xff]
      %v1306 = vld [vmem:[#allocation9 + $0xaa0] sm:$0xff]
      %v1307 = vld [vmem:[#allocation9 + $0xaa8] sm:$0xff]
      %v1308 = vld [vmem:[#allocation9 + $0xab0] sm:$0xff]
      %v1309 = vld [vmem:[#allocation9 + $0xab8] sm:$0xff]
      %v1310 = vld [vmem:[#allocation9 + $0xac0] sm:$0xff]
      %v1311 = vld [vmem:[#allocation9 + $0xac8] sm:$0xff]
      %v1312 = vld [vmem:[#allocation9 + $0xad0] sm:$0xff]
      %v1313 = vld [vmem:[#allocation9 + $0xad8] sm:$0xff]
      %v1314 = vld [vmem:[#allocation9 + $0xae0] sm:$0xff]
      %v1315 = vld [vmem:[#allocation9 + $0xae8] sm:$0xff]
      %v1316 = vld [vmem:[#allocation9 + $0xaf0] sm:$0xff]
      %v1317 = vld [vmem:[#allocation9 + $0xaf8] sm:$0xff]
      %v1318 = vld [vmem:[#allocation9 + $0xb00] sm:$0xff]
      %v1319 = vld [vmem:[#allocation9 + $0xb08] sm:$0xff]
      %v1320 = vld [vmem:[#allocation9 + $0xb10] sm:$0xff]
      %v1321 = vld [vmem:[#allocation9 + $0xb18] sm:$0xff]
      %v1322 = vld [vmem:[#allocation9 + $0xb20] sm:$0xff]
      %v1323 = vld [vmem:[#allocation9 + $0xb28] sm:$0xff]
      %v1324 = vld [vmem:[#allocation9 + $0xb30] sm:$0xff]
      %v1325 = vld [vmem:[#allocation9 + $0xb38] sm:$0xff]
      %v1326 = vld [vmem:[#allocation9 + $0xb40] sm:$0xff]
      %v1327 = vld [vmem:[#allocation9 + $0xb48] sm:$0xff]
      %v1328 = vld [vmem:[#allocation9 + $0xb50] sm:$0xff]
      %v1329 = vld [vmem:[#allocation9 + $0xb58] sm:$0xff]
      %v1330 = vld [vmem:[#allocation9 + $0xb60] sm:$0xff]
      %v1331 = vld [vmem:[#allocation9 + $0xb68] sm:$0xff]
      %v1332 = vld [vmem:[#allocation9 + $0xb70] sm:$0xff]
      %v1333 = vld [vmem:[#allocation9 + $0xb78] sm:$0xff]
      %v1334 = vld [vmem:[#allocation9 + $0xb80] sm:$0xff]
      %v1335 = vld [vmem:[#allocation9 + $0xb88] sm:$0xff]
      %v1336 = vld [vmem:[#allocation9 + $0xb90] sm:$0xff]
      %v1337 = vld [vmem:[#allocation9 + $0xb98] sm:$0xff]
      %v1338 = vld [vmem:[#allocation9 + $0xba0] sm:$0xff]
      %v1339 = vld [vmem:[#allocation9 + $0xba8] sm:$0xff]
      %v1340 = vld [vmem:[#allocation9 + $0xbb0] sm:$0xff]
      %v1341 = vld [vmem:[#allocation9 + $0xbb8] sm:$0xff]
      %v1342 = vld [vmem:[#allocation9 + $0xbc0] sm:$0xff]
      %v1343 = vld [vmem:[#allocation9 + $0xbc8] sm:$0xff]
      %v1344 = vld [vmem:[#allocation9 + $0xbd0] sm:$0xff]
      %v1345 = vld [vmem:[#allocation9 + $0xbd8] sm:$0xff]
      %v1346 = vld [vmem:[#allocation9 + $0xbe0] sm:$0xff]
      %v1347 = vld [vmem:[#allocation9 + $0xbe8] sm:$0xff]
      %v1348 = vld [vmem:[#allocation9 + $0xbf0] sm:$0xff]
      %v1349 = vld [vmem:[#allocation9 + $0xbf8] sm:$0xff]
      %v1350 = vld [vmem:[#allocation9 + $0xc00] sm:$0xff]
      %v1351 = vld [vmem:[#allocation9 + $0xc08] sm:$0xff]
      %v1352 = vld [vmem:[#allocation9 + $0xc10] sm:$0xff]
      %v1353 = vld [vmem:[#allocation9 + $0xc18] sm:$0xff]
      %v1354 = vld [vmem:[#allocation9 + $0xc20] sm:$0xff]
      %v1355 = vld [vmem:[#allocation9 + $0xc28] sm:$0xff]
      %v1356 = vld [vmem:[#allocation9 + $0xc30] sm:$0xff]
      %v1357 = vld [vmem:[#allocation9 + $0xc38] sm:$0xff]
      %v1358 = vld [vmem:[#allocation9 + $0xc40] sm:$0xff]
      %v1359 = vld [vmem:[#allocation9 + $0xc48] sm:$0xff]
      %v1360 = vld [vmem:[#allocation9 + $0xc50] sm:$0xff]
      %v1361 = vld [vmem:[#allocation9 + $0xc58] sm:$0xff]
      %v1362 = vld [vmem:[#allocation9 + $0xc60] sm:$0xff]
      %v1363 = vld [vmem:[#allocation9 + $0xc68] sm:$0xff]
      %v1364 = vld [vmem:[#allocation9 + $0xc70] sm:$0xff]
      %v1365 = vld [vmem:[#allocation9 + $0xc78] sm:$0xff]
      %v1366 = vld [vmem:[#allocation9 + $0xc80] sm:$0xff]
      %v1367 = vld [vmem:[#allocation9 + $0xc88] sm:$0xff]
      %v1368 = vld [vmem:[#allocation9 + $0xc90] sm:$0xff]
      %v1369 = vld [vmem:[#allocation9 + $0xc98] sm:$0xff]
      %v1370 = vld [vmem:[#allocation9 + $0xca0] sm:$0xff]
      %v1371 = vld [vmem:[#allocation9 + $0xca8] sm:$0xff]
      %v1372 = vld [vmem:[#allocation9 + $0xcb0] sm:$0xff]
      %v1373 = vld [vmem:[#allocation9 + $0xcb8] sm:$0xff]
      %v1374 = vld [vmem:[#allocation9 + $0xcc0] sm:$0xff]
      %v1375 = vld [vmem:[#allocation9 + $0xcc8] sm:$0xff]
      %v1376 = vld [vmem:[#allocation9 + $0xcd0] sm:$0xff]
      %v1377 = vld [vmem:[#allocation9 + $0xcd8] sm:$0xff]
      %v1378 = vld [vmem:[#allocation9 + $0xce0] sm:$0xff]
      %v1379 = vld [vmem:[#allocation9 + $0xce8] sm:$0xff]
      %v1380 = vld [vmem:[#allocation9 + $0xcf0] sm:$0xff]
      %v1381 = vld [vmem:[#allocation9 + $0xcf8] sm:$0xff]
      %v1382 = vld [vmem:[#allocation9 + $0xd00] sm:$0xff]
      %v1383 = vld [vmem:[#allocation9 + $0xd08] sm:$0xff]
      %v1384 = vld [vmem:[#allocation9 + $0xd10] sm:$0xff]
      %v1385 = vld [vmem:[#allocation9 + $0xd18] sm:$0xff]
      %v1386 = vld [vmem:[#allocation9 + $0xd20] sm:$0xff]
      %v1387 = vld [vmem:[#allocation9 + $0xd28] sm:$0xff]
      %v1388 = vld [vmem:[#allocation9 + $0xd30] sm:$0xff]
      %v1389 = vld [vmem:[#allocation9 + $0xd38] sm:$0xff]
      %v1390 = vld [vmem:[#allocation9 + $0xd40] sm:$0xff]
      %v1391 = vld [vmem:[#allocation9 + $0xd48] sm:$0xff]
      %v1392 = vld [vmem:[#allocation9 + $0xd50] sm:$0xff]
      %v1393 = vld [vmem:[#allocation9 + $0xd58] sm:$0xff]
      %v1394 = vld [vmem:[#allocation9 + $0xd60] sm:$0xff]
      %v1395 = vld [vmem:[#allocation9 + $0xd68] sm:$0xff]
      %v1396 = vld [vmem:[#allocation9 + $0xd70] sm:$0xff]
      %v1397 = vld [vmem:[#allocation9 + $0xd78] sm:$0xff]
      %v1398 = vld [vmem:[#allocation9 + $0xd80] sm:$0xff]
      %v1399 = vld [vmem:[#allocation9 + $0xd88] sm:$0xff]
      %v1400 = vld [vmem:[#allocation9 + $0xd90] sm:$0xff]
      %v1401 = vld [vmem:[#allocation9 + $0xd98] sm:$0xff]
      %v1402 = vld [vmem:[#allocation9 + $0xda0] sm:$0xff]
      %v1403 = vld [vmem:[#allocation9 + $0xda8] sm:$0xff]
      %v1404 = vld [vmem:[#allocation9 + $0xdb0] sm:$0xff]
      %v1405 = vld [vmem:[#allocation9 + $0xdb8] sm:$0xff]
      %v1406 = vld [vmem:[#allocation9 + $0xdc0] sm:$0xff]
      %v1407 = vld [vmem:[#allocation9 + $0xdc8] sm:$0xff]
      %v1408 = vld [vmem:[#allocation9 + $0xdd0] sm:$0xff]
      %v1409 = vld [vmem:[#allocation9 + $0xdd8] sm:$0xff]
      %v1410 = vld [vmem:[#allocation9 + $0xde0] sm:$0xff]
      %v1411 = vld [vmem:[#allocation9 + $0xde8] sm:$0xff]
      %v1412 = vld [vmem:[#allocation9 + $0xdf0] sm:$0xff]
      %v1413 = vld [vmem:[#allocation9 + $0xdf8] sm:$0xff]
      %v1414 = vld [vmem:[#allocation9 + $0xe00] sm:$0xff]
      %v1415 = vld [vmem:[#allocation9 + $0xe08] sm:$0xff]
      %v1416 = vld [vmem:[#allocation9 + $0xe10] sm:$0xff]
      %v1417 = vld [vmem:[#allocation9 + $0xe18] sm:$0xff]
      %v1418 = vld [vmem:[#allocation9 + $0xe20] sm:$0xff]
      %v1419 = vld [vmem:[#allocation9 + $0xe28] sm:$0xff]
      %v1420 = vld [vmem:[#allocation9 + $0xe30] sm:$0xff]
      %v1421 = vld [vmem:[#allocation9 + $0xe38] sm:$0xff]
      %v1422 = vld [vmem:[#allocation9 + $0xe40] sm:$0xff]
      %v1423 = vld [vmem:[#allocation9 + $0xe48] sm:$0xff]
      %v1424 = vld [vmem:[#allocation9 + $0xe50] sm:$0xff]
      %v1425 = vld [vmem:[#allocation9 + $0xe58] sm:$0xff]
      %v1426 = vld [vmem:[#allocation9 + $0xe60] sm:$0xff]
      %v1427 = vld [vmem:[#allocation9 + $0xe68] sm:$0xff]
      %v1428 = vld [vmem:[#allocation9 + $0xe70] sm:$0xff]
      %v1429 = vld [vmem:[#allocation9 + $0xe78] sm:$0xff]
      %v1430 = vld [vmem:[#allocation9 + $0xe80] sm:$0xff]
      %v1431 = vld [vmem:[#allocation9 + $0xe88] sm:$0xff]
      %v1432 = vld [vmem:[#allocation9 + $0xe90] sm:$0xff]
      %v1433 = vld [vmem:[#allocation9 + $0xe98] sm:$0xff]
      %v1434 = vld [vmem:[#allocation9 + $0xea0] sm:$0xff]
      %v1435 = vld [vmem:[#allocation9 + $0xea8] sm:$0xff]
      %v1436 = vld [vmem:[#allocation9 + $0xeb0] sm:$0xff]
      %v1437 = vld [vmem:[#allocation9 + $0xeb8] sm:$0xff]
      %v1438 = vld [vmem:[#allocation9 + $0xec0] sm:$0xff]
      %v1439 = vld [vmem:[#allocation9 + $0xec8] sm:$0xff]
      %v1440 = vld [vmem:[#allocation9 + $0xed0] sm:$0xff]
      %v1441 = vld [vmem:[#allocation9 + $0xed8] sm:$0xff]
      %v1442 = vld [vmem:[#allocation9 + $0xee0] sm:$0xff]
      %v1443 = vld [vmem:[#allocation9 + $0xee8] sm:$0xff]
      %v1444 = vld [vmem:[#allocation9 + $0xef0] sm:$0xff]
      %v1445 = vld [vmem:[#allocation9 + $0xef8] sm:$0xff]
      %v1446 = vld [vmem:[#allocation9 + $0xf00] sm:$0xff]
      %v1447 = vld [vmem:[#allocation9 + $0xf08] sm:$0xff]
      %v1448 = vld [vmem:[#allocation9 + $0xf10] sm:$0xff]
      %v1449 = vld [vmem:[#allocation9 + $0xf18] sm:$0xff]
      %v1450 = vld [vmem:[#allocation9 + $0xf20] sm:$0xff]
      %v1451 = vld [vmem:[#allocation9 + $0xf28] sm:$0xff]
      %v1452 = vld [vmem:[#allocation9 + $0xf30] sm:$0xff]
      %v1453 = vld [vmem:[#allocation9 + $0xf38] sm:$0xff]
      %v1454 = vld [vmem:[#allocation9 + $0xf40] sm:$0xff]
      %v1455 = vld [vmem:[#allocation9 + $0xf48] sm:$0xff]
      %v1456 = vld [vmem:[#allocation9 + $0xf50] sm:$0xff]
      %v1457 = vld [vmem:[#allocation9 + $0xf58] sm:$0xff]
      %v1458 = vld [vmem:[#allocation9 + $0xf60] sm:$0xff]
      %v1459 = vld [vmem:[#allocation9 + $0xf68] sm:$0xff]
      %v1460 = vld [vmem:[#allocation9 + $0xf70] sm:$0xff]
      %v1461 = vld [vmem:[#allocation9 + $0xf78] sm:$0xff]
      %v1462 = vld [vmem:[#allocation9 + $0xf80] sm:$0xff]
      %v1463 = vld [vmem:[#allocation9 + $0xf88] sm:$0xff]
      %v1464 = vld [vmem:[#allocation9 + $0xf90] sm:$0xff]
      %v1465 = vld [vmem:[#allocation9 + $0xf98] sm:$0xff]
      %v1466 = vld [vmem:[#allocation9 + $0xfa0] sm:$0xff]
      %v1467 = vld [vmem:[#allocation9 + $0xfa8] sm:$0xff]
      %v1468 = vld [vmem:[#allocation9 + $0xfb0] sm:$0xff]
      %v1469 = vld [vmem:[#allocation9 + $0xfb8] sm:$0xff]
      %v1470 = vld [vmem:[#allocation9 + $0xfc0] sm:$0xff]
      %v1471 = vld [vmem:[#allocation9 + $0xfc8] sm:$0xff]
      %v1472 = vld [vmem:[#allocation9 + $0xfd0] sm:$0xff]
      %v1473 = vld [vmem:[#allocation9 + $0xfd8] sm:$0xff]
      %v1474 = vld [vmem:[#allocation9 + $0xfe0] sm:$0xff]
      %v1475 = vld [vmem:[#allocation9 + $0xfe8] sm:$0xff]
      %v1476 = vld [vmem:[#allocation9 + $0xff0] sm:$0xff]
      %v1477 = vld [vmem:[#allocation9 + $0xff8] sm:$0xff]
      %v1478 = vld [vmem:[#allocation9 + $0x1000] sm:$0xff]
      %v1479 = vld [vmem:[#allocation9 + $0x1008] sm:$0xff]
      %v1480 = vld [vmem:[#allocation9 + $0x1010] sm:$0xff]
      %v1481 = vld [vmem:[#allocation9 + $0x1018] sm:$0xff]
      %v1482 = vld [vmem:[#allocation9 + $0x1020] sm:$0xff]
      %v1483 = vld [vmem:[#allocation9 + $0x1028] sm:$0xff]
      %v1484 = vld [vmem:[#allocation9 + $0x1030] sm:$0xff]
      %v1485 = vld [vmem:[#allocation9 + $0x1038] sm:$0xff]
      %v1486 = vld [vmem:[#allocation9 + $0x1040] sm:$0xff]
      %v1487 = vld [vmem:[#allocation9 + $0x1048] sm:$0xff]
      %v1488 = vld [vmem:[#allocation9 + $0x1050] sm:$0xff]
      %v1489 = vld [vmem:[#allocation9 + $0x1058] sm:$0xff]
      %v1490 = vld [vmem:[#allocation9 + $0x1060] sm:$0xff]
      %v1491 = vld [vmem:[#allocation9 + $0x1068] sm:$0xff]
      %v1492 = vld [vmem:[#allocation9 + $0x1070] sm:$0xff]
      %v1493 = vld [vmem:[#allocation9 + $0x1078] sm:$0xff]
      %v1494 = vld [vmem:[#allocation9 + $0x1080] sm:$0xff]
      %v1495 = vld [vmem:[#allocation9 + $0x1088] sm:$0xff]
      %v1496 = vld [vmem:[#allocation9 + $0x1090] sm:$0xff]
      %v1497 = vld [vmem:[#allocation9 + $0x1098] sm:$0xff]
      %v1498 = vld [vmem:[#allocation9 + $0x10a0] sm:$0xff]
      %v1499 = vld [vmem:[#allocation9 + $0x10a8] sm:$0xff]
      %v1500 = vld [vmem:[#allocation9 + $0x10b0] sm:$0xff]
      %v1501 = vld [vmem:[#allocation9 + $0x10b8] sm:$0xff]
      %v1502 = vld [vmem:[#allocation9 + $0x10c0] sm:$0xff]
      %v1503 = vld [vmem:[#allocation9 + $0x10c8] sm:$0xff]
      %v1504 = vld [vmem:[#allocation9 + $0x10d0] sm:$0xff]
      %v1505 = vld [vmem:[#allocation9 + $0x10d8] sm:$0xff]
      %v1506 = vld [vmem:[#allocation9 + $0x10e0] sm:$0xff]
      %v1507 = vld [vmem:[#allocation9 + $0x10e8] sm:$0xff]
      %v1508 = vld [vmem:[#allocation9 + $0x10f0] sm:$0xff]
      %v1509 = vld [vmem:[#allocation9 + $0x10f8] sm:$0xff]
      %v1510 = vld [vmem:[#allocation9 + $0x1100] sm:$0xff]
      %v1511 = vld [vmem:[#allocation9 + $0x1108] sm:$0xff]
      %v1512 = vld [vmem:[#allocation9 + $0x1110] sm:$0xff]
      %v1513 = vld [vmem:[#allocation9 + $0x1118] sm:$0xff]
      %v1514 = vld [vmem:[#allocation9 + $0x1120] sm:$0xff]
      %v1515 = vld [vmem:[#allocation9 + $0x1128] sm:$0xff]
      %v1516 = vld [vmem:[#allocation9 + $0x1130] sm:$0xff]
      %v1517 = vld [vmem:[#allocation9 + $0x1138] sm:$0xff]
      %v1518 = vld [vmem:[#allocation9 + $0x1140] sm:$0xff]
      %v1519 = vld [vmem:[#allocation9 + $0x1148] sm:$0xff]
      %v1520 = vld [vmem:[#allocation9 + $0x1150] sm:$0xff]
      %v1521 = vld [vmem:[#allocation9 + $0x1158] sm:$0xff]
      %v1522 = vld [vmem:[#allocation9 + $0x1160] sm:$0xff]
      %v1523 = vld [vmem:[#allocation9 + $0x1168] sm:$0xff]
      %v1524 = vld [vmem:[#allocation9 + $0x1170] sm:$0xff]
      %v1525 = vld [vmem:[#allocation9 + $0x1178] sm:$0xff]
      %v1526 = vld [vmem:[#allocation9 + $0x1180] sm:$0xff]
      %v1527 = vld [vmem:[#allocation9 + $0x1188] sm:$0xff]
      %v1528 = vld [vmem:[#allocation9 + $0x1190] sm:$0xff]
      %v1529 = vld [vmem:[#allocation9 + $0x1198] sm:$0xff]
      %v1530 = vld [vmem:[#allocation9 + $0x11a0] sm:$0xff]
      %v1531 = vld [vmem:[#allocation9 + $0x11a8] sm:$0xff]
      %v1532 = vld [vmem:[#allocation9 + $0x11b0] sm:$0xff]
      %v1533 = vld [vmem:[#allocation9 + $0x11b8] sm:$0xff]
      %v1534 = vld [vmem:[#allocation9 + $0x11c0] sm:$0xff]
      %v1535 = vld [vmem:[#allocation9 + $0x11c8] sm:$0xff]
      %v1536 = vld [vmem:[#allocation9 + $0x11d0] sm:$0xff]
      %v1537 = vld [vmem:[#allocation9 + $0x11d8] sm:$0xff]
      %v1538 = vld [vmem:[#allocation9 + $0x11e0] sm:$0xff]
      %v1539 = vld [vmem:[#allocation9 + $0x11e8] sm:$0xff]
      %v1540 = vld [vmem:[#allocation9 + $0x11f0] sm:$0xff]
      %v1541 = vld [vmem:[#allocation9 + $0x11f8] sm:$0xff]
      %v1542 = vld [vmem:[#allocation10] sm:$0xff]
      %v1543 = vld [vmem:[#allocation10 + $0x8] sm:$0xf]
      %v1546 = vperm.slane %v1542, 0
      %v1547 = vperm.slane %v1542, 1
      %v1548 = vperm.slane %v1542, 2
      %v1549 = vperm.slane %v1542, 3
      %v1550 = vperm.slane %v1542, 4
      %v1551 = vperm.slane %v1542, 5
      %v1552 = vperm.slane %v1542, 6
      %v1553 = vperm.slane %v1542, 7
      %v1554 = vperm.slane %v1543, 0
      %v1555 = vperm.slane %v1543, 1
      %v1556 = vperm.slane %v1543, 2
      %v1557 = vperm.slane %v1543, 3
      %v1570 = vpack.c.bf16 %v960, %v960
      %v1571 = vpack.c.bf16 %v961, %v961
      %v1572 = vpack.c.bf16 %v962, %v962
      %v1573 = vpack.c.bf16 %v963, %v963
      %v1574 = vpack.c.bf16 %v964, %v964
      %v1575 = vpack.c.bf16 %v965, %v965
      %v2152 = vunpack.c.l.b16 %v966
      %v2153 = vunpack.c.h.b16 %v966
      %v2154 = vunpack.c.l.b16 %v967
      %v2155 = vunpack.c.h.b16 %v967
      %v2156 = vunpack.c.l.b16 %v968
      %v2157 = vunpack.c.h.b16 %v968
      %v2158 = vunpack.c.l.b16 %v969
      %v2159 = vunpack.c.h.b16 %v969
      %v2160 = vunpack.c.l.b16 %v970
      %v2161 = vunpack.c.h.b16 %v970
      %v2162 = vunpack.c.l.b16 %v971
      %v2163 = vunpack.c.h.b16 %v971
      %v2164 = vunpack.c.l.b16 %v972
      %v2165 = vunpack.c.h.b16 %v972
      %v2166 = vunpack.c.l.b16 %v973
      %v2167 = vunpack.c.h.b16 %v973
      %v2168 = vunpack.c.l.b16 %v974
      %v2169 = vunpack.c.h.b16 %v974
      %v2170 = vunpack.c.l.b16 %v975
      %v2171 = vunpack.c.h.b16 %v975
      %v2172 = vunpack.c.l.b16 %v976
      %v2173 = vunpack.c.h.b16 %v976
      %v2174 = vunpack.c.l.b16 %v977
      %v2175 = vunpack.c.h.b16 %v977
      %v2176 = vunpack.c.l.b16 %v978
      %v2177 = vunpack.c.h.b16 %v978
      %v2178 = vunpack.c.l.b16 %v979
      %v2179 = vunpack.c.h.b16 %v979
      %v2180 = vunpack.c.l.b16 %v980
      %v2181 = vunpack.c.h.b16 %v980
      %v2182 = vunpack.c.l.b16 %v981
      %v2183 = vunpack.c.h.b16 %v981
      %v2184 = vunpack.c.l.b16 %v982
      %v2185 = vunpack.c.h.b16 %v982
      %v2186 = vunpack.c.l.b16 %v983
      %v2187 = vunpack.c.h.b16 %v983
      %v2188 = vunpack.c.l.b16 %v984
      %v2189 = vunpack.c.h.b16 %v984
      %v2190 = vunpack.c.l.b16 %v985
      %v2191 = vunpack.c.h.b16 %v985
      %v2192 = vunpack.c.l.b16 %v986
      %v2193 = vunpack.c.h.b16 %v986
      %v2194 = vunpack.c.l.b16 %v987
      %v2195 = vunpack.c.h.b16 %v987
      %v2196 = vunpack.c.l.b16 %v988
      %v2197 = vunpack.c.h.b16 %v988
      %v2198 = vunpack.c.l.b16 %v989
      %v2199 = vunpack.c.h.b16 %v989
      %v2200 = vunpack.c.l.b16 %v990
      %v2201 = vunpack.c.h.b16 %v990
      %v2202 = vunpack.c.l.b16 %v991
      %v2203 = vunpack.c.h.b16 %v991
      %v2204 = vunpack.c.l.b16 %v992
      %v2205 = vunpack.c.h.b16 %v992
      %v2206 = vunpack.c.l.b16 %v993
      %v2207 = vunpack.c.h.b16 %v993
      %v2208 = vunpack.c.l.b16 %v994
      %v2209 = vunpack.c.h.b16 %v994
      %v2210 = vunpack.c.l.b16 %v995
      %v2211 = vunpack.c.h.b16 %v995
      %v2212 = vunpack.c.l.b16 %v996
      %v2213 = vunpack.c.h.b16 %v996
      %v2214 = vunpack.c.l.b16 %v997
      %v2215 = vunpack.c.h.b16 %v997
      %v2216 = vunpack.c.l.b16 %v998
      %v2217 = vunpack.c.h.b16 %v998
      %v2218 = vunpack.c.l.b16 %v999
      %v2219 = vunpack.c.h.b16 %v999
      %v2220 = vunpack.c.l.b16 %v1000
      %v2221 = vunpack.c.h.b16 %v1000
      %v2222 = vunpack.c.l.b16 %v1001
      %v2223 = vunpack.c.h.b16 %v1001
      %v2224 = vunpack.c.l.b16 %v1002
      %v2225 = vunpack.c.h.b16 %v1002
      %v2226 = vunpack.c.l.b16 %v1003
      %v2227 = vunpack.c.h.b16 %v1003
      %v2228 = vunpack.c.l.b16 %v1004
      %v2229 = vunpack.c.h.b16 %v1004
      %v2230 = vunpack.c.l.b16 %v1005
      %v2231 = vunpack.c.h.b16 %v1005
      %v2232 = vunpack.c.l.b16 %v1006
      %v2233 = vunpack.c.h.b16 %v1006
      %v2234 = vunpack.c.l.b16 %v1007
      %v2235 = vunpack.c.h.b16 %v1007
      %v2236 = vunpack.c.l.b16 %v1008
      %v2237 = vunpack.c.h.b16 %v1008
      %v2238 = vunpack.c.l.b16 %v1009
      %v2239 = vunpack.c.h.b16 %v1009
      %v2240 = vunpack.c.l.b16 %v1010
      %v2241 = vunpack.c.h.b16 %v1010
      %v2242 = vunpack.c.l.b16 %v1011
      %v2243 = vunpack.c.h.b16 %v1011
      %v2244 = vunpack.c.l.b16 %v1012
      %v2245 = vunpack.c.h.b16 %v1012
      %v2246 = vunpack.c.l.b16 %v1013
      %v2247 = vunpack.c.h.b16 %v1013
      %v2248 = vunpack.c.l.b16 %v1014
      %v2249 = vunpack.c.h.b16 %v1014
      %v2250 = vunpack.c.l.b16 %v1015
      %v2251 = vunpack.c.h.b16 %v1015
      %v2252 = vunpack.c.l.b16 %v1016
      %v2253 = vunpack.c.h.b16 %v1016
      %v2254 = vunpack.c.l.b16 %v1017
      %v2255 = vunpack.c.h.b16 %v1017
      %v2256 = vunpack.c.l.b16 %v1018
      %v2257 = vunpack.c.h.b16 %v1018
      %v2258 = vunpack.c.l.b16 %v1019
      %v2259 = vunpack.c.h.b16 %v1019
      %v2260 = vunpack.c.l.b16 %v1020
      %v2261 = vunpack.c.h.b16 %v1020
      %v2262 = vunpack.c.l.b16 %v1021
      %v2263 = vunpack.c.h.b16 %v1021
      %v2264 = vunpack.c.l.b16 %v1022
      %v2265 = vunpack.c.h.b16 %v1022
      %v2266 = vunpack.c.l.b16 %v1023
      %v2267 = vunpack.c.h.b16 %v1023
      %v2268 = vunpack.c.l.b16 %v1024
      %v2269 = vunpack.c.h.b16 %v1024
      %v2270 = vunpack.c.l.b16 %v1025
      %v2271 = vunpack.c.h.b16 %v1025
      %v2272 = vunpack.c.l.b16 %v1026
      %v2273 = vunpack.c.h.b16 %v1026
      %v2274 = vunpack.c.l.b16 %v1027
      %v2275 = vunpack.c.h.b16 %v1027
      %v2276 = vunpack.c.l.b16 %v1028
      %v2277 = vunpack.c.h.b16 %v1028
      %v2278 = vunpack.c.l.b16 %v1029
      %v2279 = vunpack.c.h.b16 %v1029
      %v2280 = vunpack.c.l.b16 %v1030
      %v2281 = vunpack.c.h.b16 %v1030
      %v2282 = vunpack.c.l.b16 %v1031
      %v2283 = vunpack.c.h.b16 %v1031
      %v2284 = vunpack.c.l.b16 %v1032
      %v2285 = vunpack.c.h.b16 %v1032
      %v2286 = vunpack.c.l.b16 %v1033
      %v2287 = vunpack.c.h.b16 %v1033
      %v2288 = vunpack.c.l.b16 %v1034
      %v2289 = vunpack.c.h.b16 %v1034
      %v2290 = vunpack.c.l.b16 %v1035
      %v2291 = vunpack.c.h.b16 %v1035
      %v2292 = vunpack.c.l.b16 %v1036
      %v2293 = vunpack.c.h.b16 %v1036
      %v2294 = vunpack.c.l.b16 %v1037
      %v2295 = vunpack.c.h.b16 %v1037
      %v2296 = vunpack.c.l.b16 %v1038
      %v2297 = vunpack.c.h.b16 %v1038
      %v2298 = vunpack.c.l.b16 %v1039
      %v2299 = vunpack.c.h.b16 %v1039
      %v2300 = vunpack.c.l.b16 %v1040
      %v2301 = vunpack.c.h.b16 %v1040
      %v2302 = vunpack.c.l.b16 %v1041
      %v2303 = vunpack.c.h.b16 %v1041
      %v2304 = vunpack.c.l.b16 %v1042
      %v2305 = vunpack.c.h.b16 %v1042
      %v2306 = vunpack.c.l.b16 %v1043
      %v2307 = vunpack.c.h.b16 %v1043
      %v2308 = vunpack.c.l.b16 %v1044
      %v2309 = vunpack.c.h.b16 %v1044
      %v2310 = vunpack.c.l.b16 %v1045
      %v2311 = vunpack.c.h.b16 %v1045
      %v2312 = vunpack.c.l.b16 %v1046
      %v2313 = vunpack.c.h.b16 %v1046
      %v2314 = vunpack.c.l.b16 %v1047
      %v2315 = vunpack.c.h.b16 %v1047
      %v2316 = vunpack.c.l.b16 %v1048
      %v2317 = vunpack.c.h.b16 %v1048
      %v2318 = vunpack.c.l.b16 %v1049
      %v2319 = vunpack.c.h.b16 %v1049
      %v2320 = vunpack.c.l.b16 %v1050
      %v2321 = vunpack.c.h.b16 %v1050
      %v2322 = vunpack.c.l.b16 %v1051
      %v2323 = vunpack.c.h.b16 %v1051
      %v2324 = vunpack.c.l.b16 %v1052
      %v2325 = vunpack.c.h.b16 %v1052
      %v2326 = vunpack.c.l.b16 %v1053
      %v2327 = vunpack.c.h.b16 %v1053
      %v2328 = vunpack.c.l.b16 %v1054
      %v2329 = vunpack.c.h.b16 %v1054
      %v2330 = vunpack.c.l.b16 %v1055
      %v2331 = vunpack.c.h.b16 %v1055
      %v2332 = vunpack.c.l.b16 %v1056
      %v2333 = vunpack.c.h.b16 %v1056
      %v2334 = vunpack.c.l.b16 %v1057
      %v2335 = vunpack.c.h.b16 %v1057
      %v2336 = vunpack.c.l.b16 %v1058
      %v2337 = vunpack.c.h.b16 %v1058
      %v2338 = vunpack.c.l.b16 %v1059
      %v2339 = vunpack.c.h.b16 %v1059
      %v2340 = vunpack.c.l.b16 %v1060
      %v2341 = vunpack.c.h.b16 %v1060
      %v2342 = vunpack.c.l.b16 %v1061
      %v2343 = vunpack.c.h.b16 %v1061
      %v2344 = vunpack.c.l.b16 %v1062
      %v2345 = vunpack.c.h.b16 %v1062
      %v2346 = vunpack.c.l.b16 %v1063
      %v2347 = vunpack.c.h.b16 %v1063
      %v2348 = vunpack.c.l.b16 %v1064
      %v2349 = vunpack.c.h.b16 %v1064
      %v2350 = vunpack.c.l.b16 %v1065
      %v2351 = vunpack.c.h.b16 %v1065
      %v2352 = vunpack.c.l.b16 %v1066
      %v2353 = vunpack.c.h.b16 %v1066
      %v2354 = vunpack.c.l.b16 %v1067
      %v2355 = vunpack.c.h.b16 %v1067
      %v2356 = vunpack.c.l.b16 %v1068
      %v2357 = vunpack.c.h.b16 %v1068
      %v2358 = vunpack.c.l.b16 %v1069
      %v2359 = vunpack.c.h.b16 %v1069
      %v2360 = vunpack.c.l.b16 %v1070
      %v2361 = vunpack.c.h.b16 %v1070
      %v2362 = vunpack.c.l.b16 %v1071
      %v2363 = vunpack.c.h.b16 %v1071
      %v2364 = vunpack.c.l.b16 %v1072
      %v2365 = vunpack.c.h.b16 %v1072
      %v2366 = vunpack.c.l.b16 %v1073
      %v2367 = vunpack.c.h.b16 %v1073
      %v2368 = vunpack.c.l.b16 %v1074
      %v2369 = vunpack.c.h.b16 %v1074
      %v2370 = vunpack.c.l.b16 %v1075
      %v2371 = vunpack.c.h.b16 %v1075
      %v2372 = vunpack.c.l.b16 %v1076
      %v2373 = vunpack.c.h.b16 %v1076
      %v2374 = vunpack.c.l.b16 %v1077
      %v2375 = vunpack.c.h.b16 %v1077
      %v2376 = vunpack.c.l.b16 %v1078
      %v2377 = vunpack.c.h.b16 %v1078
      %v2378 = vunpack.c.l.b16 %v1079
      %v2379 = vunpack.c.h.b16 %v1079
      %v2380 = vunpack.c.l.b16 %v1080
      %v2381 = vunpack.c.h.b16 %v1080
      %v2382 = vunpack.c.l.b16 %v1081
      %v2383 = vunpack.c.h.b16 %v1081
      %v2384 = vunpack.c.l.b16 %v1082
      %v2385 = vunpack.c.h.b16 %v1082
      %v2386 = vunpack.c.l.b16 %v1083
      %v2387 = vunpack.c.h.b16 %v1083
      %v2388 = vunpack.c.l.b16 %v1084
      %v2389 = vunpack.c.h.b16 %v1084
      %v2390 = vunpack.c.l.b16 %v1085
      %v2391 = vunpack.c.h.b16 %v1085
      %v2392 = vunpack.c.l.b16 %v1086
      %v2393 = vunpack.c.h.b16 %v1086
      %v2394 = vunpack.c.l.b16 %v1087
      %v2395 = vunpack.c.h.b16 %v1087
      %v2396 = vunpack.c.l.b16 %v1088
      %v2397 = vunpack.c.h.b16 %v1088
      %v2398 = vunpack.c.l.b16 %v1089
      %v2399 = vunpack.c.h.b16 %v1089
      %v2400 = vunpack.c.l.b16 %v1090
      %v2401 = vunpack.c.h.b16 %v1090
      %v2402 = vunpack.c.l.b16 %v1091
      %v2403 = vunpack.c.h.b16 %v1091
      %v2404 = vunpack.c.l.b16 %v1092
      %v2405 = vunpack.c.h.b16 %v1092
      %v2406 = vunpack.c.l.b16 %v1093
      %v2407 = vunpack.c.h.b16 %v1093
      %v2408 = vunpack.c.l.b16 %v1094
      %v2409 = vunpack.c.h.b16 %v1094
      %v2410 = vunpack.c.l.b16 %v1095
      %v2411 = vunpack.c.h.b16 %v1095
      %v2412 = vunpack.c.l.b16 %v1096
      %v2413 = vunpack.c.h.b16 %v1096
      %v2414 = vunpack.c.l.b16 %v1097
      %v2415 = vunpack.c.h.b16 %v1097
      %v2416 = vunpack.c.l.b16 %v1098
      %v2417 = vunpack.c.h.b16 %v1098
      %v2418 = vunpack.c.l.b16 %v1099
      %v2419 = vunpack.c.h.b16 %v1099
      %v2420 = vunpack.c.l.b16 %v1100
      %v2421 = vunpack.c.h.b16 %v1100
      %v2422 = vunpack.c.l.b16 %v1101
      %v2423 = vunpack.c.h.b16 %v1101
      %v2424 = vunpack.c.l.b16 %v1102
      %v2425 = vunpack.c.h.b16 %v1102
      %v2426 = vunpack.c.l.b16 %v1103
      %v2427 = vunpack.c.h.b16 %v1103
      %v2428 = vunpack.c.l.b16 %v1104
      %v2429 = vunpack.c.h.b16 %v1104
      %v2430 = vunpack.c.l.b16 %v1105
      %v2431 = vunpack.c.h.b16 %v1105
      %v2432 = vunpack.c.l.b16 %v1106
      %v2433 = vunpack.c.h.b16 %v1106
      %v2434 = vunpack.c.l.b16 %v1107
      %v2435 = vunpack.c.h.b16 %v1107
      %v2436 = vunpack.c.l.b16 %v1108
      %v2437 = vunpack.c.h.b16 %v1108
      %v2438 = vunpack.c.l.b16 %v1109
      %v2439 = vunpack.c.h.b16 %v1109
      %v2440 = vunpack.c.l.b16 %v1110
      %v2441 = vunpack.c.h.b16 %v1110
      %v2442 = vunpack.c.l.b16 %v1111
      %v2443 = vunpack.c.h.b16 %v1111
      %v2444 = vunpack.c.l.b16 %v1112
      %v2445 = vunpack.c.h.b16 %v1112
      %v2446 = vunpack.c.l.b16 %v1113
      %v2447 = vunpack.c.h.b16 %v1113
      %v2448 = vunpack.c.l.b16 %v1114
      %v2449 = vunpack.c.h.b16 %v1114
      %v2450 = vunpack.c.l.b16 %v1115
      %v2451 = vunpack.c.h.b16 %v1115
      %v2452 = vunpack.c.l.b16 %v1116
      %v2453 = vunpack.c.h.b16 %v1116
      %v2454 = vunpack.c.l.b16 %v1117
      %v2455 = vunpack.c.h.b16 %v1117
      %v2456 = vunpack.c.l.b16 %v1118
      %v2457 = vunpack.c.h.b16 %v1118
      %v2458 = vunpack.c.l.b16 %v1119
      %v2459 = vunpack.c.h.b16 %v1119
      %v2460 = vunpack.c.l.b16 %v1120
      %v2461 = vunpack.c.h.b16 %v1120
      %v2462 = vunpack.c.l.b16 %v1121
      %v2463 = vunpack.c.h.b16 %v1121
      %v2464 = vunpack.c.l.b16 %v1122
      %v2465 = vunpack.c.h.b16 %v1122
      %v2466 = vunpack.c.l.b16 %v1123
      %v2467 = vunpack.c.h.b16 %v1123
      %v2468 = vunpack.c.l.b16 %v1124
      %v2469 = vunpack.c.h.b16 %v1124
      %v2470 = vunpack.c.l.b16 %v1125
      %v2471 = vunpack.c.h.b16 %v1125
      %v2472 = vunpack.c.l.b16 %v1126
      %v2473 = vunpack.c.h.b16 %v1126
      %v2474 = vunpack.c.l.b16 %v1127
      %v2475 = vunpack.c.h.b16 %v1127
      %v2476 = vunpack.c.l.b16 %v1128
      %v2477 = vunpack.c.h.b16 %v1128
      %v2478 = vunpack.c.l.b16 %v1129
      %v2479 = vunpack.c.h.b16 %v1129
      %v2480 = vunpack.c.l.b16 %v1130
      %v2481 = vunpack.c.h.b16 %v1130
      %v2482 = vunpack.c.l.b16 %v1131
      %v2483 = vunpack.c.h.b16 %v1131
      %v2484 = vunpack.c.l.b16 %v1132
      %v2485 = vunpack.c.h.b16 %v1132
      %v2486 = vunpack.c.l.b16 %v1133
      %v2487 = vunpack.c.h.b16 %v1133
      %v2488 = vunpack.c.l.b16 %v1134
      %v2489 = vunpack.c.h.b16 %v1134
      %v2490 = vunpack.c.l.b16 %v1135
      %v2491 = vunpack.c.h.b16 %v1135
      %v2492 = vunpack.c.l.b16 %v1136
      %v2493 = vunpack.c.h.b16 %v1136
      %v2494 = vunpack.c.l.b16 %v1137
      %v2495 = vunpack.c.h.b16 %v1137
      %v2496 = vunpack.c.l.b16 %v1138
      %v2497 = vunpack.c.h.b16 %v1138
      %v2498 = vunpack.c.l.b16 %v1139
      %v2499 = vunpack.c.h.b16 %v1139
      %v2500 = vunpack.c.l.b16 %v1140
      %v2501 = vunpack.c.h.b16 %v1140
      %v2502 = vunpack.c.l.b16 %v1141
      %v2503 = vunpack.c.h.b16 %v1141
      %v2504 = vunpack.c.l.b16 %v1142
      %v2505 = vunpack.c.h.b16 %v1142
      %v2506 = vunpack.c.l.b16 %v1143
      %v2507 = vunpack.c.h.b16 %v1143
      %v2508 = vunpack.c.l.b16 %v1144
      %v2509 = vunpack.c.h.b16 %v1144
      %v2510 = vunpack.c.l.b16 %v1145
      %v2511 = vunpack.c.h.b16 %v1145
      %v2512 = vunpack.c.l.b16 %v1146
      %v2513 = vunpack.c.h.b16 %v1146
      %v2514 = vunpack.c.l.b16 %v1147
      %v2515 = vunpack.c.h.b16 %v1147
      %v2516 = vunpack.c.l.b16 %v1148
      %v2517 = vunpack.c.h.b16 %v1148
      %v2518 = vunpack.c.l.b16 %v1149
      %v2519 = vunpack.c.h.b16 %v1149
      %v2520 = vunpack.c.l.b16 %v1150
      %v2521 = vunpack.c.h.b16 %v1150
      %v2522 = vunpack.c.l.b16 %v1151
      %v2523 = vunpack.c.h.b16 %v1151
      %v2524 = vunpack.c.l.b16 %v1152
      %v2525 = vunpack.c.h.b16 %v1152
      %v2526 = vunpack.c.l.b16 %v1153
      %v2527 = vunpack.c.h.b16 %v1153
      %v2528 = vunpack.c.l.b16 %v1154
      %v2529 = vunpack.c.h.b16 %v1154
      %v2530 = vunpack.c.l.b16 %v1155
      %v2531 = vunpack.c.h.b16 %v1155
      %v2532 = vunpack.c.l.b16 %v1156
      %v2533 = vunpack.c.h.b16 %v1156
      %v2534 = vunpack.c.l.b16 %v1157
      %v2535 = vunpack.c.h.b16 %v1157
      %v2536 = vunpack.c.l.b16 %v1158
      %v2537 = vunpack.c.h.b16 %v1158
      %v2538 = vunpack.c.l.b16 %v1159
      %v2539 = vunpack.c.h.b16 %v1159
      %v2540 = vunpack.c.l.b16 %v1160
      %v2541 = vunpack.c.h.b16 %v1160
      %v2542 = vunpack.c.l.b16 %v1161
      %v2543 = vunpack.c.h.b16 %v1161
      %v2544 = vunpack.c.l.b16 %v1162
      %v2545 = vunpack.c.h.b16 %v1162
      %v2546 = vunpack.c.l.b16 %v1163
      %v2547 = vunpack.c.h.b16 %v1163
      %v2548 = vunpack.c.l.b16 %v1164
      %v2549 = vunpack.c.h.b16 %v1164
      %v2550 = vunpack.c.l.b16 %v1165
      %v2551 = vunpack.c.h.b16 %v1165
      %v2552 = vunpack.c.l.b16 %v1166
      %v2553 = vunpack.c.h.b16 %v1166
      %v2554 = vunpack.c.l.b16 %v1167
      %v2555 = vunpack.c.h.b16 %v1167
      %v2556 = vunpack.c.l.b16 %v1168
      %v2557 = vunpack.c.h.b16 %v1168
      %v2558 = vunpack.c.l.b16 %v1169
      %v2559 = vunpack.c.h.b16 %v1169
      %v2560 = vunpack.c.l.b16 %v1170
      %v2561 = vunpack.c.h.b16 %v1170
      %v2562 = vunpack.c.l.b16 %v1171
      %v2563 = vunpack.c.h.b16 %v1171
      %v2564 = vunpack.c.l.b16 %v1172
      %v2565 = vunpack.c.h.b16 %v1172
      %v2566 = vunpack.c.l.b16 %v1173
      %v2567 = vunpack.c.h.b16 %v1173
      %v2568 = vunpack.c.l.b16 %v1174
      %v2569 = vunpack.c.h.b16 %v1174
      %v2570 = vunpack.c.l.b16 %v1175
      %v2571 = vunpack.c.h.b16 %v1175
      %v2572 = vunpack.c.l.b16 %v1176
      %v2573 = vunpack.c.h.b16 %v1176
      %v2574 = vunpack.c.l.b16 %v1177
      %v2575 = vunpack.c.h.b16 %v1177
      %v2576 = vunpack.c.l.b16 %v1178
      %v2577 = vunpack.c.h.b16 %v1178
      %v2578 = vunpack.c.l.b16 %v1179
      %v2579 = vunpack.c.h.b16 %v1179
      %v2580 = vunpack.c.l.b16 %v1180
      %v2581 = vunpack.c.h.b16 %v1180
      %v2582 = vunpack.c.l.b16 %v1181
      %v2583 = vunpack.c.h.b16 %v1181
      %v2584 = vunpack.c.l.b16 %v1182
      %v2585 = vunpack.c.h.b16 %v1182
      %v2586 = vunpack.c.l.b16 %v1183
      %v2587 = vunpack.c.h.b16 %v1183
      %v2588 = vunpack.c.l.b16 %v1184
      %v2589 = vunpack.c.h.b16 %v1184
      %v2590 = vunpack.c.l.b16 %v1185
      %v2591 = vunpack.c.h.b16 %v1185
      %v2592 = vunpack.c.l.b16 %v1186
      %v2593 = vunpack.c.h.b16 %v1186
      %v2594 = vunpack.c.l.b16 %v1187
      %v2595 = vunpack.c.h.b16 %v1187
      %v2596 = vunpack.c.l.b16 %v1188
      %v2597 = vunpack.c.h.b16 %v1188
      %v2598 = vunpack.c.l.b16 %v1189
      %v2599 = vunpack.c.h.b16 %v1189
      %v2600 = vunpack.c.l.b16 %v1190
      %v2601 = vunpack.c.h.b16 %v1190
      %v2602 = vunpack.c.l.b16 %v1191
      %v2603 = vunpack.c.h.b16 %v1191
      %v2604 = vunpack.c.l.b16 %v1192
      %v2605 = vunpack.c.h.b16 %v1192
      %v2606 = vunpack.c.l.b16 %v1193
      %v2607 = vunpack.c.h.b16 %v1193
      %v2608 = vunpack.c.l.b16 %v1194
      %v2609 = vunpack.c.h.b16 %v1194
      %v2610 = vunpack.c.l.b16 %v1195
      %v2611 = vunpack.c.h.b16 %v1195
      %v2612 = vunpack.c.l.b16 %v1196
      %v2613 = vunpack.c.h.b16 %v1196
      %v2614 = vunpack.c.l.b16 %v1197
      %v2615 = vunpack.c.h.b16 %v1197
      %v2616 = vunpack.c.l.b16 %v1198
      %v2617 = vunpack.c.h.b16 %v1198
      %v2618 = vunpack.c.l.b16 %v1199
      %v2619 = vunpack.c.h.b16 %v1199
      %v2620 = vunpack.c.l.b16 %v1200
      %v2621 = vunpack.c.h.b16 %v1200
      %v2622 = vunpack.c.l.b16 %v1201
      %v2623 = vunpack.c.h.b16 %v1201
      %v2624 = vunpack.c.l.b16 %v1202
      %v2625 = vunpack.c.h.b16 %v1202
      %v2626 = vunpack.c.l.b16 %v1203
      %v2627 = vunpack.c.h.b16 %v1203
      %v2628 = vunpack.c.l.b16 %v1204
      %v2629 = vunpack.c.h.b16 %v1204
      %v2630 = vunpack.c.l.b16 %v1205
      %v2631 = vunpack.c.h.b16 %v1205
      %v2632 = vunpack.c.l.b16 %v1206
      %v2633 = vunpack.c.h.b16 %v1206
      %v2634 = vunpack.c.l.b16 %v1207
      %v2635 = vunpack.c.h.b16 %v1207
      %v2636 = vunpack.c.l.b16 %v1208
      %v2637 = vunpack.c.h.b16 %v1208
      %v2638 = vunpack.c.l.b16 %v1209
      %v2639 = vunpack.c.h.b16 %v1209
      %v2640 = vunpack.c.l.b16 %v1210
      %v2641 = vunpack.c.h.b16 %v1210
      %v2642 = vunpack.c.l.b16 %v1211
      %v2643 = vunpack.c.h.b16 %v1211
      %v2644 = vunpack.c.l.b16 %v1212
      %v2645 = vunpack.c.h.b16 %v1212
      %v2646 = vunpack.c.l.b16 %v1213
      %v2647 = vunpack.c.h.b16 %v1213
      %v2648 = vunpack.c.l.b16 %v1214
      %v2649 = vunpack.c.h.b16 %v1214
      %v2650 = vunpack.c.l.b16 %v1215
      %v2651 = vunpack.c.h.b16 %v1215
      %v2652 = vunpack.c.l.b16 %v1216
      %v2653 = vunpack.c.h.b16 %v1216
      %v2654 = vunpack.c.l.b16 %v1217
      %v2655 = vunpack.c.h.b16 %v1217
      %v2656 = vunpack.c.l.b16 %v1218
      %v2657 = vunpack.c.h.b16 %v1218
      %v2658 = vunpack.c.l.b16 %v1219
      %v2659 = vunpack.c.h.b16 %v1219
      %v2660 = vunpack.c.l.b16 %v1220
      %v2661 = vunpack.c.h.b16 %v1220
      %v2662 = vunpack.c.l.b16 %v1221
      %v2663 = vunpack.c.h.b16 %v1221
      %v2664 = vunpack.c.l.b16 %v1222
      %v2665 = vunpack.c.h.b16 %v1222
      %v2666 = vunpack.c.l.b16 %v1223
      %v2667 = vunpack.c.h.b16 %v1223
      %v2668 = vunpack.c.l.b16 %v1224
      %v2669 = vunpack.c.h.b16 %v1224
      %v2670 = vunpack.c.l.b16 %v1225
      %v2671 = vunpack.c.h.b16 %v1225
      %v2672 = vunpack.c.l.b16 %v1226
      %v2673 = vunpack.c.h.b16 %v1226
      %v2674 = vunpack.c.l.b16 %v1227
      %v2675 = vunpack.c.h.b16 %v1227
      %v2676 = vunpack.c.l.b16 %v1228
      %v2677 = vunpack.c.h.b16 %v1228
      %v2678 = vunpack.c.l.b16 %v1229
      %v2679 = vunpack.c.h.b16 %v1229
      %v2680 = vunpack.c.l.b16 %v1230
      %v2681 = vunpack.c.h.b16 %v1230
      %v2682 = vunpack.c.l.b16 %v1231
      %v2683 = vunpack.c.h.b16 %v1231
      %v2684 = vunpack.c.l.b16 %v1232
      %v2685 = vunpack.c.h.b16 %v1232
      %v2686 = vunpack.c.l.b16 %v1233
      %v2687 = vunpack.c.h.b16 %v1233
      %v2688 = vunpack.c.l.b16 %v1234
      %v2689 = vunpack.c.h.b16 %v1234
      %v2690 = vunpack.c.l.b16 %v1235
      %v2691 = vunpack.c.h.b16 %v1235
      %v2692 = vunpack.c.l.b16 %v1236
      %v2693 = vunpack.c.h.b16 %v1236
      %v2694 = vunpack.c.l.b16 %v1237
      %v2695 = vunpack.c.h.b16 %v1237
      %v2696 = vunpack.c.l.b16 %v1238
      %v2697 = vunpack.c.h.b16 %v1238
      %v2698 = vunpack.c.l.b16 %v1239
      %v2699 = vunpack.c.h.b16 %v1239
      %v2700 = vunpack.c.l.b16 %v1240
      %v2701 = vunpack.c.h.b16 %v1240
      %v2702 = vunpack.c.l.b16 %v1241
      %v2703 = vunpack.c.h.b16 %v1241
      %v2704 = vunpack.c.l.b16 %v1242
      %v2705 = vunpack.c.h.b16 %v1242
      %v2706 = vunpack.c.l.b16 %v1243
      %v2707 = vunpack.c.h.b16 %v1243
      %v2708 = vunpack.c.l.b16 %v1244
      %v2709 = vunpack.c.h.b16 %v1244
      %v2710 = vunpack.c.l.b16 %v1245
      %v2711 = vunpack.c.h.b16 %v1245
      %v2712 = vunpack.c.l.b16 %v1246
      %v2713 = vunpack.c.h.b16 %v1246
      %v2714 = vunpack.c.l.b16 %v1247
      %v2715 = vunpack.c.h.b16 %v1247
      %v2716 = vunpack.c.l.b16 %v1248
      %v2717 = vunpack.c.h.b16 %v1248
      %v2718 = vunpack.c.l.b16 %v1249
      %v2719 = vunpack.c.h.b16 %v1249
      %v2720 = vunpack.c.l.b16 %v1250
      %v2721 = vunpack.c.h.b16 %v1250
      %v2722 = vunpack.c.l.b16 %v1251
      %v2723 = vunpack.c.h.b16 %v1251
      %v2724 = vunpack.c.l.b16 %v1252
      %v2725 = vunpack.c.h.b16 %v1252
      %v2726 = vunpack.c.l.b16 %v1253
      %v2727 = vunpack.c.h.b16 %v1253
      %v2728 = vunpack.c.l.b16 %v1254
      %v2729 = vunpack.c.h.b16 %v1254
      %v2730 = vunpack.c.l.b16 %v1255
      %v2731 = vunpack.c.h.b16 %v1255
      %v2732 = vunpack.c.l.b16 %v1256
      %v2733 = vunpack.c.h.b16 %v1256
      %v2734 = vunpack.c.l.b16 %v1257
      %v2735 = vunpack.c.h.b16 %v1257
      %v2736 = vunpack.c.l.b16 %v1258
      %v2737 = vunpack.c.h.b16 %v1258
      %v2738 = vunpack.c.l.b16 %v1259
      %v2739 = vunpack.c.h.b16 %v1259
      %v2740 = vunpack.c.l.b16 %v1260
      %v2741 = vunpack.c.h.b16 %v1260
      %v2742 = vunpack.c.l.b16 %v1261
      %v2743 = vunpack.c.h.b16 %v1261
      %v2744 = vunpack.c.l.b16 %v1262
      %v2745 = vunpack.c.h.b16 %v1262
      %v2746 = vunpack.c.l.b16 %v1263
      %v2747 = vunpack.c.h.b16 %v1263
      %v2748 = vunpack.c.l.b16 %v1264
      %v2749 = vunpack.c.h.b16 %v1264
      %v2750 = vunpack.c.l.b16 %v1265
      %v2751 = vunpack.c.h.b16 %v1265
      %v2752 = vunpack.c.l.b16 %v1266
      %v2753 = vunpack.c.h.b16 %v1266
      %v2754 = vunpack.c.l.b16 %v1267
      %v2755 = vunpack.c.h.b16 %v1267
      %v2756 = vunpack.c.l.b16 %v1268
      %v2757 = vunpack.c.h.b16 %v1268
      %v2758 = vunpack.c.l.b16 %v1269
      %v2759 = vunpack.c.h.b16 %v1269
      %v2760 = vunpack.c.l.b16 %v1270
      %v2761 = vunpack.c.h.b16 %v1270
      %v2762 = vunpack.c.l.b16 %v1271
      %v2763 = vunpack.c.h.b16 %v1271
      %v2764 = vunpack.c.l.b16 %v1272
      %v2765 = vunpack.c.h.b16 %v1272
      %v2766 = vunpack.c.l.b16 %v1273
      %v2767 = vunpack.c.h.b16 %v1273
      %v2768 = vunpack.c.l.b16 %v1274
      %v2769 = vunpack.c.h.b16 %v1274
      %v2770 = vunpack.c.l.b16 %v1275
      %v2771 = vunpack.c.h.b16 %v1275
      %v2772 = vunpack.c.l.b16 %v1276
      %v2773 = vunpack.c.h.b16 %v1276
      %v2774 = vunpack.c.l.b16 %v1277
      %v2775 = vunpack.c.h.b16 %v1277
      %v2776 = vunpack.c.l.b16 %v1278
      %v2777 = vunpack.c.h.b16 %v1278
      %v2778 = vunpack.c.l.b16 %v1279
      %v2779 = vunpack.c.h.b16 %v1279
      %v2780 = vunpack.c.l.b16 %v1280
      %v2781 = vunpack.c.h.b16 %v1280
      %v2782 = vunpack.c.l.b16 %v1281
      %v2783 = vunpack.c.h.b16 %v1281
      %v2784 = vunpack.c.l.b16 %v1282
      %v2785 = vunpack.c.h.b16 %v1282
      %v2786 = vunpack.c.l.b16 %v1283
      %v2787 = vunpack.c.h.b16 %v1283
      %v2788 = vunpack.c.l.b16 %v1284
      %v2789 = vunpack.c.h.b16 %v1284
      %v2790 = vunpack.c.l.b16 %v1285
      %v2791 = vunpack.c.h.b16 %v1285
      %v2792 = vunpack.c.l.b16 %v1286
      %v2793 = vunpack.c.h.b16 %v1286
      %v2794 = vunpack.c.l.b16 %v1287
      %v2795 = vunpack.c.h.b16 %v1287
      %v2796 = vunpack.c.l.b16 %v1288
      %v2797 = vunpack.c.h.b16 %v1288
      %v2798 = vunpack.c.l.b16 %v1289
      %v2799 = vunpack.c.h.b16 %v1289
      %v2800 = vunpack.c.l.b16 %v1290
      %v2801 = vunpack.c.h.b16 %v1290
      %v2802 = vunpack.c.l.b16 %v1291
      %v2803 = vunpack.c.h.b16 %v1291
      %v2804 = vunpack.c.l.b16 %v1292
      %v2805 = vunpack.c.h.b16 %v1292
      %v2806 = vunpack.c.l.b16 %v1293
      %v2807 = vunpack.c.h.b16 %v1293
      %v2808 = vunpack.c.l.b16 %v1294
      %v2809 = vunpack.c.h.b16 %v1294
      %v2810 = vunpack.c.l.b16 %v1295
      %v2811 = vunpack.c.h.b16 %v1295
      %v2812 = vunpack.c.l.b16 %v1296
      %v2813 = vunpack.c.h.b16 %v1296
      %v2814 = vunpack.c.l.b16 %v1297
      %v2815 = vunpack.c.h.b16 %v1297
      %v2816 = vunpack.c.l.b16 %v1298
      %v2817 = vunpack.c.h.b16 %v1298
      %v2818 = vunpack.c.l.b16 %v1299
      %v2819 = vunpack.c.h.b16 %v1299
      %v2820 = vunpack.c.l.b16 %v1300
      %v2821 = vunpack.c.h.b16 %v1300
      %v2822 = vunpack.c.l.b16 %v1301
      %v2823 = vunpack.c.h.b16 %v1301
      %v2824 = vunpack.c.l.b16 %v1302
      %v2825 = vunpack.c.h.b16 %v1302
      %v2826 = vunpack.c.l.b16 %v1303
      %v2827 = vunpack.c.h.b16 %v1303
      %v2828 = vunpack.c.l.b16 %v1304
      %v2829 = vunpack.c.h.b16 %v1304
      %v2830 = vunpack.c.l.b16 %v1305
      %v2831 = vunpack.c.h.b16 %v1305
      %v2832 = vunpack.c.l.b16 %v1306
      %v2833 = vunpack.c.h.b16 %v1306
      %v2834 = vunpack.c.l.b16 %v1307
      %v2835 = vunpack.c.h.b16 %v1307
      %v2836 = vunpack.c.l.b16 %v1308
      %v2837 = vunpack.c.h.b16 %v1308
      %v2838 = vunpack.c.l.b16 %v1309
      %v2839 = vunpack.c.h.b16 %v1309
      %v2840 = vunpack.c.l.b16 %v1310
      %v2841 = vunpack.c.h.b16 %v1310
      %v2842 = vunpack.c.l.b16 %v1311
      %v2843 = vunpack.c.h.b16 %v1311
      %v2844 = vunpack.c.l.b16 %v1312
      %v2845 = vunpack.c.h.b16 %v1312
      %v2846 = vunpack.c.l.b16 %v1313
      %v2847 = vunpack.c.h.b16 %v1313
      %v2848 = vunpack.c.l.b16 %v1314
      %v2849 = vunpack.c.h.b16 %v1314
      %v2850 = vunpack.c.l.b16 %v1315
      %v2851 = vunpack.c.h.b16 %v1315
      %v2852 = vunpack.c.l.b16 %v1316
      %v2853 = vunpack.c.h.b16 %v1316
      %v2854 = vunpack.c.l.b16 %v1317
      %v2855 = vunpack.c.h.b16 %v1317
      %v2856 = vunpack.c.l.b16 %v1318
      %v2857 = vunpack.c.h.b16 %v1318
      %v2858 = vunpack.c.l.b16 %v1319
      %v2859 = vunpack.c.h.b16 %v1319
      %v2860 = vunpack.c.l.b16 %v1320
      %v2861 = vunpack.c.h.b16 %v1320
      %v2862 = vunpack.c.l.b16 %v1321
      %v2863 = vunpack.c.h.b16 %v1321
      %v2864 = vunpack.c.l.b16 %v1322
      %v2865 = vunpack.c.h.b16 %v1322
      %v2866 = vunpack.c.l.b16 %v1323
      %v2867 = vunpack.c.h.b16 %v1323
      %v2868 = vunpack.c.l.b16 %v1324
      %v2869 = vunpack.c.h.b16 %v1324
      %v2870 = vunpack.c.l.b16 %v1325
      %v2871 = vunpack.c.h.b16 %v1325
      %v2872 = vunpack.c.l.b16 %v1326
      %v2873 = vunpack.c.h.b16 %v1326
      %v2874 = vunpack.c.l.b16 %v1327
      %v2875 = vunpack.c.h.b16 %v1327
      %v2876 = vunpack.c.l.b16 %v1328
      %v2877 = vunpack.c.h.b16 %v1328
      %v2878 = vunpack.c.l.b16 %v1329
      %v2879 = vunpack.c.h.b16 %v1329
      %v2880 = vunpack.c.l.b16 %v1330
      %v2881 = vunpack.c.h.b16 %v1330
      %v2882 = vunpack.c.l.b16 %v1331
      %v2883 = vunpack.c.h.b16 %v1331
      %v2884 = vunpack.c.l.b16 %v1332
      %v2885 = vunpack.c.h.b16 %v1332
      %v2886 = vunpack.c.l.b16 %v1333
      %v2887 = vunpack.c.h.b16 %v1333
      %v2888 = vunpack.c.l.b16 %v1334
      %v2889 = vunpack.c.h.b16 %v1334
      %v2890 = vunpack.c.l.b16 %v1335
      %v2891 = vunpack.c.h.b16 %v1335
      %v2892 = vunpack.c.l.b16 %v1336
      %v2893 = vunpack.c.h.b16 %v1336
      %v2894 = vunpack.c.l.b16 %v1337
      %v2895 = vunpack.c.h.b16 %v1337
      %v2896 = vunpack.c.l.b16 %v1338
      %v2897 = vunpack.c.h.b16 %v1338
      %v2898 = vunpack.c.l.b16 %v1339
      %v2899 = vunpack.c.h.b16 %v1339
      %v2900 = vunpack.c.l.b16 %v1340
      %v2901 = vunpack.c.h.b16 %v1340
      %v2902 = vunpack.c.l.b16 %v1341
      %v2903 = vunpack.c.h.b16 %v1341
      %v2904 = vunpack.c.l.b16 %v1342
      %v2905 = vunpack.c.h.b16 %v1342
      %v2906 = vunpack.c.l.b16 %v1343
      %v2907 = vunpack.c.h.b16 %v1343
      %v2908 = vunpack.c.l.b16 %v1344
      %v2909 = vunpack.c.h.b16 %v1344
      %v2910 = vunpack.c.l.b16 %v1345
      %v2911 = vunpack.c.h.b16 %v1345
      %v2912 = vunpack.c.l.b16 %v1346
      %v2913 = vunpack.c.h.b16 %v1346
      %v2914 = vunpack.c.l.b16 %v1347
      %v2915 = vunpack.c.h.b16 %v1347
      %v2916 = vunpack.c.l.b16 %v1348
      %v2917 = vunpack.c.h.b16 %v1348
      %v2918 = vunpack.c.l.b16 %v1349
      %v2919 = vunpack.c.h.b16 %v1349
      %v2920 = vunpack.c.l.b16 %v1350
      %v2921 = vunpack.c.h.b16 %v1350
      %v2922 = vunpack.c.l.b16 %v1351
      %v2923 = vunpack.c.h.b16 %v1351
      %v2924 = vunpack.c.l.b16 %v1352
      %v2925 = vunpack.c.h.b16 %v1352
      %v2926 = vunpack.c.l.b16 %v1353
      %v2927 = vunpack.c.h.b16 %v1353
      %v2928 = vunpack.c.l.b16 %v1354
      %v2929 = vunpack.c.h.b16 %v1354
      %v2930 = vunpack.c.l.b16 %v1355
      %v2931 = vunpack.c.h.b16 %v1355
      %v2932 = vunpack.c.l.b16 %v1356
      %v2933 = vunpack.c.h.b16 %v1356
      %v2934 = vunpack.c.l.b16 %v1357
      %v2935 = vunpack.c.h.b16 %v1357
      %v2936 = vunpack.c.l.b16 %v1358
      %v2937 = vunpack.c.h.b16 %v1358
      %v2938 = vunpack.c.l.b16 %v1359
      %v2939 = vunpack.c.h.b16 %v1359
      %v2940 = vunpack.c.l.b16 %v1360
      %v2941 = vunpack.c.h.b16 %v1360
      %v2942 = vunpack.c.l.b16 %v1361
      %v2943 = vunpack.c.h.b16 %v1361
      %v2944 = vunpack.c.l.b16 %v1362
      %v2945 = vunpack.c.h.b16 %v1362
      %v2946 = vunpack.c.l.b16 %v1363
      %v2947 = vunpack.c.h.b16 %v1363
      %v2948 = vunpack.c.l.b16 %v1364
      %v2949 = vunpack.c.h.b16 %v1364
      %v2950 = vunpack.c.l.b16 %v1365
      %v2951 = vunpack.c.h.b16 %v1365
      %v2952 = vunpack.c.l.b16 %v1366
      %v2953 = vunpack.c.h.b16 %v1366
      %v2954 = vunpack.c.l.b16 %v1367
      %v2955 = vunpack.c.h.b16 %v1367
      %v2956 = vunpack.c.l.b16 %v1368
      %v2957 = vunpack.c.h.b16 %v1368
      %v2958 = vunpack.c.l.b16 %v1369
      %v2959 = vunpack.c.h.b16 %v1369
      %v2960 = vunpack.c.l.b16 %v1370
      %v2961 = vunpack.c.h.b16 %v1370
      %v2962 = vunpack.c.l.b16 %v1371
      %v2963 = vunpack.c.h.b16 %v1371
      %v2964 = vunpack.c.l.b16 %v1372
      %v2965 = vunpack.c.h.b16 %v1372
      %v2966 = vunpack.c.l.b16 %v1373
      %v2967 = vunpack.c.h.b16 %v1373
      %v2968 = vunpack.c.l.b16 %v1374
      %v2969 = vunpack.c.h.b16 %v1374
      %v2970 = vunpack.c.l.b16 %v1375
      %v2971 = vunpack.c.h.b16 %v1375
      %v2972 = vunpack.c.l.b16 %v1376
      %v2973 = vunpack.c.h.b16 %v1376
      %v2974 = vunpack.c.l.b16 %v1377
      %v2975 = vunpack.c.h.b16 %v1377
      %v2976 = vunpack.c.l.b16 %v1378
      %v2977 = vunpack.c.h.b16 %v1378
      %v2978 = vunpack.c.l.b16 %v1379
      %v2979 = vunpack.c.h.b16 %v1379
      %v2980 = vunpack.c.l.b16 %v1380
      %v2981 = vunpack.c.h.b16 %v1380
      %v2982 = vunpack.c.l.b16 %v1381
      %v2983 = vunpack.c.h.b16 %v1381
      %v2984 = vunpack.c.l.b16 %v1382
      %v2985 = vunpack.c.h.b16 %v1382
      %v2986 = vunpack.c.l.b16 %v1383
      %v2987 = vunpack.c.h.b16 %v1383
      %v2988 = vunpack.c.l.b16 %v1384
      %v2989 = vunpack.c.h.b16 %v1384
      %v2990 = vunpack.c.l.b16 %v1385
      %v2991 = vunpack.c.h.b16 %v1385
      %v2992 = vunpack.c.l.b16 %v1386
      %v2993 = vunpack.c.h.b16 %v1386
      %v2994 = vunpack.c.l.b16 %v1387
      %v2995 = vunpack.c.h.b16 %v1387
      %v2996 = vunpack.c.l.b16 %v1388
      %v2997 = vunpack.c.h.b16 %v1388
      %v2998 = vunpack.c.l.b16 %v1389
      %v2999 = vunpack.c.h.b16 %v1389
      %v3000 = vunpack.c.l.b16 %v1390
      %v3001 = vunpack.c.h.b16 %v1390
      %v3002 = vunpack.c.l.b16 %v1391
      %v3003 = vunpack.c.h.b16 %v1391
      %v3004 = vunpack.c.l.b16 %v1392
      %v3005 = vunpack.c.h.b16 %v1392
      %v3006 = vunpack.c.l.b16 %v1393
      %v3007 = vunpack.c.h.b16 %v1393
      %v3008 = vunpack.c.l.b16 %v1394
      %v3009 = vunpack.c.h.b16 %v1394
      %v3010 = vunpack.c.l.b16 %v1395
      %v3011 = vunpack.c.h.b16 %v1395
      %v3012 = vunpack.c.l.b16 %v1396
      %v3013 = vunpack.c.h.b16 %v1396
      %v3014 = vunpack.c.l.b16 %v1397
      %v3015 = vunpack.c.h.b16 %v1397
      %v3016 = vunpack.c.l.b16 %v1398
      %v3017 = vunpack.c.h.b16 %v1398
      %v3018 = vunpack.c.l.b16 %v1399
      %v3019 = vunpack.c.h.b16 %v1399
      %v3020 = vunpack.c.l.b16 %v1400
      %v3021 = vunpack.c.h.b16 %v1400
      %v3022 = vunpack.c.l.b16 %v1401
      %v3023 = vunpack.c.h.b16 %v1401
      %v3024 = vunpack.c.l.b16 %v1402
      %v3025 = vunpack.c.h.b16 %v1402
      %v3026 = vunpack.c.l.b16 %v1403
      %v3027 = vunpack.c.h.b16 %v1403
      %v3028 = vunpack.c.l.b16 %v1404
      %v3029 = vunpack.c.h.b16 %v1404
      %v3030 = vunpack.c.l.b16 %v1405
      %v3031 = vunpack.c.h.b16 %v1405
      %v3032 = vunpack.c.l.b16 %v1406
      %v3033 = vunpack.c.h.b16 %v1406
      %v3034 = vunpack.c.l.b16 %v1407
      %v3035 = vunpack.c.h.b16 %v1407
      %v3036 = vunpack.c.l.b16 %v1408
      %v3037 = vunpack.c.h.b16 %v1408
      %v3038 = vunpack.c.l.b16 %v1409
      %v3039 = vunpack.c.h.b16 %v1409
      %v3040 = vunpack.c.l.b16 %v1410
      %v3041 = vunpack.c.h.b16 %v1410
      %v3042 = vunpack.c.l.b16 %v1411
      %v3043 = vunpack.c.h.b16 %v1411
      %v3044 = vunpack.c.l.b16 %v1412
      %v3045 = vunpack.c.h.b16 %v1412
      %v3046 = vunpack.c.l.b16 %v1413
      %v3047 = vunpack.c.h.b16 %v1413
      %v3048 = vunpack.c.l.b16 %v1414
      %v3049 = vunpack.c.h.b16 %v1414
      %v3050 = vunpack.c.l.b16 %v1415
      %v3051 = vunpack.c.h.b16 %v1415
      %v3052 = vunpack.c.l.b16 %v1416
      %v3053 = vunpack.c.h.b16 %v1416
      %v3054 = vunpack.c.l.b16 %v1417
      %v3055 = vunpack.c.h.b16 %v1417
      %v3056 = vunpack.c.l.b16 %v1418
      %v3057 = vunpack.c.h.b16 %v1418
      %v3058 = vunpack.c.l.b16 %v1419
      %v3059 = vunpack.c.h.b16 %v1419
      %v3060 = vunpack.c.l.b16 %v1420
      %v3061 = vunpack.c.h.b16 %v1420
      %v3062 = vunpack.c.l.b16 %v1421
      %v3063 = vunpack.c.h.b16 %v1421
      %v3064 = vunpack.c.l.b16 %v1422
      %v3065 = vunpack.c.h.b16 %v1422
      %v3066 = vunpack.c.l.b16 %v1423
      %v3067 = vunpack.c.h.b16 %v1423
      %v3068 = vunpack.c.l.b16 %v1424
      %v3069 = vunpack.c.h.b16 %v1424
      %v3070 = vunpack.c.l.b16 %v1425
      %v3071 = vunpack.c.h.b16 %v1425
      %v3072 = vunpack.c.l.b16 %v1426
      %v3073 = vunpack.c.h.b16 %v1426
      %v3074 = vunpack.c.l.b16 %v1427
      %v3075 = vunpack.c.h.b16 %v1427
      %v3076 = vunpack.c.l.b16 %v1428
      %v3077 = vunpack.c.h.b16 %v1428
      %v3078 = vunpack.c.l.b16 %v1429
      %v3079 = vunpack.c.h.b16 %v1429
      %v3080 = vunpack.c.l.b16 %v1430
      %v3081 = vunpack.c.h.b16 %v1430
      %v3082 = vunpack.c.l.b16 %v1431
      %v3083 = vunpack.c.h.b16 %v1431
      %v3084 = vunpack.c.l.b16 %v1432
      %v3085 = vunpack.c.h.b16 %v1432
      %v3086 = vunpack.c.l.b16 %v1433
      %v3087 = vunpack.c.h.b16 %v1433
      %v3088 = vunpack.c.l.b16 %v1434
      %v3089 = vunpack.c.h.b16 %v1434
      %v3090 = vunpack.c.l.b16 %v1435
      %v3091 = vunpack.c.h.b16 %v1435
      %v3092 = vunpack.c.l.b16 %v1436
      %v3093 = vunpack.c.h.b16 %v1436
      %v3094 = vunpack.c.l.b16 %v1437
      %v3095 = vunpack.c.h.b16 %v1437
      %v3096 = vunpack.c.l.b16 %v1438
      %v3097 = vunpack.c.h.b16 %v1438
      %v3098 = vunpack.c.l.b16 %v1439
      %v3099 = vunpack.c.h.b16 %v1439
      %v3100 = vunpack.c.l.b16 %v1440
      %v3101 = vunpack.c.h.b16 %v1440
      %v3102 = vunpack.c.l.b16 %v1441
      %v3103 = vunpack.c.h.b16 %v1441
      %v3104 = vunpack.c.l.b16 %v1442
      %v3105 = vunpack.c.h.b16 %v1442
      %v3106 = vunpack.c.l.b16 %v1443
      %v3107 = vunpack.c.h.b16 %v1443
      %v3108 = vunpack.c.l.b16 %v1444
      %v3109 = vunpack.c.h.b16 %v1444
      %v3110 = vunpack.c.l.b16 %v1445
      %v3111 = vunpack.c.h.b16 %v1445
      %v3112 = vunpack.c.l.b16 %v1446
      %v3113 = vunpack.c.h.b16 %v1446
      %v3114 = vunpack.c.l.b16 %v1447
      %v3115 = vunpack.c.h.b16 %v1447
      %v3116 = vunpack.c.l.b16 %v1448
      %v3117 = vunpack.c.h.b16 %v1448
      %v3118 = vunpack.c.l.b16 %v1449
      %v3119 = vunpack.c.h.b16 %v1449
      %v3120 = vunpack.c.l.b16 %v1450
      %v3121 = vunpack.c.h.b16 %v1450
      %v3122 = vunpack.c.l.b16 %v1451
      %v3123 = vunpack.c.h.b16 %v1451
      %v3124 = vunpack.c.l.b16 %v1452
      %v3125 = vunpack.c.h.b16 %v1452
      %v3126 = vunpack.c.l.b16 %v1453
      %v3127 = vunpack.c.h.b16 %v1453
      %v3128 = vunpack.c.l.b16 %v1454
      %v3129 = vunpack.c.h.b16 %v1454
      %v3130 = vunpack.c.l.b16 %v1455
      %v3131 = vunpack.c.h.b16 %v1455
      %v3132 = vunpack.c.l.b16 %v1456
      %v3133 = vunpack.c.h.b16 %v1456
      %v3134 = vunpack.c.l.b16 %v1457
      %v3135 = vunpack.c.h.b16 %v1457
      %v3136 = vunpack.c.l.b16 %v1458
      %v3137 = vunpack.c.h.b16 %v1458
      %v3138 = vunpack.c.l.b16 %v1459
      %v3139 = vunpack.c.h.b16 %v1459
      %v3140 = vunpack.c.l.b16 %v1460
      %v3141 = vunpack.c.h.b16 %v1460
      %v3142 = vunpack.c.l.b16 %v1461
      %v3143 = vunpack.c.h.b16 %v1461
      %v3144 = vunpack.c.l.b16 %v1462
      %v3145 = vunpack.c.h.b16 %v1462
      %v3146 = vunpack.c.l.b16 %v1463
      %v3147 = vunpack.c.h.b16 %v1463
      %v3148 = vunpack.c.l.b16 %v1464
      %v3149 = vunpack.c.h.b16 %v1464
      %v3150 = vunpack.c.l.b16 %v1465
      %v3151 = vunpack.c.h.b16 %v1465
      %v3152 = vunpack.c.l.b16 %v1466
      %v3153 = vunpack.c.h.b16 %v1466
      %v3154 = vunpack.c.l.b16 %v1467
      %v3155 = vunpack.c.h.b16 %v1467
      %v3156 = vunpack.c.l.b16 %v1468
      %v3157 = vunpack.c.h.b16 %v1468
      %v3158 = vunpack.c.l.b16 %v1469
      %v3159 = vunpack.c.h.b16 %v1469
      %v3160 = vunpack.c.l.b16 %v1470
      %v3161 = vunpack.c.h.b16 %v1470
      %v3162 = vunpack.c.l.b16 %v1471
      %v3163 = vunpack.c.h.b16 %v1471
      %v3164 = vunpack.c.l.b16 %v1472
      %v3165 = vunpack.c.h.b16 %v1472
      %v3166 = vunpack.c.l.b16 %v1473
      %v3167 = vunpack.c.h.b16 %v1473
      %v3168 = vunpack.c.l.b16 %v1474
      %v3169 = vunpack.c.h.b16 %v1474
      %v3170 = vunpack.c.l.b16 %v1475
      %v3171 = vunpack.c.h.b16 %v1475
      %v3172 = vunpack.c.l.b16 %v1476
      %v3173 = vunpack.c.h.b16 %v1476
      %v3174 = vunpack.c.l.b16 %v1477
      %v3175 = vunpack.c.h.b16 %v1477
      %v3176 = vunpack.c.l.b16 %v1478
      %v3177 = vunpack.c.h.b16 %v1478
      %v3178 = vunpack.c.l.b16 %v1479
      %v3179 = vunpack.c.h.b16 %v1479
      %v3180 = vunpack.c.l.b16 %v1480
      %v3181 = vunpack.c.h.b16 %v1480
      %v3182 = vunpack.c.l.b16 %v1481
      %v3183 = vunpack.c.h.b16 %v1481
      %v3184 = vunpack.c.l.b16 %v1482
      %v3185 = vunpack.c.h.b16 %v1482
      %v3186 = vunpack.c.l.b16 %v1483
      %v3187 = vunpack.c.h.b16 %v1483
      %v3188 = vunpack.c.l.b16 %v1484
      %v3189 = vunpack.c.h.b16 %v1484
      %v3190 = vunpack.c.l.b16 %v1485
      %v3191 = vunpack.c.h.b16 %v1485
      %v3192 = vunpack.c.l.b16 %v1486
      %v3193 = vunpack.c.h.b16 %v1486
      %v3194 = vunpack.c.l.b16 %v1487
      %v3195 = vunpack.c.h.b16 %v1487
      %v3196 = vunpack.c.l.b16 %v1488
      %v3197 = vunpack.c.h.b16 %v1488
      %v3198 = vunpack.c.l.b16 %v1489
      %v3199 = vunpack.c.h.b16 %v1489
      %v3200 = vunpack.c.l.b16 %v1490
      %v3201 = vunpack.c.h.b16 %v1490
      %v3202 = vunpack.c.l.b16 %v1491
      %v3203 = vunpack.c.h.b16 %v1491
      %v3204 = vunpack.c.l.b16 %v1492
      %v3205 = vunpack.c.h.b16 %v1492
      %v3206 = vunpack.c.l.b16 %v1493
      %v3207 = vunpack.c.h.b16 %v1493
      %v3208 = vunpack.c.l.b16 %v1494
      %v3209 = vunpack.c.h.b16 %v1494
      %v3210 = vunpack.c.l.b16 %v1495
      %v3211 = vunpack.c.h.b16 %v1495
      %v3212 = vunpack.c.l.b16 %v1496
      %v3213 = vunpack.c.h.b16 %v1496
      %v3214 = vunpack.c.l.b16 %v1497
      %v3215 = vunpack.c.h.b16 %v1497
      %v3216 = vunpack.c.l.b16 %v1498
      %v3217 = vunpack.c.h.b16 %v1498
      %v3218 = vunpack.c.l.b16 %v1499
      %v3219 = vunpack.c.h.b16 %v1499
      %v3220 = vunpack.c.l.b16 %v1500
      %v3221 = vunpack.c.h.b16 %v1500
      %v3222 = vunpack.c.l.b16 %v1501
      %v3223 = vunpack.c.h.b16 %v1501
      %v3224 = vunpack.c.l.b16 %v1502
      %v3225 = vunpack.c.h.b16 %v1502
      %v3226 = vunpack.c.l.b16 %v1503
      %v3227 = vunpack.c.h.b16 %v1503
      %v3228 = vunpack.c.l.b16 %v1504
      %v3229 = vunpack.c.h.b16 %v1504
      %v3230 = vunpack.c.l.b16 %v1505
      %v3231 = vunpack.c.h.b16 %v1505
      %v3232 = vunpack.c.l.b16 %v1506
      %v3233 = vunpack.c.h.b16 %v1506
      %v3234 = vunpack.c.l.b16 %v1507
      %v3235 = vunpack.c.h.b16 %v1507
      %v3236 = vunpack.c.l.b16 %v1508
      %v3237 = vunpack.c.h.b16 %v1508
      %v3238 = vunpack.c.l.b16 %v1509
      %v3239 = vunpack.c.h.b16 %v1509
      %v3240 = vunpack.c.l.b16 %v1510
      %v3241 = vunpack.c.h.b16 %v1510
      %v3242 = vunpack.c.l.b16 %v1511
      %v3243 = vunpack.c.h.b16 %v1511
      %v3244 = vunpack.c.l.b16 %v1512
      %v3245 = vunpack.c.h.b16 %v1512
      %v3246 = vunpack.c.l.b16 %v1513
      %v3247 = vunpack.c.h.b16 %v1513
      %v3248 = vunpack.c.l.b16 %v1514
      %v3249 = vunpack.c.h.b16 %v1514
      %v3250 = vunpack.c.l.b16 %v1515
      %v3251 = vunpack.c.h.b16 %v1515
      %v3252 = vunpack.c.l.b16 %v1516
      %v3253 = vunpack.c.h.b16 %v1516
      %v3254 = vunpack.c.l.b16 %v1517
      %v3255 = vunpack.c.h.b16 %v1517
      %v3256 = vunpack.c.l.b16 %v1518
      %v3257 = vunpack.c.h.b16 %v1518
      %v3258 = vunpack.c.l.b16 %v1519
      %v3259 = vunpack.c.h.b16 %v1519
      %v3260 = vunpack.c.l.b16 %v1520
      %v3261 = vunpack.c.h.b16 %v1520
      %v3262 = vunpack.c.l.b16 %v1521
      %v3263 = vunpack.c.h.b16 %v1521
      %v3264 = vunpack.c.l.b16 %v1522
      %v3265 = vunpack.c.h.b16 %v1522
      %v3266 = vunpack.c.l.b16 %v1523
      %v3267 = vunpack.c.h.b16 %v1523
      %v3268 = vunpack.c.l.b16 %v1524
      %v3269 = vunpack.c.h.b16 %v1524
      %v3270 = vunpack.c.l.b16 %v1525
      %v3271 = vunpack.c.h.b16 %v1525
      %v3272 = vunpack.c.l.b16 %v1526
      %v3273 = vunpack.c.h.b16 %v1526
      %v3274 = vunpack.c.l.b16 %v1527
      %v3275 = vunpack.c.h.b16 %v1527
      %v3276 = vunpack.c.l.b16 %v1528
      %v3277 = vunpack.c.h.b16 %v1528
      %v3278 = vunpack.c.l.b16 %v1529
      %v3279 = vunpack.c.h.b16 %v1529
      %v3280 = vunpack.c.l.b16 %v1530
      %v3281 = vunpack.c.h.b16 %v1530
      %v3282 = vunpack.c.l.b16 %v1531
      %v3283 = vunpack.c.h.b16 %v1531
      %v3284 = vunpack.c.l.b16 %v1532
      %v3285 = vunpack.c.h.b16 %v1532
      %v3286 = vunpack.c.l.b16 %v1533
      %v3287 = vunpack.c.h.b16 %v1533
      %v3288 = vunpack.c.l.b16 %v1534
      %v3289 = vunpack.c.h.b16 %v1534
      %v3290 = vunpack.c.l.b16 %v1535
      %v3291 = vunpack.c.h.b16 %v1535
      %v3292 = vunpack.c.l.b16 %v1536
      %v3293 = vunpack.c.h.b16 %v1536
      %v3294 = vunpack.c.l.b16 %v1537
      %v3295 = vunpack.c.h.b16 %v1537
      %v3296 = vunpack.c.l.b16 %v1538
      %v3297 = vunpack.c.h.b16 %v1538
      %v3298 = vunpack.c.l.b16 %v1539
      %v3299 = vunpack.c.h.b16 %v1539
      %v3300 = vunpack.c.l.b16 %v1540
      %v3301 = vunpack.c.h.b16 %v1540
      %v3302 = vunpack.c.l.b16 %v1541
      %v3303 = vunpack.c.h.b16 %v1541
      %v3304 = vpack.c.b16 %v2164, %v2152
      %v3305 = vpack.c.b16 %v2165, %v2153
      %v3306 = vpack.c.b16 %v2166, %v2154
      %v3307 = vpack.c.b16 %v2167, %v2155
      %v3308 = vpack.c.b16 %v2168, %v2156
      %v3309 = vpack.c.b16 %v2169, %v2157
      %v3310 = vpack.c.b16 %v2170, %v2158
      %v3311 = vpack.c.b16 %v2171, %v2159
      %v3312 = vpack.c.b16 %v2172, %v2160
      %v3313 = vpack.c.b16 %v2173, %v2161
      %v3314 = vpack.c.b16 %v2174, %v2162
      %v3315 = vpack.c.b16 %v2175, %v2163
      %v3316 = vpack.c.b16 %v2188, %v2176
      %v3317 = vpack.c.b16 %v2189, %v2177
      %v3318 = vpack.c.b16 %v2190, %v2178
      %v3319 = vpack.c.b16 %v2191, %v2179
      %v3320 = vpack.c.b16 %v2192, %v2180
      %v3321 = vpack.c.b16 %v2193, %v2181
      %v3322 = vpack.c.b16 %v2194, %v2182
      %v3323 = vpack.c.b16 %v2195, %v2183
      %v3324 = vpack.c.b16 %v2196, %v2184
      %v3325 = vpack.c.b16 %v2197, %v2185
      %v3326 = vpack.c.b16 %v2198, %v2186
      %v3327 = vpack.c.b16 %v2199, %v2187
      %v3328 = vpack.c.b16 %v2212, %v2200
      %v3329 = vpack.c.b16 %v2213, %v2201
      %v3330 = vpack.c.b16 %v2214, %v2202
      %v3331 = vpack.c.b16 %v2215, %v2203
      %v3332 = vpack.c.b16 %v2216, %v2204
      %v3333 = vpack.c.b16 %v2217, %v2205
      %v3334 = vpack.c.b16 %v2218, %v2206
      %v3335 = vpack.c.b16 %v2219, %v2207
      %v3336 = vpack.c.b16 %v2220, %v2208
      %v3337 = vpack.c.b16 %v2221, %v2209
      %v3338 = vpack.c.b16 %v2222, %v2210
      %v3339 = vpack.c.b16 %v2223, %v2211
      %v3340 = vpack.c.b16 %v2236, %v2224
      %v3341 = vpack.c.b16 %v2237, %v2225
      %v3342 = vpack.c.b16 %v2238, %v2226
      %v3343 = vpack.c.b16 %v2239, %v2227
      %v3344 = vpack.c.b16 %v2240, %v2228
      %v3345 = vpack.c.b16 %v2241, %v2229
      %v3346 = vpack.c.b16 %v2242, %v2230
      %v3347 = vpack.c.b16 %v2243, %v2231
      %v3348 = vpack.c.b16 %v2244, %v2232
      %v3349 = vpack.c.b16 %v2245, %v2233
      %v3350 = vpack.c.b16 %v2246, %v2234
      %v3351 = vpack.c.b16 %v2247, %v2235
      %v3352 = vpack.c.b16 %v2260, %v2248
      %v3353 = vpack.c.b16 %v2261, %v2249
      %v3354 = vpack.c.b16 %v2262, %v2250
      %v3355 = vpack.c.b16 %v2263, %v2251
      %v3356 = vpack.c.b16 %v2264, %v2252
      %v3357 = vpack.c.b16 %v2265, %v2253
      %v3358 = vpack.c.b16 %v2266, %v2254
      %v3359 = vpack.c.b16 %v2267, %v2255
      %v3360 = vpack.c.b16 %v2268, %v2256
      %v3361 = vpack.c.b16 %v2269, %v2257
      %v3362 = vpack.c.b16 %v2270, %v2258
      %v3363 = vpack.c.b16 %v2271, %v2259
      %v3364 = vpack.c.b16 %v2284, %v2272
      %v3365 = vpack.c.b16 %v2285, %v2273
      %v3366 = vpack.c.b16 %v2286, %v2274
      %v3367 = vpack.c.b16 %v2287, %v2275
      %v3368 = vpack.c.b16 %v2288, %v2276
      %v3369 = vpack.c.b16 %v2289, %v2277
      %v3370 = vpack.c.b16 %v2290, %v2278
      %v3371 = vpack.c.b16 %v2291, %v2279
      %v3372 = vpack.c.b16 %v2292, %v2280
      %v3373 = vpack.c.b16 %v2293, %v2281
      %v3374 = vpack.c.b16 %v2294, %v2282
      %v3375 = vpack.c.b16 %v2295, %v2283
      %v3376 = vpack.c.b16 %v2308, %v2296
      %v3377 = vpack.c.b16 %v2309, %v2297
      %v3378 = vpack.c.b16 %v2310, %v2298
      %v3379 = vpack.c.b16 %v2311, %v2299
      %v3380 = vpack.c.b16 %v2312, %v2300
      %v3381 = vpack.c.b16 %v2313, %v2301
      %v3382 = vpack.c.b16 %v2314, %v2302
      %v3383 = vpack.c.b16 %v2315, %v2303
      %v3384 = vpack.c.b16 %v2316, %v2304
      %v3385 = vpack.c.b16 %v2317, %v2305
      %v3386 = vpack.c.b16 %v2318, %v2306
      %v3387 = vpack.c.b16 %v2319, %v2307
      %v3388 = vpack.c.b16 %v2332, %v2320
      %v3389 = vpack.c.b16 %v2333, %v2321
      %v3390 = vpack.c.b16 %v2334, %v2322
      %v3391 = vpack.c.b16 %v2335, %v2323
      %v3392 = vpack.c.b16 %v2336, %v2324
      %v3393 = vpack.c.b16 %v2337, %v2325
      %v3394 = vpack.c.b16 %v2338, %v2326
      %v3395 = vpack.c.b16 %v2339, %v2327
      %v3396 = vpack.c.b16 %v2340, %v2328
      %v3397 = vpack.c.b16 %v2341, %v2329
      %v3398 = vpack.c.b16 %v2342, %v2330
      %v3399 = vpack.c.b16 %v2343, %v2331
      %v3400 = vpack.c.b16 %v2356, %v2344
      %v3401 = vpack.c.b16 %v2357, %v2345
      %v3402 = vpack.c.b16 %v2358, %v2346
      %v3403 = vpack.c.b16 %v2359, %v2347
      %v3404 = vpack.c.b16 %v2360, %v2348
      %v3405 = vpack.c.b16 %v2361, %v2349
      %v3406 = vpack.c.b16 %v2362, %v2350
      %v3407 = vpack.c.b16 %v2363, %v2351
      %v3408 = vpack.c.b16 %v2364, %v2352
      %v3409 = vpack.c.b16 %v2365, %v2353
      %v3410 = vpack.c.b16 %v2366, %v2354
      %v3411 = vpack.c.b16 %v2367, %v2355
      %v3412 = vpack.c.b16 %v2380, %v2368
      %v3413 = vpack.c.b16 %v2381, %v2369
      %v3414 = vpack.c.b16 %v2382, %v2370
      %v3415 = vpack.c.b16 %v2383, %v2371
      %v3416 = vpack.c.b16 %v2384, %v2372
      %v3417 = vpack.c.b16 %v2385, %v2373
      %v3418 = vpack.c.b16 %v2386, %v2374
      %v3419 = vpack.c.b16 %v2387, %v2375
      %v3420 = vpack.c.b16 %v2388, %v2376
      %v3421 = vpack.c.b16 %v2389, %v2377
      %v3422 = vpack.c.b16 %v2390, %v2378
      %v3423 = vpack.c.b16 %v2391, %v2379
      %v3424 = vpack.c.b16 %v2404, %v2392
      %v3425 = vpack.c.b16 %v2405, %v2393
      %v3426 = vpack.c.b16 %v2406, %v2394
      %v3427 = vpack.c.b16 %v2407, %v2395
      %v3428 = vpack.c.b16 %v2408, %v2396
      %v3429 = vpack.c.b16 %v2409, %v2397
      %v3430 = vpack.c.b16 %v2410, %v2398
      %v3431 = vpack.c.b16 %v2411, %v2399
      %v3432 = vpack.c.b16 %v2412, %v2400
      %v3433 = vpack.c.b16 %v2413, %v2401
      %v3434 = vpack.c.b16 %v2414, %v2402
      %v3435 = vpack.c.b16 %v2415, %v2403
      %v3436 = vpack.c.b16 %v2428, %v2416
      %v3437 = vpack.c.b16 %v2429, %v2417
      %v3438 = vpack.c.b16 %v2430, %v2418
      %v3439 = vpack.c.b16 %v2431, %v2419
      %v3440 = vpack.c.b16 %v2432, %v2420
      %v3441 = vpack.c.b16 %v2433, %v2421
      %v3442 = vpack.c.b16 %v2434, %v2422
      %v3443 = vpack.c.b16 %v2435, %v2423
      %v3444 = vpack.c.b16 %v2436, %v2424
      %v3445 = vpack.c.b16 %v2437, %v2425
      %v3446 = vpack.c.b16 %v2438, %v2426
      %v3447 = vpack.c.b16 %v2439, %v2427
      %v3448 = vpack.c.b16 %v2452, %v2440
      %v3449 = vpack.c.b16 %v2453, %v2441
      %v3450 = vpack.c.b16 %v2454, %v2442
      %v3451 = vpack.c.b16 %v2455, %v2443
      %v3452 = vpack.c.b16 %v2456, %v2444
      %v3453 = vpack.c.b16 %v2457, %v2445
      %v3454 = vpack.c.b16 %v2458, %v2446
      %v3455 = vpack.c.b16 %v2459, %v2447
      %v3456 = vpack.c.b16 %v2460, %v2448
      %v3457 = vpack.c.b16 %v2461, %v2449
      %v3458 = vpack.c.b16 %v2462, %v2450
      %v3459 = vpack.c.b16 %v2463, %v2451
      %v3460 = vpack.c.b16 %v2476, %v2464
      %v3461 = vpack.c.b16 %v2477, %v2465
      %v3462 = vpack.c.b16 %v2478, %v2466
      %v3463 = vpack.c.b16 %v2479, %v2467
      %v3464 = vpack.c.b16 %v2480, %v2468
      %v3465 = vpack.c.b16 %v2481, %v2469
      %v3466 = vpack.c.b16 %v2482, %v2470
      %v3467 = vpack.c.b16 %v2483, %v2471
      %v3468 = vpack.c.b16 %v2484, %v2472
      %v3469 = vpack.c.b16 %v2485, %v2473
      %v3470 = vpack.c.b16 %v2486, %v2474
      %v3471 = vpack.c.b16 %v2487, %v2475
      %v3472 = vpack.c.b16 %v2500, %v2488
      %v3473 = vpack.c.b16 %v2501, %v2489
      %v3474 = vpack.c.b16 %v2502, %v2490
      %v3475 = vpack.c.b16 %v2503, %v2491
      %v3476 = vpack.c.b16 %v2504, %v2492
      %v3477 = vpack.c.b16 %v2505, %v2493
      %v3478 = vpack.c.b16 %v2506, %v2494
      %v3479 = vpack.c.b16 %v2507, %v2495
      %v3480 = vpack.c.b16 %v2508, %v2496
      %v3481 = vpack.c.b16 %v2509, %v2497
      %v3482 = vpack.c.b16 %v2510, %v2498
      %v3483 = vpack.c.b16 %v2511, %v2499
      %v3484 = vpack.c.b16 %v2524, %v2512
      %v3485 = vpack.c.b16 %v2525, %v2513
      %v3486 = vpack.c.b16 %v2526, %v2514
      %v3487 = vpack.c.b16 %v2527, %v2515
      %v3488 = vpack.c.b16 %v2528, %v2516
      %v3489 = vpack.c.b16 %v2529, %v2517
      %v3490 = vpack.c.b16 %v2530, %v2518
      %v3491 = vpack.c.b16 %v2531, %v2519
      %v3492 = vpack.c.b16 %v2532, %v2520
      %v3493 = vpack.c.b16 %v2533, %v2521
      %v3494 = vpack.c.b16 %v2534, %v2522
      %v3495 = vpack.c.b16 %v2535, %v2523
      %v3496 = vpack.c.b16 %v2548, %v2536
      %v3497 = vpack.c.b16 %v2549, %v2537
      %v3498 = vpack.c.b16 %v2550, %v2538
      %v3499 = vpack.c.b16 %v2551, %v2539
      %v3500 = vpack.c.b16 %v2552, %v2540
      %v3501 = vpack.c.b16 %v2553, %v2541
      %v3502 = vpack.c.b16 %v2554, %v2542
      %v3503 = vpack.c.b16 %v2555, %v2543
      %v3504 = vpack.c.b16 %v2556, %v2544
      %v3505 = vpack.c.b16 %v2557, %v2545
      %v3506 = vpack.c.b16 %v2558, %v2546
      %v3507 = vpack.c.b16 %v2559, %v2547
      %v3508 = vpack.c.b16 %v2572, %v2560
      %v3509 = vpack.c.b16 %v2573, %v2561
      %v3510 = vpack.c.b16 %v2574, %v2562
      %v3511 = vpack.c.b16 %v2575, %v2563
      %v3512 = vpack.c.b16 %v2576, %v2564
      %v3513 = vpack.c.b16 %v2577, %v2565
      %v3514 = vpack.c.b16 %v2578, %v2566
      %v3515 = vpack.c.b16 %v2579, %v2567
      %v3516 = vpack.c.b16 %v2580, %v2568
      %v3517 = vpack.c.b16 %v2581, %v2569
      %v3518 = vpack.c.b16 %v2582, %v2570
      %v3519 = vpack.c.b16 %v2583, %v2571
      %v3520 = vpack.c.b16 %v2596, %v2584
      %v3521 = vpack.c.b16 %v2597, %v2585
      %v3522 = vpack.c.b16 %v2598, %v2586
      %v3523 = vpack.c.b16 %v2599, %v2587
      %v3524 = vpack.c.b16 %v2600, %v2588
      %v3525 = vpack.c.b16 %v2601, %v2589
      %v3526 = vpack.c.b16 %v2602, %v2590
      %v3527 = vpack.c.b16 %v2603, %v2591
      %v3528 = vpack.c.b16 %v2604, %v2592
      %v3529 = vpack.c.b16 %v2605, %v2593
      %v3530 = vpack.c.b16 %v2606, %v2594
      %v3531 = vpack.c.b16 %v2607, %v2595
      %v3532 = vpack.c.b16 %v2620, %v2608
      %v3533 = vpack.c.b16 %v2621, %v2609
      %v3534 = vpack.c.b16 %v2622, %v2610
      %v3535 = vpack.c.b16 %v2623, %v2611
      %v3536 = vpack.c.b16 %v2624, %v2612
      %v3537 = vpack.c.b16 %v2625, %v2613
      %v3538 = vpack.c.b16 %v2626, %v2614
      %v3539 = vpack.c.b16 %v2627, %v2615
      %v3540 = vpack.c.b16 %v2628, %v2616
      %v3541 = vpack.c.b16 %v2629, %v2617
      %v3542 = vpack.c.b16 %v2630, %v2618
      %v3543 = vpack.c.b16 %v2631, %v2619
      %v3544 = vpack.c.b16 %v2644, %v2632
      %v3545 = vpack.c.b16 %v2645, %v2633
      %v3546 = vpack.c.b16 %v2646, %v2634
      %v3547 = vpack.c.b16 %v2647, %v2635
      %v3548 = vpack.c.b16 %v2648, %v2636
      %v3549 = vpack.c.b16 %v2649, %v2637
      %v3550 = vpack.c.b16 %v2650, %v2638
      %v3551 = vpack.c.b16 %v2651, %v2639
      %v3552 = vpack.c.b16 %v2652, %v2640
      %v3553 = vpack.c.b16 %v2653, %v2641
      %v3554 = vpack.c.b16 %v2654, %v2642
      %v3555 = vpack.c.b16 %v2655, %v2643
      %v3556 = vpack.c.b16 %v2668, %v2656
      %v3557 = vpack.c.b16 %v2669, %v2657
      %v3558 = vpack.c.b16 %v2670, %v2658
      %v3559 = vpack.c.b16 %v2671, %v2659
      %v3560 = vpack.c.b16 %v2672, %v2660
      %v3561 = vpack.c.b16 %v2673, %v2661
      %v3562 = vpack.c.b16 %v2674, %v2662
      %v3563 = vpack.c.b16 %v2675, %v2663
      %v3564 = vpack.c.b16 %v2676, %v2664
      %v3565 = vpack.c.b16 %v2677, %v2665
      %v3566 = vpack.c.b16 %v2678, %v2666
      %v3567 = vpack.c.b16 %v2679, %v2667
      %v3568 = vpack.c.b16 %v2692, %v2680
      %v3569 = vpack.c.b16 %v2693, %v2681
      %v3570 = vpack.c.b16 %v2694, %v2682
      %v3571 = vpack.c.b16 %v2695, %v2683
      %v3572 = vpack.c.b16 %v2696, %v2684
      %v3573 = vpack.c.b16 %v2697, %v2685
      %v3574 = vpack.c.b16 %v2698, %v2686
      %v3575 = vpack.c.b16 %v2699, %v2687
      %v3576 = vpack.c.b16 %v2700, %v2688
      %v3577 = vpack.c.b16 %v2701, %v2689
      %v3578 = vpack.c.b16 %v2702, %v2690
      %v3579 = vpack.c.b16 %v2703, %v2691
      %v3580 = vpack.c.b16 %v2716, %v2704
      %v3581 = vpack.c.b16 %v2717, %v2705
      %v3582 = vpack.c.b16 %v2718, %v2706
      %v3583 = vpack.c.b16 %v2719, %v2707
      %v3584 = vpack.c.b16 %v2720, %v2708
      %v3585 = vpack.c.b16 %v2721, %v2709
      %v3586 = vpack.c.b16 %v2722, %v2710
      %v3587 = vpack.c.b16 %v2723, %v2711
      %v3588 = vpack.c.b16 %v2724, %v2712
      %v3589 = vpack.c.b16 %v2725, %v2713
      %v3590 = vpack.c.b16 %v2726, %v2714
      %v3591 = vpack.c.b16 %v2727, %v2715
      %v3592 = vpack.c.b16 %v2740, %v2728
      %v3593 = vpack.c.b16 %v2741, %v2729
      %v3594 = vpack.c.b16 %v2742, %v2730
      %v3595 = vpack.c.b16 %v2743, %v2731
      %v3596 = vpack.c.b16 %v2744, %v2732
      %v3597 = vpack.c.b16 %v2745, %v2733
      %v3598 = vpack.c.b16 %v2746, %v2734
      %v3599 = vpack.c.b16 %v2747, %v2735
      %v3600 = vpack.c.b16 %v2748, %v2736
      %v3601 = vpack.c.b16 %v2749, %v2737
      %v3602 = vpack.c.b16 %v2750, %v2738
      %v3603 = vpack.c.b16 %v2751, %v2739
      %v3604 = vpack.c.b16 %v2764, %v2752
      %v3605 = vpack.c.b16 %v2765, %v2753
      %v3606 = vpack.c.b16 %v2766, %v2754
      %v3607 = vpack.c.b16 %v2767, %v2755
      %v3608 = vpack.c.b16 %v2768, %v2756
      %v3609 = vpack.c.b16 %v2769, %v2757
      %v3610 = vpack.c.b16 %v2770, %v2758
      %v3611 = vpack.c.b16 %v2771, %v2759
      %v3612 = vpack.c.b16 %v2772, %v2760
      %v3613 = vpack.c.b16 %v2773, %v2761
      %v3614 = vpack.c.b16 %v2774, %v2762
      %v3615 = vpack.c.b16 %v2775, %v2763
      %v3616 = vpack.c.b16 %v2788, %v2776
      %v3617 = vpack.c.b16 %v2789, %v2777
      %v3618 = vpack.c.b16 %v2790, %v2778
      %v3619 = vpack.c.b16 %v2791, %v2779
      %v3620 = vpack.c.b16 %v2792, %v2780
      %v3621 = vpack.c.b16 %v2793, %v2781
      %v3622 = vpack.c.b16 %v2794, %v2782
      %v3623 = vpack.c.b16 %v2795, %v2783
      %v3624 = vpack.c.b16 %v2796, %v2784
      %v3625 = vpack.c.b16 %v2797, %v2785
      %v3626 = vpack.c.b16 %v2798, %v2786
      %v3627 = vpack.c.b16 %v2799, %v2787
      %v3628 = vpack.c.b16 %v2812, %v2800
      %v3629 = vpack.c.b16 %v2813, %v2801
      %v3630 = vpack.c.b16 %v2814, %v2802
      %v3631 = vpack.c.b16 %v2815, %v2803
      %v3632 = vpack.c.b16 %v2816, %v2804
      %v3633 = vpack.c.b16 %v2817, %v2805
      %v3634 = vpack.c.b16 %v2818, %v2806
      %v3635 = vpack.c.b16 %v2819, %v2807
      %v3636 = vpack.c.b16 %v2820, %v2808
      %v3637 = vpack.c.b16 %v2821, %v2809
      %v3638 = vpack.c.b16 %v2822, %v2810
      %v3639 = vpack.c.b16 %v2823, %v2811
      %v3640 = vpack.c.b16 %v2836, %v2824
      %v3641 = vpack.c.b16 %v2837, %v2825
      %v3642 = vpack.c.b16 %v2838, %v2826
      %v3643 = vpack.c.b16 %v2839, %v2827
      %v3644 = vpack.c.b16 %v2840, %v2828
      %v3645 = vpack.c.b16 %v2841, %v2829
      %v3646 = vpack.c.b16 %v2842, %v2830
      %v3647 = vpack.c.b16 %v2843, %v2831
      %v3648 = vpack.c.b16 %v2844, %v2832
      %v3649 = vpack.c.b16 %v2845, %v2833
      %v3650 = vpack.c.b16 %v2846, %v2834
      %v3651 = vpack.c.b16 %v2847, %v2835
      %v3652 = vpack.c.b16 %v2860, %v2848
      %v3653 = vpack.c.b16 %v2861, %v2849
      %v3654 = vpack.c.b16 %v2862, %v2850
      %v3655 = vpack.c.b16 %v2863, %v2851
      %v3656 = vpack.c.b16 %v2864, %v2852
      %v3657 = vpack.c.b16 %v2865, %v2853
      %v3658 = vpack.c.b16 %v2866, %v2854
      %v3659 = vpack.c.b16 %v2867, %v2855
      %v3660 = vpack.c.b16 %v2868, %v2856
      %v3661 = vpack.c.b16 %v2869, %v2857
      %v3662 = vpack.c.b16 %v2870, %v2858
      %v3663 = vpack.c.b16 %v2871, %v2859
      %v3664 = vpack.c.b16 %v2884, %v2872
      %v3665 = vpack.c.b16 %v2885, %v2873
      %v3666 = vpack.c.b16 %v2886, %v2874
      %v3667 = vpack.c.b16 %v2887, %v2875
      %v3668 = vpack.c.b16 %v2888, %v2876
      %v3669 = vpack.c.b16 %v2889, %v2877
      %v3670 = vpack.c.b16 %v2890, %v2878
      %v3671 = vpack.c.b16 %v2891, %v2879
      %v3672 = vpack.c.b16 %v2892, %v2880
      %v3673 = vpack.c.b16 %v2893, %v2881
      %v3674 = vpack.c.b16 %v2894, %v2882
      %v3675 = vpack.c.b16 %v2895, %v2883
      %v3676 = vpack.c.b16 %v2908, %v2896
      %v3677 = vpack.c.b16 %v2909, %v2897
      %v3678 = vpack.c.b16 %v2910, %v2898
      %v3679 = vpack.c.b16 %v2911, %v2899
      %v3680 = vpack.c.b16 %v2912, %v2900
      %v3681 = vpack.c.b16 %v2913, %v2901
      %v3682 = vpack.c.b16 %v2914, %v2902
      %v3683 = vpack.c.b16 %v2915, %v2903
      %v3684 = vpack.c.b16 %v2916, %v2904
      %v3685 = vpack.c.b16 %v2917, %v2905
      %v3686 = vpack.c.b16 %v2918, %v2906
      %v3687 = vpack.c.b16 %v2919, %v2907
      %v3688 = vpack.c.b16 %v2932, %v2920
      %v3689 = vpack.c.b16 %v2933, %v2921
      %v3690 = vpack.c.b16 %v2934, %v2922
      %v3691 = vpack.c.b16 %v2935, %v2923
      %v3692 = vpack.c.b16 %v2936, %v2924
      %v3693 = vpack.c.b16 %v2937, %v2925
      %v3694 = vpack.c.b16 %v2938, %v2926
      %v3695 = vpack.c.b16 %v2939, %v2927
      %v3696 = vpack.c.b16 %v2940, %v2928
      %v3697 = vpack.c.b16 %v2941, %v2929
      %v3698 = vpack.c.b16 %v2942, %v2930
      %v3699 = vpack.c.b16 %v2943, %v2931
      %v3700 = vpack.c.b16 %v2956, %v2944
      %v3701 = vpack.c.b16 %v2957, %v2945
      %v3702 = vpack.c.b16 %v2958, %v2946
      %v3703 = vpack.c.b16 %v2959, %v2947
      %v3704 = vpack.c.b16 %v2960, %v2948
      %v3705 = vpack.c.b16 %v2961, %v2949
      %v3706 = vpack.c.b16 %v2962, %v2950
      %v3707 = vpack.c.b16 %v2963, %v2951
      %v3708 = vpack.c.b16 %v2964, %v2952
      %v3709 = vpack.c.b16 %v2965, %v2953
      %v3710 = vpack.c.b16 %v2966, %v2954
      %v3711 = vpack.c.b16 %v2967, %v2955
      %v3712 = vpack.c.b16 %v2980, %v2968
      %v3713 = vpack.c.b16 %v2981, %v2969
      %v3714 = vpack.c.b16 %v2982, %v2970
      %v3715 = vpack.c.b16 %v2983, %v2971
      %v3716 = vpack.c.b16 %v2984, %v2972
      %v3717 = vpack.c.b16 %v2985, %v2973
      %v3718 = vpack.c.b16 %v2986, %v2974
      %v3719 = vpack.c.b16 %v2987, %v2975
      %v3720 = vpack.c.b16 %v2988, %v2976
      %v3721 = vpack.c.b16 %v2989, %v2977
      %v3722 = vpack.c.b16 %v2990, %v2978
      %v3723 = vpack.c.b16 %v2991, %v2979
      %v3724 = vpack.c.b16 %v3004, %v2992
      %v3725 = vpack.c.b16 %v3005, %v2993
      %v3726 = vpack.c.b16 %v3006, %v2994
      %v3727 = vpack.c.b16 %v3007, %v2995
      %v3728 = vpack.c.b16 %v3008, %v2996
      %v3729 = vpack.c.b16 %v3009, %v2997
      %v3730 = vpack.c.b16 %v3010, %v2998
      %v3731 = vpack.c.b16 %v3011, %v2999
      %v3732 = vpack.c.b16 %v3012, %v3000
      %v3733 = vpack.c.b16 %v3013, %v3001
      %v3734 = vpack.c.b16 %v3014, %v3002
      %v3735 = vpack.c.b16 %v3015, %v3003
      %v3736 = vpack.c.b16 %v3028, %v3016
      %v3737 = vpack.c.b16 %v3029, %v3017
      %v3738 = vpack.c.b16 %v3030, %v3018
      %v3739 = vpack.c.b16 %v3031, %v3019
      %v3740 = vpack.c.b16 %v3032, %v3020
      %v3741 = vpack.c.b16 %v3033, %v3021
      %v3742 = vpack.c.b16 %v3034, %v3022
      %v3743 = vpack.c.b16 %v3035, %v3023
      %v3744 = vpack.c.b16 %v3036, %v3024
      %v3745 = vpack.c.b16 %v3037, %v3025
      %v3746 = vpack.c.b16 %v3038, %v3026
      %v3747 = vpack.c.b16 %v3039, %v3027
      %v3748 = vpack.c.b16 %v3052, %v3040
      %v3749 = vpack.c.b16 %v3053, %v3041
      %v3750 = vpack.c.b16 %v3054, %v3042
      %v3751 = vpack.c.b16 %v3055, %v3043
      %v3752 = vpack.c.b16 %v3056, %v3044
      %v3753 = vpack.c.b16 %v3057, %v3045
      %v3754 = vpack.c.b16 %v3058, %v3046
      %v3755 = vpack.c.b16 %v3059, %v3047
      %v3756 = vpack.c.b16 %v3060, %v3048
      %v3757 = vpack.c.b16 %v3061, %v3049
      %v3758 = vpack.c.b16 %v3062, %v3050
      %v3759 = vpack.c.b16 %v3063, %v3051
      %v3760 = vpack.c.b16 %v3076, %v3064
      %v3761 = vpack.c.b16 %v3077, %v3065
      %v3762 = vpack.c.b16 %v3078, %v3066
      %v3763 = vpack.c.b16 %v3079, %v3067
      %v3764 = vpack.c.b16 %v3080, %v3068
      %v3765 = vpack.c.b16 %v3081, %v3069
      %v3766 = vpack.c.b16 %v3082, %v3070
      %v3767 = vpack.c.b16 %v3083, %v3071
      %v3768 = vpack.c.b16 %v3084, %v3072
      %v3769 = vpack.c.b16 %v3085, %v3073
      %v3770 = vpack.c.b16 %v3086, %v3074
      %v3771 = vpack.c.b16 %v3087, %v3075
      %v3772 = vpack.c.b16 %v3100, %v3088
      %v3773 = vpack.c.b16 %v3101, %v3089
      %v3774 = vpack.c.b16 %v3102, %v3090
      %v3775 = vpack.c.b16 %v3103, %v3091
      %v3776 = vpack.c.b16 %v3104, %v3092
      %v3777 = vpack.c.b16 %v3105, %v3093
      %v3778 = vpack.c.b16 %v3106, %v3094
      %v3779 = vpack.c.b16 %v3107, %v3095
      %v3780 = vpack.c.b16 %v3108, %v3096
      %v3781 = vpack.c.b16 %v3109, %v3097
      %v3782 = vpack.c.b16 %v3110, %v3098
      %v3783 = vpack.c.b16 %v3111, %v3099
      %v3784 = vpack.c.b16 %v3124, %v3112
      %v3785 = vpack.c.b16 %v3125, %v3113
      %v3786 = vpack.c.b16 %v3126, %v3114
      %v3787 = vpack.c.b16 %v3127, %v3115
      %v3788 = vpack.c.b16 %v3128, %v3116
      %v3789 = vpack.c.b16 %v3129, %v3117
      %v3790 = vpack.c.b16 %v3130, %v3118
      %v3791 = vpack.c.b16 %v3131, %v3119
      %v3792 = vpack.c.b16 %v3132, %v3120
      %v3793 = vpack.c.b16 %v3133, %v3121
      %v3794 = vpack.c.b16 %v3134, %v3122
      %v3795 = vpack.c.b16 %v3135, %v3123
      %v3796 = vpack.c.b16 %v3148, %v3136
      %v3797 = vpack.c.b16 %v3149, %v3137
      %v3798 = vpack.c.b16 %v3150, %v3138
      %v3799 = vpack.c.b16 %v3151, %v3139
      %v3800 = vpack.c.b16 %v3152, %v3140
      %v3801 = vpack.c.b16 %v3153, %v3141
      %v3802 = vpack.c.b16 %v3154, %v3142
      %v3803 = vpack.c.b16 %v3155, %v3143
      %v3804 = vpack.c.b16 %v3156, %v3144
      %v3805 = vpack.c.b16 %v3157, %v3145
      %v3806 = vpack.c.b16 %v3158, %v3146
      %v3807 = vpack.c.b16 %v3159, %v3147
      %v3808 = vpack.c.b16 %v3172, %v3160
      %v3809 = vpack.c.b16 %v3173, %v3161
      %v3810 = vpack.c.b16 %v3174, %v3162
      %v3811 = vpack.c.b16 %v3175, %v3163
      %v3812 = vpack.c.b16 %v3176, %v3164
      %v3813 = vpack.c.b16 %v3177, %v3165
      %v3814 = vpack.c.b16 %v3178, %v3166
      %v3815 = vpack.c.b16 %v3179, %v3167
      %v3816 = vpack.c.b16 %v3180, %v3168
      %v3817 = vpack.c.b16 %v3181, %v3169
      %v3818 = vpack.c.b16 %v3182, %v3170
      %v3819 = vpack.c.b16 %v3183, %v3171
      %v3820 = vpack.c.b16 %v3196, %v3184
      %v3821 = vpack.c.b16 %v3197, %v3185
      %v3822 = vpack.c.b16 %v3198, %v3186
      %v3823 = vpack.c.b16 %v3199, %v3187
      %v3824 = vpack.c.b16 %v3200, %v3188
      %v3825 = vpack.c.b16 %v3201, %v3189
      %v3826 = vpack.c.b16 %v3202, %v3190
      %v3827 = vpack.c.b16 %v3203, %v3191
      %v3828 = vpack.c.b16 %v3204, %v3192
      %v3829 = vpack.c.b16 %v3205, %v3193
      %v3830 = vpack.c.b16 %v3206, %v3194
      %v3831 = vpack.c.b16 %v3207, %v3195
      %v3832 = vpack.c.b16 %v3220, %v3208
      %v3833 = vpack.c.b16 %v3221, %v3209
      %v3834 = vpack.c.b16 %v3222, %v3210
      %v3835 = vpack.c.b16 %v3223, %v3211
      %v3836 = vpack.c.b16 %v3224, %v3212
      %v3837 = vpack.c.b16 %v3225, %v3213
      %v3838 = vpack.c.b16 %v3226, %v3214
      %v3839 = vpack.c.b16 %v3227, %v3215
      %v3840 = vpack.c.b16 %v3228, %v3216
      %v3841 = vpack.c.b16 %v3229, %v3217
      %v3842 = vpack.c.b16 %v3230, %v3218
      %v3843 = vpack.c.b16 %v3231, %v3219
      %v3844 = vpack.c.b16 %v3244, %v3232
      %v3845 = vpack.c.b16 %v3245, %v3233
      %v3846 = vpack.c.b16 %v3246, %v3234
      %v3847 = vpack.c.b16 %v3247, %v3235
      %v3848 = vpack.c.b16 %v3248, %v3236
      %v3849 = vpack.c.b16 %v3249, %v3237
      %v3850 = vpack.c.b16 %v3250, %v3238
      %v3851 = vpack.c.b16 %v3251, %v3239
      %v3852 = vpack.c.b16 %v3252, %v3240
      %v3853 = vpack.c.b16 %v3253, %v3241
      %v3854 = vpack.c.b16 %v3254, %v3242
      %v3855 = vpack.c.b16 %v3255, %v3243
      %v3856 = vpack.c.b16 %v3268, %v3256
      %v3857 = vpack.c.b16 %v3269, %v3257
      %v3858 = vpack.c.b16 %v3270, %v3258
      %v3859 = vpack.c.b16 %v3271, %v3259
      %v3860 = vpack.c.b16 %v3272, %v3260
      %v3861 = vpack.c.b16 %v3273, %v3261
      %v3862 = vpack.c.b16 %v3274, %v3262
      %v3863 = vpack.c.b16 %v3275, %v3263
      %v3864 = vpack.c.b16 %v3276, %v3264
      %v3865 = vpack.c.b16 %v3277, %v3265
      %v3866 = vpack.c.b16 %v3278, %v3266
      %v3867 = vpack.c.b16 %v3279, %v3267
      %v3868 = vpack.c.b16 %v3292, %v3280
      %v3869 = vpack.c.b16 %v3293, %v3281
      %v3870 = vpack.c.b16 %v3294, %v3282
      %v3871 = vpack.c.b16 %v3295, %v3283
      %v3872 = vpack.c.b16 %v3296, %v3284
      %v3873 = vpack.c.b16 %v3297, %v3285
      %v3874 = vpack.c.b16 %v3298, %v3286
      %v3875 = vpack.c.b16 %v3299, %v3287
      %v3876 = vpack.c.b16 %v3300, %v3288
      %v3877 = vpack.c.b16 %v3301, %v3289
      %v3878 = vpack.c.b16 %v3302, %v3290
      %v3879 = vpack.c.b16 %v3303, %v3291
      %4456 = vmatpush.bf16.msra.mxu0 %v3388
      %4457 = vmatpush.bf16.msra.mxu0 %v3376
      %4458 = vmatpush.bf16.msra.mxu0 %v3364
      %4459 = vmatpush.bf16.msra.mxu0 %v3352
      %4460 = vmatpush.bf16.msra.mxu0 %v3340
      %4461 = vmatpush.bf16.msra.mxu0 %v3328
      %4462 = vmatpush.bf16.msra.mxu0 %v3316
      %4463 = vmatpush.bf16.msra.mxu0 %v3304
      %4464 = vmatmul.bf16.gmra.mxu0 %v1570
      %v4465 = vpop.f32.mrf.mxu0
      %v4466 = vadd.f32 %v1546, %v4465
      %v4467 = vpop.f32.mrf.mxu0
      %4468 = vdwg.mxu0
      %4469 = vmatpush.bf16.msra.mxu0 %v3484
      %4470 = vmatpush.bf16.msra.mxu0 %v3472
      %4471 = vmatpush.bf16.msra.mxu0 %v3460
      %4472 = vmatpush.bf16.msra.mxu0 %v3448
      %4473 = vmatpush.bf16.msra.mxu0 %v3436
      %4474 = vmatpush.bf16.msra.mxu0 %v3424
      %4475 = vmatpush.bf16.msra.mxu0 %v3412
      %4476 = vmatpush.bf16.msra.mxu0 %v3400
      %4477 = vmatmul.bf16.gmra.mxu0 %v1571
      %v4478 = vpop.f32.mrf.mxu0
      %v4479 = vadd.f32 %v4466, %v4478
      %v4480 = vpop.f32.mrf.mxu0
      %4481 = vdwg.mxu0
      %4482 = vmatpush.bf16.msra.mxu0 %v3580
      %4483 = vmatpush.bf16.msra.mxu0 %v3568
      %4484 = vmatpush.bf16.msra.mxu0 %v3556
      %4485 = vmatpush.bf16.msra.mxu0 %v3544
      %4486 = vmatpush.bf16.msra.mxu0 %v3532
      %4487 = vmatpush.bf16.msra.mxu0 %v3520
      %4488 = vmatpush.bf16.msra.mxu0 %v3508
      %4489 = vmatpush.bf16.msra.mxu0 %v3496
      %4490 = vmatmul.bf16.gmra.mxu0 %v1572
      %v4491 = vpop.f32.mrf.mxu0
      %v4492 = vadd.f32 %v4479, %v4491
      %v4493 = vpop.f32.mrf.mxu0
      %4494 = vdwg.mxu0
      %4495 = vmatpush.bf16.msra.mxu0 %v3676
      %4496 = vmatpush.bf16.msra.mxu0 %v3664
      %4497 = vmatpush.bf16.msra.mxu0 %v3652
      %4498 = vmatpush.bf16.msra.mxu0 %v3640
      %4499 = vmatpush.bf16.msra.mxu0 %v3628
      %4500 = vmatpush.bf16.msra.mxu0 %v3616
      %4501 = vmatpush.bf16.msra.mxu0 %v3604
      %4502 = vmatpush.bf16.msra.mxu0 %v3592
      %4503 = vmatmul.bf16.gmra.mxu0 %v1573
      %v4504 = vpop.f32.mrf.mxu0
      %v4505 = vadd.f32 %v4492, %v4504
      %v4506 = vpop.f32.mrf.mxu0
      %4507 = vdwg.mxu0
      %4508 = vmatpush.bf16.msra.mxu0 %v3772
      %4509 = vmatpush.bf16.msra.mxu0 %v3760
      %4510 = vmatpush.bf16.msra.mxu0 %v3748
      %4511 = vmatpush.bf16.msra.mxu0 %v3736
      %4512 = vmatpush.bf16.msra.mxu0 %v3724
      %4513 = vmatpush.bf16.msra.mxu0 %v3712
      %4514 = vmatpush.bf16.msra.mxu0 %v3700
      %4515 = vmatpush.bf16.msra.mxu0 %v3688
      %4516 = vmatmul.bf16.gmra.mxu0 %v1574
      %v4517 = vpop.f32.mrf.mxu0
      %v4518 = vadd.f32 %v4505, %v4517
      %v4519 = vpop.f32.mrf.mxu0
      %4520 = vdwg.mxu0
      %4521 = vmatpush.bf16.msra.mxu0 %v3868
      %4522 = vmatpush.bf16.msra.mxu0 %v3856
      %4523 = vmatpush.bf16.msra.mxu0 %v3844
      %4524 = vmatpush.bf16.msra.mxu0 %v3832
      %4525 = vmatpush.bf16.msra.mxu0 %v3820
      %4526 = vmatpush.bf16.msra.mxu0 %v3808
      %4527 = vmatpush.bf16.msra.mxu0 %v3796
      %4528 = vmatpush.bf16.msra.mxu0 %v3784
      %4529 = vmatmul.bf16.gmra.mxu0 %v1575
      %v4530 = vpop.f32.mrf.mxu0
      %v4531 = vadd.f32 %v4518, %v4530
      %v4532 = vpop.f32.mrf.mxu0
      %4533 = vdwg.mxu0
      %4534 = vmatpush.bf16.msra.mxu0 %v3389
      %4535 = vmatpush.bf16.msra.mxu0 %v3377
      %4536 = vmatpush.bf16.msra.mxu0 %v3365
      %4537 = vmatpush.bf16.msra.mxu0 %v3353
      %4538 = vmatpush.bf16.msra.mxu0 %v3341
      %4539 = vmatpush.bf16.msra.mxu0 %v3329
      %4540 = vmatpush.bf16.msra.mxu0 %v3317
      %4541 = vmatpush.bf16.msra.mxu0 %v3305
      %4542 = vmatmul.bf16.gmra.mxu0 %v1570
      %v4543 = vpop.f32.mrf.mxu0
      %v4544 = vadd.f32 %v1547, %v4543
      %v4545 = vpop.f32.mrf.mxu0
      %4546 = vdwg.mxu0
      %4547 = vmatpush.bf16.msra.mxu0 %v3485
      %4548 = vmatpush.bf16.msra.mxu0 %v3473
      %4549 = vmatpush.bf16.msra.mxu0 %v3461
      %4550 = vmatpush.bf16.msra.mxu0 %v3449
      %4551 = vmatpush.bf16.msra.mxu0 %v3437
      %4552 = vmatpush.bf16.msra.mxu0 %v3425
      %4553 = vmatpush.bf16.msra.mxu0 %v3413
      %4554 = vmatpush.bf16.msra.mxu0 %v3401
      %4555 = vmatmul.bf16.gmra.mxu0 %v1571
      %v4556 = vpop.f32.mrf.mxu0
      %v4557 = vadd.f32 %v4544, %v4556
      %v4558 = vpop.f32.mrf.mxu0
      %4559 = vdwg.mxu0
      %4560 = vmatpush.bf16.msra.mxu0 %v3581
      %4561 = vmatpush.bf16.msra.mxu0 %v3569
      %4562 = vmatpush.bf16.msra.mxu0 %v3557
      %4563 = vmatpush.bf16.msra.mxu0 %v3545
      %4564 = vmatpush.bf16.msra.mxu0 %v3533
      %4565 = vmatpush.bf16.msra.mxu0 %v3521
      %4566 = vmatpush.bf16.msra.mxu0 %v3509
      %4567 = vmatpush.bf16.msra.mxu0 %v3497
      %4568 = vmatmul.bf16.gmra.mxu0 %v1572
      %v4569 = vpop.f32.mrf.mxu0
      %v4570 = vadd.f32 %v4557, %v4569
      %v4571 = vpop.f32.mrf.mxu0
      %4572 = vdwg.mxu0
      %4573 = vmatpush.bf16.msra.mxu0 %v3677
      %4574 = vmatpush.bf16.msra.mxu0 %v3665
      %4575 = vmatpush.bf16.msra.mxu0 %v3653
      %4576 = vmatpush.bf16.msra.mxu0 %v3641
      %4577 = vmatpush.bf16.msra.mxu0 %v3629
      %4578 = vmatpush.bf16.msra.mxu0 %v3617
      %4579 = vmatpush.bf16.msra.mxu0 %v3605
      %4580 = vmatpush.bf16.msra.mxu0 %v3593
      %4581 = vmatmul.bf16.gmra.mxu0 %v1573
      %v4582 = vpop.f32.mrf.mxu0
      %v4583 = vadd.f32 %v4570, %v4582
      %v4584 = vpop.f32.mrf.mxu0
      %4585 = vdwg.mxu0
      %4586 = vmatpush.bf16.msra.mxu0 %v3773
      %4587 = vmatpush.bf16.msra.mxu0 %v3761
      %4588 = vmatpush.bf16.msra.mxu0 %v3749
      %4589 = vmatpush.bf16.msra.mxu0 %v3737
      %4590 = vmatpush.bf16.msra.mxu0 %v3725
      %4591 = vmatpush.bf16.msra.mxu0 %v3713
      %4592 = vmatpush.bf16.msra.mxu0 %v3701
      %4593 = vmatpush.bf16.msra.mxu0 %v3689
      %4594 = vmatmul.bf16.gmra.mxu0 %v1574
      %v4595 = vpop.f32.mrf.mxu0
      %v4596 = vadd.f32 %v4583, %v4595
      %v4597 = vpop.f32.mrf.mxu0
      %4598 = vdwg.mxu0
      %4599 = vmatpush.bf16.msra.mxu0 %v3869
      %4600 = vmatpush.bf16.msra.mxu0 %v3857
      %4601 = vmatpush.bf16.msra.mxu0 %v3845
      %4602 = vmatpush.bf16.msra.mxu0 %v3833
      %4603 = vmatpush.bf16.msra.mxu0 %v3821
      %4604 = vmatpush.bf16.msra.mxu0 %v3809
      %4605 = vmatpush.bf16.msra.mxu0 %v3797
      %4606 = vmatpush.bf16.msra.mxu0 %v3785
      %4607 = vmatmul.bf16.gmra.mxu0 %v1575
      %v4608 = vpop.f32.mrf.mxu0
      %v4609 = vadd.f32 %v4596, %v4608
      %v4610 = vpop.f32.mrf.mxu0
      %4611 = vdwg.mxu0
      %4612 = vmatpush.bf16.msra.mxu0 %v3390
      %4613 = vmatpush.bf16.msra.mxu0 %v3378
      %4614 = vmatpush.bf16.msra.mxu0 %v3366
      %4615 = vmatpush.bf16.msra.mxu0 %v3354
      %4616 = vmatpush.bf16.msra.mxu0 %v3342
      %4617 = vmatpush.bf16.msra.mxu0 %v3330
      %4618 = vmatpush.bf16.msra.mxu0 %v3318
      %4619 = vmatpush.bf16.msra.mxu0 %v3306
      %4620 = vmatmul.bf16.gmra.mxu0 %v1570
      %v4621 = vpop.f32.mrf.mxu0
      %v4622 = vadd.f32 %v1548, %v4621
      %v4623 = vpop.f32.mrf.mxu0
      %4624 = vdwg.mxu0
      %4625 = vmatpush.bf16.msra.mxu0 %v3486
      %4626 = vmatpush.bf16.msra.mxu0 %v3474
      %4627 = vmatpush.bf16.msra.mxu0 %v3462
      %4628 = vmatpush.bf16.msra.mxu0 %v3450
      %4629 = vmatpush.bf16.msra.mxu0 %v3438
      %4630 = vmatpush.bf16.msra.mxu0 %v3426
      %4631 = vmatpush.bf16.msra.mxu0 %v3414
      %4632 = vmatpush.bf16.msra.mxu0 %v3402
      %4633 = vmatmul.bf16.gmra.mxu0 %v1571
      %v4634 = vpop.f32.mrf.mxu0
      %v4635 = vadd.f32 %v4622, %v4634
      %v4636 = vpop.f32.mrf.mxu0
      %4637 = vdwg.mxu0
      %4638 = vmatpush.bf16.msra.mxu0 %v3582
      %4639 = vmatpush.bf16.msra.mxu0 %v3570
      %4640 = vmatpush.bf16.msra.mxu0 %v3558
      %4641 = vmatpush.bf16.msra.mxu0 %v3546
      %4642 = vmatpush.bf16.msra.mxu0 %v3534
      %4643 = vmatpush.bf16.msra.mxu0 %v3522
      %4644 = vmatpush.bf16.msra.mxu0 %v3510
      %4645 = vmatpush.bf16.msra.mxu0 %v3498
      %4646 = vmatmul.bf16.gmra.mxu0 %v1572
      %v4647 = vpop.f32.mrf.mxu0
      %v4648 = vadd.f32 %v4635, %v4647
      %v4649 = vpop.f32.mrf.mxu0
      %4650 = vdwg.mxu0
      %4651 = vmatpush.bf16.msra.mxu0 %v3678
      %4652 = vmatpush.bf16.msra.mxu0 %v3666
      %4653 = vmatpush.bf16.msra.mxu0 %v3654
      %4654 = vmatpush.bf16.msra.mxu0 %v3642
      %4655 = vmatpush.bf16.msra.mxu0 %v3630
      %4656 = vmatpush.bf16.msra.mxu0 %v3618
      %4657 = vmatpush.bf16.msra.mxu0 %v3606
      %4658 = vmatpush.bf16.msra.mxu0 %v3594
      %4659 = vmatmul.bf16.gmra.mxu0 %v1573
      %v4660 = vpop.f32.mrf.mxu0
      %v4661 = vadd.f32 %v4648, %v4660
      %v4662 = vpop.f32.mrf.mxu0
      %4663 = vdwg.mxu0
      %4664 = vmatpush.bf16.msra.mxu0 %v3774
      %4665 = vmatpush.bf16.msra.mxu0 %v3762
      %4666 = vmatpush.bf16.msra.mxu0 %v3750
      %4667 = vmatpush.bf16.msra.mxu0 %v3738
      %4668 = vmatpush.bf16.msra.mxu0 %v3726
      %4669 = vmatpush.bf16.msra.mxu0 %v3714
      %4670 = vmatpush.bf16.msra.mxu0 %v3702
      %4671 = vmatpush.bf16.msra.mxu0 %v3690
      %4672 = vmatmul.bf16.gmra.mxu0 %v1574
      %v4673 = vpop.f32.mrf.mxu0
      %v4674 = vadd.f32 %v4661, %v4673
      %v4675 = vpop.f32.mrf.mxu0
      %4676 = vdwg.mxu0
      %4677 = vmatpush.bf16.msra.mxu0 %v3870
      %4678 = vmatpush.bf16.msra.mxu0 %v3858
      %4679 = vmatpush.bf16.msra.mxu0 %v3846
      %4680 = vmatpush.bf16.msra.mxu0 %v3834
      %4681 = vmatpush.bf16.msra.mxu0 %v3822
      %4682 = vmatpush.bf16.msra.mxu0 %v3810
      %4683 = vmatpush.bf16.msra.mxu0 %v3798
      %4684 = vmatpush.bf16.msra.mxu0 %v3786
      %4685 = vmatmul.bf16.gmra.mxu0 %v1575
      %v4686 = vpop.f32.mrf.mxu0
      %v4687 = vadd.f32 %v4674, %v4686
      %v4688 = vpop.f32.mrf.mxu0
      %4689 = vdwg.mxu0
      %4690 = vmatpush.bf16.msra.mxu0 %v3391
      %4691 = vmatpush.bf16.msra.mxu0 %v3379
      %4692 = vmatpush.bf16.msra.mxu0 %v3367
      %4693 = vmatpush.bf16.msra.mxu0 %v3355
      %4694 = vmatpush.bf16.msra.mxu0 %v3343
      %4695 = vmatpush.bf16.msra.mxu0 %v3331
      %4696 = vmatpush.bf16.msra.mxu0 %v3319
      %4697 = vmatpush.bf16.msra.mxu0 %v3307
      %4698 = vmatmul.bf16.gmra.mxu0 %v1570
      %v4699 = vpop.f32.mrf.mxu0
      %v4700 = vadd.f32 %v1549, %v4699
      %v4701 = vpop.f32.mrf.mxu0
      %4702 = vdwg.mxu0
      %4703 = vmatpush.bf16.msra.mxu0 %v3487
      %4704 = vmatpush.bf16.msra.mxu0 %v3475
      %4705 = vmatpush.bf16.msra.mxu0 %v3463
      %4706 = vmatpush.bf16.msra.mxu0 %v3451
      %4707 = vmatpush.bf16.msra.mxu0 %v3439
      %4708 = vmatpush.bf16.msra.mxu0 %v3427
      %4709 = vmatpush.bf16.msra.mxu0 %v3415
      %4710 = vmatpush.bf16.msra.mxu0 %v3403
      %4711 = vmatmul.bf16.gmra.mxu0 %v1571
      %v4712 = vpop.f32.mrf.mxu0
      %v4713 = vadd.f32 %v4700, %v4712
      %v4714 = vpop.f32.mrf.mxu0
      %4715 = vdwg.mxu0
      %4716 = vmatpush.bf16.msra.mxu0 %v3583
      %4717 = vmatpush.bf16.msra.mxu0 %v3571
      %4718 = vmatpush.bf16.msra.mxu0 %v3559
      %4719 = vmatpush.bf16.msra.mxu0 %v3547
      %4720 = vmatpush.bf16.msra.mxu0 %v3535
      %4721 = vmatpush.bf16.msra.mxu0 %v3523
      %4722 = vmatpush.bf16.msra.mxu0 %v3511
      %4723 = vmatpush.bf16.msra.mxu0 %v3499
      %4724 = vmatmul.bf16.gmra.mxu0 %v1572
      %v4725 = vpop.f32.mrf.mxu0
      %v4726 = vadd.f32 %v4713, %v4725
      %v4727 = vpop.f32.mrf.mxu0
      %4728 = vdwg.mxu0
      %4729 = vmatpush.bf16.msra.mxu0 %v3679
      %4730 = vmatpush.bf16.msra.mxu0 %v3667
      %4731 = vmatpush.bf16.msra.mxu0 %v3655
      %4732 = vmatpush.bf16.msra.mxu0 %v3643
      %4733 = vmatpush.bf16.msra.mxu0 %v3631
      %4734 = vmatpush.bf16.msra.mxu0 %v3619
      %4735 = vmatpush.bf16.msra.mxu0 %v3607
      %4736 = vmatpush.bf16.msra.mxu0 %v3595
      %4737 = vmatmul.bf16.gmra.mxu0 %v1573
      %v4738 = vpop.f32.mrf.mxu0
      %v4739 = vadd.f32 %v4726, %v4738
      %v4740 = vpop.f32.mrf.mxu0
      %4741 = vdwg.mxu0
      %4742 = vmatpush.bf16.msra.mxu0 %v3775
      %4743 = vmatpush.bf16.msra.mxu0 %v3763
      %4744 = vmatpush.bf16.msra.mxu0 %v3751
      %4745 = vmatpush.bf16.msra.mxu0 %v3739
      %4746 = vmatpush.bf16.msra.mxu0 %v3727
      %4747 = vmatpush.bf16.msra.mxu0 %v3715
      %4748 = vmatpush.bf16.msra.mxu0 %v3703
      %4749 = vmatpush.bf16.msra.mxu0 %v3691
      %4750 = vmatmul.bf16.gmra.mxu0 %v1574
      %v4751 = vpop.f32.mrf.mxu0
      %v4752 = vadd.f32 %v4739, %v4751
      %v4753 = vpop.f32.mrf.mxu0
      %4754 = vdwg.mxu0
      %4755 = vmatpush.bf16.msra.mxu0 %v3871
      %4756 = vmatpush.bf16.msra.mxu0 %v3859
      %4757 = vmatpush.bf16.msra.mxu0 %v3847
      %4758 = vmatpush.bf16.msra.mxu0 %v3835
      %4759 = vmatpush.bf16.msra.mxu0 %v3823
      %4760 = vmatpush.bf16.msra.mxu0 %v3811
      %4761 = vmatpush.bf16.msra.mxu0 %v3799
      %4762 = vmatpush.bf16.msra.mxu0 %v3787
      %4763 = vmatmul.bf16.gmra.mxu0 %v1575
      %v4764 = vpop.f32.mrf.mxu0
      %v4765 = vadd.f32 %v4752, %v4764
      %v4766 = vpop.f32.mrf.mxu0
      %4767 = vdwg.mxu0
      %4768 = vmatpush.bf16.msra.mxu0 %v3392
      %4769 = vmatpush.bf16.msra.mxu0 %v3380
      %4770 = vmatpush.bf16.msra.mxu0 %v3368
      %4771 = vmatpush.bf16.msra.mxu0 %v3356
      %4772 = vmatpush.bf16.msra.mxu0 %v3344
      %4773 = vmatpush.bf16.msra.mxu0 %v3332
      %4774 = vmatpush.bf16.msra.mxu0 %v3320
      %4775 = vmatpush.bf16.msra.mxu0 %v3308
      %4776 = vmatmul.bf16.gmra.mxu0 %v1570
      %v4777 = vpop.f32.mrf.mxu0
      %v4778 = vadd.f32 %v1550, %v4777
      %v4779 = vpop.f32.mrf.mxu0
      %4780 = vdwg.mxu0
      %4781 = vmatpush.bf16.msra.mxu0 %v3488
      %4782 = vmatpush.bf16.msra.mxu0 %v3476
      %4783 = vmatpush.bf16.msra.mxu0 %v3464
      %4784 = vmatpush.bf16.msra.mxu0 %v3452
      %4785 = vmatpush.bf16.msra.mxu0 %v3440
      %4786 = vmatpush.bf16.msra.mxu0 %v3428
      %4787 = vmatpush.bf16.msra.mxu0 %v3416
      %4788 = vmatpush.bf16.msra.mxu0 %v3404
      %4789 = vmatmul.bf16.gmra.mxu0 %v1571
      %v4790 = vpop.f32.mrf.mxu0
      %v4791 = vadd.f32 %v4778, %v4790
      %v4792 = vpop.f32.mrf.mxu0
      %4793 = vdwg.mxu0
      %4794 = vmatpush.bf16.msra.mxu0 %v3584
      %4795 = vmatpush.bf16.msra.mxu0 %v3572
      %4796 = vmatpush.bf16.msra.mxu0 %v3560
      %4797 = vmatpush.bf16.msra.mxu0 %v3548
      %4798 = vmatpush.bf16.msra.mxu0 %v3536
      %4799 = vmatpush.bf16.msra.mxu0 %v3524
      %4800 = vmatpush.bf16.msra.mxu0 %v3512
      %4801 = vmatpush.bf16.msra.mxu0 %v3500
      %4802 = vmatmul.bf16.gmra.mxu0 %v1572
      %v4803 = vpop.f32.mrf.mxu0
      %v4804 = vadd.f32 %v4791, %v4803
      %v4805 = vpop.f32.mrf.mxu0
      %4806 = vdwg.mxu0
      %4807 = vmatpush.bf16.msra.mxu0 %v3680
      %4808 = vmatpush.bf16.msra.mxu0 %v3668
      %4809 = vmatpush.bf16.msra.mxu0 %v3656
      %4810 = vmatpush.bf16.msra.mxu0 %v3644
      %4811 = vmatpush.bf16.msra.mxu0 %v3632
      %4812 = vmatpush.bf16.msra.mxu0 %v3620
      %4813 = vmatpush.bf16.msra.mxu0 %v3608
      %4814 = vmatpush.bf16.msra.mxu0 %v3596
      %4815 = vmatmul.bf16.gmra.mxu0 %v1573
      %v4816 = vpop.f32.mrf.mxu0
      %v4817 = vadd.f32 %v4804, %v4816
      %v4818 = vpop.f32.mrf.mxu0
      %4819 = vdwg.mxu0
      %4820 = vmatpush.bf16.msra.mxu0 %v3776
      %4821 = vmatpush.bf16.msra.mxu0 %v3764
      %4822 = vmatpush.bf16.msra.mxu0 %v3752
      %4823 = vmatpush.bf16.msra.mxu0 %v3740
      %4824 = vmatpush.bf16.msra.mxu0 %v3728
      %4825 = vmatpush.bf16.msra.mxu0 %v3716
      %4826 = vmatpush.bf16.msra.mxu0 %v3704
      %4827 = vmatpush.bf16.msra.mxu0 %v3692
      %4828 = vmatmul.bf16.gmra.mxu0 %v1574
      %v4829 = vpop.f32.mrf.mxu0
      %v4830 = vadd.f32 %v4817, %v4829
      %v4831 = vpop.f32.mrf.mxu0
      %4832 = vdwg.mxu0
      %4833 = vmatpush.bf16.msra.mxu0 %v3872
      %4834 = vmatpush.bf16.msra.mxu0 %v3860
      %4835 = vmatpush.bf16.msra.mxu0 %v3848
      %4836 = vmatpush.bf16.msra.mxu0 %v3836
      %4837 = vmatpush.bf16.msra.mxu0 %v3824
      %4838 = vmatpush.bf16.msra.mxu0 %v3812
      %4839 = vmatpush.bf16.msra.mxu0 %v3800
      %4840 = vmatpush.bf16.msra.mxu0 %v3788
      %4841 = vmatmul.bf16.gmra.mxu0 %v1575
      %v4842 = vpop.f32.mrf.mxu0
      %v4843 = vadd.f32 %v4830, %v4842
      %v4844 = vpop.f32.mrf.mxu0
      %4845 = vdwg.mxu0
      %4846 = vmatpush.bf16.msra.mxu0 %v3393
      %4847 = vmatpush.bf16.msra.mxu0 %v3381
      %4848 = vmatpush.bf16.msra.mxu0 %v3369
      %4849 = vmatpush.bf16.msra.mxu0 %v3357
      %4850 = vmatpush.bf16.msra.mxu0 %v3345
      %4851 = vmatpush.bf16.msra.mxu0 %v3333
      %4852 = vmatpush.bf16.msra.mxu0 %v3321
      %4853 = vmatpush.bf16.msra.mxu0 %v3309
      %4854 = vmatmul.bf16.gmra.mxu0 %v1570
      %v4855 = vpop.f32.mrf.mxu0
      %v4856 = vadd.f32 %v1551, %v4855
      %v4857 = vpop.f32.mrf.mxu0
      %4858 = vdwg.mxu0
      %4859 = vmatpush.bf16.msra.mxu0 %v3489
      %4860 = vmatpush.bf16.msra.mxu0 %v3477
      %4861 = vmatpush.bf16.msra.mxu0 %v3465
      %4862 = vmatpush.bf16.msra.mxu0 %v3453
      %4863 = vmatpush.bf16.msra.mxu0 %v3441
      %4864 = vmatpush.bf16.msra.mxu0 %v3429
      %4865 = vmatpush.bf16.msra.mxu0 %v3417
      %4866 = vmatpush.bf16.msra.mxu0 %v3405
      %4867 = vmatmul.bf16.gmra.mxu0 %v1571
      %v4868 = vpop.f32.mrf.mxu0
      %v4869 = vadd.f32 %v4856, %v4868
      %v4870 = vpop.f32.mrf.mxu0
      %4871 = vdwg.mxu0
      %4872 = vmatpush.bf16.msra.mxu0 %v3585
      %4873 = vmatpush.bf16.msra.mxu0 %v3573
      %4874 = vmatpush.bf16.msra.mxu0 %v3561
      %4875 = vmatpush.bf16.msra.mxu0 %v3549
      %4876 = vmatpush.bf16.msra.mxu0 %v3537
      %4877 = vmatpush.bf16.msra.mxu0 %v3525
      %4878 = vmatpush.bf16.msra.mxu0 %v3513
      %4879 = vmatpush.bf16.msra.mxu0 %v3501
      %4880 = vmatmul.bf16.gmra.mxu0 %v1572
      %v4881 = vpop.f32.mrf.mxu0
      %v4882 = vadd.f32 %v4869, %v4881
      %v4883 = vpop.f32.mrf.mxu0
      %4884 = vdwg.mxu0
      %4885 = vmatpush.bf16.msra.mxu0 %v3681
      %4886 = vmatpush.bf16.msra.mxu0 %v3669
      %4887 = vmatpush.bf16.msra.mxu0 %v3657
      %4888 = vmatpush.bf16.msra.mxu0 %v3645
      %4889 = vmatpush.bf16.msra.mxu0 %v3633
      %4890 = vmatpush.bf16.msra.mxu0 %v3621
      %4891 = vmatpush.bf16.msra.mxu0 %v3609
      %4892 = vmatpush.bf16.msra.mxu0 %v3597
      %4893 = vmatmul.bf16.gmra.mxu0 %v1573
      %v4894 = vpop.f32.mrf.mxu0
      %v4895 = vadd.f32 %v4882, %v4894
      %v4896 = vpop.f32.mrf.mxu0
      %4897 = vdwg.mxu0
      %4898 = vmatpush.bf16.msra.mxu0 %v3777
      %4899 = vmatpush.bf16.msra.mxu0 %v3765
      %4900 = vmatpush.bf16.msra.mxu0 %v3753
      %4901 = vmatpush.bf16.msra.mxu0 %v3741
      %4902 = vmatpush.bf16.msra.mxu0 %v3729
      %4903 = vmatpush.bf16.msra.mxu0 %v3717
      %4904 = vmatpush.bf16.msra.mxu0 %v3705
      %4905 = vmatpush.bf16.msra.mxu0 %v3693
      %4906 = vmatmul.bf16.gmra.mxu0 %v1574
      %v4907 = vpop.f32.mrf.mxu0
      %v4908 = vadd.f32 %v4895, %v4907
      %v4909 = vpop.f32.mrf.mxu0
      %4910 = vdwg.mxu0
      %4911 = vmatpush.bf16.msra.mxu0 %v3873
      %4912 = vmatpush.bf16.msra.mxu0 %v3861
      %4913 = vmatpush.bf16.msra.mxu0 %v3849
      %4914 = vmatpush.bf16.msra.mxu0 %v3837
      %4915 = vmatpush.bf16.msra.mxu0 %v3825
      %4916 = vmatpush.bf16.msra.mxu0 %v3813
      %4917 = vmatpush.bf16.msra.mxu0 %v3801
      %4918 = vmatpush.bf16.msra.mxu0 %v3789
      %4919 = vmatmul.bf16.gmra.mxu0 %v1575
      %v4920 = vpop.f32.mrf.mxu0
      %v4921 = vadd.f32 %v4908, %v4920
      %v4922 = vpop.f32.mrf.mxu0
      %4923 = vdwg.mxu0
      %4924 = vmatpush.bf16.msra.mxu0 %v3394
      %4925 = vmatpush.bf16.msra.mxu0 %v3382
      %4926 = vmatpush.bf16.msra.mxu0 %v3370
      %4927 = vmatpush.bf16.msra.mxu0 %v3358
      %4928 = vmatpush.bf16.msra.mxu0 %v3346
      %4929 = vmatpush.bf16.msra.mxu0 %v3334
      %4930 = vmatpush.bf16.msra.mxu0 %v3322
      %4931 = vmatpush.bf16.msra.mxu0 %v3310
      %4932 = vmatmul.bf16.gmra.mxu0 %v1570
      %v4933 = vpop.f32.mrf.mxu0
      %v4934 = vadd.f32 %v1552, %v4933
      %v4935 = vpop.f32.mrf.mxu0
      %4936 = vdwg.mxu0
      %4937 = vmatpush.bf16.msra.mxu0 %v3490
      %4938 = vmatpush.bf16.msra.mxu0 %v3478
      %4939 = vmatpush.bf16.msra.mxu0 %v3466
      %4940 = vmatpush.bf16.msra.mxu0 %v3454
      %4941 = vmatpush.bf16.msra.mxu0 %v3442
      %4942 = vmatpush.bf16.msra.mxu0 %v3430
      %4943 = vmatpush.bf16.msra.mxu0 %v3418
      %4944 = vmatpush.bf16.msra.mxu0 %v3406
      %4945 = vmatmul.bf16.gmra.mxu0 %v1571
      %v4946 = vpop.f32.mrf.mxu0
      %v4947 = vadd.f32 %v4934, %v4946
      %v4948 = vpop.f32.mrf.mxu0
      %4949 = vdwg.mxu0
      %4950 = vmatpush.bf16.msra.mxu0 %v3586
      %4951 = vmatpush.bf16.msra.mxu0 %v3574
      %4952 = vmatpush.bf16.msra.mxu0 %v3562
      %4953 = vmatpush.bf16.msra.mxu0 %v3550
      %4954 = vmatpush.bf16.msra.mxu0 %v3538
      %4955 = vmatpush.bf16.msra.mxu0 %v3526
      %4956 = vmatpush.bf16.msra.mxu0 %v3514
      %4957 = vmatpush.bf16.msra.mxu0 %v3502
      %4958 = vmatmul.bf16.gmra.mxu0 %v1572
      %v4959 = vpop.f32.mrf.mxu0
      %v4960 = vadd.f32 %v4947, %v4959
      %v4961 = vpop.f32.mrf.mxu0
      %4962 = vdwg.mxu0
      %4963 = vmatpush.bf16.msra.mxu0 %v3682
      %4964 = vmatpush.bf16.msra.mxu0 %v3670
      %4965 = vmatpush.bf16.msra.mxu0 %v3658
      %4966 = vmatpush.bf16.msra.mxu0 %v3646
      %4967 = vmatpush.bf16.msra.mxu0 %v3634
      %4968 = vmatpush.bf16.msra.mxu0 %v3622
      %4969 = vmatpush.bf16.msra.mxu0 %v3610
      %4970 = vmatpush.bf16.msra.mxu0 %v3598
      %4971 = vmatmul.bf16.gmra.mxu0 %v1573
      %v4972 = vpop.f32.mrf.mxu0
      %v4973 = vadd.f32 %v4960, %v4972
      %v4974 = vpop.f32.mrf.mxu0
      %4975 = vdwg.mxu0
      %4976 = vmatpush.bf16.msra.mxu0 %v3778
      %4977 = vmatpush.bf16.msra.mxu0 %v3766
      %4978 = vmatpush.bf16.msra.mxu0 %v3754
      %4979 = vmatpush.bf16.msra.mxu0 %v3742
      %4980 = vmatpush.bf16.msra.mxu0 %v3730
      %4981 = vmatpush.bf16.msra.mxu0 %v3718
      %4982 = vmatpush.bf16.msra.mxu0 %v3706
      %4983 = vmatpush.bf16.msra.mxu0 %v3694
      %4984 = vmatmul.bf16.gmra.mxu0 %v1574
      %v4985 = vpop.f32.mrf.mxu0
      %v4986 = vadd.f32 %v4973, %v4985
      %v4987 = vpop.f32.mrf.mxu0
      %4988 = vdwg.mxu0
      %4989 = vmatpush.bf16.msra.mxu0 %v3874
      %4990 = vmatpush.bf16.msra.mxu0 %v3862
      %4991 = vmatpush.bf16.msra.mxu0 %v3850
      %4992 = vmatpush.bf16.msra.mxu0 %v3838
      %4993 = vmatpush.bf16.msra.mxu0 %v3826
      %4994 = vmatpush.bf16.msra.mxu0 %v3814
      %4995 = vmatpush.bf16.msra.mxu0 %v3802
      %4996 = vmatpush.bf16.msra.mxu0 %v3790
      %4997 = vmatmul.bf16.gmra.mxu0 %v1575
      %v4998 = vpop.f32.mrf.mxu0
      %v4999 = vadd.f32 %v4986, %v4998
      %v5000 = vpop.f32.mrf.mxu0
      %5001 = vdwg.mxu0
      %5002 = vmatpush.bf16.msra.mxu0 %v3395
      %5003 = vmatpush.bf16.msra.mxu0 %v3383
      %5004 = vmatpush.bf16.msra.mxu0 %v3371
      %5005 = vmatpush.bf16.msra.mxu0 %v3359
      %5006 = vmatpush.bf16.msra.mxu0 %v3347
      %5007 = vmatpush.bf16.msra.mxu0 %v3335
      %5008 = vmatpush.bf16.msra.mxu0 %v3323
      %5009 = vmatpush.bf16.msra.mxu0 %v3311
      %5010 = vmatmul.bf16.gmra.mxu0 %v1570
      %v5011 = vpop.f32.mrf.mxu0
      %v5012 = vadd.f32 %v1553, %v5011
      %v5013 = vpop.f32.mrf.mxu0
      %5014 = vdwg.mxu0
      %5015 = vmatpush.bf16.msra.mxu0 %v3491
      %5016 = vmatpush.bf16.msra.mxu0 %v3479
      %5017 = vmatpush.bf16.msra.mxu0 %v3467
      %5018 = vmatpush.bf16.msra.mxu0 %v3455
      %5019 = vmatpush.bf16.msra.mxu0 %v3443
      %5020 = vmatpush.bf16.msra.mxu0 %v3431
      %5021 = vmatpush.bf16.msra.mxu0 %v3419
      %5022 = vmatpush.bf16.msra.mxu0 %v3407
      %5023 = vmatmul.bf16.gmra.mxu0 %v1571
      %v5024 = vpop.f32.mrf.mxu0
      %v5025 = vadd.f32 %v5012, %v5024
      %v5026 = vpop.f32.mrf.mxu0
      %5027 = vdwg.mxu0
      %5028 = vmatpush.bf16.msra.mxu0 %v3587
      %5029 = vmatpush.bf16.msra.mxu0 %v3575
      %5030 = vmatpush.bf16.msra.mxu0 %v3563
      %5031 = vmatpush.bf16.msra.mxu0 %v3551
      %5032 = vmatpush.bf16.msra.mxu0 %v3539
      %5033 = vmatpush.bf16.msra.mxu0 %v3527
      %5034 = vmatpush.bf16.msra.mxu0 %v3515
      %5035 = vmatpush.bf16.msra.mxu0 %v3503
      %5036 = vmatmul.bf16.gmra.mxu0 %v1572
      %v5037 = vpop.f32.mrf.mxu0
      %v5038 = vadd.f32 %v5025, %v5037
      %v5039 = vpop.f32.mrf.mxu0
      %5040 = vdwg.mxu0
      %5041 = vmatpush.bf16.msra.mxu0 %v3683
      %5042 = vmatpush.bf16.msra.mxu0 %v3671
      %5043 = vmatpush.bf16.msra.mxu0 %v3659
      %5044 = vmatpush.bf16.msra.mxu0 %v3647
      %5045 = vmatpush.bf16.msra.mxu0 %v3635
      %5046 = vmatpush.bf16.msra.mxu0 %v3623
      %5047 = vmatpush.bf16.msra.mxu0 %v3611
      %5048 = vmatpush.bf16.msra.mxu0 %v3599
      %5049 = vmatmul.bf16.gmra.mxu0 %v1573
      %v5050 = vpop.f32.mrf.mxu0
      %v5051 = vadd.f32 %v5038, %v5050
      %v5052 = vpop.f32.mrf.mxu0
      %5053 = vdwg.mxu0
      %5054 = vmatpush.bf16.msra.mxu0 %v3779
      %5055 = vmatpush.bf16.msra.mxu0 %v3767
      %5056 = vmatpush.bf16.msra.mxu0 %v3755
      %5057 = vmatpush.bf16.msra.mxu0 %v3743
      %5058 = vmatpush.bf16.msra.mxu0 %v3731
      %5059 = vmatpush.bf16.msra.mxu0 %v3719
      %5060 = vmatpush.bf16.msra.mxu0 %v3707
      %5061 = vmatpush.bf16.msra.mxu0 %v3695
      %5062 = vmatmul.bf16.gmra.mxu0 %v1574
      %v5063 = vpop.f32.mrf.mxu0
      %v5064 = vadd.f32 %v5051, %v5063
      %v5065 = vpop.f32.mrf.mxu0
      %5066 = vdwg.mxu0
      %5067 = vmatpush.bf16.msra.mxu0 %v3875
      %5068 = vmatpush.bf16.msra.mxu0 %v3863
      %5069 = vmatpush.bf16.msra.mxu0 %v3851
      %5070 = vmatpush.bf16.msra.mxu0 %v3839
      %5071 = vmatpush.bf16.msra.mxu0 %v3827
      %5072 = vmatpush.bf16.msra.mxu0 %v3815
      %5073 = vmatpush.bf16.msra.mxu0 %v3803
      %5074 = vmatpush.bf16.msra.mxu0 %v3791
      %5075 = vmatmul.bf16.gmra.mxu0 %v1575
      %v5076 = vpop.f32.mrf.mxu0
      %v5077 = vadd.f32 %v5064, %v5076
      %v5078 = vpop.f32.mrf.mxu0
      %5079 = vdwg.mxu0
      %5080 = vmatpush.bf16.msra.mxu0 %v3396
      %5081 = vmatpush.bf16.msra.mxu0 %v3384
      %5082 = vmatpush.bf16.msra.mxu0 %v3372
      %5083 = vmatpush.bf16.msra.mxu0 %v3360
      %5084 = vmatpush.bf16.msra.mxu0 %v3348
      %5085 = vmatpush.bf16.msra.mxu0 %v3336
      %5086 = vmatpush.bf16.msra.mxu0 %v3324
      %5087 = vmatpush.bf16.msra.mxu0 %v3312
      %5088 = vmatmul.bf16.gmra.mxu0 %v1570
      %v5089 = vpop.f32.mrf.mxu0
      %v5090 = vadd.f32 %v1554, %v5089
      %v5091 = vpop.f32.mrf.mxu0
      %5092 = vdwg.mxu0
      %5093 = vmatpush.bf16.msra.mxu0 %v3492
      %5094 = vmatpush.bf16.msra.mxu0 %v3480
      %5095 = vmatpush.bf16.msra.mxu0 %v3468
      %5096 = vmatpush.bf16.msra.mxu0 %v3456
      %5097 = vmatpush.bf16.msra.mxu0 %v3444
      %5098 = vmatpush.bf16.msra.mxu0 %v3432
      %5099 = vmatpush.bf16.msra.mxu0 %v3420
      %5100 = vmatpush.bf16.msra.mxu0 %v3408
      %5101 = vmatmul.bf16.gmra.mxu0 %v1571
      %v5102 = vpop.f32.mrf.mxu0
      %v5103 = vadd.f32 %v5090, %v5102
      %v5104 = vpop.f32.mrf.mxu0
      %5105 = vdwg.mxu0
      %5106 = vmatpush.bf16.msra.mxu0 %v3588
      %5107 = vmatpush.bf16.msra.mxu0 %v3576
      %5108 = vmatpush.bf16.msra.mxu0 %v3564
      %5109 = vmatpush.bf16.msra.mxu0 %v3552
      %5110 = vmatpush.bf16.msra.mxu0 %v3540
      %5111 = vmatpush.bf16.msra.mxu0 %v3528
      %5112 = vmatpush.bf16.msra.mxu0 %v3516
      %5113 = vmatpush.bf16.msra.mxu0 %v3504
      %5114 = vmatmul.bf16.gmra.mxu0 %v1572
      %v5115 = vpop.f32.mrf.mxu0
      %v5116 = vadd.f32 %v5103, %v5115
      %v5117 = vpop.f32.mrf.mxu0
      %5118 = vdwg.mxu0
      %5119 = vmatpush.bf16.msra.mxu0 %v3684
      %5120 = vmatpush.bf16.msra.mxu0 %v3672
      %5121 = vmatpush.bf16.msra.mxu0 %v3660
      %5122 = vmatpush.bf16.msra.mxu0 %v3648
      %5123 = vmatpush.bf16.msra.mxu0 %v3636
      %5124 = vmatpush.bf16.msra.mxu0 %v3624
      %5125 = vmatpush.bf16.msra.mxu0 %v3612
      %5126 = vmatpush.bf16.msra.mxu0 %v3600
      %5127 = vmatmul.bf16.gmra.mxu0 %v1573
      %v5128 = vpop.f32.mrf.mxu0
      %v5129 = vadd.f32 %v5116, %v5128
      %v5130 = vpop.f32.mrf.mxu0
      %5131 = vdwg.mxu0
      %5132 = vmatpush.bf16.msra.mxu0 %v3780
      %5133 = vmatpush.bf16.msra.mxu0 %v3768
      %5134 = vmatpush.bf16.msra.mxu0 %v3756
      %5135 = vmatpush.bf16.msra.mxu0 %v3744
      %5136 = vmatpush.bf16.msra.mxu0 %v3732
      %5137 = vmatpush.bf16.msra.mxu0 %v3720
      %5138 = vmatpush.bf16.msra.mxu0 %v3708
      %5139 = vmatpush.bf16.msra.mxu0 %v3696
      %5140 = vmatmul.bf16.gmra.mxu0 %v1574
      %v5141 = vpop.f32.mrf.mxu0
      %v5142 = vadd.f32 %v5129, %v5141
      %v5143 = vpop.f32.mrf.mxu0
      %5144 = vdwg.mxu0
      %5145 = vmatpush.bf16.msra.mxu0 %v3876
      %5146 = vmatpush.bf16.msra.mxu0 %v3864
      %5147 = vmatpush.bf16.msra.mxu0 %v3852
      %5148 = vmatpush.bf16.msra.mxu0 %v3840
      %5149 = vmatpush.bf16.msra.mxu0 %v3828
      %5150 = vmatpush.bf16.msra.mxu0 %v3816
      %5151 = vmatpush.bf16.msra.mxu0 %v3804
      %5152 = vmatpush.bf16.msra.mxu0 %v3792
      %5153 = vmatmul.bf16.gmra.mxu0 %v1575
      %v5154 = vpop.f32.mrf.mxu0
      %v5155 = vadd.f32 %v5142, %v5154
      %v5156 = vpop.f32.mrf.mxu0
      %5157 = vdwg.mxu0
      %5158 = vmatpush.bf16.msra.mxu0 %v3397
      %5159 = vmatpush.bf16.msra.mxu0 %v3385
      %5160 = vmatpush.bf16.msra.mxu0 %v3373
      %5161 = vmatpush.bf16.msra.mxu0 %v3361
      %5162 = vmatpush.bf16.msra.mxu0 %v3349
      %5163 = vmatpush.bf16.msra.mxu0 %v3337
      %5164 = vmatpush.bf16.msra.mxu0 %v3325
      %5165 = vmatpush.bf16.msra.mxu0 %v3313
      %5166 = vmatmul.bf16.gmra.mxu0 %v1570
      %v5167 = vpop.f32.mrf.mxu0
      %v5168 = vadd.f32 %v1555, %v5167
      %v5169 = vpop.f32.mrf.mxu0
      %5170 = vdwg.mxu0
      %5171 = vmatpush.bf16.msra.mxu0 %v3493
      %5172 = vmatpush.bf16.msra.mxu0 %v3481
      %5173 = vmatpush.bf16.msra.mxu0 %v3469
      %5174 = vmatpush.bf16.msra.mxu0 %v3457
      %5175 = vmatpush.bf16.msra.mxu0 %v3445
      %5176 = vmatpush.bf16.msra.mxu0 %v3433
      %5177 = vmatpush.bf16.msra.mxu0 %v3421
      %5178 = vmatpush.bf16.msra.mxu0 %v3409
      %5179 = vmatmul.bf16.gmra.mxu0 %v1571
      %v5180 = vpop.f32.mrf.mxu0
      %v5181 = vadd.f32 %v5168, %v5180
      %v5182 = vpop.f32.mrf.mxu0
      %5183 = vdwg.mxu0
      %5184 = vmatpush.bf16.msra.mxu0 %v3589
      %5185 = vmatpush.bf16.msra.mxu0 %v3577
      %5186 = vmatpush.bf16.msra.mxu0 %v3565
      %5187 = vmatpush.bf16.msra.mxu0 %v3553
      %5188 = vmatpush.bf16.msra.mxu0 %v3541
      %5189 = vmatpush.bf16.msra.mxu0 %v3529
      %5190 = vmatpush.bf16.msra.mxu0 %v3517
      %5191 = vmatpush.bf16.msra.mxu0 %v3505
      %5192 = vmatmul.bf16.gmra.mxu0 %v1572
      %v5193 = vpop.f32.mrf.mxu0
      %v5194 = vadd.f32 %v5181, %v5193
      %v5195 = vpop.f32.mrf.mxu0
      %5196 = vdwg.mxu0
      %5197 = vmatpush.bf16.msra.mxu0 %v3685
      %5198 = vmatpush.bf16.msra.mxu0 %v3673
      %5199 = vmatpush.bf16.msra.mxu0 %v3661
      %5200 = vmatpush.bf16.msra.mxu0 %v3649
      %5201 = vmatpush.bf16.msra.mxu0 %v3637
      %5202 = vmatpush.bf16.msra.mxu0 %v3625
      %5203 = vmatpush.bf16.msra.mxu0 %v3613
      %5204 = vmatpush.bf16.msra.mxu0 %v3601
      %5205 = vmatmul.bf16.gmra.mxu0 %v1573
      %v5206 = vpop.f32.mrf.mxu0
      %v5207 = vadd.f32 %v5194, %v5206
      %v5208 = vpop.f32.mrf.mxu0
      %5209 = vdwg.mxu0
      %5210 = vmatpush.bf16.msra.mxu0 %v3781
      %5211 = vmatpush.bf16.msra.mxu0 %v3769
      %5212 = vmatpush.bf16.msra.mxu0 %v3757
      %5213 = vmatpush.bf16.msra.mxu0 %v3745
      %5214 = vmatpush.bf16.msra.mxu0 %v3733
      %5215 = vmatpush.bf16.msra.mxu0 %v3721
      %5216 = vmatpush.bf16.msra.mxu0 %v3709
      %5217 = vmatpush.bf16.msra.mxu0 %v3697
      %5218 = vmatmul.bf16.gmra.mxu0 %v1574
      %v5219 = vpop.f32.mrf.mxu0
      %v5220 = vadd.f32 %v5207, %v5219
      %v5221 = vpop.f32.mrf.mxu0
      %5222 = vdwg.mxu0
      %5223 = vmatpush.bf16.msra.mxu0 %v3877
      %5224 = vmatpush.bf16.msra.mxu0 %v3865
      %5225 = vmatpush.bf16.msra.mxu0 %v3853
      %5226 = vmatpush.bf16.msra.mxu0 %v3841
      %5227 = vmatpush.bf16.msra.mxu0 %v3829
      %5228 = vmatpush.bf16.msra.mxu0 %v3817
      %5229 = vmatpush.bf16.msra.mxu0 %v3805
      %5230 = vmatpush.bf16.msra.mxu0 %v3793
      %5231 = vmatmul.bf16.gmra.mxu0 %v1575
      %v5232 = vpop.f32.mrf.mxu0
      %v5233 = vadd.f32 %v5220, %v5232
      %v5234 = vpop.f32.mrf.mxu0
      %5235 = vdwg.mxu0
      %5236 = vmatpush.bf16.msra.mxu0 %v3398
      %5237 = vmatpush.bf16.msra.mxu0 %v3386
      %5238 = vmatpush.bf16.msra.mxu0 %v3374
      %5239 = vmatpush.bf16.msra.mxu0 %v3362
      %5240 = vmatpush.bf16.msra.mxu0 %v3350
      %5241 = vmatpush.bf16.msra.mxu0 %v3338
      %5242 = vmatpush.bf16.msra.mxu0 %v3326
      %5243 = vmatpush.bf16.msra.mxu0 %v3314
      %5244 = vmatmul.bf16.gmra.mxu0 %v1570
      %v5245 = vpop.f32.mrf.mxu0
      %v5246 = vadd.f32 %v1556, %v5245
      %v5247 = vpop.f32.mrf.mxu0
      %5248 = vdwg.mxu0
      %5249 = vmatpush.bf16.msra.mxu0 %v3494
      %5250 = vmatpush.bf16.msra.mxu0 %v3482
      %5251 = vmatpush.bf16.msra.mxu0 %v3470
      %5252 = vmatpush.bf16.msra.mxu0 %v3458
      %5253 = vmatpush.bf16.msra.mxu0 %v3446
      %5254 = vmatpush.bf16.msra.mxu0 %v3434
      %5255 = vmatpush.bf16.msra.mxu0 %v3422
      %5256 = vmatpush.bf16.msra.mxu0 %v3410
      %5257 = vmatmul.bf16.gmra.mxu0 %v1571
      %v5258 = vpop.f32.mrf.mxu0
      %v5259 = vadd.f32 %v5246, %v5258
      %v5260 = vpop.f32.mrf.mxu0
      %5261 = vdwg.mxu0
      %5262 = vmatpush.bf16.msra.mxu0 %v3590
      %5263 = vmatpush.bf16.msra.mxu0 %v3578
      %5264 = vmatpush.bf16.msra.mxu0 %v3566
      %5265 = vmatpush.bf16.msra.mxu0 %v3554
      %5266 = vmatpush.bf16.msra.mxu0 %v3542
      %5267 = vmatpush.bf16.msra.mxu0 %v3530
      %5268 = vmatpush.bf16.msra.mxu0 %v3518
      %5269 = vmatpush.bf16.msra.mxu0 %v3506
      %5270 = vmatmul.bf16.gmra.mxu0 %v1572
      %v5271 = vpop.f32.mrf.mxu0
      %v5272 = vadd.f32 %v5259, %v5271
      %v5273 = vpop.f32.mrf.mxu0
      %5274 = vdwg.mxu0
      %5275 = vmatpush.bf16.msra.mxu0 %v3686
      %5276 = vmatpush.bf16.msra.mxu0 %v3674
      %5277 = vmatpush.bf16.msra.mxu0 %v3662
      %5278 = vmatpush.bf16.msra.mxu0 %v3650
      %5279 = vmatpush.bf16.msra.mxu0 %v3638
      %5280 = vmatpush.bf16.msra.mxu0 %v3626
      %5281 = vmatpush.bf16.msra.mxu0 %v3614
      %5282 = vmatpush.bf16.msra.mxu0 %v3602
      %5283 = vmatmul.bf16.gmra.mxu0 %v1573
      %v5284 = vpop.f32.mrf.mxu0
      %v5285 = vadd.f32 %v5272, %v5284
      %v5286 = vpop.f32.mrf.mxu0
      %5287 = vdwg.mxu0
      %5288 = vmatpush.bf16.msra.mxu0 %v3782
      %5289 = vmatpush.bf16.msra.mxu0 %v3770
      %5290 = vmatpush.bf16.msra.mxu0 %v3758
      %5291 = vmatpush.bf16.msra.mxu0 %v3746
      %5292 = vmatpush.bf16.msra.mxu0 %v3734
      %5293 = vmatpush.bf16.msra.mxu0 %v3722
      %5294 = vmatpush.bf16.msra.mxu0 %v3710
      %5295 = vmatpush.bf16.msra.mxu0 %v3698
      %5296 = vmatmul.bf16.gmra.mxu0 %v1574
      %v5297 = vpop.f32.mrf.mxu0
      %v5298 = vadd.f32 %v5285, %v5297
      %v5299 = vpop.f32.mrf.mxu0
      %5300 = vdwg.mxu0
      %5301 = vmatpush.bf16.msra.mxu0 %v3878
      %5302 = vmatpush.bf16.msra.mxu0 %v3866
      %5303 = vmatpush.bf16.msra.mxu0 %v3854
      %5304 = vmatpush.bf16.msra.mxu0 %v3842
      %5305 = vmatpush.bf16.msra.mxu0 %v3830
      %5306 = vmatpush.bf16.msra.mxu0 %v3818
      %5307 = vmatpush.bf16.msra.mxu0 %v3806
      %5308 = vmatpush.bf16.msra.mxu0 %v3794
      %5309 = vmatmul.bf16.gmra.mxu0 %v1575
      %v5310 = vpop.f32.mrf.mxu0
      %v5311 = vadd.f32 %v5298, %v5310
      %v5312 = vpop.f32.mrf.mxu0
      %5313 = vdwg.mxu0
      %5314 = vmatpush.bf16.msra.mxu0 %v3399
      %5315 = vmatpush.bf16.msra.mxu0 %v3387
      %5316 = vmatpush.bf16.msra.mxu0 %v3375
      %5317 = vmatpush.bf16.msra.mxu0 %v3363
      %5318 = vmatpush.bf16.msra.mxu0 %v3351
      %5319 = vmatpush.bf16.msra.mxu0 %v3339
      %5320 = vmatpush.bf16.msra.mxu0 %v3327
      %5321 = vmatpush.bf16.msra.mxu0 %v3315
      %5322 = vmatmul.bf16.gmra.mxu0 %v1570
      %v5323 = vpop.f32.mrf.mxu0
      %v5324 = vadd.f32 %v1557, %v5323
      %v5325 = vpop.f32.mrf.mxu0
      %5326 = vdwg.mxu0
      %5327 = vmatpush.bf16.msra.mxu0 %v3495
      %5328 = vmatpush.bf16.msra.mxu0 %v3483
      %5329 = vmatpush.bf16.msra.mxu0 %v3471
      %5330 = vmatpush.bf16.msra.mxu0 %v3459
      %5331 = vmatpush.bf16.msra.mxu0 %v3447
      %5332 = vmatpush.bf16.msra.mxu0 %v3435
      %5333 = vmatpush.bf16.msra.mxu0 %v3423
      %5334 = vmatpush.bf16.msra.mxu0 %v3411
      %5335 = vmatmul.bf16.gmra.mxu0 %v1571
      %v5336 = vpop.f32.mrf.mxu0
      %v5337 = vadd.f32 %v5324, %v5336
      %v5338 = vpop.f32.mrf.mxu0
      %5339 = vdwg.mxu0
      %5340 = vmatpush.bf16.msra.mxu0 %v3591
      %5341 = vmatpush.bf16.msra.mxu0 %v3579
      %5342 = vmatpush.bf16.msra.mxu0 %v3567
      %5343 = vmatpush.bf16.msra.mxu0 %v3555
      %5344 = vmatpush.bf16.msra.mxu0 %v3543
      %5345 = vmatpush.bf16.msra.mxu0 %v3531
      %5346 = vmatpush.bf16.msra.mxu0 %v3519
      %5347 = vmatpush.bf16.msra.mxu0 %v3507
      %5348 = vmatmul.bf16.gmra.mxu0 %v1572
      %v5349 = vpop.f32.mrf.mxu0
      %v5350 = vadd.f32 %v5337, %v5349
      %v5351 = vpop.f32.mrf.mxu0
      %5352 = vdwg.mxu0
      %5353 = vmatpush.bf16.msra.mxu0 %v3687
      %5354 = vmatpush.bf16.msra.mxu0 %v3675
      %5355 = vmatpush.bf16.msra.mxu0 %v3663
      %5356 = vmatpush.bf16.msra.mxu0 %v3651
      %5357 = vmatpush.bf16.msra.mxu0 %v3639
      %5358 = vmatpush.bf16.msra.mxu0 %v3627
      %5359 = vmatpush.bf16.msra.mxu0 %v3615
      %5360 = vmatpush.bf16.msra.mxu0 %v3603
      %5361 = vmatmul.bf16.gmra.mxu0 %v1573
      %v5362 = vpop.f32.mrf.mxu0
      %v5363 = vadd.f32 %v5350, %v5362
      %v5364 = vpop.f32.mrf.mxu0
      %5365 = vdwg.mxu0
      %5366 = vmatpush.bf16.msra.mxu0 %v3783
      %5367 = vmatpush.bf16.msra.mxu0 %v3771
      %5368 = vmatpush.bf16.msra.mxu0 %v3759
      %5369 = vmatpush.bf16.msra.mxu0 %v3747
      %5370 = vmatpush.bf16.msra.mxu0 %v3735
      %5371 = vmatpush.bf16.msra.mxu0 %v3723
      %5372 = vmatpush.bf16.msra.mxu0 %v3711
      %5373 = vmatpush.bf16.msra.mxu0 %v3699
      %5374 = vmatmul.bf16.gmra.mxu0 %v1574
      %v5375 = vpop.f32.mrf.mxu0
      %v5376 = vadd.f32 %v5363, %v5375
      %v5377 = vpop.f32.mrf.mxu0
      %5378 = vdwg.mxu0
      %5379 = vmatpush.bf16.msra.mxu0 %v3879
      %5380 = vmatpush.bf16.msra.mxu0 %v3867
      %5381 = vmatpush.bf16.msra.mxu0 %v3855
      %5382 = vmatpush.bf16.msra.mxu0 %v3843
      %5383 = vmatpush.bf16.msra.mxu0 %v3831
      %5384 = vmatpush.bf16.msra.mxu0 %v3819
      %5385 = vmatpush.bf16.msra.mxu0 %v3807
      %5386 = vmatpush.bf16.msra.mxu0 %v3795
      %5387 = vmatmul.bf16.gmra.mxu0 %v1575
      %v5388 = vpop.f32.mrf.mxu0
      %v5389 = vadd.f32 %v5376, %v5388
      %v5390 = vpop.f32.mrf.mxu0
      %5391 = vdwg.mxu0
      %v5392 = vmax.f32 %v4531, 0.0
      %v5393 = vmax.f32 %v4609, 0.0
      %v5394 = vmax.f32 %v4687, 0.0
      %v5395 = vmax.f32 %v4765, 0.0
      %v5396 = vmax.f32 %v4843, 0.0
      %v5397 = vmax.f32 %v4921, 0.0
      %v5398 = vxor.u32 %v4999, 2147483648
      %v5399 = vxor.u32 %v5077, 2147483648
      %v5400 = vxor.u32 %v5155, 2147483648
      %v5401 = vxor.u32 %v5233, 2147483648
      %v5402 = vxor.u32 %v5311, 2147483648
      %v5403 = vxor.u32 %v5389, 2147483648
      %v5404 = vmul.f32 %v5398, 1.442695
      %v5405 = vpow.pop %v5404
      %v5406 = vmul.f32 %v5399, 1.442695
      %v5407 = vpow.pop %v5406
      %v5408 = vmul.f32 %v5400, 1.442695
      %v5409 = vpow.pop %v5408
      %v5410 = vmul.f32 %v5401, 1.442695
      %v5411 = vpow.pop %v5410
      %v5412 = vmul.f32 %v5402, 1.442695
      %v5413 = vpow.pop %v5412
      %v5414 = vmul.f32 %v5403, 1.442695
      %v5415 = vpow.pop %v5414
      %v5416 = vadd.f32 %v5405, 1.0
      %v5417 = vadd.f32 %v5407, 1.0
      %v5418 = vadd.f32 %v5409, 1.0
      %v5419 = vadd.f32 %v5411, 1.0
      %v5420 = vadd.f32 %v5413, 1.0
      %v5421 = vadd.f32 %v5415, 1.0
      %v5422 = vrcp.pop %v5416
      %v5423 = vmul.f32 %v5416, %v5422
      %v5424 = vsub.f32 1.0, %v5423
      %v5425 = vmul.f32 %v5422, %v5424
      %v5426 = vadd.f32 %v5422, %v5425
      %vm5427 = vweird.f32 %v5416
      %vm5428 = vweird.f32 %v5422
      %vm5429 = vmor %vm5427, %vm5428
      %v5430 = vsel %vm5429, %v5422, %v5426
      %v5431 = vand.u32 2147483647, %v5416
      %vm5432 = vcmp.eq.f32.partialorder %v5431, 8.507059e+37
      %v5433 = vand.u32 %v5416, 2147483648
      %v5434 = vor.u32 1.1754944e-38, %v5433
      %v5435 = vsel %vm5432, %v5434, %v5430
      %v5436 = vmul.f32 1.0, %v5435
      %v5437 = vrcp.pop %v5417
      %v5438 = vmul.f32 %v5417, %v5437
      %v5439 = vsub.f32 1.0, %v5438
      %v5440 = vmul.f32 %v5437, %v5439
      %v5441 = vadd.f32 %v5437, %v5440
      %vm5442 = vweird.f32 %v5417
      %vm5443 = vweird.f32 %v5437
      %vm5444 = vmor %vm5442, %vm5443
      %v5445 = vsel %vm5444, %v5437, %v5441
      %v5446 = vand.u32 2147483647, %v5417
      %vm5447 = vcmp.eq.f32.partialorder %v5446, 8.507059e+37
      %v5448 = vand.u32 %v5417, 2147483648
      %v5449 = vor.u32 1.1754944e-38, %v5448
      %v5450 = vsel %vm5447, %v5449, %v5445
      %v5451 = vmul.f32 1.0, %v5450
      %v5452 = vrcp.pop %v5418
      %v5453 = vmul.f32 %v5418, %v5452
      %v5454 = vsub.f32 1.0, %v5453
      %v5455 = vmul.f32 %v5452, %v5454
      %v5456 = vadd.f32 %v5452, %v5455
      %vm5457 = vweird.f32 %v5418
      %vm5458 = vweird.f32 %v5452
      %vm5459 = vmor %vm5457, %vm5458
      %v5460 = vsel %vm5459, %v5452, %v5456
      %v5461 = vand.u32 2147483647, %v5418
      %vm5462 = vcmp.eq.f32.partialorder %v5461, 8.507059e+37
      %v5463 = vand.u32 %v5418, 2147483648
      %v5464 = vor.u32 1.1754944e-38, %v5463
      %v5465 = vsel %vm5462, %v5464, %v5460
      %v5466 = vmul.f32 1.0, %v5465
      %v5467 = vrcp.pop %v5419
      %v5468 = vmul.f32 %v5419, %v5467
      %v5469 = vsub.f32 1.0, %v5468
      %v5470 = vmul.f32 %v5467, %v5469
      %v5471 = vadd.f32 %v5467, %v5470
      %vm5472 = vweird.f32 %v5419
      %vm5473 = vweird.f32 %v5467
      %vm5474 = vmor %vm5472, %vm5473
      %v5475 = vsel %vm5474, %v5467, %v5471
      %v5476 = vand.u32 2147483647, %v5419
      %vm5477 = vcmp.eq.f32.partialorder %v5476, 8.507059e+37
      %v5478 = vand.u32 %v5419, 2147483648
      %v5479 = vor.u32 1.1754944e-38, %v5478
      %v5480 = vsel %vm5477, %v5479, %v5475
      %v5481 = vmul.f32 1.0, %v5480
      %v5482 = vrcp.pop %v5420
      %v5483 = vmul.f32 %v5420, %v5482
      %v5484 = vsub.f32 1.0, %v5483
      %v5485 = vmul.f32 %v5482, %v5484
      %v5486 = vadd.f32 %v5482, %v5485
      %vm5487 = vweird.f32 %v5420
      %vm5488 = vweird.f32 %v5482
      %vm5489 = vmor %vm5487, %vm5488
      %v5490 = vsel %vm5489, %v5482, %v5486
      %v5491 = vand.u32 2147483647, %v5420
      %vm5492 = vcmp.eq.f32.partialorder %v5491, 8.507059e+37
      %v5493 = vand.u32 %v5420, 2147483648
      %v5494 = vor.u32 1.1754944e-38, %v5493
      %v5495 = vsel %vm5492, %v5494, %v5490
      %v5496 = vmul.f32 1.0, %v5495
      %v5497 = vrcp.pop %v5421
      %v5498 = vmul.f32 %v5421, %v5497
      %v5499 = vsub.f32 1.0, %v5498
      %v5500 = vmul.f32 %v5497, %v5499
      %v5501 = vadd.f32 %v5497, %v5500
      %vm5502 = vweird.f32 %v5421
      %vm5503 = vweird.f32 %v5497
      %vm5504 = vmor %vm5502, %vm5503
      %v5505 = vsel %vm5504, %v5497, %v5501
      %v5506 = vand.u32 2147483647, %v5421
      %vm5507 = vcmp.eq.f32.partialorder %v5506, 8.507059e+37
      %v5508 = vand.u32 %v5421, 2147483648
      %v5509 = vor.u32 1.1754944e-38, %v5508
      %v5510 = vsel %vm5507, %v5509, %v5505
      %v5511 = vmul.f32 1.0, %v5510
      %v5512 = vsub.f32 %v5392, %v960
      %v5513 = vsub.f32 %v5393, %v961
      %v5514 = vsub.f32 %v5394, %v962
      %v5515 = vsub.f32 %v5395, %v963
      %v5516 = vsub.f32 %v5396, %v964
      %v5517 = vsub.f32 %v5397, %v965
      %v5518 = vmul.f32 %v5436, %v5512
      %v5519 = vmul.f32 %v5451, %v5513
      %v5520 = vmul.f32 %v5466, %v5514
      %v5521 = vmul.f32 %v5481, %v5515
      %v5522 = vmul.f32 %v5496, %v5516
      %v5523 = vmul.f32 %v5511, %v5517
      %v5524 = vadd.f32 %v960, %v5518
      %v5525 = vadd.f32 %v961, %v5519
      %v5526 = vadd.f32 %v962, %v5520
      %v5527 = vadd.f32 %v963, %v5521
      %v5528 = vadd.f32 %v964, %v5522
      %v5529 = vadd.f32 %v965, %v5523
      %v5530 = vpack.c.bf16 %v5524, %v5524
      %v5531 = vpack.c.bf16 %v5525, %v5525
      %v5532 = vpack.c.bf16 %v5526, %v5526
      %v5533 = vpack.c.bf16 %v5527, %v5527
      %v5534 = vpack.c.bf16 %v5528, %v5528
      %v5535 = vpack.c.bf16 %v5529, %v5529
      %5536 = vmatpush.bf16.msra.mxu0 %v3388
      %5537 = vmatpush.bf16.msra.mxu0 %v3376
      %5538 = vmatpush.bf16.msra.mxu0 %v3364
      %5539 = vmatpush.bf16.msra.mxu0 %v3352
      %5540 = vmatpush.bf16.msra.mxu0 %v3340
      %5541 = vmatpush.bf16.msra.mxu0 %v3328
      %5542 = vmatpush.bf16.msra.mxu0 %v3316
      %5543 = vmatpush.bf16.msra.mxu0 %v3304
      %5544 = vmatmul.bf16.gmra.mxu0 %v5530
      %v5545 = vpop.f32.mrf.mxu0
      %v5546 = vadd.f32 %v1546, %v5545
      %v5547 = vpop.f32.mrf.mxu0
      %5548 = vdwg.mxu0
      %5549 = vmatpush.bf16.msra.mxu0 %v3484
      %5550 = vmatpush.bf16.msra.mxu0 %v3472
      %5551 = vmatpush.bf16.msra.mxu0 %v3460
      %5552 = vmatpush.bf16.msra.mxu0 %v3448
      %5553 = vmatpush.bf16.msra.mxu0 %v3436
      %5554 = vmatpush.bf16.msra.mxu0 %v3424
      %5555 = vmatpush.bf16.msra.mxu0 %v3412
      %5556 = vmatpush.bf16.msra.mxu0 %v3400
      %5557 = vmatmul.bf16.gmra.mxu0 %v5531
      %v5558 = vpop.f32.mrf.mxu0
      %v5559 = vadd.f32 %v5546, %v5558
      %v5560 = vpop.f32.mrf.mxu0
      %5561 = vdwg.mxu0
      %5562 = vmatpush.bf16.msra.mxu0 %v3580
      %5563 = vmatpush.bf16.msra.mxu0 %v3568
      %5564 = vmatpush.bf16.msra.mxu0 %v3556
      %5565 = vmatpush.bf16.msra.mxu0 %v3544
      %5566 = vmatpush.bf16.msra.mxu0 %v3532
      %5567 = vmatpush.bf16.msra.mxu0 %v3520
      %5568 = vmatpush.bf16.msra.mxu0 %v3508
      %5569 = vmatpush.bf16.msra.mxu0 %v3496
      %5570 = vmatmul.bf16.gmra.mxu0 %v5532
      %v5571 = vpop.f32.mrf.mxu0
      %v5572 = vadd.f32 %v5559, %v5571
      %v5573 = vpop.f32.mrf.mxu0
      %5574 = vdwg.mxu0
      %5575 = vmatpush.bf16.msra.mxu0 %v3676
      %5576 = vmatpush.bf16.msra.mxu0 %v3664
      %5577 = vmatpush.bf16.msra.mxu0 %v3652
      %5578 = vmatpush.bf16.msra.mxu0 %v3640
      %5579 = vmatpush.bf16.msra.mxu0 %v3628
      %5580 = vmatpush.bf16.msra.mxu0 %v3616
      %5581 = vmatpush.bf16.msra.mxu0 %v3604
      %5582 = vmatpush.bf16.msra.mxu0 %v3592
      %5583 = vmatmul.bf16.gmra.mxu0 %v5533
      %v5584 = vpop.f32.mrf.mxu0
      %v5585 = vadd.f32 %v5572, %v5584
      %v5586 = vpop.f32.mrf.mxu0
      %5587 = vdwg.mxu0
      %5588 = vmatpush.bf16.msra.mxu0 %v3772
      %5589 = vmatpush.bf16.msra.mxu0 %v3760
      %5590 = vmatpush.bf16.msra.mxu0 %v3748
      %5591 = vmatpush.bf16.msra.mxu0 %v3736
      %5592 = vmatpush.bf16.msra.mxu0 %v3724
      %5593 = vmatpush.bf16.msra.mxu0 %v3712
      %5594 = vmatpush.bf16.msra.mxu0 %v3700
      %5595 = vmatpush.bf16.msra.mxu0 %v3688
      %5596 = vmatmul.bf16.gmra.mxu0 %v5534
      %v5597 = vpop.f32.mrf.mxu0
      %v5598 = vadd.f32 %v5585, %v5597
      %v5599 = vpop.f32.mrf.mxu0
      %5600 = vdwg.mxu0
      %5601 = vmatpush.bf16.msra.mxu0 %v3868
      %5602 = vmatpush.bf16.msra.mxu0 %v3856
      %5603 = vmatpush.bf16.msra.mxu0 %v3844
      %5604 = vmatpush.bf16.msra.mxu0 %v3832
      %5605 = vmatpush.bf16.msra.mxu0 %v3820
      %5606 = vmatpush.bf16.msra.mxu0 %v3808
      %5607 = vmatpush.bf16.msra.mxu0 %v3796
      %5608 = vmatpush.bf16.msra.mxu0 %v3784
      %5609 = vmatmul.bf16.gmra.mxu0 %v5535
      %v5610 = vpop.f32.mrf.mxu0
      %v5611 = vadd.f32 %v5598, %v5610
      %v5612 = vpop.f32.mrf.mxu0
      %5613 = vdwg.mxu0
      %5614 = vmatpush.bf16.msra.mxu0 %v3389
      %5615 = vmatpush.bf16.msra.mxu0 %v3377
      %5616 = vmatpush.bf16.msra.mxu0 %v3365
      %5617 = vmatpush.bf16.msra.mxu0 %v3353
      %5618 = vmatpush.bf16.msra.mxu0 %v3341
      %5619 = vmatpush.bf16.msra.mxu0 %v3329
      %5620 = vmatpush.bf16.msra.mxu0 %v3317
      %5621 = vmatpush.bf16.msra.mxu0 %v3305
      %5622 = vmatmul.bf16.gmra.mxu0 %v5530
      %v5623 = vpop.f32.mrf.mxu0
      %v5624 = vadd.f32 %v1547, %v5623
      %v5625 = vpop.f32.mrf.mxu0
      %5626 = vdwg.mxu0
      %5627 = vmatpush.bf16.msra.mxu0 %v3485
      %5628 = vmatpush.bf16.msra.mxu0 %v3473
      %5629 = vmatpush.bf16.msra.mxu0 %v3461
      %5630 = vmatpush.bf16.msra.mxu0 %v3449
      %5631 = vmatpush.bf16.msra.mxu0 %v3437
      %5632 = vmatpush.bf16.msra.mxu0 %v3425
      %5633 = vmatpush.bf16.msra.mxu0 %v3413
      %5634 = vmatpush.bf16.msra.mxu0 %v3401
      %5635 = vmatmul.bf16.gmra.mxu0 %v5531
      %v5636 = vpop.f32.mrf.mxu0
      %v5637 = vadd.f32 %v5624, %v5636
      %v5638 = vpop.f32.mrf.mxu0
      %5639 = vdwg.mxu0
      %5640 = vmatpush.bf16.msra.mxu0 %v3581
      %5641 = vmatpush.bf16.msra.mxu0 %v3569
      %5642 = vmatpush.bf16.msra.mxu0 %v3557
      %5643 = vmatpush.bf16.msra.mxu0 %v3545
      %5644 = vmatpush.bf16.msra.mxu0 %v3533
      %5645 = vmatpush.bf16.msra.mxu0 %v3521
      %5646 = vmatpush.bf16.msra.mxu0 %v3509
      %5647 = vmatpush.bf16.msra.mxu0 %v3497
      %5648 = vmatmul.bf16.gmra.mxu0 %v5532
      %v5649 = vpop.f32.mrf.mxu0
      %v5650 = vadd.f32 %v5637, %v5649
      %v5651 = vpop.f32.mrf.mxu0
      %5652 = vdwg.mxu0
      %5653 = vmatpush.bf16.msra.mxu0 %v3677
      %5654 = vmatpush.bf16.msra.mxu0 %v3665
      %5655 = vmatpush.bf16.msra.mxu0 %v3653
      %5656 = vmatpush.bf16.msra.mxu0 %v3641
      %5657 = vmatpush.bf16.msra.mxu0 %v3629
      %5658 = vmatpush.bf16.msra.mxu0 %v3617
      %5659 = vmatpush.bf16.msra.mxu0 %v3605
      %5660 = vmatpush.bf16.msra.mxu0 %v3593
      %5661 = vmatmul.bf16.gmra.mxu0 %v5533
      %v5662 = vpop.f32.mrf.mxu0
      %v5663 = vadd.f32 %v5650, %v5662
      %v5664 = vpop.f32.mrf.mxu0
      %5665 = vdwg.mxu0
      %5666 = vmatpush.bf16.msra.mxu0 %v3773
      %5667 = vmatpush.bf16.msra.mxu0 %v3761
      %5668 = vmatpush.bf16.msra.mxu0 %v3749
      %5669 = vmatpush.bf16.msra.mxu0 %v3737
      %5670 = vmatpush.bf16.msra.mxu0 %v3725
      %5671 = vmatpush.bf16.msra.mxu0 %v3713
      %5672 = vmatpush.bf16.msra.mxu0 %v3701
      %5673 = vmatpush.bf16.msra.mxu0 %v3689
      %5674 = vmatmul.bf16.gmra.mxu0 %v5534
      %v5675 = vpop.f32.mrf.mxu0
      %v5676 = vadd.f32 %v5663, %v5675
      %v5677 = vpop.f32.mrf.mxu0
      %5678 = vdwg.mxu0
      %5679 = vmatpush.bf16.msra.mxu0 %v3869
      %5680 = vmatpush.bf16.msra.mxu0 %v3857
      %5681 = vmatpush.bf16.msra.mxu0 %v3845
      %5682 = vmatpush.bf16.msra.mxu0 %v3833
      %5683 = vmatpush.bf16.msra.mxu0 %v3821
      %5684 = vmatpush.bf16.msra.mxu0 %v3809
      %5685 = vmatpush.bf16.msra.mxu0 %v3797
      %5686 = vmatpush.bf16.msra.mxu0 %v3785
      %5687 = vmatmul.bf16.gmra.mxu0 %v5535
      %v5688 = vpop.f32.mrf.mxu0
      %v5689 = vadd.f32 %v5676, %v5688
      %v5690 = vpop.f32.mrf.mxu0
      %5691 = vdwg.mxu0
      %5692 = vmatpush.bf16.msra.mxu0 %v3390
      %5693 = vmatpush.bf16.msra.mxu0 %v3378
      %5694 = vmatpush.bf16.msra.mxu0 %v3366
      %5695 = vmatpush.bf16.msra.mxu0 %v3354
      %5696 = vmatpush.bf16.msra.mxu0 %v3342
      %5697 = vmatpush.bf16.msra.mxu0 %v3330
      %5698 = vmatpush.bf16.msra.mxu0 %v3318
      %5699 = vmatpush.bf16.msra.mxu0 %v3306
      %5700 = vmatmul.bf16.gmra.mxu0 %v5530
      %v5701 = vpop.f32.mrf.mxu0
      %v5702 = vadd.f32 %v1548, %v5701
      %v5703 = vpop.f32.mrf.mxu0
      %5704 = vdwg.mxu0
      %5705 = vmatpush.bf16.msra.mxu0 %v3486
      %5706 = vmatpush.bf16.msra.mxu0 %v3474
      %5707 = vmatpush.bf16.msra.mxu0 %v3462
      %5708 = vmatpush.bf16.msra.mxu0 %v3450
      %5709 = vmatpush.bf16.msra.mxu0 %v3438
      %5710 = vmatpush.bf16.msra.mxu0 %v3426
      %5711 = vmatpush.bf16.msra.mxu0 %v3414
      %5712 = vmatpush.bf16.msra.mxu0 %v3402
      %5713 = vmatmul.bf16.gmra.mxu0 %v5531
      %v5714 = vpop.f32.mrf.mxu0
      %v5715 = vadd.f32 %v5702, %v5714
      %v5716 = vpop.f32.mrf.mxu0
      %5717 = vdwg.mxu0
      %5718 = vmatpush.bf16.msra.mxu0 %v3582
      %5719 = vmatpush.bf16.msra.mxu0 %v3570
      %5720 = vmatpush.bf16.msra.mxu0 %v3558
      %5721 = vmatpush.bf16.msra.mxu0 %v3546
      %5722 = vmatpush.bf16.msra.mxu0 %v3534
      %5723 = vmatpush.bf16.msra.mxu0 %v3522
      %5724 = vmatpush.bf16.msra.mxu0 %v3510
      %5725 = vmatpush.bf16.msra.mxu0 %v3498
      %5726 = vmatmul.bf16.gmra.mxu0 %v5532
      %v5727 = vpop.f32.mrf.mxu0
      %v5728 = vadd.f32 %v5715, %v5727
      %v5729 = vpop.f32.mrf.mxu0
      %5730 = vdwg.mxu0
      %5731 = vmatpush.bf16.msra.mxu0 %v3678
      %5732 = vmatpush.bf16.msra.mxu0 %v3666
      %5733 = vmatpush.bf16.msra.mxu0 %v3654
      %5734 = vmatpush.bf16.msra.mxu0 %v3642
      %5735 = vmatpush.bf16.msra.mxu0 %v3630
      %5736 = vmatpush.bf16.msra.mxu0 %v3618
      %5737 = vmatpush.bf16.msra.mxu0 %v3606
      %5738 = vmatpush.bf16.msra.mxu0 %v3594
      %5739 = vmatmul.bf16.gmra.mxu0 %v5533
      %v5740 = vpop.f32.mrf.mxu0
      %v5741 = vadd.f32 %v5728, %v5740
      %v5742 = vpop.f32.mrf.mxu0
      %5743 = vdwg.mxu0
      %5744 = vmatpush.bf16.msra.mxu0 %v3774
      %5745 = vmatpush.bf16.msra.mxu0 %v3762
      %5746 = vmatpush.bf16.msra.mxu0 %v3750
      %5747 = vmatpush.bf16.msra.mxu0 %v3738
      %5748 = vmatpush.bf16.msra.mxu0 %v3726
      %5749 = vmatpush.bf16.msra.mxu0 %v3714
      %5750 = vmatpush.bf16.msra.mxu0 %v3702
      %5751 = vmatpush.bf16.msra.mxu0 %v3690
      %5752 = vmatmul.bf16.gmra.mxu0 %v5534
      %v5753 = vpop.f32.mrf.mxu0
      %v5754 = vadd.f32 %v5741, %v5753
      %v5755 = vpop.f32.mrf.mxu0
      %5756 = vdwg.mxu0
      %5757 = vmatpush.bf16.msra.mxu0 %v3870
      %5758 = vmatpush.bf16.msra.mxu0 %v3858
      %5759 = vmatpush.bf16.msra.mxu0 %v3846
      %5760 = vmatpush.bf16.msra.mxu0 %v3834
      %5761 = vmatpush.bf16.msra.mxu0 %v3822
      %5762 = vmatpush.bf16.msra.mxu0 %v3810
      %5763 = vmatpush.bf16.msra.mxu0 %v3798
      %5764 = vmatpush.bf16.msra.mxu0 %v3786
      %5765 = vmatmul.bf16.gmra.mxu0 %v5535
      %v5766 = vpop.f32.mrf.mxu0
      %v5767 = vadd.f32 %v5754, %v5766
      %v5768 = vpop.f32.mrf.mxu0
      %5769 = vdwg.mxu0
      %5770 = vmatpush.bf16.msra.mxu0 %v3391
      %5771 = vmatpush.bf16.msra.mxu0 %v3379
      %5772 = vmatpush.bf16.msra.mxu0 %v3367
      %5773 = vmatpush.bf16.msra.mxu0 %v3355
      %5774 = vmatpush.bf16.msra.mxu0 %v3343
      %5775 = vmatpush.bf16.msra.mxu0 %v3331
      %5776 = vmatpush.bf16.msra.mxu0 %v3319
      %5777 = vmatpush.bf16.msra.mxu0 %v3307
      %5778 = vmatmul.bf16.gmra.mxu0 %v5530
      %v5779 = vpop.f32.mrf.mxu0
      %v5780 = vadd.f32 %v1549, %v5779
      %v5781 = vpop.f32.mrf.mxu0
      %5782 = vdwg.mxu0
      %5783 = vmatpush.bf16.msra.mxu0 %v3487
      %5784 = vmatpush.bf16.msra.mxu0 %v3475
      %5785 = vmatpush.bf16.msra.mxu0 %v3463
      %5786 = vmatpush.bf16.msra.mxu0 %v3451
      %5787 = vmatpush.bf16.msra.mxu0 %v3439
      %5788 = vmatpush.bf16.msra.mxu0 %v3427
      %5789 = vmatpush.bf16.msra.mxu0 %v3415
      %5790 = vmatpush.bf16.msra.mxu0 %v3403
      %5791 = vmatmul.bf16.gmra.mxu0 %v5531
      %v5792 = vpop.f32.mrf.mxu0
      %v5793 = vadd.f32 %v5780, %v5792
      %v5794 = vpop.f32.mrf.mxu0
      %5795 = vdwg.mxu0
      %5796 = vmatpush.bf16.msra.mxu0 %v3583
      %5797 = vmatpush.bf16.msra.mxu0 %v3571
      %5798 = vmatpush.bf16.msra.mxu0 %v3559
      %5799 = vmatpush.bf16.msra.mxu0 %v3547
      %5800 = vmatpush.bf16.msra.mxu0 %v3535
      %5801 = vmatpush.bf16.msra.mxu0 %v3523
      %5802 = vmatpush.bf16.msra.mxu0 %v3511
      %5803 = vmatpush.bf16.msra.mxu0 %v3499
      %5804 = vmatmul.bf16.gmra.mxu0 %v5532
      %v5805 = vpop.f32.mrf.mxu0
      %v5806 = vadd.f32 %v5793, %v5805
      %v5807 = vpop.f32.mrf.mxu0
      %5808 = vdwg.mxu0
      %5809 = vmatpush.bf16.msra.mxu0 %v3679
      %5810 = vmatpush.bf16.msra.mxu0 %v3667
      %5811 = vmatpush.bf16.msra.mxu0 %v3655
      %5812 = vmatpush.bf16.msra.mxu0 %v3643
      %5813 = vmatpush.bf16.msra.mxu0 %v3631
      %5814 = vmatpush.bf16.msra.mxu0 %v3619
      %5815 = vmatpush.bf16.msra.mxu0 %v3607
      %5816 = vmatpush.bf16.msra.mxu0 %v3595
      %5817 = vmatmul.bf16.gmra.mxu0 %v5533
      %v5818 = vpop.f32.mrf.mxu0
      %v5819 = vadd.f32 %v5806, %v5818
      %v5820 = vpop.f32.mrf.mxu0
      %5821 = vdwg.mxu0
      %5822 = vmatpush.bf16.msra.mxu0 %v3775
      %5823 = vmatpush.bf16.msra.mxu0 %v3763
      %5824 = vmatpush.bf16.msra.mxu0 %v3751
      %5825 = vmatpush.bf16.msra.mxu0 %v3739
      %5826 = vmatpush.bf16.msra.mxu0 %v3727
      %5827 = vmatpush.bf16.msra.mxu0 %v3715
      %5828 = vmatpush.bf16.msra.mxu0 %v3703
      %5829 = vmatpush.bf16.msra.mxu0 %v3691
      %5830 = vmatmul.bf16.gmra.mxu0 %v5534
      %v5831 = vpop.f32.mrf.mxu0
      %v5832 = vadd.f32 %v5819, %v5831
      %v5833 = vpop.f32.mrf.mxu0
      %5834 = vdwg.mxu0
      %5835 = vmatpush.bf16.msra.mxu0 %v3871
      %5836 = vmatpush.bf16.msra.mxu0 %v3859
      %5837 = vmatpush.bf16.msra.mxu0 %v3847
      %5838 = vmatpush.bf16.msra.mxu0 %v3835
      %5839 = vmatpush.bf16.msra.mxu0 %v3823
      %5840 = vmatpush.bf16.msra.mxu0 %v3811
      %5841 = vmatpush.bf16.msra.mxu0 %v3799
      %5842 = vmatpush.bf16.msra.mxu0 %v3787
      %5843 = vmatmul.bf16.gmra.mxu0 %v5535
      %v5844 = vpop.f32.mrf.mxu0
      %v5845 = vadd.f32 %v5832, %v5844
      %v5846 = vpop.f32.mrf.mxu0
      %5847 = vdwg.mxu0
      %5848 = vmatpush.bf16.msra.mxu0 %v3392
      %5849 = vmatpush.bf16.msra.mxu0 %v3380
      %5850 = vmatpush.bf16.msra.mxu0 %v3368
      %5851 = vmatpush.bf16.msra.mxu0 %v3356
      %5852 = vmatpush.bf16.msra.mxu0 %v3344
      %5853 = vmatpush.bf16.msra.mxu0 %v3332
      %5854 = vmatpush.bf16.msra.mxu0 %v3320
      %5855 = vmatpush.bf16.msra.mxu0 %v3308
      %5856 = vmatmul.bf16.gmra.mxu0 %v5530
      %v5857 = vpop.f32.mrf.mxu0
      %v5858 = vadd.f32 %v1550, %v5857
      %v5859 = vpop.f32.mrf.mxu0
      %5860 = vdwg.mxu0
      %5861 = vmatpush.bf16.msra.mxu0 %v3488
      %5862 = vmatpush.bf16.msra.mxu0 %v3476
      %5863 = vmatpush.bf16.msra.mxu0 %v3464
      %5864 = vmatpush.bf16.msra.mxu0 %v3452
      %5865 = vmatpush.bf16.msra.mxu0 %v3440
      %5866 = vmatpush.bf16.msra.mxu0 %v3428
      %5867 = vmatpush.bf16.msra.mxu0 %v3416
      %5868 = vmatpush.bf16.msra.mxu0 %v3404
      %5869 = vmatmul.bf16.gmra.mxu0 %v5531
      %v5870 = vpop.f32.mrf.mxu0
      %v5871 = vadd.f32 %v5858, %v5870
      %v5872 = vpop.f32.mrf.mxu0
      %5873 = vdwg.mxu0
      %5874 = vmatpush.bf16.msra.mxu0 %v3584
      %5875 = vmatpush.bf16.msra.mxu0 %v3572
      %5876 = vmatpush.bf16.msra.mxu0 %v3560
      %5877 = vmatpush.bf16.msra.mxu0 %v3548
      %5878 = vmatpush.bf16.msra.mxu0 %v3536
      %5879 = vmatpush.bf16.msra.mxu0 %v3524
      %5880 = vmatpush.bf16.msra.mxu0 %v3512
      %5881 = vmatpush.bf16.msra.mxu0 %v3500
      %5882 = vmatmul.bf16.gmra.mxu0 %v5532
      %v5883 = vpop.f32.mrf.mxu0
      %v5884 = vadd.f32 %v5871, %v5883
      %v5885 = vpop.f32.mrf.mxu0
      %5886 = vdwg.mxu0
      %5887 = vmatpush.bf16.msra.mxu0 %v3680
      %5888 = vmatpush.bf16.msra.mxu0 %v3668
      %5889 = vmatpush.bf16.msra.mxu0 %v3656
      %5890 = vmatpush.bf16.msra.mxu0 %v3644
      %5891 = vmatpush.bf16.msra.mxu0 %v3632
      %5892 = vmatpush.bf16.msra.mxu0 %v3620
      %5893 = vmatpush.bf16.msra.mxu0 %v3608
      %5894 = vmatpush.bf16.msra.mxu0 %v3596
      %5895 = vmatmul.bf16.gmra.mxu0 %v5533
      %v5896 = vpop.f32.mrf.mxu0
      %v5897 = vadd.f32 %v5884, %v5896
      %v5898 = vpop.f32.mrf.mxu0
      %5899 = vdwg.mxu0
      %5900 = vmatpush.bf16.msra.mxu0 %v3776
      %5901 = vmatpush.bf16.msra.mxu0 %v3764
      %5902 = vmatpush.bf16.msra.mxu0 %v3752
      %5903 = vmatpush.bf16.msra.mxu0 %v3740
      %5904 = vmatpush.bf16.msra.mxu0 %v3728
      %5905 = vmatpush.bf16.msra.mxu0 %v3716
      %5906 = vmatpush.bf16.msra.mxu0 %v3704
      %5907 = vmatpush.bf16.msra.mxu0 %v3692
      %5908 = vmatmul.bf16.gmra.mxu0 %v5534
      %v5909 = vpop.f32.mrf.mxu0
      %v5910 = vadd.f32 %v5897, %v5909
      %v5911 = vpop.f32.mrf.mxu0
      %5912 = vdwg.mxu0
      %5913 = vmatpush.bf16.msra.mxu0 %v3872
      %5914 = vmatpush.bf16.msra.mxu0 %v3860
      %5915 = vmatpush.bf16.msra.mxu0 %v3848
      %5916 = vmatpush.bf16.msra.mxu0 %v3836
      %5917 = vmatpush.bf16.msra.mxu0 %v3824
      %5918 = vmatpush.bf16.msra.mxu0 %v3812
      %5919 = vmatpush.bf16.msra.mxu0 %v3800
      %5920 = vmatpush.bf16.msra.mxu0 %v3788
      %5921 = vmatmul.bf16.gmra.mxu0 %v5535
      %v5922 = vpop.f32.mrf.mxu0
      %v5923 = vadd.f32 %v5910, %v5922
      %v5924 = vpop.f32.mrf.mxu0
      %5925 = vdwg.mxu0
      %5926 = vmatpush.bf16.msra.mxu0 %v3393
      %5927 = vmatpush.bf16.msra.mxu0 %v3381
      %5928 = vmatpush.bf16.msra.mxu0 %v3369
      %5929 = vmatpush.bf16.msra.mxu0 %v3357
      %5930 = vmatpush.bf16.msra.mxu0 %v3345
      %5931 = vmatpush.bf16.msra.mxu0 %v3333
      %5932 = vmatpush.bf16.msra.mxu0 %v3321
      %5933 = vmatpush.bf16.msra.mxu0 %v3309
      %5934 = vmatmul.bf16.gmra.mxu0 %v5530
      %v5935 = vpop.f32.mrf.mxu0
      %v5936 = vadd.f32 %v1551, %v5935
      %v5937 = vpop.f32.mrf.mxu0
      %5938 = vdwg.mxu0
      %5939 = vmatpush.bf16.msra.mxu0 %v3489
      %5940 = vmatpush.bf16.msra.mxu0 %v3477
      %5941 = vmatpush.bf16.msra.mxu0 %v3465
      %5942 = vmatpush.bf16.msra.mxu0 %v3453
      %5943 = vmatpush.bf16.msra.mxu0 %v3441
      %5944 = vmatpush.bf16.msra.mxu0 %v3429
      %5945 = vmatpush.bf16.msra.mxu0 %v3417
      %5946 = vmatpush.bf16.msra.mxu0 %v3405
      %5947 = vmatmul.bf16.gmra.mxu0 %v5531
      %v5948 = vpop.f32.mrf.mxu0
      %v5949 = vadd.f32 %v5936, %v5948
      %v5950 = vpop.f32.mrf.mxu0
      %5951 = vdwg.mxu0
      %5952 = vmatpush.bf16.msra.mxu0 %v3585
      %5953 = vmatpush.bf16.msra.mxu0 %v3573
      %5954 = vmatpush.bf16.msra.mxu0 %v3561
      %5955 = vmatpush.bf16.msra.mxu0 %v3549
      %5956 = vmatpush.bf16.msra.mxu0 %v3537
      %5957 = vmatpush.bf16.msra.mxu0 %v3525
      %5958 = vmatpush.bf16.msra.mxu0 %v3513
      %5959 = vmatpush.bf16.msra.mxu0 %v3501
      %5960 = vmatmul.bf16.gmra.mxu0 %v5532
      %v5961 = vpop.f32.mrf.mxu0
      %v5962 = vadd.f32 %v5949, %v5961
      %v5963 = vpop.f32.mrf.mxu0
      %5964 = vdwg.mxu0
      %5965 = vmatpush.bf16.msra.mxu0 %v3681
      %5966 = vmatpush.bf16.msra.mxu0 %v3669
      %5967 = vmatpush.bf16.msra.mxu0 %v3657
      %5968 = vmatpush.bf16.msra.mxu0 %v3645
      %5969 = vmatpush.bf16.msra.mxu0 %v3633
      %5970 = vmatpush.bf16.msra.mxu0 %v3621
      %5971 = vmatpush.bf16.msra.mxu0 %v3609
      %5972 = vmatpush.bf16.msra.mxu0 %v3597
      %5973 = vmatmul.bf16.gmra.mxu0 %v5533
      %v5974 = vpop.f32.mrf.mxu0
      %v5975 = vadd.f32 %v5962, %v5974
      %v5976 = vpop.f32.mrf.mxu0
      %5977 = vdwg.mxu0
      %5978 = vmatpush.bf16.msra.mxu0 %v3777
      %5979 = vmatpush.bf16.msra.mxu0 %v3765
      %5980 = vmatpush.bf16.msra.mxu0 %v3753
      %5981 = vmatpush.bf16.msra.mxu0 %v3741
      %5982 = vmatpush.bf16.msra.mxu0 %v3729
      %5983 = vmatpush.bf16.msra.mxu0 %v3717
      %5984 = vmatpush.bf16.msra.mxu0 %v3705
      %5985 = vmatpush.bf16.msra.mxu0 %v3693
      %5986 = vmatmul.bf16.gmra.mxu0 %v5534
      %v5987 = vpop.f32.mrf.mxu0
      %v5988 = vadd.f32 %v5975, %v5987
      %v5989 = vpop.f32.mrf.mxu0
      %5990 = vdwg.mxu0
      %5991 = vmatpush.bf16.msra.mxu0 %v3873
      %5992 = vmatpush.bf16.msra.mxu0 %v3861
      %5993 = vmatpush.bf16.msra.mxu0 %v3849
      %5994 = vmatpush.bf16.msra.mxu0 %v3837
      %5995 = vmatpush.bf16.msra.mxu0 %v3825
      %5996 = vmatpush.bf16.msra.mxu0 %v3813
      %5997 = vmatpush.bf16.msra.mxu0 %v3801
      %5998 = vmatpush.bf16.msra.mxu0 %v3789
      %5999 = vmatmul.bf16.gmra.mxu0 %v5535
      %v6000 = vpop.f32.mrf.mxu0
      %v6001 = vadd.f32 %v5988, %v6000
      %v6002 = vpop.f32.mrf.mxu0
      %6003 = vdwg.mxu0
      %6004 = vmatpush.bf16.msra.mxu0 %v3394
      %6005 = vmatpush.bf16.msra.mxu0 %v3382
      %6006 = vmatpush.bf16.msra.mxu0 %v3370
      %6007 = vmatpush.bf16.msra.mxu0 %v3358
      %6008 = vmatpush.bf16.msra.mxu0 %v3346
      %6009 = vmatpush.bf16.msra.mxu0 %v3334
      %6010 = vmatpush.bf16.msra.mxu0 %v3322
      %6011 = vmatpush.bf16.msra.mxu0 %v3310
      %6012 = vmatmul.bf16.gmra.mxu0 %v5530
      %v6013 = vpop.f32.mrf.mxu0
      %v6014 = vadd.f32 %v1552, %v6013
      %v6015 = vpop.f32.mrf.mxu0
      %6016 = vdwg.mxu0
      %6017 = vmatpush.bf16.msra.mxu0 %v3490
      %6018 = vmatpush.bf16.msra.mxu0 %v3478
      %6019 = vmatpush.bf16.msra.mxu0 %v3466
      %6020 = vmatpush.bf16.msra.mxu0 %v3454
      %6021 = vmatpush.bf16.msra.mxu0 %v3442
      %6022 = vmatpush.bf16.msra.mxu0 %v3430
      %6023 = vmatpush.bf16.msra.mxu0 %v3418
      %6024 = vmatpush.bf16.msra.mxu0 %v3406
      %6025 = vmatmul.bf16.gmra.mxu0 %v5531
      %v6026 = vpop.f32.mrf.mxu0
      %v6027 = vadd.f32 %v6014, %v6026
      %v6028 = vpop.f32.mrf.mxu0
      %6029 = vdwg.mxu0
      %6030 = vmatpush.bf16.msra.mxu0 %v3586
      %6031 = vmatpush.bf16.msra.mxu0 %v3574
      %6032 = vmatpush.bf16.msra.mxu0 %v3562
      %6033 = vmatpush.bf16.msra.mxu0 %v3550
      %6034 = vmatpush.bf16.msra.mxu0 %v3538
      %6035 = vmatpush.bf16.msra.mxu0 %v3526
      %6036 = vmatpush.bf16.msra.mxu0 %v3514
      %6037 = vmatpush.bf16.msra.mxu0 %v3502
      %6038 = vmatmul.bf16.gmra.mxu0 %v5532
      %v6039 = vpop.f32.mrf.mxu0
      %v6040 = vadd.f32 %v6027, %v6039
      %v6041 = vpop.f32.mrf.mxu0
      %6042 = vdwg.mxu0
      %6043 = vmatpush.bf16.msra.mxu0 %v3682
      %6044 = vmatpush.bf16.msra.mxu0 %v3670
      %6045 = vmatpush.bf16.msra.mxu0 %v3658
      %6046 = vmatpush.bf16.msra.mxu0 %v3646
      %6047 = vmatpush.bf16.msra.mxu0 %v3634
      %6048 = vmatpush.bf16.msra.mxu0 %v3622
      %6049 = vmatpush.bf16.msra.mxu0 %v3610
      %6050 = vmatpush.bf16.msra.mxu0 %v3598
      %6051 = vmatmul.bf16.gmra.mxu0 %v5533
      %v6052 = vpop.f32.mrf.mxu0
      %v6053 = vadd.f32 %v6040, %v6052
      %v6054 = vpop.f32.mrf.mxu0
      %6055 = vdwg.mxu0
      %6056 = vmatpush.bf16.msra.mxu0 %v3778
      %6057 = vmatpush.bf16.msra.mxu0 %v3766
      %6058 = vmatpush.bf16.msra.mxu0 %v3754
      %6059 = vmatpush.bf16.msra.mxu0 %v3742
      %6060 = vmatpush.bf16.msra.mxu0 %v3730
      %6061 = vmatpush.bf16.msra.mxu0 %v3718
      %6062 = vmatpush.bf16.msra.mxu0 %v3706
      %6063 = vmatpush.bf16.msra.mxu0 %v3694
      %6064 = vmatmul.bf16.gmra.mxu0 %v5534
      %v6065 = vpop.f32.mrf.mxu0
      %v6066 = vadd.f32 %v6053, %v6065
      %v6067 = vpop.f32.mrf.mxu0
      %6068 = vdwg.mxu0
      %6069 = vmatpush.bf16.msra.mxu0 %v3874
      %6070 = vmatpush.bf16.msra.mxu0 %v3862
      %6071 = vmatpush.bf16.msra.mxu0 %v3850
      %6072 = vmatpush.bf16.msra.mxu0 %v3838
      %6073 = vmatpush.bf16.msra.mxu0 %v3826
      %6074 = vmatpush.bf16.msra.mxu0 %v3814
      %6075 = vmatpush.bf16.msra.mxu0 %v3802
      %6076 = vmatpush.bf16.msra.mxu0 %v3790
      %6077 = vmatmul.bf16.gmra.mxu0 %v5535
      %v6078 = vpop.f32.mrf.mxu0
      %v6079 = vadd.f32 %v6066, %v6078
      %v6080 = vpop.f32.mrf.mxu0
      %6081 = vdwg.mxu0
      %6082 = vmatpush.bf16.msra.mxu0 %v3395
      %6083 = vmatpush.bf16.msra.mxu0 %v3383
      %6084 = vmatpush.bf16.msra.mxu0 %v3371
      %6085 = vmatpush.bf16.msra.mxu0 %v3359
      %6086 = vmatpush.bf16.msra.mxu0 %v3347
      %6087 = vmatpush.bf16.msra.mxu0 %v3335
      %6088 = vmatpush.bf16.msra.mxu0 %v3323
      %6089 = vmatpush.bf16.msra.mxu0 %v3311
      %6090 = vmatmul.bf16.gmra.mxu0 %v5530
      %v6091 = vpop.f32.mrf.mxu0
      %v6092 = vadd.f32 %v1553, %v6091
      %v6093 = vpop.f32.mrf.mxu0
      %6094 = vdwg.mxu0
      %6095 = vmatpush.bf16.msra.mxu0 %v3491
      %6096 = vmatpush.bf16.msra.mxu0 %v3479
      %6097 = vmatpush.bf16.msra.mxu0 %v3467
      %6098 = vmatpush.bf16.msra.mxu0 %v3455
      %6099 = vmatpush.bf16.msra.mxu0 %v3443
      %6100 = vmatpush.bf16.msra.mxu0 %v3431
      %6101 = vmatpush.bf16.msra.mxu0 %v3419
      %6102 = vmatpush.bf16.msra.mxu0 %v3407
      %6103 = vmatmul.bf16.gmra.mxu0 %v5531
      %v6104 = vpop.f32.mrf.mxu0
      %v6105 = vadd.f32 %v6092, %v6104
      %v6106 = vpop.f32.mrf.mxu0
      %6107 = vdwg.mxu0
      %6108 = vmatpush.bf16.msra.mxu0 %v3587
      %6109 = vmatpush.bf16.msra.mxu0 %v3575
      %6110 = vmatpush.bf16.msra.mxu0 %v3563
      %6111 = vmatpush.bf16.msra.mxu0 %v3551
      %6112 = vmatpush.bf16.msra.mxu0 %v3539
      %6113 = vmatpush.bf16.msra.mxu0 %v3527
      %6114 = vmatpush.bf16.msra.mxu0 %v3515
      %6115 = vmatpush.bf16.msra.mxu0 %v3503
      %6116 = vmatmul.bf16.gmra.mxu0 %v5532
      %v6117 = vpop.f32.mrf.mxu0
      %v6118 = vadd.f32 %v6105, %v6117
      %v6119 = vpop.f32.mrf.mxu0
      %6120 = vdwg.mxu0
      %6121 = vmatpush.bf16.msra.mxu0 %v3683
      %6122 = vmatpush.bf16.msra.mxu0 %v3671
      %6123 = vmatpush.bf16.msra.mxu0 %v3659
      %6124 = vmatpush.bf16.msra.mxu0 %v3647
      %6125 = vmatpush.bf16.msra.mxu0 %v3635
      %6126 = vmatpush.bf16.msra.mxu0 %v3623
      %6127 = vmatpush.bf16.msra.mxu0 %v3611
      %6128 = vmatpush.bf16.msra.mxu0 %v3599
      %6129 = vmatmul.bf16.gmra.mxu0 %v5533
      %v6130 = vpop.f32.mrf.mxu0
      %v6131 = vadd.f32 %v6118, %v6130
      %v6132 = vpop.f32.mrf.mxu0
      %6133 = vdwg.mxu0
      %6134 = vmatpush.bf16.msra.mxu0 %v3779
      %6135 = vmatpush.bf16.msra.mxu0 %v3767
      %6136 = vmatpush.bf16.msra.mxu0 %v3755
      %6137 = vmatpush.bf16.msra.mxu0 %v3743
      %6138 = vmatpush.bf16.msra.mxu0 %v3731
      %6139 = vmatpush.bf16.msra.mxu0 %v3719
      %6140 = vmatpush.bf16.msra.mxu0 %v3707
      %6141 = vmatpush.bf16.msra.mxu0 %v3695
      %6142 = vmatmul.bf16.gmra.mxu0 %v5534
      %v6143 = vpop.f32.mrf.mxu0
      %v6144 = vadd.f32 %v6131, %v6143
      %v6145 = vpop.f32.mrf.mxu0
      %6146 = vdwg.mxu0
      %6147 = vmatpush.bf16.msra.mxu0 %v3875
      %6148 = vmatpush.bf16.msra.mxu0 %v3863
      %6149 = vmatpush.bf16.msra.mxu0 %v3851
      %6150 = vmatpush.bf16.msra.mxu0 %v3839
      %6151 = vmatpush.bf16.msra.mxu0 %v3827
      %6152 = vmatpush.bf16.msra.mxu0 %v3815
      %6153 = vmatpush.bf16.msra.mxu0 %v3803
      %6154 = vmatpush.bf16.msra.mxu0 %v3791
      %6155 = vmatmul.bf16.gmra.mxu0 %v5535
      %v6156 = vpop.f32.mrf.mxu0
      %v6157 = vadd.f32 %v6144, %v6156
      %v6158 = vpop.f32.mrf.mxu0
      %6159 = vdwg.mxu0
      %6160 = vmatpush.bf16.msra.mxu0 %v3396
      %6161 = vmatpush.bf16.msra.mxu0 %v3384
      %6162 = vmatpush.bf16.msra.mxu0 %v3372
      %6163 = vmatpush.bf16.msra.mxu0 %v3360
      %6164 = vmatpush.bf16.msra.mxu0 %v3348
      %6165 = vmatpush.bf16.msra.mxu0 %v3336
      %6166 = vmatpush.bf16.msra.mxu0 %v3324
      %6167 = vmatpush.bf16.msra.mxu0 %v3312
      %6168 = vmatmul.bf16.gmra.mxu0 %v5530
      %v6169 = vpop.f32.mrf.mxu0
      %v6170 = vadd.f32 %v1554, %v6169
      %v6171 = vpop.f32.mrf.mxu0
      %6172 = vdwg.mxu0
      %6173 = vmatpush.bf16.msra.mxu0 %v3492
      %6174 = vmatpush.bf16.msra.mxu0 %v3480
      %6175 = vmatpush.bf16.msra.mxu0 %v3468
      %6176 = vmatpush.bf16.msra.mxu0 %v3456
      %6177 = vmatpush.bf16.msra.mxu0 %v3444
      %6178 = vmatpush.bf16.msra.mxu0 %v3432
      %6179 = vmatpush.bf16.msra.mxu0 %v3420
      %6180 = vmatpush.bf16.msra.mxu0 %v3408
      %6181 = vmatmul.bf16.gmra.mxu0 %v5531
      %v6182 = vpop.f32.mrf.mxu0
      %v6183 = vadd.f32 %v6170, %v6182
      %v6184 = vpop.f32.mrf.mxu0
      %6185 = vdwg.mxu0
      %6186 = vmatpush.bf16.msra.mxu0 %v3588
      %6187 = vmatpush.bf16.msra.mxu0 %v3576
      %6188 = vmatpush.bf16.msra.mxu0 %v3564
      %6189 = vmatpush.bf16.msra.mxu0 %v3552
      %6190 = vmatpush.bf16.msra.mxu0 %v3540
      %6191 = vmatpush.bf16.msra.mxu0 %v3528
      %6192 = vmatpush.bf16.msra.mxu0 %v3516
      %6193 = vmatpush.bf16.msra.mxu0 %v3504
      %6194 = vmatmul.bf16.gmra.mxu0 %v5532
      %v6195 = vpop.f32.mrf.mxu0
      %v6196 = vadd.f32 %v6183, %v6195
      %v6197 = vpop.f32.mrf.mxu0
      %6198 = vdwg.mxu0
      %6199 = vmatpush.bf16.msra.mxu0 %v3684
      %6200 = vmatpush.bf16.msra.mxu0 %v3672
      %6201 = vmatpush.bf16.msra.mxu0 %v3660
      %6202 = vmatpush.bf16.msra.mxu0 %v3648
      %6203 = vmatpush.bf16.msra.mxu0 %v3636
      %6204 = vmatpush.bf16.msra.mxu0 %v3624
      %6205 = vmatpush.bf16.msra.mxu0 %v3612
      %6206 = vmatpush.bf16.msra.mxu0 %v3600
      %6207 = vmatmul.bf16.gmra.mxu0 %v5533
      %v6208 = vpop.f32.mrf.mxu0
      %v6209 = vadd.f32 %v6196, %v6208
      %v6210 = vpop.f32.mrf.mxu0
      %6211 = vdwg.mxu0
      %6212 = vmatpush.bf16.msra.mxu0 %v3780
      %6213 = vmatpush.bf16.msra.mxu0 %v3768
      %6214 = vmatpush.bf16.msra.mxu0 %v3756
      %6215 = vmatpush.bf16.msra.mxu0 %v3744
      %6216 = vmatpush.bf16.msra.mxu0 %v3732
      %6217 = vmatpush.bf16.msra.mxu0 %v3720
      %6218 = vmatpush.bf16.msra.mxu0 %v3708
      %6219 = vmatpush.bf16.msra.mxu0 %v3696
      %6220 = vmatmul.bf16.gmra.mxu0 %v5534
      %v6221 = vpop.f32.mrf.mxu0
      %v6222 = vadd.f32 %v6209, %v6221
      %v6223 = vpop.f32.mrf.mxu0
      %6224 = vdwg.mxu0
      %6225 = vmatpush.bf16.msra.mxu0 %v3876
      %6226 = vmatpush.bf16.msra.mxu0 %v3864
      %6227 = vmatpush.bf16.msra.mxu0 %v3852
      %6228 = vmatpush.bf16.msra.mxu0 %v3840
      %6229 = vmatpush.bf16.msra.mxu0 %v3828
      %6230 = vmatpush.bf16.msra.mxu0 %v3816
      %6231 = vmatpush.bf16.msra.mxu0 %v3804
      %6232 = vmatpush.bf16.msra.mxu0 %v3792
      %6233 = vmatmul.bf16.gmra.mxu0 %v5535
      %v6234 = vpop.f32.mrf.mxu0
      %v6235 = vadd.f32 %v6222, %v6234
      %v6236 = vpop.f32.mrf.mxu0
      %6237 = vdwg.mxu0
      %6238 = vmatpush.bf16.msra.mxu0 %v3397
      %6239 = vmatpush.bf16.msra.mxu0 %v3385
      %6240 = vmatpush.bf16.msra.mxu0 %v3373
      %6241 = vmatpush.bf16.msra.mxu0 %v3361
      %6242 = vmatpush.bf16.msra.mxu0 %v3349
      %6243 = vmatpush.bf16.msra.mxu0 %v3337
      %6244 = vmatpush.bf16.msra.mxu0 %v3325
      %6245 = vmatpush.bf16.msra.mxu0 %v3313
      %6246 = vmatmul.bf16.gmra.mxu0 %v5530
      %v6247 = vpop.f32.mrf.mxu0
      %v6248 = vadd.f32 %v1555, %v6247
      %v6249 = vpop.f32.mrf.mxu0
      %6250 = vdwg.mxu0
      %6251 = vmatpush.bf16.msra.mxu0 %v3493
      %6252 = vmatpush.bf16.msra.mxu0 %v3481
      %6253 = vmatpush.bf16.msra.mxu0 %v3469
      %6254 = vmatpush.bf16.msra.mxu0 %v3457
      %6255 = vmatpush.bf16.msra.mxu0 %v3445
      %6256 = vmatpush.bf16.msra.mxu0 %v3433
      %6257 = vmatpush.bf16.msra.mxu0 %v3421
      %6258 = vmatpush.bf16.msra.mxu0 %v3409
      %6259 = vmatmul.bf16.gmra.mxu0 %v5531
      %v6260 = vpop.f32.mrf.mxu0
      %v6261 = vadd.f32 %v6248, %v6260
      %v6262 = vpop.f32.mrf.mxu0
      %6263 = vdwg.mxu0
      %6264 = vmatpush.bf16.msra.mxu0 %v3589
      %6265 = vmatpush.bf16.msra.mxu0 %v3577
      %6266 = vmatpush.bf16.msra.mxu0 %v3565
      %6267 = vmatpush.bf16.msra.mxu0 %v3553
      %6268 = vmatpush.bf16.msra.mxu0 %v3541
      %6269 = vmatpush.bf16.msra.mxu0 %v3529
      %6270 = vmatpush.bf16.msra.mxu0 %v3517
      %6271 = vmatpush.bf16.msra.mxu0 %v3505
      %6272 = vmatmul.bf16.gmra.mxu0 %v5532
      %v6273 = vpop.f32.mrf.mxu0
      %v6274 = vadd.f32 %v6261, %v6273
      %v6275 = vpop.f32.mrf.mxu0
      %6276 = vdwg.mxu0
      %6277 = vmatpush.bf16.msra.mxu0 %v3685
      %6278 = vmatpush.bf16.msra.mxu0 %v3673
      %6279 = vmatpush.bf16.msra.mxu0 %v3661
      %6280 = vmatpush.bf16.msra.mxu0 %v3649
      %6281 = vmatpush.bf16.msra.mxu0 %v3637
      %6282 = vmatpush.bf16.msra.mxu0 %v3625
      %6283 = vmatpush.bf16.msra.mxu0 %v3613
      %6284 = vmatpush.bf16.msra.mxu0 %v3601
      %6285 = vmatmul.bf16.gmra.mxu0 %v5533
      %v6286 = vpop.f32.mrf.mxu0
      %v6287 = vadd.f32 %v6274, %v6286
      %v6288 = vpop.f32.mrf.mxu0
      %6289 = vdwg.mxu0
      %6290 = vmatpush.bf16.msra.mxu0 %v3781
      %6291 = vmatpush.bf16.msra.mxu0 %v3769
      %6292 = vmatpush.bf16.msra.mxu0 %v3757
      %6293 = vmatpush.bf16.msra.mxu0 %v3745
      %6294 = vmatpush.bf16.msra.mxu0 %v3733
      %6295 = vmatpush.bf16.msra.mxu0 %v3721
      %6296 = vmatpush.bf16.msra.mxu0 %v3709
      %6297 = vmatpush.bf16.msra.mxu0 %v3697
      %6298 = vmatmul.bf16.gmra.mxu0 %v5534
      %v6299 = vpop.f32.mrf.mxu0
      %v6300 = vadd.f32 %v6287, %v6299
      %v6301 = vpop.f32.mrf.mxu0
      %6302 = vdwg.mxu0
      %6303 = vmatpush.bf16.msra.mxu0 %v3877
      %6304 = vmatpush.bf16.msra.mxu0 %v3865
      %6305 = vmatpush.bf16.msra.mxu0 %v3853
      %6306 = vmatpush.bf16.msra.mxu0 %v3841
      %6307 = vmatpush.bf16.msra.mxu0 %v3829
      %6308 = vmatpush.bf16.msra.mxu0 %v3817
      %6309 = vmatpush.bf16.msra.mxu0 %v3805
      %6310 = vmatpush.bf16.msra.mxu0 %v3793
      %6311 = vmatmul.bf16.gmra.mxu0 %v5535
      %v6312 = vpop.f32.mrf.mxu0
      %v6313 = vadd.f32 %v6300, %v6312
      %v6314 = vpop.f32.mrf.mxu0
      %6315 = vdwg.mxu0
      %6316 = vmatpush.bf16.msra.mxu0 %v3398
      %6317 = vmatpush.bf16.msra.mxu0 %v3386
      %6318 = vmatpush.bf16.msra.mxu0 %v3374
      %6319 = vmatpush.bf16.msra.mxu0 %v3362
      %6320 = vmatpush.bf16.msra.mxu0 %v3350
      %6321 = vmatpush.bf16.msra.mxu0 %v3338
      %6322 = vmatpush.bf16.msra.mxu0 %v3326
      %6323 = vmatpush.bf16.msra.mxu0 %v3314
      %6324 = vmatmul.bf16.gmra.mxu0 %v5530
      %v6325 = vpop.f32.mrf.mxu0
      %v6326 = vadd.f32 %v1556, %v6325
      %v6327 = vpop.f32.mrf.mxu0
      %6328 = vdwg.mxu0
      %6329 = vmatpush.bf16.msra.mxu0 %v3494
      %6330 = vmatpush.bf16.msra.mxu0 %v3482
      %6331 = vmatpush.bf16.msra.mxu0 %v3470
      %6332 = vmatpush.bf16.msra.mxu0 %v3458
      %6333 = vmatpush.bf16.msra.mxu0 %v3446
      %6334 = vmatpush.bf16.msra.mxu0 %v3434
      %6335 = vmatpush.bf16.msra.mxu0 %v3422
      %6336 = vmatpush.bf16.msra.mxu0 %v3410
      %6337 = vmatmul.bf16.gmra.mxu0 %v5531
      %v6338 = vpop.f32.mrf.mxu0
      %v6339 = vadd.f32 %v6326, %v6338
      %v6340 = vpop.f32.mrf.mxu0
      %6341 = vdwg.mxu0
      %6342 = vmatpush.bf16.msra.mxu0 %v3590
      %6343 = vmatpush.bf16.msra.mxu0 %v3578
      %6344 = vmatpush.bf16.msra.mxu0 %v3566
      %6345 = vmatpush.bf16.msra.mxu0 %v3554
      %6346 = vmatpush.bf16.msra.mxu0 %v3542
      %6347 = vmatpush.bf16.msra.mxu0 %v3530
      %6348 = vmatpush.bf16.msra.mxu0 %v3518
      %6349 = vmatpush.bf16.msra.mxu0 %v3506
      %6350 = vmatmul.bf16.gmra.mxu0 %v5532
      %v6351 = vpop.f32.mrf.mxu0
      %v6352 = vadd.f32 %v6339, %v6351
      %v6353 = vpop.f32.mrf.mxu0
      %6354 = vdwg.mxu0
      %6355 = vmatpush.bf16.msra.mxu0 %v3686
      %6356 = vmatpush.bf16.msra.mxu0 %v3674
      %6357 = vmatpush.bf16.msra.mxu0 %v3662
      %6358 = vmatpush.bf16.msra.mxu0 %v3650
      %6359 = vmatpush.bf16.msra.mxu0 %v3638
      %6360 = vmatpush.bf16.msra.mxu0 %v3626
      %6361 = vmatpush.bf16.msra.mxu0 %v3614
      %6362 = vmatpush.bf16.msra.mxu0 %v3602
      %6363 = vmatmul.bf16.gmra.mxu0 %v5533
      %v6364 = vpop.f32.mrf.mxu0
      %v6365 = vadd.f32 %v6352, %v6364
      %v6366 = vpop.f32.mrf.mxu0
      %6367 = vdwg.mxu0
      %6368 = vmatpush.bf16.msra.mxu0 %v3782
      %6369 = vmatpush.bf16.msra.mxu0 %v3770
      %6370 = vmatpush.bf16.msra.mxu0 %v3758
      %6371 = vmatpush.bf16.msra.mxu0 %v3746
      %6372 = vmatpush.bf16.msra.mxu0 %v3734
      %6373 = vmatpush.bf16.msra.mxu0 %v3722
      %6374 = vmatpush.bf16.msra.mxu0 %v3710
      %6375 = vmatpush.bf16.msra.mxu0 %v3698
      %6376 = vmatmul.bf16.gmra.mxu0 %v5534
      %v6377 = vpop.f32.mrf.mxu0
      %v6378 = vadd.f32 %v6365, %v6377
      %v6379 = vpop.f32.mrf.mxu0
      %6380 = vdwg.mxu0
      %6381 = vmatpush.bf16.msra.mxu0 %v3878
      %6382 = vmatpush.bf16.msra.mxu0 %v3866
      %6383 = vmatpush.bf16.msra.mxu0 %v3854
      %6384 = vmatpush.bf16.msra.mxu0 %v3842
      %6385 = vmatpush.bf16.msra.mxu0 %v3830
      %6386 = vmatpush.bf16.msra.mxu0 %v3818
      %6387 = vmatpush.bf16.msra.mxu0 %v3806
      %6388 = vmatpush.bf16.msra.mxu0 %v3794
      %6389 = vmatmul.bf16.gmra.mxu0 %v5535
      %v6390 = vpop.f32.mrf.mxu0
      %v6391 = vadd.f32 %v6378, %v6390
      %v6392 = vpop.f32.mrf.mxu0
      %6393 = vdwg.mxu0
      %6394 = vmatpush.bf16.msra.mxu0 %v3399
      %6395 = vmatpush.bf16.msra.mxu0 %v3387
      %6396 = vmatpush.bf16.msra.mxu0 %v3375
      %6397 = vmatpush.bf16.msra.mxu0 %v3363
      %6398 = vmatpush.bf16.msra.mxu0 %v3351
      %6399 = vmatpush.bf16.msra.mxu0 %v3339
      %6400 = vmatpush.bf16.msra.mxu0 %v3327
      %6401 = vmatpush.bf16.msra.mxu0 %v3315
      %6402 = vmatmul.bf16.gmra.mxu0 %v5530
      %v6403 = vpop.f32.mrf.mxu0
      %v6404 = vadd.f32 %v1557, %v6403
      %v6405 = vpop.f32.mrf.mxu0
      %6406 = vdwg.mxu0
      %6407 = vmatpush.bf16.msra.mxu0 %v3495
      %6408 = vmatpush.bf16.msra.mxu0 %v3483
      %6409 = vmatpush.bf16.msra.mxu0 %v3471
      %6410 = vmatpush.bf16.msra.mxu0 %v3459
      %6411 = vmatpush.bf16.msra.mxu0 %v3447
      %6412 = vmatpush.bf16.msra.mxu0 %v3435
      %6413 = vmatpush.bf16.msra.mxu0 %v3423
      %6414 = vmatpush.bf16.msra.mxu0 %v3411
      %6415 = vmatmul.bf16.gmra.mxu0 %v5531
      %v6416 = vpop.f32.mrf.mxu0
      %v6417 = vadd.f32 %v6404, %v6416
      %v6418 = vpop.f32.mrf.mxu0
      %6419 = vdwg.mxu0
      %6420 = vmatpush.bf16.msra.mxu0 %v3591
      %6421 = vmatpush.bf16.msra.mxu0 %v3579
      %6422 = vmatpush.bf16.msra.mxu0 %v3567
      %6423 = vmatpush.bf16.msra.mxu0 %v3555
      %6424 = vmatpush.bf16.msra.mxu0 %v3543
      %6425 = vmatpush.bf16.msra.mxu0 %v3531
      %6426 = vmatpush.bf16.msra.mxu0 %v3519
      %6427 = vmatpush.bf16.msra.mxu0 %v3507
      %6428 = vmatmul.bf16.gmra.mxu0 %v5532
      %v6429 = vpop.f32.mrf.mxu0
      %v6430 = vadd.f32 %v6417, %v6429
      %v6431 = vpop.f32.mrf.mxu0
      %6432 = vdwg.mxu0
      %6433 = vmatpush.bf16.msra.mxu0 %v3687
      %6434 = vmatpush.bf16.msra.mxu0 %v3675
      %6435 = vmatpush.bf16.msra.mxu0 %v3663
      %6436 = vmatpush.bf16.msra.mxu0 %v3651
      %6437 = vmatpush.bf16.msra.mxu0 %v3639
      %6438 = vmatpush.bf16.msra.mxu0 %v3627
      %6439 = vmatpush.bf16.msra.mxu0 %v3615
      %6440 = vmatpush.bf16.msra.mxu0 %v3603
      %6441 = vmatmul.bf16.gmra.mxu0 %v5533
      %v6442 = vpop.f32.mrf.mxu0
      %v6443 = vadd.f32 %v6430, %v6442
      %v6444 = vpop.f32.mrf.mxu0
      %6445 = vdwg.mxu0
      %6446 = vmatpush.bf16.msra.mxu0 %v3783
      %6447 = vmatpush.bf16.msra.mxu0 %v3771
      %6448 = vmatpush.bf16.msra.mxu0 %v3759
      %6449 = vmatpush.bf16.msra.mxu0 %v3747
      %6450 = vmatpush.bf16.msra.mxu0 %v3735
      %6451 = vmatpush.bf16.msra.mxu0 %v3723
      %6452 = vmatpush.bf16.msra.mxu0 %v3711
      %6453 = vmatpush.bf16.msra.mxu0 %v3699
      %6454 = vmatmul.bf16.gmra.mxu0 %v5534
      %v6455 = vpop.f32.mrf.mxu0
      %v6456 = vadd.f32 %v6443, %v6455
      %v6457 = vpop.f32.mrf.mxu0
      %6458 = vdwg.mxu0
      %6459 = vmatpush.bf16.msra.mxu0 %v3879
      %6460 = vmatpush.bf16.msra.mxu0 %v3867
      %6461 = vmatpush.bf16.msra.mxu0 %v3855
      %6462 = vmatpush.bf16.msra.mxu0 %v3843
      %6463 = vmatpush.bf16.msra.mxu0 %v3831
      %6464 = vmatpush.bf16.msra.mxu0 %v3819
      %6465 = vmatpush.bf16.msra.mxu0 %v3807
      %6466 = vmatpush.bf16.msra.mxu0 %v3795
      %6467 = vmatmul.bf16.gmra.mxu0 %v5535
      %v6468 = vpop.f32.mrf.mxu0
      %v6469 = vadd.f32 %v6456, %v6468
      %v6470 = vpop.f32.mrf.mxu0
      %6471 = vdwg.mxu0
      %v6472 = vmax.f32 %v5611, 0.0
      %v6473 = vmax.f32 %v5689, 0.0
      %v6474 = vmax.f32 %v5767, 0.0
      %v6475 = vmax.f32 %v5845, 0.0
      %v6476 = vmax.f32 %v5923, 0.0
      %v6477 = vmax.f32 %v6001, 0.0
      %v6478 = vxor.u32 %v6079, 2147483648
      %v6479 = vxor.u32 %v6157, 2147483648
      %v6480 = vxor.u32 %v6235, 2147483648
      %v6481 = vxor.u32 %v6313, 2147483648
      %v6482 = vxor.u32 %v6391, 2147483648
      %v6483 = vxor.u32 %v6469, 2147483648
      %v6484 = vmul.f32 %v6478, 1.442695
      %v6485 = vpow.pop %v6484
      %v6486 = vmul.f32 %v6479, 1.442695
      %v6487 = vpow.pop %v6486
      %v6488 = vmul.f32 %v6480, 1.442695
      %v6489 = vpow.pop %v6488
      %v6490 = vmul.f32 %v6481, 1.442695
      %v6491 = vpow.pop %v6490
      %v6492 = vmul.f32 %v6482, 1.442695
      %v6493 = vpow.pop %v6492
      %v6494 = vmul.f32 %v6483, 1.442695
      %v6495 = vpow.pop %v6494
      %v6496 = vadd.f32 %v6485, 1.0
      %v6497 = vadd.f32 %v6487, 1.0
      %v6498 = vadd.f32 %v6489, 1.0
      %v6499 = vadd.f32 %v6491, 1.0
      %v6500 = vadd.f32 %v6493, 1.0
      %v6501 = vadd.f32 %v6495, 1.0
      %v6502 = vrcp.pop %v6496
      %v6503 = vmul.f32 %v6496, %v6502
      %v6504 = vsub.f32 1.0, %v6503
      %v6505 = vmul.f32 %v6502, %v6504
      %v6506 = vadd.f32 %v6502, %v6505
      %vm6507 = vweird.f32 %v6496
      %vm6508 = vweird.f32 %v6502
      %vm6509 = vmor %vm6507, %vm6508
      %v6510 = vsel %vm6509, %v6502, %v6506
      %v6511 = vand.u32 2147483647, %v6496
      %vm6512 = vcmp.eq.f32.partialorder %v6511, 8.507059e+37
      %v6513 = vand.u32 %v6496, 2147483648
      %v6514 = vor.u32 1.1754944e-38, %v6513
      %v6515 = vsel %vm6512, %v6514, %v6510
      %v6516 = vmul.f32 1.0, %v6515
      %v6517 = vrcp.pop %v6497
      %v6518 = vmul.f32 %v6497, %v6517
      %v6519 = vsub.f32 1.0, %v6518
      %v6520 = vmul.f32 %v6517, %v6519
      %v6521 = vadd.f32 %v6517, %v6520
      %vm6522 = vweird.f32 %v6497
      %vm6523 = vweird.f32 %v6517
      %vm6524 = vmor %vm6522, %vm6523
      %v6525 = vsel %vm6524, %v6517, %v6521
      %v6526 = vand.u32 2147483647, %v6497
      %vm6527 = vcmp.eq.f32.partialorder %v6526, 8.507059e+37
      %v6528 = vand.u32 %v6497, 2147483648
      %v6529 = vor.u32 1.1754944e-38, %v6528
      %v6530 = vsel %vm6527, %v6529, %v6525
      %v6531 = vmul.f32 1.0, %v6530
      %v6532 = vrcp.pop %v6498
      %v6533 = vmul.f32 %v6498, %v6532
      %v6534 = vsub.f32 1.0, %v6533
      %v6535 = vmul.f32 %v6532, %v6534
      %v6536 = vadd.f32 %v6532, %v6535
      %vm6537 = vweird.f32 %v6498
      %vm6538 = vweird.f32 %v6532
      %vm6539 = vmor %vm6537, %vm6538
      %v6540 = vsel %vm6539, %v6532, %v6536
      %v6541 = vand.u32 2147483647, %v6498
      %vm6542 = vcmp.eq.f32.partialorder %v6541, 8.507059e+37
      %v6543 = vand.u32 %v6498, 2147483648
      %v6544 = vor.u32 1.1754944e-38, %v6543
      %v6545 = vsel %vm6542, %v6544, %v6540
      %v6546 = vmul.f32 1.0, %v6545
      %v6547 = vrcp.pop %v6499
      %v6548 = vmul.f32 %v6499, %v6547
      %v6549 = vsub.f32 1.0, %v6548
      %v6550 = vmul.f32 %v6547, %v6549
      %v6551 = vadd.f32 %v6547, %v6550
      %vm6552 = vweird.f32 %v6499
      %vm6553 = vweird.f32 %v6547
      %vm6554 = vmor %vm6552, %vm6553
      %v6555 = vsel %vm6554, %v6547, %v6551
      %v6556 = vand.u32 2147483647, %v6499
      %vm6557 = vcmp.eq.f32.partialorder %v6556, 8.507059e+37
      %v6558 = vand.u32 %v6499, 2147483648
      %v6559 = vor.u32 1.1754944e-38, %v6558
      %v6560 = vsel %vm6557, %v6559, %v6555
      %v6561 = vmul.f32 1.0, %v6560
      %v6562 = vrcp.pop %v6500
      %v6563 = vmul.f32 %v6500, %v6562
      %v6564 = vsub.f32 1.0, %v6563
      %v6565 = vmul.f32 %v6562, %v6564
      %v6566 = vadd.f32 %v6562, %v6565
      %vm6567 = vweird.f32 %v6500
      %vm6568 = vweird.f32 %v6562
      %vm6569 = vmor %vm6567, %vm6568
      %v6570 = vsel %vm6569, %v6562, %v6566
      %v6571 = vand.u32 2147483647, %v6500
      %vm6572 = vcmp.eq.f32.partialorder %v6571, 8.507059e+37
      %v6573 = vand.u32 %v6500, 2147483648
      %v6574 = vor.u32 1.1754944e-38, %v6573
      %v6575 = vsel %vm6572, %v6574, %v6570
      %v6576 = vmul.f32 1.0, %v6575
      %v6577 = vrcp.pop %v6501
      %v6578 = vmul.f32 %v6501, %v6577
      %v6579 = vsub.f32 1.0, %v6578
      %v6580 = vmul.f32 %v6577, %v6579
      %v6581 = vadd.f32 %v6577, %v6580
      %vm6582 = vweird.f32 %v6501
      %vm6583 = vweird.f32 %v6577
      %vm6584 = vmor %vm6582, %vm6583
      %v6585 = vsel %vm6584, %v6577, %v6581
      %v6586 = vand.u32 2147483647, %v6501
      %vm6587 = vcmp.eq.f32.partialorder %v6586, 8.507059e+37
      %v6588 = vand.u32 %v6501, 2147483648
      %v6589 = vor.u32 1.1754944e-38, %v6588
      %v6590 = vsel %vm6587, %v6589, %v6585
      %v6591 = vmul.f32 1.0, %v6590
      %v6592 = vsub.f32 %v6472, %v5524
      %v6593 = vsub.f32 %v6473, %v5525
      %v6594 = vsub.f32 %v6474, %v5526
      %v6595 = vsub.f32 %v6475, %v5527
      %v6596 = vsub.f32 %v6476, %v5528
      %v6597 = vsub.f32 %v6477, %v5529
      %v6598 = vmul.f32 %v6516, %v6592
      %v6599 = vmul.f32 %v6531, %v6593
      %v6600 = vmul.f32 %v6546, %v6594
      %v6601 = vmul.f32 %v6561, %v6595
      %v6602 = vmul.f32 %v6576, %v6596
      %v6603 = vmul.f32 %v6591, %v6597
      %v6604 = vadd.f32 %v5524, %v6598
      %v6605 = vadd.f32 %v5525, %v6599
      %v6606 = vadd.f32 %v5526, %v6600
      %v6607 = vadd.f32 %v5527, %v6601
      %v6608 = vadd.f32 %v5528, %v6602
      %v6609 = vadd.f32 %v5529, %v6603
      %v6610 = vpack.c.bf16 %v6604, %v6604
      %v6611 = vpack.c.bf16 %v6605, %v6605
      %v6612 = vpack.c.bf16 %v6606, %v6606
      %v6613 = vpack.c.bf16 %v6607, %v6607
      %v6614 = vpack.c.bf16 %v6608, %v6608
      %v6615 = vpack.c.bf16 %v6609, %v6609
      %6616 = vmatpush.bf16.msra.mxu0 %v3388
      %6617 = vmatpush.bf16.msra.mxu0 %v3376
      %6618 = vmatpush.bf16.msra.mxu0 %v3364
      %6619 = vmatpush.bf16.msra.mxu0 %v3352
      %6620 = vmatpush.bf16.msra.mxu0 %v3340
      %6621 = vmatpush.bf16.msra.mxu0 %v3328
      %6622 = vmatpush.bf16.msra.mxu0 %v3316
      %6623 = vmatpush.bf16.msra.mxu0 %v3304
      %6624 = vmatmul.bf16.gmra.mxu0 %v6610
      %v6625 = vpop.f32.mrf.mxu0
      %v6626 = vadd.f32 %v1546, %v6625
      %v6627 = vpop.f32.mrf.mxu0
      %6628 = vdwg.mxu0
      %6629 = vmatpush.bf16.msra.mxu0 %v3484
      %6630 = vmatpush.bf16.msra.mxu0 %v3472
      %6631 = vmatpush.bf16.msra.mxu0 %v3460
      %6632 = vmatpush.bf16.msra.mxu0 %v3448
      %6633 = vmatpush.bf16.msra.mxu0 %v3436
      %6634 = vmatpush.bf16.msra.mxu0 %v3424
      %6635 = vmatpush.bf16.msra.mxu0 %v3412
      %6636 = vmatpush.bf16.msra.mxu0 %v3400
      %6637 = vmatmul.bf16.gmra.mxu0 %v6611
      %v6638 = vpop.f32.mrf.mxu0
      %v6639 = vadd.f32 %v6626, %v6638
      %v6640 = vpop.f32.mrf.mxu0
      %6641 = vdwg.mxu0
      %6642 = vmatpush.bf16.msra.mxu0 %v3580
      %6643 = vmatpush.bf16.msra.mxu0 %v3568
      %6644 = vmatpush.bf16.msra.mxu0 %v3556
      %6645 = vmatpush.bf16.msra.mxu0 %v3544
      %6646 = vmatpush.bf16.msra.mxu0 %v3532
      %6647 = vmatpush.bf16.msra.mxu0 %v3520
      %6648 = vmatpush.bf16.msra.mxu0 %v3508
      %6649 = vmatpush.bf16.msra.mxu0 %v3496
      %6650 = vmatmul.bf16.gmra.mxu0 %v6612
      %v6651 = vpop.f32.mrf.mxu0
      %v6652 = vadd.f32 %v6639, %v6651
      %v6653 = vpop.f32.mrf.mxu0
      %6654 = vdwg.mxu0
      %6655 = vmatpush.bf16.msra.mxu0 %v3676
      %6656 = vmatpush.bf16.msra.mxu0 %v3664
      %6657 = vmatpush.bf16.msra.mxu0 %v3652
      %6658 = vmatpush.bf16.msra.mxu0 %v3640
      %6659 = vmatpush.bf16.msra.mxu0 %v3628
      %6660 = vmatpush.bf16.msra.mxu0 %v3616
      %6661 = vmatpush.bf16.msra.mxu0 %v3604
      %6662 = vmatpush.bf16.msra.mxu0 %v3592
      %6663 = vmatmul.bf16.gmra.mxu0 %v6613
      %v6664 = vpop.f32.mrf.mxu0
      %v6665 = vadd.f32 %v6652, %v6664
      %v6666 = vpop.f32.mrf.mxu0
      %6667 = vdwg.mxu0
      %6668 = vmatpush.bf16.msra.mxu0 %v3772
      %6669 = vmatpush.bf16.msra.mxu0 %v3760
      %6670 = vmatpush.bf16.msra.mxu0 %v3748
      %6671 = vmatpush.bf16.msra.mxu0 %v3736
      %6672 = vmatpush.bf16.msra.mxu0 %v3724
      %6673 = vmatpush.bf16.msra.mxu0 %v3712
      %6674 = vmatpush.bf16.msra.mxu0 %v3700
      %6675 = vmatpush.bf16.msra.mxu0 %v3688
      %6676 = vmatmul.bf16.gmra.mxu0 %v6614
      %v6677 = vpop.f32.mrf.mxu0
      %v6678 = vadd.f32 %v6665, %v6677
      %v6679 = vpop.f32.mrf.mxu0
      %6680 = vdwg.mxu0
      %6681 = vmatpush.bf16.msra.mxu0 %v3868
      %6682 = vmatpush.bf16.msra.mxu0 %v3856
      %6683 = vmatpush.bf16.msra.mxu0 %v3844
      %6684 = vmatpush.bf16.msra.mxu0 %v3832
      %6685 = vmatpush.bf16.msra.mxu0 %v3820
      %6686 = vmatpush.bf16.msra.mxu0 %v3808
      %6687 = vmatpush.bf16.msra.mxu0 %v3796
      %6688 = vmatpush.bf16.msra.mxu0 %v3784
      %6689 = vmatmul.bf16.gmra.mxu0 %v6615
      %v6690 = vpop.f32.mrf.mxu0
      %v6691 = vadd.f32 %v6678, %v6690
      %v6692 = vpop.f32.mrf.mxu0
      %6693 = vdwg.mxu0
      %6694 = vmatpush.bf16.msra.mxu0 %v3389
      %6695 = vmatpush.bf16.msra.mxu0 %v3377
      %6696 = vmatpush.bf16.msra.mxu0 %v3365
      %6697 = vmatpush.bf16.msra.mxu0 %v3353
      %6698 = vmatpush.bf16.msra.mxu0 %v3341
      %6699 = vmatpush.bf16.msra.mxu0 %v3329
      %6700 = vmatpush.bf16.msra.mxu0 %v3317
      %6701 = vmatpush.bf16.msra.mxu0 %v3305
      %6702 = vmatmul.bf16.gmra.mxu0 %v6610
      %v6703 = vpop.f32.mrf.mxu0
      %v6704 = vadd.f32 %v1547, %v6703
      %v6705 = vpop.f32.mrf.mxu0
      %6706 = vdwg.mxu0
      %6707 = vmatpush.bf16.msra.mxu0 %v3485
      %6708 = vmatpush.bf16.msra.mxu0 %v3473
      %6709 = vmatpush.bf16.msra.mxu0 %v3461
      %6710 = vmatpush.bf16.msra.mxu0 %v3449
      %6711 = vmatpush.bf16.msra.mxu0 %v3437
      %6712 = vmatpush.bf16.msra.mxu0 %v3425
      %6713 = vmatpush.bf16.msra.mxu0 %v3413
      %6714 = vmatpush.bf16.msra.mxu0 %v3401
      %6715 = vmatmul.bf16.gmra.mxu0 %v6611
      %v6716 = vpop.f32.mrf.mxu0
      %v6717 = vadd.f32 %v6704, %v6716
      %v6718 = vpop.f32.mrf.mxu0
      %6719 = vdwg.mxu0
      %6720 = vmatpush.bf16.msra.mxu0 %v3581
      %6721 = vmatpush.bf16.msra.mxu0 %v3569
      %6722 = vmatpush.bf16.msra.mxu0 %v3557
      %6723 = vmatpush.bf16.msra.mxu0 %v3545
      %6724 = vmatpush.bf16.msra.mxu0 %v3533
      %6725 = vmatpush.bf16.msra.mxu0 %v3521
      %6726 = vmatpush.bf16.msra.mxu0 %v3509
      %6727 = vmatpush.bf16.msra.mxu0 %v3497
      %6728 = vmatmul.bf16.gmra.mxu0 %v6612
      %v6729 = vpop.f32.mrf.mxu0
      %v6730 = vadd.f32 %v6717, %v6729
      %v6731 = vpop.f32.mrf.mxu0
      %6732 = vdwg.mxu0
      %6733 = vmatpush.bf16.msra.mxu0 %v3677
      %6734 = vmatpush.bf16.msra.mxu0 %v3665
      %6735 = vmatpush.bf16.msra.mxu0 %v3653
      %6736 = vmatpush.bf16.msra.mxu0 %v3641
      %6737 = vmatpush.bf16.msra.mxu0 %v3629
      %6738 = vmatpush.bf16.msra.mxu0 %v3617
      %6739 = vmatpush.bf16.msra.mxu0 %v3605
      %6740 = vmatpush.bf16.msra.mxu0 %v3593
      %6741 = vmatmul.bf16.gmra.mxu0 %v6613
      %v6742 = vpop.f32.mrf.mxu0
      %v6743 = vadd.f32 %v6730, %v6742
      %v6744 = vpop.f32.mrf.mxu0
      %6745 = vdwg.mxu0
      %6746 = vmatpush.bf16.msra.mxu0 %v3773
      %6747 = vmatpush.bf16.msra.mxu0 %v3761
      %6748 = vmatpush.bf16.msra.mxu0 %v3749
      %6749 = vmatpush.bf16.msra.mxu0 %v3737
      %6750 = vmatpush.bf16.msra.mxu0 %v3725
      %6751 = vmatpush.bf16.msra.mxu0 %v3713
      %6752 = vmatpush.bf16.msra.mxu0 %v3701
      %6753 = vmatpush.bf16.msra.mxu0 %v3689
      %6754 = vmatmul.bf16.gmra.mxu0 %v6614
      %v6755 = vpop.f32.mrf.mxu0
      %v6756 = vadd.f32 %v6743, %v6755
      %v6757 = vpop.f32.mrf.mxu0
      %6758 = vdwg.mxu0
      %6759 = vmatpush.bf16.msra.mxu0 %v3869
      %6760 = vmatpush.bf16.msra.mxu0 %v3857
      %6761 = vmatpush.bf16.msra.mxu0 %v3845
      %6762 = vmatpush.bf16.msra.mxu0 %v3833
      %6763 = vmatpush.bf16.msra.mxu0 %v3821
      %6764 = vmatpush.bf16.msra.mxu0 %v3809
      %6765 = vmatpush.bf16.msra.mxu0 %v3797
      %6766 = vmatpush.bf16.msra.mxu0 %v3785
      %6767 = vmatmul.bf16.gmra.mxu0 %v6615
      %v6768 = vpop.f32.mrf.mxu0
      %v6769 = vadd.f32 %v6756, %v6768
      %v6770 = vpop.f32.mrf.mxu0
      %6771 = vdwg.mxu0
      %6772 = vmatpush.bf16.msra.mxu0 %v3390
      %6773 = vmatpush.bf16.msra.mxu0 %v3378
      %6774 = vmatpush.bf16.msra.mxu0 %v3366
      %6775 = vmatpush.bf16.msra.mxu0 %v3354
      %6776 = vmatpush.bf16.msra.mxu0 %v3342
      %6777 = vmatpush.bf16.msra.mxu0 %v3330
      %6778 = vmatpush.bf16.msra.mxu0 %v3318
      %6779 = vmatpush.bf16.msra.mxu0 %v3306
      %6780 = vmatmul.bf16.gmra.mxu0 %v6610
      %v6781 = vpop.f32.mrf.mxu0
      %v6782 = vadd.f32 %v1548, %v6781
      %v6783 = vpop.f32.mrf.mxu0
      %6784 = vdwg.mxu0
      %6785 = vmatpush.bf16.msra.mxu0 %v3486
      %6786 = vmatpush.bf16.msra.mxu0 %v3474
      %6787 = vmatpush.bf16.msra.mxu0 %v3462
      %6788 = vmatpush.bf16.msra.mxu0 %v3450
      %6789 = vmatpush.bf16.msra.mxu0 %v3438
      %6790 = vmatpush.bf16.msra.mxu0 %v3426
      %6791 = vmatpush.bf16.msra.mxu0 %v3414
      %6792 = vmatpush.bf16.msra.mxu0 %v3402
      %6793 = vmatmul.bf16.gmra.mxu0 %v6611
      %v6794 = vpop.f32.mrf.mxu0
      %v6795 = vadd.f32 %v6782, %v6794
      %v6796 = vpop.f32.mrf.mxu0
      %6797 = vdwg.mxu0
      %6798 = vmatpush.bf16.msra.mxu0 %v3582
      %6799 = vmatpush.bf16.msra.mxu0 %v3570
      %6800 = vmatpush.bf16.msra.mxu0 %v3558
      %6801 = vmatpush.bf16.msra.mxu0 %v3546
      %6802 = vmatpush.bf16.msra.mxu0 %v3534
      %6803 = vmatpush.bf16.msra.mxu0 %v3522
      %6804 = vmatpush.bf16.msra.mxu0 %v3510
      %6805 = vmatpush.bf16.msra.mxu0 %v3498
      %6806 = vmatmul.bf16.gmra.mxu0 %v6612
      %v6807 = vpop.f32.mrf.mxu0
      %v6808 = vadd.f32 %v6795, %v6807
      %v6809 = vpop.f32.mrf.mxu0
      %6810 = vdwg.mxu0
      %6811 = vmatpush.bf16.msra.mxu0 %v3678
      %6812 = vmatpush.bf16.msra.mxu0 %v3666
      %6813 = vmatpush.bf16.msra.mxu0 %v3654
      %6814 = vmatpush.bf16.msra.mxu0 %v3642
      %6815 = vmatpush.bf16.msra.mxu0 %v3630
      %6816 = vmatpush.bf16.msra.mxu0 %v3618
      %6817 = vmatpush.bf16.msra.mxu0 %v3606
      %6818 = vmatpush.bf16.msra.mxu0 %v3594
      %6819 = vmatmul.bf16.gmra.mxu0 %v6613
      %v6820 = vpop.f32.mrf.mxu0
      %v6821 = vadd.f32 %v6808, %v6820
      %v6822 = vpop.f32.mrf.mxu0
      %6823 = vdwg.mxu0
      %6824 = vmatpush.bf16.msra.mxu0 %v3774
      %6825 = vmatpush.bf16.msra.mxu0 %v3762
      %6826 = vmatpush.bf16.msra.mxu0 %v3750
      %6827 = vmatpush.bf16.msra.mxu0 %v3738
      %6828 = vmatpush.bf16.msra.mxu0 %v3726
      %6829 = vmatpush.bf16.msra.mxu0 %v3714
      %6830 = vmatpush.bf16.msra.mxu0 %v3702
      %6831 = vmatpush.bf16.msra.mxu0 %v3690
      %6832 = vmatmul.bf16.gmra.mxu0 %v6614
      %v6833 = vpop.f32.mrf.mxu0
      %v6834 = vadd.f32 %v6821, %v6833
      %v6835 = vpop.f32.mrf.mxu0
      %6836 = vdwg.mxu0
      %6837 = vmatpush.bf16.msra.mxu0 %v3870
      %6838 = vmatpush.bf16.msra.mxu0 %v3858
      %6839 = vmatpush.bf16.msra.mxu0 %v3846
      %6840 = vmatpush.bf16.msra.mxu0 %v3834
      %6841 = vmatpush.bf16.msra.mxu0 %v3822
      %6842 = vmatpush.bf16.msra.mxu0 %v3810
      %6843 = vmatpush.bf16.msra.mxu0 %v3798
      %6844 = vmatpush.bf16.msra.mxu0 %v3786
      %6845 = vmatmul.bf16.gmra.mxu0 %v6615
      %v6846 = vpop.f32.mrf.mxu0
      %v6847 = vadd.f32 %v6834, %v6846
      %v6848 = vpop.f32.mrf.mxu0
      %6849 = vdwg.mxu0
      %6850 = vmatpush.bf16.msra.mxu0 %v3391
      %6851 = vmatpush.bf16.msra.mxu0 %v3379
      %6852 = vmatpush.bf16.msra.mxu0 %v3367
      %6853 = vmatpush.bf16.msra.mxu0 %v3355
      %6854 = vmatpush.bf16.msra.mxu0 %v3343
      %6855 = vmatpush.bf16.msra.mxu0 %v3331
      %6856 = vmatpush.bf16.msra.mxu0 %v3319
      %6857 = vmatpush.bf16.msra.mxu0 %v3307
      %6858 = vmatmul.bf16.gmra.mxu0 %v6610
      %v6859 = vpop.f32.mrf.mxu0
      %v6860 = vadd.f32 %v1549, %v6859
      %v6861 = vpop.f32.mrf.mxu0
      %6862 = vdwg.mxu0
      %6863 = vmatpush.bf16.msra.mxu0 %v3487
      %6864 = vmatpush.bf16.msra.mxu0 %v3475
      %6865 = vmatpush.bf16.msra.mxu0 %v3463
      %6866 = vmatpush.bf16.msra.mxu0 %v3451
      %6867 = vmatpush.bf16.msra.mxu0 %v3439
      %6868 = vmatpush.bf16.msra.mxu0 %v3427
      %6869 = vmatpush.bf16.msra.mxu0 %v3415
      %6870 = vmatpush.bf16.msra.mxu0 %v3403
      %6871 = vmatmul.bf16.gmra.mxu0 %v6611
      %v6872 = vpop.f32.mrf.mxu0
      %v6873 = vadd.f32 %v6860, %v6872
      %v6874 = vpop.f32.mrf.mxu0
      %6875 = vdwg.mxu0
      %6876 = vmatpush.bf16.msra.mxu0 %v3583
      %6877 = vmatpush.bf16.msra.mxu0 %v3571
      %6878 = vmatpush.bf16.msra.mxu0 %v3559
      %6879 = vmatpush.bf16.msra.mxu0 %v3547
      %6880 = vmatpush.bf16.msra.mxu0 %v3535
      %6881 = vmatpush.bf16.msra.mxu0 %v3523
      %6882 = vmatpush.bf16.msra.mxu0 %v3511
      %6883 = vmatpush.bf16.msra.mxu0 %v3499
      %6884 = vmatmul.bf16.gmra.mxu0 %v6612
      %v6885 = vpop.f32.mrf.mxu0
      %v6886 = vadd.f32 %v6873, %v6885
      %v6887 = vpop.f32.mrf.mxu0
      %6888 = vdwg.mxu0
      %6889 = vmatpush.bf16.msra.mxu0 %v3679
      %6890 = vmatpush.bf16.msra.mxu0 %v3667
      %6891 = vmatpush.bf16.msra.mxu0 %v3655
      %6892 = vmatpush.bf16.msra.mxu0 %v3643
      %6893 = vmatpush.bf16.msra.mxu0 %v3631
      %6894 = vmatpush.bf16.msra.mxu0 %v3619
      %6895 = vmatpush.bf16.msra.mxu0 %v3607
      %6896 = vmatpush.bf16.msra.mxu0 %v3595
      %6897 = vmatmul.bf16.gmra.mxu0 %v6613
      %v6898 = vpop.f32.mrf.mxu0
      %v6899 = vadd.f32 %v6886, %v6898
      %v6900 = vpop.f32.mrf.mxu0
      %6901 = vdwg.mxu0
      %6902 = vmatpush.bf16.msra.mxu0 %v3775
      %6903 = vmatpush.bf16.msra.mxu0 %v3763
      %6904 = vmatpush.bf16.msra.mxu0 %v3751
      %6905 = vmatpush.bf16.msra.mxu0 %v3739
      %6906 = vmatpush.bf16.msra.mxu0 %v3727
      %6907 = vmatpush.bf16.msra.mxu0 %v3715
      %6908 = vmatpush.bf16.msra.mxu0 %v3703
      %6909 = vmatpush.bf16.msra.mxu0 %v3691
      %6910 = vmatmul.bf16.gmra.mxu0 %v6614
      %v6911 = vpop.f32.mrf.mxu0
      %v6912 = vadd.f32 %v6899, %v6911
      %v6913 = vpop.f32.mrf.mxu0
      %6914 = vdwg.mxu0
      %6915 = vmatpush.bf16.msra.mxu0 %v3871
      %6916 = vmatpush.bf16.msra.mxu0 %v3859
      %6917 = vmatpush.bf16.msra.mxu0 %v3847
      %6918 = vmatpush.bf16.msra.mxu0 %v3835
      %6919 = vmatpush.bf16.msra.mxu0 %v3823
      %6920 = vmatpush.bf16.msra.mxu0 %v3811
      %6921 = vmatpush.bf16.msra.mxu0 %v3799
      %6922 = vmatpush.bf16.msra.mxu0 %v3787
      %6923 = vmatmul.bf16.gmra.mxu0 %v6615
      %v6924 = vpop.f32.mrf.mxu0
      %v6925 = vadd.f32 %v6912, %v6924
      %v6926 = vpop.f32.mrf.mxu0
      %6927 = vdwg.mxu0
      %6928 = vmatpush.bf16.msra.mxu0 %v3392
      %6929 = vmatpush.bf16.msra.mxu0 %v3380
      %6930 = vmatpush.bf16.msra.mxu0 %v3368
      %6931 = vmatpush.bf16.msra.mxu0 %v3356
      %6932 = vmatpush.bf16.msra.mxu0 %v3344
      %6933 = vmatpush.bf16.msra.mxu0 %v3332
      %6934 = vmatpush.bf16.msra.mxu0 %v3320
      %6935 = vmatpush.bf16.msra.mxu0 %v3308
      %6936 = vmatmul.bf16.gmra.mxu0 %v6610
      %v6937 = vpop.f32.mrf.mxu0
      %v6938 = vadd.f32 %v1550, %v6937
      %v6939 = vpop.f32.mrf.mxu0
      %6940 = vdwg.mxu0
      %6941 = vmatpush.bf16.msra.mxu0 %v3488
      %6942 = vmatpush.bf16.msra.mxu0 %v3476
      %6943 = vmatpush.bf16.msra.mxu0 %v3464
      %6944 = vmatpush.bf16.msra.mxu0 %v3452
      %6945 = vmatpush.bf16.msra.mxu0 %v3440
      %6946 = vmatpush.bf16.msra.mxu0 %v3428
      %6947 = vmatpush.bf16.msra.mxu0 %v3416
      %6948 = vmatpush.bf16.msra.mxu0 %v3404
      %6949 = vmatmul.bf16.gmra.mxu0 %v6611
      %v6950 = vpop.f32.mrf.mxu0
      %v6951 = vadd.f32 %v6938, %v6950
      %v6952 = vpop.f32.mrf.mxu0
      %6953 = vdwg.mxu0
      %6954 = vmatpush.bf16.msra.mxu0 %v3584
      %6955 = vmatpush.bf16.msra.mxu0 %v3572
      %6956 = vmatpush.bf16.msra.mxu0 %v3560
      %6957 = vmatpush.bf16.msra.mxu0 %v3548
      %6958 = vmatpush.bf16.msra.mxu0 %v3536
      %6959 = vmatpush.bf16.msra.mxu0 %v3524
      %6960 = vmatpush.bf16.msra.mxu0 %v3512
      %6961 = vmatpush.bf16.msra.mxu0 %v3500
      %6962 = vmatmul.bf16.gmra.mxu0 %v6612
      %v6963 = vpop.f32.mrf.mxu0
      %v6964 = vadd.f32 %v6951, %v6963
      %v6965 = vpop.f32.mrf.mxu0
      %6966 = vdwg.mxu0
      %6967 = vmatpush.bf16.msra.mxu0 %v3680
      %6968 = vmatpush.bf16.msra.mxu0 %v3668
      %6969 = vmatpush.bf16.msra.mxu0 %v3656
      %6970 = vmatpush.bf16.msra.mxu0 %v3644
      %6971 = vmatpush.bf16.msra.mxu0 %v3632
      %6972 = vmatpush.bf16.msra.mxu0 %v3620
      %6973 = vmatpush.bf16.msra.mxu0 %v3608
      %6974 = vmatpush.bf16.msra.mxu0 %v3596
      %6975 = vmatmul.bf16.gmra.mxu0 %v6613
      %v6976 = vpop.f32.mrf.mxu0
      %v6977 = vadd.f32 %v6964, %v6976
      %v6978 = vpop.f32.mrf.mxu0
      %6979 = vdwg.mxu0
      %6980 = vmatpush.bf16.msra.mxu0 %v3776
      %6981 = vmatpush.bf16.msra.mxu0 %v3764
      %6982 = vmatpush.bf16.msra.mxu0 %v3752
      %6983 = vmatpush.bf16.msra.mxu0 %v3740
      %6984 = vmatpush.bf16.msra.mxu0 %v3728
      %6985 = vmatpush.bf16.msra.mxu0 %v3716
      %6986 = vmatpush.bf16.msra.mxu0 %v3704
      %6987 = vmatpush.bf16.msra.mxu0 %v3692
      %6988 = vmatmul.bf16.gmra.mxu0 %v6614
      %v6989 = vpop.f32.mrf.mxu0
      %v6990 = vadd.f32 %v6977, %v6989
      %v6991 = vpop.f32.mrf.mxu0
      %6992 = vdwg.mxu0
      %6993 = vmatpush.bf16.msra.mxu0 %v3872
      %6994 = vmatpush.bf16.msra.mxu0 %v3860
      %6995 = vmatpush.bf16.msra.mxu0 %v3848
      %6996 = vmatpush.bf16.msra.mxu0 %v3836
      %6997 = vmatpush.bf16.msra.mxu0 %v3824
      %6998 = vmatpush.bf16.msra.mxu0 %v3812
      %6999 = vmatpush.bf16.msra.mxu0 %v3800
      %7000 = vmatpush.bf16.msra.mxu0 %v3788
      %7001 = vmatmul.bf16.gmra.mxu0 %v6615
      %v7002 = vpop.f32.mrf.mxu0
      %v7003 = vadd.f32 %v6990, %v7002
      %v7004 = vpop.f32.mrf.mxu0
      %7005 = vdwg.mxu0
      %7006 = vmatpush.bf16.msra.mxu0 %v3393
      %7007 = vmatpush.bf16.msra.mxu0 %v3381
      %7008 = vmatpush.bf16.msra.mxu0 %v3369
      %7009 = vmatpush.bf16.msra.mxu0 %v3357
      %7010 = vmatpush.bf16.msra.mxu0 %v3345
      %7011 = vmatpush.bf16.msra.mxu0 %v3333
      %7012 = vmatpush.bf16.msra.mxu0 %v3321
      %7013 = vmatpush.bf16.msra.mxu0 %v3309
      %7014 = vmatmul.bf16.gmra.mxu0 %v6610
      %v7015 = vpop.f32.mrf.mxu0
      %v7016 = vadd.f32 %v1551, %v7015
      %v7017 = vpop.f32.mrf.mxu0
      %7018 = vdwg.mxu0
      %7019 = vmatpush.bf16.msra.mxu0 %v3489
      %7020 = vmatpush.bf16.msra.mxu0 %v3477
      %7021 = vmatpush.bf16.msra.mxu0 %v3465
      %7022 = vmatpush.bf16.msra.mxu0 %v3453
      %7023 = vmatpush.bf16.msra.mxu0 %v3441
      %7024 = vmatpush.bf16.msra.mxu0 %v3429
      %7025 = vmatpush.bf16.msra.mxu0 %v3417
      %7026 = vmatpush.bf16.msra.mxu0 %v3405
      %7027 = vmatmul.bf16.gmra.mxu0 %v6611
      %v7028 = vpop.f32.mrf.mxu0
      %v7029 = vadd.f32 %v7016, %v7028
      %v7030 = vpop.f32.mrf.mxu0
      %7031 = vdwg.mxu0
      %7032 = vmatpush.bf16.msra.mxu0 %v3585
      %7033 = vmatpush.bf16.msra.mxu0 %v3573
      %7034 = vmatpush.bf16.msra.mxu0 %v3561
      %7035 = vmatpush.bf16.msra.mxu0 %v3549
      %7036 = vmatpush.bf16.msra.mxu0 %v3537
      %7037 = vmatpush.bf16.msra.mxu0 %v3525
      %7038 = vmatpush.bf16.msra.mxu0 %v3513
      %7039 = vmatpush.bf16.msra.mxu0 %v3501
      %7040 = vmatmul.bf16.gmra.mxu0 %v6612
      %v7041 = vpop.f32.mrf.mxu0
      %v7042 = vadd.f32 %v7029, %v7041
      %v7043 = vpop.f32.mrf.mxu0
      %7044 = vdwg.mxu0
      %7045 = vmatpush.bf16.msra.mxu0 %v3681
      %7046 = vmatpush.bf16.msra.mxu0 %v3669
      %7047 = vmatpush.bf16.msra.mxu0 %v3657
      %7048 = vmatpush.bf16.msra.mxu0 %v3645
      %7049 = vmatpush.bf16.msra.mxu0 %v3633
      %7050 = vmatpush.bf16.msra.mxu0 %v3621
      %7051 = vmatpush.bf16.msra.mxu0 %v3609
      %7052 = vmatpush.bf16.msra.mxu0 %v3597
      %7053 = vmatmul.bf16.gmra.mxu0 %v6613
      %v7054 = vpop.f32.mrf.mxu0
      %v7055 = vadd.f32 %v7042, %v7054
      %v7056 = vpop.f32.mrf.mxu0
      %7057 = vdwg.mxu0
      %7058 = vmatpush.bf16.msra.mxu0 %v3777
      %7059 = vmatpush.bf16.msra.mxu0 %v3765
      %7060 = vmatpush.bf16.msra.mxu0 %v3753
      %7061 = vmatpush.bf16.msra.mxu0 %v3741
      %7062 = vmatpush.bf16.msra.mxu0 %v3729
      %7063 = vmatpush.bf16.msra.mxu0 %v3717
      %7064 = vmatpush.bf16.msra.mxu0 %v3705
      %7065 = vmatpush.bf16.msra.mxu0 %v3693
      %7066 = vmatmul.bf16.gmra.mxu0 %v6614
      %v7067 = vpop.f32.mrf.mxu0
      %v7068 = vadd.f32 %v7055, %v7067
      %v7069 = vpop.f32.mrf.mxu0
      %7070 = vdwg.mxu0
      %7071 = vmatpush.bf16.msra.mxu0 %v3873
      %7072 = vmatpush.bf16.msra.mxu0 %v3861
      %7073 = vmatpush.bf16.msra.mxu0 %v3849
      %7074 = vmatpush.bf16.msra.mxu0 %v3837
      %7075 = vmatpush.bf16.msra.mxu0 %v3825
      %7076 = vmatpush.bf16.msra.mxu0 %v3813
      %7077 = vmatpush.bf16.msra.mxu0 %v3801
      %7078 = vmatpush.bf16.msra.mxu0 %v3789
      %7079 = vmatmul.bf16.gmra.mxu0 %v6615
      %v7080 = vpop.f32.mrf.mxu0
      %v7081 = vadd.f32 %v7068, %v7080
      %v7082 = vpop.f32.mrf.mxu0
      %7083 = vdwg.mxu0
      %7084 = vmatpush.bf16.msra.mxu0 %v3394
      %7085 = vmatpush.bf16.msra.mxu0 %v3382
      %7086 = vmatpush.bf16.msra.mxu0 %v3370
      %7087 = vmatpush.bf16.msra.mxu0 %v3358
      %7088 = vmatpush.bf16.msra.mxu0 %v3346
      %7089 = vmatpush.bf16.msra.mxu0 %v3334
      %7090 = vmatpush.bf16.msra.mxu0 %v3322
      %7091 = vmatpush.bf16.msra.mxu0 %v3310
      %7092 = vmatmul.bf16.gmra.mxu0 %v6610
      %v7093 = vpop.f32.mrf.mxu0
      %v7094 = vadd.f32 %v1552, %v7093
      %v7095 = vpop.f32.mrf.mxu0
      %7096 = vdwg.mxu0
      %7097 = vmatpush.bf16.msra.mxu0 %v3490
      %7098 = vmatpush.bf16.msra.mxu0 %v3478
      %7099 = vmatpush.bf16.msra.mxu0 %v3466
      %7100 = vmatpush.bf16.msra.mxu0 %v3454
      %7101 = vmatpush.bf16.msra.mxu0 %v3442
      %7102 = vmatpush.bf16.msra.mxu0 %v3430
      %7103 = vmatpush.bf16.msra.mxu0 %v3418
      %7104 = vmatpush.bf16.msra.mxu0 %v3406
      %7105 = vmatmul.bf16.gmra.mxu0 %v6611
      %v7106 = vpop.f32.mrf.mxu0
      %v7107 = vadd.f32 %v7094, %v7106
      %v7108 = vpop.f32.mrf.mxu0
      %7109 = vdwg.mxu0
      %7110 = vmatpush.bf16.msra.mxu0 %v3586
      %7111 = vmatpush.bf16.msra.mxu0 %v3574
      %7112 = vmatpush.bf16.msra.mxu0 %v3562
      %7113 = vmatpush.bf16.msra.mxu0 %v3550
      %7114 = vmatpush.bf16.msra.mxu0 %v3538
      %7115 = vmatpush.bf16.msra.mxu0 %v3526
      %7116 = vmatpush.bf16.msra.mxu0 %v3514
      %7117 = vmatpush.bf16.msra.mxu0 %v3502
      %7118 = vmatmul.bf16.gmra.mxu0 %v6612
      %v7119 = vpop.f32.mrf.mxu0
      %v7120 = vadd.f32 %v7107, %v7119
      %v7121 = vpop.f32.mrf.mxu0
      %7122 = vdwg.mxu0
      %7123 = vmatpush.bf16.msra.mxu0 %v3682
      %7124 = vmatpush.bf16.msra.mxu0 %v3670
      %7125 = vmatpush.bf16.msra.mxu0 %v3658
      %7126 = vmatpush.bf16.msra.mxu0 %v3646
      %7127 = vmatpush.bf16.msra.mxu0 %v3634
      %7128 = vmatpush.bf16.msra.mxu0 %v3622
      %7129 = vmatpush.bf16.msra.mxu0 %v3610
      %7130 = vmatpush.bf16.msra.mxu0 %v3598
      %7131 = vmatmul.bf16.gmra.mxu0 %v6613
      %v7132 = vpop.f32.mrf.mxu0
      %v7133 = vadd.f32 %v7120, %v7132
      %v7134 = vpop.f32.mrf.mxu0
      %7135 = vdwg.mxu0
      %7136 = vmatpush.bf16.msra.mxu0 %v3778
      %7137 = vmatpush.bf16.msra.mxu0 %v3766
      %7138 = vmatpush.bf16.msra.mxu0 %v3754
      %7139 = vmatpush.bf16.msra.mxu0 %v3742
      %7140 = vmatpush.bf16.msra.mxu0 %v3730
      %7141 = vmatpush.bf16.msra.mxu0 %v3718
      %7142 = vmatpush.bf16.msra.mxu0 %v3706
      %7143 = vmatpush.bf16.msra.mxu0 %v3694
      %7144 = vmatmul.bf16.gmra.mxu0 %v6614
      %v7145 = vpop.f32.mrf.mxu0
      %v7146 = vadd.f32 %v7133, %v7145
      %v7147 = vpop.f32.mrf.mxu0
      %7148 = vdwg.mxu0
      %7149 = vmatpush.bf16.msra.mxu0 %v3874
      %7150 = vmatpush.bf16.msra.mxu0 %v3862
      %7151 = vmatpush.bf16.msra.mxu0 %v3850
      %7152 = vmatpush.bf16.msra.mxu0 %v3838
      %7153 = vmatpush.bf16.msra.mxu0 %v3826
      %7154 = vmatpush.bf16.msra.mxu0 %v3814
      %7155 = vmatpush.bf16.msra.mxu0 %v3802
      %7156 = vmatpush.bf16.msra.mxu0 %v3790
      %7157 = vmatmul.bf16.gmra.mxu0 %v6615
      %v7158 = vpop.f32.mrf.mxu0
      %v7159 = vadd.f32 %v7146, %v7158
      %v7160 = vpop.f32.mrf.mxu0
      %7161 = vdwg.mxu0
      %7162 = vmatpush.bf16.msra.mxu0 %v3395
      %7163 = vmatpush.bf16.msra.mxu0 %v3383
      %7164 = vmatpush.bf16.msra.mxu0 %v3371
      %7165 = vmatpush.bf16.msra.mxu0 %v3359
      %7166 = vmatpush.bf16.msra.mxu0 %v3347
      %7167 = vmatpush.bf16.msra.mxu0 %v3335
      %7168 = vmatpush.bf16.msra.mxu0 %v3323
      %7169 = vmatpush.bf16.msra.mxu0 %v3311
      %7170 = vmatmul.bf16.gmra.mxu0 %v6610
      %v7171 = vpop.f32.mrf.mxu0
      %v7172 = vadd.f32 %v1553, %v7171
      %v7173 = vpop.f32.mrf.mxu0
      %7174 = vdwg.mxu0
      %7175 = vmatpush.bf16.msra.mxu0 %v3491
      %7176 = vmatpush.bf16.msra.mxu0 %v3479
      %7177 = vmatpush.bf16.msra.mxu0 %v3467
      %7178 = vmatpush.bf16.msra.mxu0 %v3455
      %7179 = vmatpush.bf16.msra.mxu0 %v3443
      %7180 = vmatpush.bf16.msra.mxu0 %v3431
      %7181 = vmatpush.bf16.msra.mxu0 %v3419
      %7182 = vmatpush.bf16.msra.mxu0 %v3407
      %7183 = vmatmul.bf16.gmra.mxu0 %v6611
      %v7184 = vpop.f32.mrf.mxu0
      %v7185 = vadd.f32 %v7172, %v7184
      %v7186 = vpop.f32.mrf.mxu0
      %7187 = vdwg.mxu0
      %7188 = vmatpush.bf16.msra.mxu0 %v3587
      %7189 = vmatpush.bf16.msra.mxu0 %v3575
      %7190 = vmatpush.bf16.msra.mxu0 %v3563
      %7191 = vmatpush.bf16.msra.mxu0 %v3551
      %7192 = vmatpush.bf16.msra.mxu0 %v3539
      %7193 = vmatpush.bf16.msra.mxu0 %v3527
      %7194 = vmatpush.bf16.msra.mxu0 %v3515
      %7195 = vmatpush.bf16.msra.mxu0 %v3503
      %7196 = vmatmul.bf16.gmra.mxu0 %v6612
      %v7197 = vpop.f32.mrf.mxu0
      %v7198 = vadd.f32 %v7185, %v7197
      %v7199 = vpop.f32.mrf.mxu0
      %7200 = vdwg.mxu0
      %7201 = vmatpush.bf16.msra.mxu0 %v3683
      %7202 = vmatpush.bf16.msra.mxu0 %v3671
      %7203 = vmatpush.bf16.msra.mxu0 %v3659
      %7204 = vmatpush.bf16.msra.mxu0 %v3647
      %7205 = vmatpush.bf16.msra.mxu0 %v3635
      %7206 = vmatpush.bf16.msra.mxu0 %v3623
      %7207 = vmatpush.bf16.msra.mxu0 %v3611
      %7208 = vmatpush.bf16.msra.mxu0 %v3599
      %7209 = vmatmul.bf16.gmra.mxu0 %v6613
      %v7210 = vpop.f32.mrf.mxu0
      %v7211 = vadd.f32 %v7198, %v7210
      %v7212 = vpop.f32.mrf.mxu0
      %7213 = vdwg.mxu0
      %7214 = vmatpush.bf16.msra.mxu0 %v3779
      %7215 = vmatpush.bf16.msra.mxu0 %v3767
      %7216 = vmatpush.bf16.msra.mxu0 %v3755
      %7217 = vmatpush.bf16.msra.mxu0 %v3743
      %7218 = vmatpush.bf16.msra.mxu0 %v3731
      %7219 = vmatpush.bf16.msra.mxu0 %v3719
      %7220 = vmatpush.bf16.msra.mxu0 %v3707
      %7221 = vmatpush.bf16.msra.mxu0 %v3695
      %7222 = vmatmul.bf16.gmra.mxu0 %v6614
      %v7223 = vpop.f32.mrf.mxu0
      %v7224 = vadd.f32 %v7211, %v7223
      %v7225 = vpop.f32.mrf.mxu0
      %7226 = vdwg.mxu0
      %7227 = vmatpush.bf16.msra.mxu0 %v3875
      %7228 = vmatpush.bf16.msra.mxu0 %v3863
      %7229 = vmatpush.bf16.msra.mxu0 %v3851
      %7230 = vmatpush.bf16.msra.mxu0 %v3839
      %7231 = vmatpush.bf16.msra.mxu0 %v3827
      %7232 = vmatpush.bf16.msra.mxu0 %v3815
      %7233 = vmatpush.bf16.msra.mxu0 %v3803
      %7234 = vmatpush.bf16.msra.mxu0 %v3791
      %7235 = vmatmul.bf16.gmra.mxu0 %v6615
      %v7236 = vpop.f32.mrf.mxu0
      %v7237 = vadd.f32 %v7224, %v7236
      %v7238 = vpop.f32.mrf.mxu0
      %7239 = vdwg.mxu0
      %7240 = vmatpush.bf16.msra.mxu0 %v3396
      %7241 = vmatpush.bf16.msra.mxu0 %v3384
      %7242 = vmatpush.bf16.msra.mxu0 %v3372
      %7243 = vmatpush.bf16.msra.mxu0 %v3360
      %7244 = vmatpush.bf16.msra.mxu0 %v3348
      %7245 = vmatpush.bf16.msra.mxu0 %v3336
      %7246 = vmatpush.bf16.msra.mxu0 %v3324
      %7247 = vmatpush.bf16.msra.mxu0 %v3312
      %7248 = vmatmul.bf16.gmra.mxu0 %v6610
      %v7249 = vpop.f32.mrf.mxu0
      %v7250 = vadd.f32 %v1554, %v7249
      %v7251 = vpop.f32.mrf.mxu0
      %7252 = vdwg.mxu0
      %7253 = vmatpush.bf16.msra.mxu0 %v3492
      %7254 = vmatpush.bf16.msra.mxu0 %v3480
      %7255 = vmatpush.bf16.msra.mxu0 %v3468
      %7256 = vmatpush.bf16.msra.mxu0 %v3456
      %7257 = vmatpush.bf16.msra.mxu0 %v3444
      %7258 = vmatpush.bf16.msra.mxu0 %v3432
      %7259 = vmatpush.bf16.msra.mxu0 %v3420
      %7260 = vmatpush.bf16.msra.mxu0 %v3408
      %7261 = vmatmul.bf16.gmra.mxu0 %v6611
      %v7262 = vpop.f32.mrf.mxu0
      %v7263 = vadd.f32 %v7250, %v7262
      %v7264 = vpop.f32.mrf.mxu0
      %7265 = vdwg.mxu0
      %7266 = vmatpush.bf16.msra.mxu0 %v3588
      %7267 = vmatpush.bf16.msra.mxu0 %v3576
      %7268 = vmatpush.bf16.msra.mxu0 %v3564
      %7269 = vmatpush.bf16.msra.mxu0 %v3552
      %7270 = vmatpush.bf16.msra.mxu0 %v3540
      %7271 = vmatpush.bf16.msra.mxu0 %v3528
      %7272 = vmatpush.bf16.msra.mxu0 %v3516
      %7273 = vmatpush.bf16.msra.mxu0 %v3504
      %7274 = vmatmul.bf16.gmra.mxu0 %v6612
      %v7275 = vpop.f32.mrf.mxu0
      %v7276 = vadd.f32 %v7263, %v7275
      %v7277 = vpop.f32.mrf.mxu0
      %7278 = vdwg.mxu0
      %7279 = vmatpush.bf16.msra.mxu0 %v3684
      %7280 = vmatpush.bf16.msra.mxu0 %v3672
      %7281 = vmatpush.bf16.msra.mxu0 %v3660
      %7282 = vmatpush.bf16.msra.mxu0 %v3648
      %7283 = vmatpush.bf16.msra.mxu0 %v3636
      %7284 = vmatpush.bf16.msra.mxu0 %v3624
      %7285 = vmatpush.bf16.msra.mxu0 %v3612
      %7286 = vmatpush.bf16.msra.mxu0 %v3600
      %7287 = vmatmul.bf16.gmra.mxu0 %v6613
      %v7288 = vpop.f32.mrf.mxu0
      %v7289 = vadd.f32 %v7276, %v7288
      %v7290 = vpop.f32.mrf.mxu0
      %7291 = vdwg.mxu0
      %7292 = vmatpush.bf16.msra.mxu0 %v3780
      %7293 = vmatpush.bf16.msra.mxu0 %v3768
      %7294 = vmatpush.bf16.msra.mxu0 %v3756
      %7295 = vmatpush.bf16.msra.mxu0 %v3744
      %7296 = vmatpush.bf16.msra.mxu0 %v3732
      %7297 = vmatpush.bf16.msra.mxu0 %v3720
      %7298 = vmatpush.bf16.msra.mxu0 %v3708
      %7299 = vmatpush.bf16.msra.mxu0 %v3696
      %7300 = vmatmul.bf16.gmra.mxu0 %v6614
      %v7301 = vpop.f32.mrf.mxu0
      %v7302 = vadd.f32 %v7289, %v7301
      %v7303 = vpop.f32.mrf.mxu0
      %7304 = vdwg.mxu0
      %7305 = vmatpush.bf16.msra.mxu0 %v3876
      %7306 = vmatpush.bf16.msra.mxu0 %v3864
      %7307 = vmatpush.bf16.msra.mxu0 %v3852
      %7308 = vmatpush.bf16.msra.mxu0 %v3840
      %7309 = vmatpush.bf16.msra.mxu0 %v3828
      %7310 = vmatpush.bf16.msra.mxu0 %v3816
      %7311 = vmatpush.bf16.msra.mxu0 %v3804
      %7312 = vmatpush.bf16.msra.mxu0 %v3792
      %7313 = vmatmul.bf16.gmra.mxu0 %v6615
      %v7314 = vpop.f32.mrf.mxu0
      %v7315 = vadd.f32 %v7302, %v7314
      %v7316 = vpop.f32.mrf.mxu0
      %7317 = vdwg.mxu0
      %7318 = vmatpush.bf16.msra.mxu0 %v3397
      %7319 = vmatpush.bf16.msra.mxu0 %v3385
      %7320 = vmatpush.bf16.msra.mxu0 %v3373
      %7321 = vmatpush.bf16.msra.mxu0 %v3361
      %7322 = vmatpush.bf16.msra.mxu0 %v3349
      %7323 = vmatpush.bf16.msra.mxu0 %v3337
      %7324 = vmatpush.bf16.msra.mxu0 %v3325
      %7325 = vmatpush.bf16.msra.mxu0 %v3313
      %7326 = vmatmul.bf16.gmra.mxu0 %v6610
      %v7327 = vpop.f32.mrf.mxu0
      %v7328 = vadd.f32 %v1555, %v7327
      %v7329 = vpop.f32.mrf.mxu0
      %7330 = vdwg.mxu0
      %7331 = vmatpush.bf16.msra.mxu0 %v3493
      %7332 = vmatpush.bf16.msra.mxu0 %v3481
      %7333 = vmatpush.bf16.msra.mxu0 %v3469
      %7334 = vmatpush.bf16.msra.mxu0 %v3457
      %7335 = vmatpush.bf16.msra.mxu0 %v3445
      %7336 = vmatpush.bf16.msra.mxu0 %v3433
      %7337 = vmatpush.bf16.msra.mxu0 %v3421
      %7338 = vmatpush.bf16.msra.mxu0 %v3409
      %7339 = vmatmul.bf16.gmra.mxu0 %v6611
      %v7340 = vpop.f32.mrf.mxu0
      %v7341 = vadd.f32 %v7328, %v7340
      %v7342 = vpop.f32.mrf.mxu0
      %7343 = vdwg.mxu0
      %7344 = vmatpush.bf16.msra.mxu0 %v3589
      %7345 = vmatpush.bf16.msra.mxu0 %v3577
      %7346 = vmatpush.bf16.msra.mxu0 %v3565
      %7347 = vmatpush.bf16.msra.mxu0 %v3553
      %7348 = vmatpush.bf16.msra.mxu0 %v3541
      %7349 = vmatpush.bf16.msra.mxu0 %v3529
      %7350 = vmatpush.bf16.msra.mxu0 %v3517
      %7351 = vmatpush.bf16.msra.mxu0 %v3505
      %7352 = vmatmul.bf16.gmra.mxu0 %v6612
      %v7353 = vpop.f32.mrf.mxu0
      %v7354 = vadd.f32 %v7341, %v7353
      %v7355 = vpop.f32.mrf.mxu0
      %7356 = vdwg.mxu0
      %7357 = vmatpush.bf16.msra.mxu0 %v3685
      %7358 = vmatpush.bf16.msra.mxu0 %v3673
      %7359 = vmatpush.bf16.msra.mxu0 %v3661
      %7360 = vmatpush.bf16.msra.mxu0 %v3649
      %7361 = vmatpush.bf16.msra.mxu0 %v3637
      %7362 = vmatpush.bf16.msra.mxu0 %v3625
      %7363 = vmatpush.bf16.msra.mxu0 %v3613
      %7364 = vmatpush.bf16.msra.mxu0 %v3601
      %7365 = vmatmul.bf16.gmra.mxu0 %v6613
      %v7366 = vpop.f32.mrf.mxu0
      %v7367 = vadd.f32 %v7354, %v7366
      %v7368 = vpop.f32.mrf.mxu0
      %7369 = vdwg.mxu0
      %7370 = vmatpush.bf16.msra.mxu0 %v3781
      %7371 = vmatpush.bf16.msra.mxu0 %v3769
      %7372 = vmatpush.bf16.msra.mxu0 %v3757
      %7373 = vmatpush.bf16.msra.mxu0 %v3745
      %7374 = vmatpush.bf16.msra.mxu0 %v3733
      %7375 = vmatpush.bf16.msra.mxu0 %v3721
      %7376 = vmatpush.bf16.msra.mxu0 %v3709
      %7377 = vmatpush.bf16.msra.mxu0 %v3697
      %7378 = vmatmul.bf16.gmra.mxu0 %v6614
      %v7379 = vpop.f32.mrf.mxu0
      %v7380 = vadd.f32 %v7367, %v7379
      %v7381 = vpop.f32.mrf.mxu0
      %7382 = vdwg.mxu0
      %7383 = vmatpush.bf16.msra.mxu0 %v3877
      %7384 = vmatpush.bf16.msra.mxu0 %v3865
      %7385 = vmatpush.bf16.msra.mxu0 %v3853
      %7386 = vmatpush.bf16.msra.mxu0 %v3841
      %7387 = vmatpush.bf16.msra.mxu0 %v3829
      %7388 = vmatpush.bf16.msra.mxu0 %v3817
      %7389 = vmatpush.bf16.msra.mxu0 %v3805
      %7390 = vmatpush.bf16.msra.mxu0 %v3793
      %7391 = vmatmul.bf16.gmra.mxu0 %v6615
      %v7392 = vpop.f32.mrf.mxu0
      %v7393 = vadd.f32 %v7380, %v7392
      %v7394 = vpop.f32.mrf.mxu0
      %7395 = vdwg.mxu0
      %7396 = vmatpush.bf16.msra.mxu0 %v3398
      %7397 = vmatpush.bf16.msra.mxu0 %v3386
      %7398 = vmatpush.bf16.msra.mxu0 %v3374
      %7399 = vmatpush.bf16.msra.mxu0 %v3362
      %7400 = vmatpush.bf16.msra.mxu0 %v3350
      %7401 = vmatpush.bf16.msra.mxu0 %v3338
      %7402 = vmatpush.bf16.msra.mxu0 %v3326
      %7403 = vmatpush.bf16.msra.mxu0 %v3314
      %7404 = vmatmul.bf16.gmra.mxu0 %v6610
      %v7405 = vpop.f32.mrf.mxu0
      %v7406 = vadd.f32 %v1556, %v7405
      %v7407 = vpop.f32.mrf.mxu0
      %7408 = vdwg.mxu0
      %7409 = vmatpush.bf16.msra.mxu0 %v3494
      %7410 = vmatpush.bf16.msra.mxu0 %v3482
      %7411 = vmatpush.bf16.msra.mxu0 %v3470
      %7412 = vmatpush.bf16.msra.mxu0 %v3458
      %7413 = vmatpush.bf16.msra.mxu0 %v3446
      %7414 = vmatpush.bf16.msra.mxu0 %v3434
      %7415 = vmatpush.bf16.msra.mxu0 %v3422
      %7416 = vmatpush.bf16.msra.mxu0 %v3410
      %7417 = vmatmul.bf16.gmra.mxu0 %v6611
      %v7418 = vpop.f32.mrf.mxu0
      %v7419 = vadd.f32 %v7406, %v7418
      %v7420 = vpop.f32.mrf.mxu0
      %7421 = vdwg.mxu0
      %7422 = vmatpush.bf16.msra.mxu0 %v3590
      %7423 = vmatpush.bf16.msra.mxu0 %v3578
      %7424 = vmatpush.bf16.msra.mxu0 %v3566
      %7425 = vmatpush.bf16.msra.mxu0 %v3554
      %7426 = vmatpush.bf16.msra.mxu0 %v3542
      %7427 = vmatpush.bf16.msra.mxu0 %v3530
      %7428 = vmatpush.bf16.msra.mxu0 %v3518
      %7429 = vmatpush.bf16.msra.mxu0 %v3506
      %7430 = vmatmul.bf16.gmra.mxu0 %v6612
      %v7431 = vpop.f32.mrf.mxu0
      %v7432 = vadd.f32 %v7419, %v7431
      %v7433 = vpop.f32.mrf.mxu0
      %7434 = vdwg.mxu0
      %7435 = vmatpush.bf16.msra.mxu0 %v3686
      %7436 = vmatpush.bf16.msra.mxu0 %v3674
      %7437 = vmatpush.bf16.msra.mxu0 %v3662
      %7438 = vmatpush.bf16.msra.mxu0 %v3650
      %7439 = vmatpush.bf16.msra.mxu0 %v3638
      %7440 = vmatpush.bf16.msra.mxu0 %v3626
      %7441 = vmatpush.bf16.msra.mxu0 %v3614
      %7442 = vmatpush.bf16.msra.mxu0 %v3602
      %7443 = vmatmul.bf16.gmra.mxu0 %v6613
      %v7444 = vpop.f32.mrf.mxu0
      %v7445 = vadd.f32 %v7432, %v7444
      %v7446 = vpop.f32.mrf.mxu0
      %7447 = vdwg.mxu0
      %7448 = vmatpush.bf16.msra.mxu0 %v3782
      %7449 = vmatpush.bf16.msra.mxu0 %v3770
      %7450 = vmatpush.bf16.msra.mxu0 %v3758
      %7451 = vmatpush.bf16.msra.mxu0 %v3746
      %7452 = vmatpush.bf16.msra.mxu0 %v3734
      %7453 = vmatpush.bf16.msra.mxu0 %v3722
      %7454 = vmatpush.bf16.msra.mxu0 %v3710
      %7455 = vmatpush.bf16.msra.mxu0 %v3698
      %7456 = vmatmul.bf16.gmra.mxu0 %v6614
      %v7457 = vpop.f32.mrf.mxu0
      %v7458 = vadd.f32 %v7445, %v7457
      %v7459 = vpop.f32.mrf.mxu0
      %7460 = vdwg.mxu0
      %7461 = vmatpush.bf16.msra.mxu0 %v3878
      %7462 = vmatpush.bf16.msra.mxu0 %v3866
      %7463 = vmatpush.bf16.msra.mxu0 %v3854
      %7464 = vmatpush.bf16.msra.mxu0 %v3842
      %7465 = vmatpush.bf16.msra.mxu0 %v3830
      %7466 = vmatpush.bf16.msra.mxu0 %v3818
      %7467 = vmatpush.bf16.msra.mxu0 %v3806
      %7468 = vmatpush.bf16.msra.mxu0 %v3794
      %7469 = vmatmul.bf16.gmra.mxu0 %v6615
      %v7470 = vpop.f32.mrf.mxu0
      %v7471 = vadd.f32 %v7458, %v7470
      %v7472 = vpop.f32.mrf.mxu0
      %7473 = vdwg.mxu0
      %7474 = vmatpush.bf16.msra.mxu0 %v3399
      %7475 = vmatpush.bf16.msra.mxu0 %v3387
      %7476 = vmatpush.bf16.msra.mxu0 %v3375
      %7477 = vmatpush.bf16.msra.mxu0 %v3363
      %7478 = vmatpush.bf16.msra.mxu0 %v3351
      %7479 = vmatpush.bf16.msra.mxu0 %v3339
      %7480 = vmatpush.bf16.msra.mxu0 %v3327
      %7481 = vmatpush.bf16.msra.mxu0 %v3315
      %7482 = vmatmul.bf16.gmra.mxu0 %v6610
      %v7483 = vpop.f32.mrf.mxu0
      %v7484 = vadd.f32 %v1557, %v7483
      %v7485 = vpop.f32.mrf.mxu0
      %7486 = vdwg.mxu0
      %7487 = vmatpush.bf16.msra.mxu0 %v3495
      %7488 = vmatpush.bf16.msra.mxu0 %v3483
      %7489 = vmatpush.bf16.msra.mxu0 %v3471
      %7490 = vmatpush.bf16.msra.mxu0 %v3459
      %7491 = vmatpush.bf16.msra.mxu0 %v3447
      %7492 = vmatpush.bf16.msra.mxu0 %v3435
      %7493 = vmatpush.bf16.msra.mxu0 %v3423
      %7494 = vmatpush.bf16.msra.mxu0 %v3411
      %7495 = vmatmul.bf16.gmra.mxu0 %v6611
      %v7496 = vpop.f32.mrf.mxu0
      %v7497 = vadd.f32 %v7484, %v7496
      %v7498 = vpop.f32.mrf.mxu0
      %7499 = vdwg.mxu0
      %7500 = vmatpush.bf16.msra.mxu0 %v3591
      %7501 = vmatpush.bf16.msra.mxu0 %v3579
      %7502 = vmatpush.bf16.msra.mxu0 %v3567
      %7503 = vmatpush.bf16.msra.mxu0 %v3555
      %7504 = vmatpush.bf16.msra.mxu0 %v3543
      %7505 = vmatpush.bf16.msra.mxu0 %v3531
      %7506 = vmatpush.bf16.msra.mxu0 %v3519
      %7507 = vmatpush.bf16.msra.mxu0 %v3507
      %7508 = vmatmul.bf16.gmra.mxu0 %v6612
      %v7509 = vpop.f32.mrf.mxu0
      %v7510 = vadd.f32 %v7497, %v7509
      %v7511 = vpop.f32.mrf.mxu0
      %7512 = vdwg.mxu0
      %7513 = vmatpush.bf16.msra.mxu0 %v3687
      %7514 = vmatpush.bf16.msra.mxu0 %v3675
      %7515 = vmatpush.bf16.msra.mxu0 %v3663
      %7516 = vmatpush.bf16.msra.mxu0 %v3651
      %7517 = vmatpush.bf16.msra.mxu0 %v3639
      %7518 = vmatpush.bf16.msra.mxu0 %v3627
      %7519 = vmatpush.bf16.msra.mxu0 %v3615
      %7520 = vmatpush.bf16.msra.mxu0 %v3603
      %7521 = vmatmul.bf16.gmra.mxu0 %v6613
      %v7522 = vpop.f32.mrf.mxu0
      %v7523 = vadd.f32 %v7510, %v7522
      %v7524 = vpop.f32.mrf.mxu0
      %7525 = vdwg.mxu0
      %7526 = vmatpush.bf16.msra.mxu0 %v3783
      %7527 = vmatpush.bf16.msra.mxu0 %v3771
      %7528 = vmatpush.bf16.msra.mxu0 %v3759
      %7529 = vmatpush.bf16.msra.mxu0 %v3747
      %7530 = vmatpush.bf16.msra.mxu0 %v3735
      %7531 = vmatpush.bf16.msra.mxu0 %v3723
      %7532 = vmatpush.bf16.msra.mxu0 %v3711
      %7533 = vmatpush.bf16.msra.mxu0 %v3699
      %7534 = vmatmul.bf16.gmra.mxu0 %v6614
      %v7535 = vpop.f32.mrf.mxu0
      %v7536 = vadd.f32 %v7523, %v7535
      %v7537 = vpop.f32.mrf.mxu0
      %7538 = vdwg.mxu0
      %7539 = vmatpush.bf16.msra.mxu0 %v3879
      %7540 = vmatpush.bf16.msra.mxu0 %v3867
      %7541 = vmatpush.bf16.msra.mxu0 %v3855
      %7542 = vmatpush.bf16.msra.mxu0 %v3843
      %7543 = vmatpush.bf16.msra.mxu0 %v3831
      %7544 = vmatpush.bf16.msra.mxu0 %v3819
      %7545 = vmatpush.bf16.msra.mxu0 %v3807
      %7546 = vmatpush.bf16.msra.mxu0 %v3795
      %7547 = vmatmul.bf16.gmra.mxu0 %v6615
      %v7548 = vpop.f32.mrf.mxu0
      %v7549 = vadd.f32 %v7536, %v7548
      %v7550 = vpop.f32.mrf.mxu0
      %7551 = vdwg.mxu0
      %v7552 = vmax.f32 %v6691, 0.0
      %v7553 = vmax.f32 %v6769, 0.0
      %v7554 = vmax.f32 %v6847, 0.0
      %v7555 = vmax.f32 %v6925, 0.0
      %v7556 = vmax.f32 %v7003, 0.0
      %v7557 = vmax.f32 %v7081, 0.0
      %v7558 = vxor.u32 %v7159, 2147483648
      %v7559 = vxor.u32 %v7237, 2147483648
      %v7560 = vxor.u32 %v7315, 2147483648
      %v7561 = vxor.u32 %v7393, 2147483648
      %v7562 = vxor.u32 %v7471, 2147483648
      %v7563 = vxor.u32 %v7549, 2147483648
      %v7564 = vmul.f32 %v7558, 1.442695
      %v7565 = vpow.pop %v7564
      %v7566 = vmul.f32 %v7559, 1.442695
      %v7567 = vpow.pop %v7566
      %v7568 = vmul.f32 %v7560, 1.442695
      %v7569 = vpow.pop %v7568
      %v7570 = vmul.f32 %v7561, 1.442695
      %v7571 = vpow.pop %v7570
      %v7572 = vmul.f32 %v7562, 1.442695
      %v7573 = vpow.pop %v7572
      %v7574 = vmul.f32 %v7563, 1.442695
      %v7575 = vpow.pop %v7574
      %v7576 = vadd.f32 %v7565, 1.0
      %v7577 = vadd.f32 %v7567, 1.0
      %v7578 = vadd.f32 %v7569, 1.0
      %v7579 = vadd.f32 %v7571, 1.0
      %v7580 = vadd.f32 %v7573, 1.0
      %v7581 = vadd.f32 %v7575, 1.0
      %v7582 = vrcp.pop %v7576
      %v7583 = vmul.f32 %v7576, %v7582
      %v7584 = vsub.f32 1.0, %v7583
      %v7585 = vmul.f32 %v7582, %v7584
      %v7586 = vadd.f32 %v7582, %v7585
      %vm7587 = vweird.f32 %v7576
      %vm7588 = vweird.f32 %v7582
      %vm7589 = vmor %vm7587, %vm7588
      %v7590 = vsel %vm7589, %v7582, %v7586
      %v7591 = vand.u32 2147483647, %v7576
      %vm7592 = vcmp.eq.f32.partialorder %v7591, 8.507059e+37
      %v7593 = vand.u32 %v7576, 2147483648
      %v7594 = vor.u32 1.1754944e-38, %v7593
      %v7595 = vsel %vm7592, %v7594, %v7590
      %v7596 = vmul.f32 1.0, %v7595
      %v7597 = vrcp.pop %v7577
      %v7598 = vmul.f32 %v7577, %v7597
      %v7599 = vsub.f32 1.0, %v7598
      %v7600 = vmul.f32 %v7597, %v7599
      %v7601 = vadd.f32 %v7597, %v7600
      %vm7602 = vweird.f32 %v7577
      %vm7603 = vweird.f32 %v7597
      %vm7604 = vmor %vm7602, %vm7603
      %v7605 = vsel %vm7604, %v7597, %v7601
      %v7606 = vand.u32 2147483647, %v7577
      %vm7607 = vcmp.eq.f32.partialorder %v7606, 8.507059e+37
      %v7608 = vand.u32 %v7577, 2147483648
      %v7609 = vor.u32 1.1754944e-38, %v7608
      %v7610 = vsel %vm7607, %v7609, %v7605
      %v7611 = vmul.f32 1.0, %v7610
      %v7612 = vrcp.pop %v7578
      %v7613 = vmul.f32 %v7578, %v7612
      %v7614 = vsub.f32 1.0, %v7613
      %v7615 = vmul.f32 %v7612, %v7614
      %v7616 = vadd.f32 %v7612, %v7615
      %vm7617 = vweird.f32 %v7578
      %vm7618 = vweird.f32 %v7612
      %vm7619 = vmor %vm7617, %vm7618
      %v7620 = vsel %vm7619, %v7612, %v7616
      %v7621 = vand.u32 2147483647, %v7578
      %vm7622 = vcmp.eq.f32.partialorder %v7621, 8.507059e+37
      %v7623 = vand.u32 %v7578, 2147483648
      %v7624 = vor.u32 1.1754944e-38, %v7623
      %v7625 = vsel %vm7622, %v7624, %v7620
      %v7626 = vmul.f32 1.0, %v7625
      %v7627 = vrcp.pop %v7579
      %v7628 = vmul.f32 %v7579, %v7627
      %v7629 = vsub.f32 1.0, %v7628
      %v7630 = vmul.f32 %v7627, %v7629
      %v7631 = vadd.f32 %v7627, %v7630
      %vm7632 = vweird.f32 %v7579
      %vm7633 = vweird.f32 %v7627
      %vm7634 = vmor %vm7632, %vm7633
      %v7635 = vsel %vm7634, %v7627, %v7631
      %v7636 = vand.u32 2147483647, %v7579
      %vm7637 = vcmp.eq.f32.partialorder %v7636, 8.507059e+37
      %v7638 = vand.u32 %v7579, 2147483648
      %v7639 = vor.u32 1.1754944e-38, %v7638
      %v7640 = vsel %vm7637, %v7639, %v7635
      %v7641 = vmul.f32 1.0, %v7640
      %v7642 = vrcp.pop %v7580
      %v7643 = vmul.f32 %v7580, %v7642
      %v7644 = vsub.f32 1.0, %v7643
      %v7645 = vmul.f32 %v7642, %v7644
      %v7646 = vadd.f32 %v7642, %v7645
      %vm7647 = vweird.f32 %v7580
      %vm7648 = vweird.f32 %v7642
      %vm7649 = vmor %vm7647, %vm7648
      %v7650 = vsel %vm7649, %v7642, %v7646
      %v7651 = vand.u32 2147483647, %v7580
      %vm7652 = vcmp.eq.f32.partialorder %v7651, 8.507059e+37
      %v7653 = vand.u32 %v7580, 2147483648
      %v7654 = vor.u32 1.1754944e-38, %v7653
      %v7655 = vsel %vm7652, %v7654, %v7650
      %v7656 = vmul.f32 1.0, %v7655
      %v7657 = vrcp.pop %v7581
      %v7658 = vmul.f32 %v7581, %v7657
      %v7659 = vsub.f32 1.0, %v7658
      %v7660 = vmul.f32 %v7657, %v7659
      %v7661 = vadd.f32 %v7657, %v7660
      %vm7662 = vweird.f32 %v7581
      %vm7663 = vweird.f32 %v7657
      %vm7664 = vmor %vm7662, %vm7663
      %v7665 = vsel %vm7664, %v7657, %v7661
      %v7666 = vand.u32 2147483647, %v7581
      %vm7667 = vcmp.eq.f32.partialorder %v7666, 8.507059e+37
      %v7668 = vand.u32 %v7581, 2147483648
      %v7669 = vor.u32 1.1754944e-38, %v7668
      %v7670 = vsel %vm7667, %v7669, %v7665
      %v7671 = vmul.f32 1.0, %v7670
      %v7672 = vsub.f32 %v7552, %v6604
      %v7673 = vsub.f32 %v7553, %v6605
      %v7674 = vsub.f32 %v7554, %v6606
      %v7675 = vsub.f32 %v7555, %v6607
      %v7676 = vsub.f32 %v7556, %v6608
      %v7677 = vsub.f32 %v7557, %v6609
      %v7678 = vmul.f32 %v7596, %v7672
      %v7679 = vmul.f32 %v7611, %v7673
      %v7680 = vmul.f32 %v7626, %v7674
      %v7681 = vmul.f32 %v7641, %v7675
      %v7682 = vmul.f32 %v7656, %v7676
      %v7683 = vmul.f32 %v7671, %v7677
      %v7684 = vadd.f32 %v6604, %v7678
      %v7685 = vadd.f32 %v6605, %v7679
      %v7686 = vadd.f32 %v6606, %v7680
      %v7687 = vadd.f32 %v6607, %v7681
      %v7688 = vadd.f32 %v6608, %v7682
      %v7689 = vadd.f32 %v6609, %v7683
      %v7690 = vpack.c.bf16 %v7684, %v7684
      %v7691 = vpack.c.bf16 %v7685, %v7685
      %v7692 = vpack.c.bf16 %v7686, %v7686
      %v7693 = vpack.c.bf16 %v7687, %v7687
      %v7694 = vpack.c.bf16 %v7688, %v7688
      %v7695 = vpack.c.bf16 %v7689, %v7689
      %7696 = vmatpush.bf16.msra.mxu0 %v3388
      %7697 = vmatpush.bf16.msra.mxu0 %v3376
      %7698 = vmatpush.bf16.msra.mxu0 %v3364
      %7699 = vmatpush.bf16.msra.mxu0 %v3352
      %7700 = vmatpush.bf16.msra.mxu0 %v3340
      %7701 = vmatpush.bf16.msra.mxu0 %v3328
      %7702 = vmatpush.bf16.msra.mxu0 %v3316
      %7703 = vmatpush.bf16.msra.mxu0 %v3304
      %7704 = vmatmul.bf16.gmra.mxu0 %v7690
      %v7705 = vpop.f32.mrf.mxu0
      %v7706 = vadd.f32 %v1546, %v7705
      %v7707 = vpop.f32.mrf.mxu0
      %7708 = vdwg.mxu0
      %7709 = vmatpush.bf16.msra.mxu0 %v3484
      %7710 = vmatpush.bf16.msra.mxu0 %v3472
      %7711 = vmatpush.bf16.msra.mxu0 %v3460
      %7712 = vmatpush.bf16.msra.mxu0 %v3448
      %7713 = vmatpush.bf16.msra.mxu0 %v3436
      %7714 = vmatpush.bf16.msra.mxu0 %v3424
      %7715 = vmatpush.bf16.msra.mxu0 %v3412
      %7716 = vmatpush.bf16.msra.mxu0 %v3400
      %7717 = vmatmul.bf16.gmra.mxu0 %v7691
      %v7718 = vpop.f32.mrf.mxu0
      %v7719 = vadd.f32 %v7706, %v7718
      %v7720 = vpop.f32.mrf.mxu0
      %7721 = vdwg.mxu0
      %7722 = vmatpush.bf16.msra.mxu0 %v3580
      %7723 = vmatpush.bf16.msra.mxu0 %v3568
      %7724 = vmatpush.bf16.msra.mxu0 %v3556
      %7725 = vmatpush.bf16.msra.mxu0 %v3544
      %7726 = vmatpush.bf16.msra.mxu0 %v3532
      %7727 = vmatpush.bf16.msra.mxu0 %v3520
      %7728 = vmatpush.bf16.msra.mxu0 %v3508
      %7729 = vmatpush.bf16.msra.mxu0 %v3496
      %7730 = vmatmul.bf16.gmra.mxu0 %v7692
      %v7731 = vpop.f32.mrf.mxu0
      %v7732 = vadd.f32 %v7719, %v7731
      %v7733 = vpop.f32.mrf.mxu0
      %7734 = vdwg.mxu0
      %7735 = vmatpush.bf16.msra.mxu0 %v3676
      %7736 = vmatpush.bf16.msra.mxu0 %v3664
      %7737 = vmatpush.bf16.msra.mxu0 %v3652
      %7738 = vmatpush.bf16.msra.mxu0 %v3640
      %7739 = vmatpush.bf16.msra.mxu0 %v3628
      %7740 = vmatpush.bf16.msra.mxu0 %v3616
      %7741 = vmatpush.bf16.msra.mxu0 %v3604
      %7742 = vmatpush.bf16.msra.mxu0 %v3592
      %7743 = vmatmul.bf16.gmra.mxu0 %v7693
      %v7744 = vpop.f32.mrf.mxu0
      %v7745 = vadd.f32 %v7732, %v7744
      %v7746 = vpop.f32.mrf.mxu0
      %7747 = vdwg.mxu0
      %7748 = vmatpush.bf16.msra.mxu0 %v3772
      %7749 = vmatpush.bf16.msra.mxu0 %v3760
      %7750 = vmatpush.bf16.msra.mxu0 %v3748
      %7751 = vmatpush.bf16.msra.mxu0 %v3736
      %7752 = vmatpush.bf16.msra.mxu0 %v3724
      %7753 = vmatpush.bf16.msra.mxu0 %v3712
      %7754 = vmatpush.bf16.msra.mxu0 %v3700
      %7755 = vmatpush.bf16.msra.mxu0 %v3688
      %7756 = vmatmul.bf16.gmra.mxu0 %v7694
      %v7757 = vpop.f32.mrf.mxu0
      %v7758 = vadd.f32 %v7745, %v7757
      %v7759 = vpop.f32.mrf.mxu0
      %7760 = vdwg.mxu0
      %7761 = vmatpush.bf16.msra.mxu0 %v3868
      %7762 = vmatpush.bf16.msra.mxu0 %v3856
      %7763 = vmatpush.bf16.msra.mxu0 %v3844
      %7764 = vmatpush.bf16.msra.mxu0 %v3832
      %7765 = vmatpush.bf16.msra.mxu0 %v3820
      %7766 = vmatpush.bf16.msra.mxu0 %v3808
      %7767 = vmatpush.bf16.msra.mxu0 %v3796
      %7768 = vmatpush.bf16.msra.mxu0 %v3784
      %7769 = vmatmul.bf16.gmra.mxu0 %v7695
      %v7770 = vpop.f32.mrf.mxu0
      %v7771 = vadd.f32 %v7758, %v7770
      %v7772 = vpop.f32.mrf.mxu0
      %7773 = vdwg.mxu0
      %7774 = vmatpush.bf16.msra.mxu0 %v3389
      %7775 = vmatpush.bf16.msra.mxu0 %v3377
      %7776 = vmatpush.bf16.msra.mxu0 %v3365
      %7777 = vmatpush.bf16.msra.mxu0 %v3353
      %7778 = vmatpush.bf16.msra.mxu0 %v3341
      %7779 = vmatpush.bf16.msra.mxu0 %v3329
      %7780 = vmatpush.bf16.msra.mxu0 %v3317
      %7781 = vmatpush.bf16.msra.mxu0 %v3305
      %7782 = vmatmul.bf16.gmra.mxu0 %v7690
      %v7783 = vpop.f32.mrf.mxu0
      %v7784 = vadd.f32 %v1547, %v7783
      %v7785 = vpop.f32.mrf.mxu0
      %7786 = vdwg.mxu0
      %7787 = vmatpush.bf16.msra.mxu0 %v3485
      %7788 = vmatpush.bf16.msra.mxu0 %v3473
      %7789 = vmatpush.bf16.msra.mxu0 %v3461
      %7790 = vmatpush.bf16.msra.mxu0 %v3449
      %7791 = vmatpush.bf16.msra.mxu0 %v3437
      %7792 = vmatpush.bf16.msra.mxu0 %v3425
      %7793 = vmatpush.bf16.msra.mxu0 %v3413
      %7794 = vmatpush.bf16.msra.mxu0 %v3401
      %7795 = vmatmul.bf16.gmra.mxu0 %v7691
      %v7796 = vpop.f32.mrf.mxu0
      %v7797 = vadd.f32 %v7784, %v7796
      %v7798 = vpop.f32.mrf.mxu0
      %7799 = vdwg.mxu0
      %7800 = vmatpush.bf16.msra.mxu0 %v3581
      %7801 = vmatpush.bf16.msra.mxu0 %v3569
      %7802 = vmatpush.bf16.msra.mxu0 %v3557
      %7803 = vmatpush.bf16.msra.mxu0 %v3545
      %7804 = vmatpush.bf16.msra.mxu0 %v3533
      %7805 = vmatpush.bf16.msra.mxu0 %v3521
      %7806 = vmatpush.bf16.msra.mxu0 %v3509
      %7807 = vmatpush.bf16.msra.mxu0 %v3497
      %7808 = vmatmul.bf16.gmra.mxu0 %v7692
      %v7809 = vpop.f32.mrf.mxu0
      %v7810 = vadd.f32 %v7797, %v7809
      %v7811 = vpop.f32.mrf.mxu0
      %7812 = vdwg.mxu0
      %7813 = vmatpush.bf16.msra.mxu0 %v3677
      %7814 = vmatpush.bf16.msra.mxu0 %v3665
      %7815 = vmatpush.bf16.msra.mxu0 %v3653
      %7816 = vmatpush.bf16.msra.mxu0 %v3641
      %7817 = vmatpush.bf16.msra.mxu0 %v3629
      %7818 = vmatpush.bf16.msra.mxu0 %v3617
      %7819 = vmatpush.bf16.msra.mxu0 %v3605
      %7820 = vmatpush.bf16.msra.mxu0 %v3593
      %7821 = vmatmul.bf16.gmra.mxu0 %v7693
      %v7822 = vpop.f32.mrf.mxu0
      %v7823 = vadd.f32 %v7810, %v7822
      %v7824 = vpop.f32.mrf.mxu0
      %7825 = vdwg.mxu0
      %7826 = vmatpush.bf16.msra.mxu0 %v3773
      %7827 = vmatpush.bf16.msra.mxu0 %v3761
      %7828 = vmatpush.bf16.msra.mxu0 %v3749
      %7829 = vmatpush.bf16.msra.mxu0 %v3737
      %7830 = vmatpush.bf16.msra.mxu0 %v3725
      %7831 = vmatpush.bf16.msra.mxu0 %v3713
      %7832 = vmatpush.bf16.msra.mxu0 %v3701
      %7833 = vmatpush.bf16.msra.mxu0 %v3689
      %7834 = vmatmul.bf16.gmra.mxu0 %v7694
      %v7835 = vpop.f32.mrf.mxu0
      %v7836 = vadd.f32 %v7823, %v7835
      %v7837 = vpop.f32.mrf.mxu0
      %7838 = vdwg.mxu0
      %7839 = vmatpush.bf16.msra.mxu0 %v3869
      %7840 = vmatpush.bf16.msra.mxu0 %v3857
      %7841 = vmatpush.bf16.msra.mxu0 %v3845
      %7842 = vmatpush.bf16.msra.mxu0 %v3833
      %7843 = vmatpush.bf16.msra.mxu0 %v3821
      %7844 = vmatpush.bf16.msra.mxu0 %v3809
      %7845 = vmatpush.bf16.msra.mxu0 %v3797
      %7846 = vmatpush.bf16.msra.mxu0 %v3785
      %7847 = vmatmul.bf16.gmra.mxu0 %v7695
      %v7848 = vpop.f32.mrf.mxu0
      %v7849 = vadd.f32 %v7836, %v7848
      %v7850 = vpop.f32.mrf.mxu0
      %7851 = vdwg.mxu0
      %7852 = vmatpush.bf16.msra.mxu0 %v3390
      %7853 = vmatpush.bf16.msra.mxu0 %v3378
      %7854 = vmatpush.bf16.msra.mxu0 %v3366
      %7855 = vmatpush.bf16.msra.mxu0 %v3354
      %7856 = vmatpush.bf16.msra.mxu0 %v3342
      %7857 = vmatpush.bf16.msra.mxu0 %v3330
      %7858 = vmatpush.bf16.msra.mxu0 %v3318
      %7859 = vmatpush.bf16.msra.mxu0 %v3306
      %7860 = vmatmul.bf16.gmra.mxu0 %v7690
      %v7861 = vpop.f32.mrf.mxu0
      %v7862 = vadd.f32 %v1548, %v7861
      %v7863 = vpop.f32.mrf.mxu0
      %7864 = vdwg.mxu0
      %7865 = vmatpush.bf16.msra.mxu0 %v3486
      %7866 = vmatpush.bf16.msra.mxu0 %v3474
      %7867 = vmatpush.bf16.msra.mxu0 %v3462
      %7868 = vmatpush.bf16.msra.mxu0 %v3450
      %7869 = vmatpush.bf16.msra.mxu0 %v3438
      %7870 = vmatpush.bf16.msra.mxu0 %v3426
      %7871 = vmatpush.bf16.msra.mxu0 %v3414
      %7872 = vmatpush.bf16.msra.mxu0 %v3402
      %7873 = vmatmul.bf16.gmra.mxu0 %v7691
      %v7874 = vpop.f32.mrf.mxu0
      %v7875 = vadd.f32 %v7862, %v7874
      %v7876 = vpop.f32.mrf.mxu0
      %7877 = vdwg.mxu0
      %7878 = vmatpush.bf16.msra.mxu0 %v3582
      %7879 = vmatpush.bf16.msra.mxu0 %v3570
      %7880 = vmatpush.bf16.msra.mxu0 %v3558
      %7881 = vmatpush.bf16.msra.mxu0 %v3546
      %7882 = vmatpush.bf16.msra.mxu0 %v3534
      %7883 = vmatpush.bf16.msra.mxu0 %v3522
      %7884 = vmatpush.bf16.msra.mxu0 %v3510
      %7885 = vmatpush.bf16.msra.mxu0 %v3498
      %7886 = vmatmul.bf16.gmra.mxu0 %v7692
      %v7887 = vpop.f32.mrf.mxu0
      %v7888 = vadd.f32 %v7875, %v7887
      %v7889 = vpop.f32.mrf.mxu0
      %7890 = vdwg.mxu0
      %7891 = vmatpush.bf16.msra.mxu0 %v3678
      %7892 = vmatpush.bf16.msra.mxu0 %v3666
      %7893 = vmatpush.bf16.msra.mxu0 %v3654
      %7894 = vmatpush.bf16.msra.mxu0 %v3642
      %7895 = vmatpush.bf16.msra.mxu0 %v3630
      %7896 = vmatpush.bf16.msra.mxu0 %v3618
      %7897 = vmatpush.bf16.msra.mxu0 %v3606
      %7898 = vmatpush.bf16.msra.mxu0 %v3594
      %7899 = vmatmul.bf16.gmra.mxu0 %v7693
      %v7900 = vpop.f32.mrf.mxu0
      %v7901 = vadd.f32 %v7888, %v7900
      %v7902 = vpop.f32.mrf.mxu0
      %7903 = vdwg.mxu0
      %7904 = vmatpush.bf16.msra.mxu0 %v3774
      %7905 = vmatpush.bf16.msra.mxu0 %v3762
      %7906 = vmatpush.bf16.msra.mxu0 %v3750
      %7907 = vmatpush.bf16.msra.mxu0 %v3738
      %7908 = vmatpush.bf16.msra.mxu0 %v3726
      %7909 = vmatpush.bf16.msra.mxu0 %v3714
      %7910 = vmatpush.bf16.msra.mxu0 %v3702
      %7911 = vmatpush.bf16.msra.mxu0 %v3690
      %7912 = vmatmul.bf16.gmra.mxu0 %v7694
      %v7913 = vpop.f32.mrf.mxu0
      %v7914 = vadd.f32 %v7901, %v7913
      %v7915 = vpop.f32.mrf.mxu0
      %7916 = vdwg.mxu0
      %7917 = vmatpush.bf16.msra.mxu0 %v3870
      %7918 = vmatpush.bf16.msra.mxu0 %v3858
      %7919 = vmatpush.bf16.msra.mxu0 %v3846
      %7920 = vmatpush.bf16.msra.mxu0 %v3834
      %7921 = vmatpush.bf16.msra.mxu0 %v3822
      %7922 = vmatpush.bf16.msra.mxu0 %v3810
      %7923 = vmatpush.bf16.msra.mxu0 %v3798
      %7924 = vmatpush.bf16.msra.mxu0 %v3786
      %7925 = vmatmul.bf16.gmra.mxu0 %v7695
      %v7926 = vpop.f32.mrf.mxu0
      %v7927 = vadd.f32 %v7914, %v7926
      %v7928 = vpop.f32.mrf.mxu0
      %7929 = vdwg.mxu0
      %7930 = vmatpush.bf16.msra.mxu0 %v3391
      %7931 = vmatpush.bf16.msra.mxu0 %v3379
      %7932 = vmatpush.bf16.msra.mxu0 %v3367
      %7933 = vmatpush.bf16.msra.mxu0 %v3355
      %7934 = vmatpush.bf16.msra.mxu0 %v3343
      %7935 = vmatpush.bf16.msra.mxu0 %v3331
      %7936 = vmatpush.bf16.msra.mxu0 %v3319
      %7937 = vmatpush.bf16.msra.mxu0 %v3307
      %7938 = vmatmul.bf16.gmra.mxu0 %v7690
      %v7939 = vpop.f32.mrf.mxu0
      %v7940 = vadd.f32 %v1549, %v7939
      %v7941 = vpop.f32.mrf.mxu0
      %7942 = vdwg.mxu0
      %7943 = vmatpush.bf16.msra.mxu0 %v3487
      %7944 = vmatpush.bf16.msra.mxu0 %v3475
      %7945 = vmatpush.bf16.msra.mxu0 %v3463
      %7946 = vmatpush.bf16.msra.mxu0 %v3451
      %7947 = vmatpush.bf16.msra.mxu0 %v3439
      %7948 = vmatpush.bf16.msra.mxu0 %v3427
      %7949 = vmatpush.bf16.msra.mxu0 %v3415
      %7950 = vmatpush.bf16.msra.mxu0 %v3403
      %7951 = vmatmul.bf16.gmra.mxu0 %v7691
      %v7952 = vpop.f32.mrf.mxu0
      %v7953 = vadd.f32 %v7940, %v7952
      %v7954 = vpop.f32.mrf.mxu0
      %7955 = vdwg.mxu0
      %7956 = vmatpush.bf16.msra.mxu0 %v3583
      %7957 = vmatpush.bf16.msra.mxu0 %v3571
      %7958 = vmatpush.bf16.msra.mxu0 %v3559
      %7959 = vmatpush.bf16.msra.mxu0 %v3547
      %7960 = vmatpush.bf16.msra.mxu0 %v3535
      %7961 = vmatpush.bf16.msra.mxu0 %v3523
      %7962 = vmatpush.bf16.msra.mxu0 %v3511
      %7963 = vmatpush.bf16.msra.mxu0 %v3499
      %7964 = vmatmul.bf16.gmra.mxu0 %v7692
      %v7965 = vpop.f32.mrf.mxu0
      %v7966 = vadd.f32 %v7953, %v7965
      %v7967 = vpop.f32.mrf.mxu0
      %7968 = vdwg.mxu0
      %7969 = vmatpush.bf16.msra.mxu0 %v3679
      %7970 = vmatpush.bf16.msra.mxu0 %v3667
      %7971 = vmatpush.bf16.msra.mxu0 %v3655
      %7972 = vmatpush.bf16.msra.mxu0 %v3643
      %7973 = vmatpush.bf16.msra.mxu0 %v3631
      %7974 = vmatpush.bf16.msra.mxu0 %v3619
      %7975 = vmatpush.bf16.msra.mxu0 %v3607
      %7976 = vmatpush.bf16.msra.mxu0 %v3595
      %7977 = vmatmul.bf16.gmra.mxu0 %v7693
      %v7978 = vpop.f32.mrf.mxu0
      %v7979 = vadd.f32 %v7966, %v7978
      %v7980 = vpop.f32.mrf.mxu0
      %7981 = vdwg.mxu0
      %7982 = vmatpush.bf16.msra.mxu0 %v3775
      %7983 = vmatpush.bf16.msra.mxu0 %v3763
      %7984 = vmatpush.bf16.msra.mxu0 %v3751
      %7985 = vmatpush.bf16.msra.mxu0 %v3739
      %7986 = vmatpush.bf16.msra.mxu0 %v3727
      %7987 = vmatpush.bf16.msra.mxu0 %v3715
      %7988 = vmatpush.bf16.msra.mxu0 %v3703
      %7989 = vmatpush.bf16.msra.mxu0 %v3691
      %7990 = vmatmul.bf16.gmra.mxu0 %v7694
      %v7991 = vpop.f32.mrf.mxu0
      %v7992 = vadd.f32 %v7979, %v7991
      %v7993 = vpop.f32.mrf.mxu0
      %7994 = vdwg.mxu0
      %7995 = vmatpush.bf16.msra.mxu0 %v3871
      %7996 = vmatpush.bf16.msra.mxu0 %v3859
      %7997 = vmatpush.bf16.msra.mxu0 %v3847
      %7998 = vmatpush.bf16.msra.mxu0 %v3835
      %7999 = vmatpush.bf16.msra.mxu0 %v3823
      %8000 = vmatpush.bf16.msra.mxu0 %v3811
      %8001 = vmatpush.bf16.msra.mxu0 %v3799
      %8002 = vmatpush.bf16.msra.mxu0 %v3787
      %8003 = vmatmul.bf16.gmra.mxu0 %v7695
      %v8004 = vpop.f32.mrf.mxu0
      %v8005 = vadd.f32 %v7992, %v8004
      %v8006 = vpop.f32.mrf.mxu0
      %8007 = vdwg.mxu0
      %8008 = vmatpush.bf16.msra.mxu0 %v3392
      %8009 = vmatpush.bf16.msra.mxu0 %v3380
      %8010 = vmatpush.bf16.msra.mxu0 %v3368
      %8011 = vmatpush.bf16.msra.mxu0 %v3356
      %8012 = vmatpush.bf16.msra.mxu0 %v3344
      %8013 = vmatpush.bf16.msra.mxu0 %v3332
      %8014 = vmatpush.bf16.msra.mxu0 %v3320
      %8015 = vmatpush.bf16.msra.mxu0 %v3308
      %8016 = vmatmul.bf16.gmra.mxu0 %v7690
      %v8017 = vpop.f32.mrf.mxu0
      %v8018 = vadd.f32 %v1550, %v8017
      %v8019 = vpop.f32.mrf.mxu0
      %8020 = vdwg.mxu0
      %8021 = vmatpush.bf16.msra.mxu0 %v3488
      %8022 = vmatpush.bf16.msra.mxu0 %v3476
      %8023 = vmatpush.bf16.msra.mxu0 %v3464
      %8024 = vmatpush.bf16.msra.mxu0 %v3452
      %8025 = vmatpush.bf16.msra.mxu0 %v3440
      %8026 = vmatpush.bf16.msra.mxu0 %v3428
      %8027 = vmatpush.bf16.msra.mxu0 %v3416
      %8028 = vmatpush.bf16.msra.mxu0 %v3404
      %8029 = vmatmul.bf16.gmra.mxu0 %v7691
      %v8030 = vpop.f32.mrf.mxu0
      %v8031 = vadd.f32 %v8018, %v8030
      %v8032 = vpop.f32.mrf.mxu0
      %8033 = vdwg.mxu0
      %8034 = vmatpush.bf16.msra.mxu0 %v3584
      %8035 = vmatpush.bf16.msra.mxu0 %v3572
      %8036 = vmatpush.bf16.msra.mxu0 %v3560
      %8037 = vmatpush.bf16.msra.mxu0 %v3548
      %8038 = vmatpush.bf16.msra.mxu0 %v3536
      %8039 = vmatpush.bf16.msra.mxu0 %v3524
      %8040 = vmatpush.bf16.msra.mxu0 %v3512
      %8041 = vmatpush.bf16.msra.mxu0 %v3500
      %8042 = vmatmul.bf16.gmra.mxu0 %v7692
      %v8043 = vpop.f32.mrf.mxu0
      %v8044 = vadd.f32 %v8031, %v8043
      %v8045 = vpop.f32.mrf.mxu0
      %8046 = vdwg.mxu0
      %8047 = vmatpush.bf16.msra.mxu0 %v3680
      %8048 = vmatpush.bf16.msra.mxu0 %v3668
      %8049 = vmatpush.bf16.msra.mxu0 %v3656
      %8050 = vmatpush.bf16.msra.mxu0 %v3644
      %8051 = vmatpush.bf16.msra.mxu0 %v3632
      %8052 = vmatpush.bf16.msra.mxu0 %v3620
      %8053 = vmatpush.bf16.msra.mxu0 %v3608
      %8054 = vmatpush.bf16.msra.mxu0 %v3596
      %8055 = vmatmul.bf16.gmra.mxu0 %v7693
      %v8056 = vpop.f32.mrf.mxu0
      %v8057 = vadd.f32 %v8044, %v8056
      %v8058 = vpop.f32.mrf.mxu0
      %8059 = vdwg.mxu0
      %8060 = vmatpush.bf16.msra.mxu0 %v3776
      %8061 = vmatpush.bf16.msra.mxu0 %v3764
      %8062 = vmatpush.bf16.msra.mxu0 %v3752
      %8063 = vmatpush.bf16.msra.mxu0 %v3740
      %8064 = vmatpush.bf16.msra.mxu0 %v3728
      %8065 = vmatpush.bf16.msra.mxu0 %v3716
      %8066 = vmatpush.bf16.msra.mxu0 %v3704
      %8067 = vmatpush.bf16.msra.mxu0 %v3692
      %8068 = vmatmul.bf16.gmra.mxu0 %v7694
      %v8069 = vpop.f32.mrf.mxu0
      %v8070 = vadd.f32 %v8057, %v8069
      %v8071 = vpop.f32.mrf.mxu0
      %8072 = vdwg.mxu0
      %8073 = vmatpush.bf16.msra.mxu0 %v3872
      %8074 = vmatpush.bf16.msra.mxu0 %v3860
      %8075 = vmatpush.bf16.msra.mxu0 %v3848
      %8076 = vmatpush.bf16.msra.mxu0 %v3836
      %8077 = vmatpush.bf16.msra.mxu0 %v3824
      %8078 = vmatpush.bf16.msra.mxu0 %v3812
      %8079 = vmatpush.bf16.msra.mxu0 %v3800
      %8080 = vmatpush.bf16.msra.mxu0 %v3788
      %8081 = vmatmul.bf16.gmra.mxu0 %v7695
      %v8082 = vpop.f32.mrf.mxu0
      %v8083 = vadd.f32 %v8070, %v8082
      %v8084 = vpop.f32.mrf.mxu0
      %8085 = vdwg.mxu0
      %8086 = vmatpush.bf16.msra.mxu0 %v3393
      %8087 = vmatpush.bf16.msra.mxu0 %v3381
      %8088 = vmatpush.bf16.msra.mxu0 %v3369
      %8089 = vmatpush.bf16.msra.mxu0 %v3357
      %8090 = vmatpush.bf16.msra.mxu0 %v3345
      %8091 = vmatpush.bf16.msra.mxu0 %v3333
      %8092 = vmatpush.bf16.msra.mxu0 %v3321
      %8093 = vmatpush.bf16.msra.mxu0 %v3309
      %8094 = vmatmul.bf16.gmra.mxu0 %v7690
      %v8095 = vpop.f32.mrf.mxu0
      %v8096 = vadd.f32 %v1551, %v8095
      %v8097 = vpop.f32.mrf.mxu0
      %8098 = vdwg.mxu0
      %8099 = vmatpush.bf16.msra.mxu0 %v3489
      %8100 = vmatpush.bf16.msra.mxu0 %v3477
      %8101 = vmatpush.bf16.msra.mxu0 %v3465
      %8102 = vmatpush.bf16.msra.mxu0 %v3453
      %8103 = vmatpush.bf16.msra.mxu0 %v3441
      %8104 = vmatpush.bf16.msra.mxu0 %v3429
      %8105 = vmatpush.bf16.msra.mxu0 %v3417
      %8106 = vmatpush.bf16.msra.mxu0 %v3405
      %8107 = vmatmul.bf16.gmra.mxu0 %v7691
      %v8108 = vpop.f32.mrf.mxu0
      %v8109 = vadd.f32 %v8096, %v8108
      %v8110 = vpop.f32.mrf.mxu0
      %8111 = vdwg.mxu0
      %8112 = vmatpush.bf16.msra.mxu0 %v3585
      %8113 = vmatpush.bf16.msra.mxu0 %v3573
      %8114 = vmatpush.bf16.msra.mxu0 %v3561
      %8115 = vmatpush.bf16.msra.mxu0 %v3549
      %8116 = vmatpush.bf16.msra.mxu0 %v3537
      %8117 = vmatpush.bf16.msra.mxu0 %v3525
      %8118 = vmatpush.bf16.msra.mxu0 %v3513
      %8119 = vmatpush.bf16.msra.mxu0 %v3501
      %8120 = vmatmul.bf16.gmra.mxu0 %v7692
      %v8121 = vpop.f32.mrf.mxu0
      %v8122 = vadd.f32 %v8109, %v8121
      %v8123 = vpop.f32.mrf.mxu0
      %8124 = vdwg.mxu0
      %8125 = vmatpush.bf16.msra.mxu0 %v3681
      %8126 = vmatpush.bf16.msra.mxu0 %v3669
      %8127 = vmatpush.bf16.msra.mxu0 %v3657
      %8128 = vmatpush.bf16.msra.mxu0 %v3645
      %8129 = vmatpush.bf16.msra.mxu0 %v3633
      %8130 = vmatpush.bf16.msra.mxu0 %v3621
      %8131 = vmatpush.bf16.msra.mxu0 %v3609
      %8132 = vmatpush.bf16.msra.mxu0 %v3597
      %8133 = vmatmul.bf16.gmra.mxu0 %v7693
      %v8134 = vpop.f32.mrf.mxu0
      %v8135 = vadd.f32 %v8122, %v8134
      %v8136 = vpop.f32.mrf.mxu0
      %8137 = vdwg.mxu0
      %8138 = vmatpush.bf16.msra.mxu0 %v3777
      %8139 = vmatpush.bf16.msra.mxu0 %v3765
      %8140 = vmatpush.bf16.msra.mxu0 %v3753
      %8141 = vmatpush.bf16.msra.mxu0 %v3741
      %8142 = vmatpush.bf16.msra.mxu0 %v3729
      %8143 = vmatpush.bf16.msra.mxu0 %v3717
      %8144 = vmatpush.bf16.msra.mxu0 %v3705
      %8145 = vmatpush.bf16.msra.mxu0 %v3693
      %8146 = vmatmul.bf16.gmra.mxu0 %v7694
      %v8147 = vpop.f32.mrf.mxu0
      %v8148 = vadd.f32 %v8135, %v8147
      %v8149 = vpop.f32.mrf.mxu0
      %8150 = vdwg.mxu0
      %8151 = vmatpush.bf16.msra.mxu0 %v3873
      %8152 = vmatpush.bf16.msra.mxu0 %v3861
      %8153 = vmatpush.bf16.msra.mxu0 %v3849
      %8154 = vmatpush.bf16.msra.mxu0 %v3837
      %8155 = vmatpush.bf16.msra.mxu0 %v3825
      %8156 = vmatpush.bf16.msra.mxu0 %v3813
      %8157 = vmatpush.bf16.msra.mxu0 %v3801
      %8158 = vmatpush.bf16.msra.mxu0 %v3789
      %8159 = vmatmul.bf16.gmra.mxu0 %v7695
      %v8160 = vpop.f32.mrf.mxu0
      %v8161 = vadd.f32 %v8148, %v8160
      %v8162 = vpop.f32.mrf.mxu0
      %8163 = vdwg.mxu0
      %8164 = vmatpush.bf16.msra.mxu0 %v3394
      %8165 = vmatpush.bf16.msra.mxu0 %v3382
      %8166 = vmatpush.bf16.msra.mxu0 %v3370
      %8167 = vmatpush.bf16.msra.mxu0 %v3358
      %8168 = vmatpush.bf16.msra.mxu0 %v3346
      %8169 = vmatpush.bf16.msra.mxu0 %v3334
      %8170 = vmatpush.bf16.msra.mxu0 %v3322
      %8171 = vmatpush.bf16.msra.mxu0 %v3310
      %8172 = vmatmul.bf16.gmra.mxu0 %v7690
      %v8173 = vpop.f32.mrf.mxu0
      %v8174 = vadd.f32 %v1552, %v8173
      %v8175 = vpop.f32.mrf.mxu0
      %8176 = vdwg.mxu0
      %8177 = vmatpush.bf16.msra.mxu0 %v3490
      %8178 = vmatpush.bf16.msra.mxu0 %v3478
      %8179 = vmatpush.bf16.msra.mxu0 %v3466
      %8180 = vmatpush.bf16.msra.mxu0 %v3454
      %8181 = vmatpush.bf16.msra.mxu0 %v3442
      %8182 = vmatpush.bf16.msra.mxu0 %v3430
      %8183 = vmatpush.bf16.msra.mxu0 %v3418
      %8184 = vmatpush.bf16.msra.mxu0 %v3406
      %8185 = vmatmul.bf16.gmra.mxu0 %v7691
      %v8186 = vpop.f32.mrf.mxu0
      %v8187 = vadd.f32 %v8174, %v8186
      %v8188 = vpop.f32.mrf.mxu0
      %8189 = vdwg.mxu0
      %8190 = vmatpush.bf16.msra.mxu0 %v3586
      %8191 = vmatpush.bf16.msra.mxu0 %v3574
      %8192 = vmatpush.bf16.msra.mxu0 %v3562
      %8193 = vmatpush.bf16.msra.mxu0 %v3550
      %8194 = vmatpush.bf16.msra.mxu0 %v3538
      %8195 = vmatpush.bf16.msra.mxu0 %v3526
      %8196 = vmatpush.bf16.msra.mxu0 %v3514
      %8197 = vmatpush.bf16.msra.mxu0 %v3502
      %8198 = vmatmul.bf16.gmra.mxu0 %v7692
      %v8199 = vpop.f32.mrf.mxu0
      %v8200 = vadd.f32 %v8187, %v8199
      %v8201 = vpop.f32.mrf.mxu0
      %8202 = vdwg.mxu0
      %8203 = vmatpush.bf16.msra.mxu0 %v3682
      %8204 = vmatpush.bf16.msra.mxu0 %v3670
      %8205 = vmatpush.bf16.msra.mxu0 %v3658
      %8206 = vmatpush.bf16.msra.mxu0 %v3646
      %8207 = vmatpush.bf16.msra.mxu0 %v3634
      %8208 = vmatpush.bf16.msra.mxu0 %v3622
      %8209 = vmatpush.bf16.msra.mxu0 %v3610
      %8210 = vmatpush.bf16.msra.mxu0 %v3598
      %8211 = vmatmul.bf16.gmra.mxu0 %v7693
      %v8212 = vpop.f32.mrf.mxu0
      %v8213 = vadd.f32 %v8200, %v8212
      %v8214 = vpop.f32.mrf.mxu0
      %8215 = vdwg.mxu0
      %8216 = vmatpush.bf16.msra.mxu0 %v3778
      %8217 = vmatpush.bf16.msra.mxu0 %v3766
      %8218 = vmatpush.bf16.msra.mxu0 %v3754
      %8219 = vmatpush.bf16.msra.mxu0 %v3742
      %8220 = vmatpush.bf16.msra.mxu0 %v3730
      %8221 = vmatpush.bf16.msra.mxu0 %v3718
      %8222 = vmatpush.bf16.msra.mxu0 %v3706
      %8223 = vmatpush.bf16.msra.mxu0 %v3694
      %8224 = vmatmul.bf16.gmra.mxu0 %v7694
      %v8225 = vpop.f32.mrf.mxu0
      %v8226 = vadd.f32 %v8213, %v8225
      %v8227 = vpop.f32.mrf.mxu0
      %8228 = vdwg.mxu0
      %8229 = vmatpush.bf16.msra.mxu0 %v3874
      %8230 = vmatpush.bf16.msra.mxu0 %v3862
      %8231 = vmatpush.bf16.msra.mxu0 %v3850
      %8232 = vmatpush.bf16.msra.mxu0 %v3838
      %8233 = vmatpush.bf16.msra.mxu0 %v3826
      %8234 = vmatpush.bf16.msra.mxu0 %v3814
      %8235 = vmatpush.bf16.msra.mxu0 %v3802
      %8236 = vmatpush.bf16.msra.mxu0 %v3790
      %8237 = vmatmul.bf16.gmra.mxu0 %v7695
      %v8238 = vpop.f32.mrf.mxu0
      %v8239 = vadd.f32 %v8226, %v8238
      %v8240 = vpop.f32.mrf.mxu0
      %8241 = vdwg.mxu0
      %8242 = vmatpush.bf16.msra.mxu0 %v3395
      %8243 = vmatpush.bf16.msra.mxu0 %v3383
      %8244 = vmatpush.bf16.msra.mxu0 %v3371
      %8245 = vmatpush.bf16.msra.mxu0 %v3359
      %8246 = vmatpush.bf16.msra.mxu0 %v3347
      %8247 = vmatpush.bf16.msra.mxu0 %v3335
      %8248 = vmatpush.bf16.msra.mxu0 %v3323
      %8249 = vmatpush.bf16.msra.mxu0 %v3311
      %8250 = vmatmul.bf16.gmra.mxu0 %v7690
      %v8251 = vpop.f32.mrf.mxu0
      %v8252 = vadd.f32 %v1553, %v8251
      %v8253 = vpop.f32.mrf.mxu0
      %8254 = vdwg.mxu0
      %8255 = vmatpush.bf16.msra.mxu0 %v3491
      %8256 = vmatpush.bf16.msra.mxu0 %v3479
      %8257 = vmatpush.bf16.msra.mxu0 %v3467
      %8258 = vmatpush.bf16.msra.mxu0 %v3455
      %8259 = vmatpush.bf16.msra.mxu0 %v3443
      %8260 = vmatpush.bf16.msra.mxu0 %v3431
      %8261 = vmatpush.bf16.msra.mxu0 %v3419
      %8262 = vmatpush.bf16.msra.mxu0 %v3407
      %8263 = vmatmul.bf16.gmra.mxu0 %v7691
      %v8264 = vpop.f32.mrf.mxu0
      %v8265 = vadd.f32 %v8252, %v8264
      %v8266 = vpop.f32.mrf.mxu0
      %8267 = vdwg.mxu0
      %8268 = vmatpush.bf16.msra.mxu0 %v3587
      %8269 = vmatpush.bf16.msra.mxu0 %v3575
      %8270 = vmatpush.bf16.msra.mxu0 %v3563
      %8271 = vmatpush.bf16.msra.mxu0 %v3551
      %8272 = vmatpush.bf16.msra.mxu0 %v3539
      %8273 = vmatpush.bf16.msra.mxu0 %v3527
      %8274 = vmatpush.bf16.msra.mxu0 %v3515
      %8275 = vmatpush.bf16.msra.mxu0 %v3503
      %8276 = vmatmul.bf16.gmra.mxu0 %v7692
      %v8277 = vpop.f32.mrf.mxu0
      %v8278 = vadd.f32 %v8265, %v8277
      %v8279 = vpop.f32.mrf.mxu0
      %8280 = vdwg.mxu0
      %8281 = vmatpush.bf16.msra.mxu0 %v3683
      %8282 = vmatpush.bf16.msra.mxu0 %v3671
      %8283 = vmatpush.bf16.msra.mxu0 %v3659
      %8284 = vmatpush.bf16.msra.mxu0 %v3647
      %8285 = vmatpush.bf16.msra.mxu0 %v3635
      %8286 = vmatpush.bf16.msra.mxu0 %v3623
      %8287 = vmatpush.bf16.msra.mxu0 %v3611
      %8288 = vmatpush.bf16.msra.mxu0 %v3599
      %8289 = vmatmul.bf16.gmra.mxu0 %v7693
      %v8290 = vpop.f32.mrf.mxu0
      %v8291 = vadd.f32 %v8278, %v8290
      %v8292 = vpop.f32.mrf.mxu0
      %8293 = vdwg.mxu0
      %8294 = vmatpush.bf16.msra.mxu0 %v3779
      %8295 = vmatpush.bf16.msra.mxu0 %v3767
      %8296 = vmatpush.bf16.msra.mxu0 %v3755
      %8297 = vmatpush.bf16.msra.mxu0 %v3743
      %8298 = vmatpush.bf16.msra.mxu0 %v3731
      %8299 = vmatpush.bf16.msra.mxu0 %v3719
      %8300 = vmatpush.bf16.msra.mxu0 %v3707
      %8301 = vmatpush.bf16.msra.mxu0 %v3695
      %8302 = vmatmul.bf16.gmra.mxu0 %v7694
      %v8303 = vpop.f32.mrf.mxu0
      %v8304 = vadd.f32 %v8291, %v8303
      %v8305 = vpop.f32.mrf.mxu0
      %8306 = vdwg.mxu0
      %8307 = vmatpush.bf16.msra.mxu0 %v3875
      %8308 = vmatpush.bf16.msra.mxu0 %v3863
      %8309 = vmatpush.bf16.msra.mxu0 %v3851
      %8310 = vmatpush.bf16.msra.mxu0 %v3839
      %8311 = vmatpush.bf16.msra.mxu0 %v3827
      %8312 = vmatpush.bf16.msra.mxu0 %v3815
      %8313 = vmatpush.bf16.msra.mxu0 %v3803
      %8314 = vmatpush.bf16.msra.mxu0 %v3791
      %8315 = vmatmul.bf16.gmra.mxu0 %v7695
      %v8316 = vpop.f32.mrf.mxu0
      %v8317 = vadd.f32 %v8304, %v8316
      %v8318 = vpop.f32.mrf.mxu0
      %8319 = vdwg.mxu0
      %8320 = vmatpush.bf16.msra.mxu0 %v3396
      %8321 = vmatpush.bf16.msra.mxu0 %v3384
      %8322 = vmatpush.bf16.msra.mxu0 %v3372
      %8323 = vmatpush.bf16.msra.mxu0 %v3360
      %8324 = vmatpush.bf16.msra.mxu0 %v3348
      %8325 = vmatpush.bf16.msra.mxu0 %v3336
      %8326 = vmatpush.bf16.msra.mxu0 %v3324
      %8327 = vmatpush.bf16.msra.mxu0 %v3312
      %8328 = vmatmul.bf16.gmra.mxu0 %v7690
      %v8329 = vpop.f32.mrf.mxu0
      %v8330 = vadd.f32 %v1554, %v8329
      %v8331 = vpop.f32.mrf.mxu0
      %8332 = vdwg.mxu0
      %8333 = vmatpush.bf16.msra.mxu0 %v3492
      %8334 = vmatpush.bf16.msra.mxu0 %v3480
      %8335 = vmatpush.bf16.msra.mxu0 %v3468
      %8336 = vmatpush.bf16.msra.mxu0 %v3456
      %8337 = vmatpush.bf16.msra.mxu0 %v3444
      %8338 = vmatpush.bf16.msra.mxu0 %v3432
      %8339 = vmatpush.bf16.msra.mxu0 %v3420
      %8340 = vmatpush.bf16.msra.mxu0 %v3408
      %8341 = vmatmul.bf16.gmra.mxu0 %v7691
      %v8342 = vpop.f32.mrf.mxu0
      %v8343 = vadd.f32 %v8330, %v8342
      %v8344 = vpop.f32.mrf.mxu0
      %8345 = vdwg.mxu0
      %8346 = vmatpush.bf16.msra.mxu0 %v3588
      %8347 = vmatpush.bf16.msra.mxu0 %v3576
      %8348 = vmatpush.bf16.msra.mxu0 %v3564
      %8349 = vmatpush.bf16.msra.mxu0 %v3552
      %8350 = vmatpush.bf16.msra.mxu0 %v3540
      %8351 = vmatpush.bf16.msra.mxu0 %v3528
      %8352 = vmatpush.bf16.msra.mxu0 %v3516
      %8353 = vmatpush.bf16.msra.mxu0 %v3504
      %8354 = vmatmul.bf16.gmra.mxu0 %v7692
      %v8355 = vpop.f32.mrf.mxu0
      %v8356 = vadd.f32 %v8343, %v8355
      %v8357 = vpop.f32.mrf.mxu0
      %8358 = vdwg.mxu0
      %8359 = vmatpush.bf16.msra.mxu0 %v3684
      %8360 = vmatpush.bf16.msra.mxu0 %v3672
      %8361 = vmatpush.bf16.msra.mxu0 %v3660
      %8362 = vmatpush.bf16.msra.mxu0 %v3648
      %8363 = vmatpush.bf16.msra.mxu0 %v3636
      %8364 = vmatpush.bf16.msra.mxu0 %v3624
      %8365 = vmatpush.bf16.msra.mxu0 %v3612
      %8366 = vmatpush.bf16.msra.mxu0 %v3600
      %8367 = vmatmul.bf16.gmra.mxu0 %v7693
      %v8368 = vpop.f32.mrf.mxu0
      %v8369 = vadd.f32 %v8356, %v8368
      %v8370 = vpop.f32.mrf.mxu0
      %8371 = vdwg.mxu0
      %8372 = vmatpush.bf16.msra.mxu0 %v3780
      %8373 = vmatpush.bf16.msra.mxu0 %v3768
      %8374 = vmatpush.bf16.msra.mxu0 %v3756
      %8375 = vmatpush.bf16.msra.mxu0 %v3744
      %8376 = vmatpush.bf16.msra.mxu0 %v3732
      %8377 = vmatpush.bf16.msra.mxu0 %v3720
      %8378 = vmatpush.bf16.msra.mxu0 %v3708
      %8379 = vmatpush.bf16.msra.mxu0 %v3696
      %8380 = vmatmul.bf16.gmra.mxu0 %v7694
      %v8381 = vpop.f32.mrf.mxu0
      %v8382 = vadd.f32 %v8369, %v8381
      %v8383 = vpop.f32.mrf.mxu0
      %8384 = vdwg.mxu0
      %8385 = vmatpush.bf16.msra.mxu0 %v3876
      %8386 = vmatpush.bf16.msra.mxu0 %v3864
      %8387 = vmatpush.bf16.msra.mxu0 %v3852
      %8388 = vmatpush.bf16.msra.mxu0 %v3840
      %8389 = vmatpush.bf16.msra.mxu0 %v3828
      %8390 = vmatpush.bf16.msra.mxu0 %v3816
      %8391 = vmatpush.bf16.msra.mxu0 %v3804
      %8392 = vmatpush.bf16.msra.mxu0 %v3792
      %8393 = vmatmul.bf16.gmra.mxu0 %v7695
      %v8394 = vpop.f32.mrf.mxu0
      %v8395 = vadd.f32 %v8382, %v8394
      %v8396 = vpop.f32.mrf.mxu0
      %8397 = vdwg.mxu0
      %8398 = vmatpush.bf16.msra.mxu0 %v3397
      %8399 = vmatpush.bf16.msra.mxu0 %v3385
      %8400 = vmatpush.bf16.msra.mxu0 %v3373
      %8401 = vmatpush.bf16.msra.mxu0 %v3361
      %8402 = vmatpush.bf16.msra.mxu0 %v3349
      %8403 = vmatpush.bf16.msra.mxu0 %v3337
      %8404 = vmatpush.bf16.msra.mxu0 %v3325
      %8405 = vmatpush.bf16.msra.mxu0 %v3313
      %8406 = vmatmul.bf16.gmra.mxu0 %v7690
      %v8407 = vpop.f32.mrf.mxu0
      %v8408 = vadd.f32 %v1555, %v8407
      %v8409 = vpop.f32.mrf.mxu0
      %8410 = vdwg.mxu0
      %8411 = vmatpush.bf16.msra.mxu0 %v3493
      %8412 = vmatpush.bf16.msra.mxu0 %v3481
      %8413 = vmatpush.bf16.msra.mxu0 %v3469
      %8414 = vmatpush.bf16.msra.mxu0 %v3457
      %8415 = vmatpush.bf16.msra.mxu0 %v3445
      %8416 = vmatpush.bf16.msra.mxu0 %v3433
      %8417 = vmatpush.bf16.msra.mxu0 %v3421
      %8418 = vmatpush.bf16.msra.mxu0 %v3409
      %8419 = vmatmul.bf16.gmra.mxu0 %v7691
      %v8420 = vpop.f32.mrf.mxu0
      %v8421 = vadd.f32 %v8408, %v8420
      %v8422 = vpop.f32.mrf.mxu0
      %8423 = vdwg.mxu0
      %8424 = vmatpush.bf16.msra.mxu0 %v3589
      %8425 = vmatpush.bf16.msra.mxu0 %v3577
      %8426 = vmatpush.bf16.msra.mxu0 %v3565
      %8427 = vmatpush.bf16.msra.mxu0 %v3553
      %8428 = vmatpush.bf16.msra.mxu0 %v3541
      %8429 = vmatpush.bf16.msra.mxu0 %v3529
      %8430 = vmatpush.bf16.msra.mxu0 %v3517
      %8431 = vmatpush.bf16.msra.mxu0 %v3505
      %8432 = vmatmul.bf16.gmra.mxu0 %v7692
      %v8433 = vpop.f32.mrf.mxu0
      %v8434 = vadd.f32 %v8421, %v8433
      %v8435 = vpop.f32.mrf.mxu0
      %8436 = vdwg.mxu0
      %8437 = vmatpush.bf16.msra.mxu0 %v3685
      %8438 = vmatpush.bf16.msra.mxu0 %v3673
      %8439 = vmatpush.bf16.msra.mxu0 %v3661
      %8440 = vmatpush.bf16.msra.mxu0 %v3649
      %8441 = vmatpush.bf16.msra.mxu0 %v3637
      %8442 = vmatpush.bf16.msra.mxu0 %v3625
      %8443 = vmatpush.bf16.msra.mxu0 %v3613
      %8444 = vmatpush.bf16.msra.mxu0 %v3601
      %8445 = vmatmul.bf16.gmra.mxu0 %v7693
      %v8446 = vpop.f32.mrf.mxu0
      %v8447 = vadd.f32 %v8434, %v8446
      %v8448 = vpop.f32.mrf.mxu0
      %8449 = vdwg.mxu0
      %8450 = vmatpush.bf16.msra.mxu0 %v3781
      %8451 = vmatpush.bf16.msra.mxu0 %v3769
      %8452 = vmatpush.bf16.msra.mxu0 %v3757
      %8453 = vmatpush.bf16.msra.mxu0 %v3745
      %8454 = vmatpush.bf16.msra.mxu0 %v3733
      %8455 = vmatpush.bf16.msra.mxu0 %v3721
      %8456 = vmatpush.bf16.msra.mxu0 %v3709
      %8457 = vmatpush.bf16.msra.mxu0 %v3697
      %8458 = vmatmul.bf16.gmra.mxu0 %v7694
      %v8459 = vpop.f32.mrf.mxu0
      %v8460 = vadd.f32 %v8447, %v8459
      %v8461 = vpop.f32.mrf.mxu0
      %8462 = vdwg.mxu0
      %8463 = vmatpush.bf16.msra.mxu0 %v3877
      %8464 = vmatpush.bf16.msra.mxu0 %v3865
      %8465 = vmatpush.bf16.msra.mxu0 %v3853
      %8466 = vmatpush.bf16.msra.mxu0 %v3841
      %8467 = vmatpush.bf16.msra.mxu0 %v3829
      %8468 = vmatpush.bf16.msra.mxu0 %v3817
      %8469 = vmatpush.bf16.msra.mxu0 %v3805
      %8470 = vmatpush.bf16.msra.mxu0 %v3793
      %8471 = vmatmul.bf16.gmra.mxu0 %v7695
      %v8472 = vpop.f32.mrf.mxu0
      %v8473 = vadd.f32 %v8460, %v8472
      %v8474 = vpop.f32.mrf.mxu0
      %8475 = vdwg.mxu0
      %8476 = vmatpush.bf16.msra.mxu0 %v3398
      %8477 = vmatpush.bf16.msra.mxu0 %v3386
      %8478 = vmatpush.bf16.msra.mxu0 %v3374
      %8479 = vmatpush.bf16.msra.mxu0 %v3362
      %8480 = vmatpush.bf16.msra.mxu0 %v3350
      %8481 = vmatpush.bf16.msra.mxu0 %v3338
      %8482 = vmatpush.bf16.msra.mxu0 %v3326
      %8483 = vmatpush.bf16.msra.mxu0 %v3314
      %8484 = vmatmul.bf16.gmra.mxu0 %v7690
      %v8485 = vpop.f32.mrf.mxu0
      %v8486 = vadd.f32 %v1556, %v8485
      %v8487 = vpop.f32.mrf.mxu0
      %8488 = vdwg.mxu0
      %8489 = vmatpush.bf16.msra.mxu0 %v3494
      %8490 = vmatpush.bf16.msra.mxu0 %v3482
      %8491 = vmatpush.bf16.msra.mxu0 %v3470
      %8492 = vmatpush.bf16.msra.mxu0 %v3458
      %8493 = vmatpush.bf16.msra.mxu0 %v3446
      %8494 = vmatpush.bf16.msra.mxu0 %v3434
      %8495 = vmatpush.bf16.msra.mxu0 %v3422
      %8496 = vmatpush.bf16.msra.mxu0 %v3410
      %8497 = vmatmul.bf16.gmra.mxu0 %v7691
      %v8498 = vpop.f32.mrf.mxu0
      %v8499 = vadd.f32 %v8486, %v8498
      %v8500 = vpop.f32.mrf.mxu0
      %8501 = vdwg.mxu0
      %8502 = vmatpush.bf16.msra.mxu0 %v3590
      %8503 = vmatpush.bf16.msra.mxu0 %v3578
      %8504 = vmatpush.bf16.msra.mxu0 %v3566
      %8505 = vmatpush.bf16.msra.mxu0 %v3554
      %8506 = vmatpush.bf16.msra.mxu0 %v3542
      %8507 = vmatpush.bf16.msra.mxu0 %v3530
      %8508 = vmatpush.bf16.msra.mxu0 %v3518
      %8509 = vmatpush.bf16.msra.mxu0 %v3506
      %8510 = vmatmul.bf16.gmra.mxu0 %v7692
      %v8511 = vpop.f32.mrf.mxu0
      %v8512 = vadd.f32 %v8499, %v8511
      %v8513 = vpop.f32.mrf.mxu0
      %8514 = vdwg.mxu0
      %8515 = vmatpush.bf16.msra.mxu0 %v3686
      %8516 = vmatpush.bf16.msra.mxu0 %v3674
      %8517 = vmatpush.bf16.msra.mxu0 %v3662
      %8518 = vmatpush.bf16.msra.mxu0 %v3650
      %8519 = vmatpush.bf16.msra.mxu0 %v3638
      %8520 = vmatpush.bf16.msra.mxu0 %v3626
      %8521 = vmatpush.bf16.msra.mxu0 %v3614
      %8522 = vmatpush.bf16.msra.mxu0 %v3602
      %8523 = vmatmul.bf16.gmra.mxu0 %v7693
      %v8524 = vpop.f32.mrf.mxu0
      %v8525 = vadd.f32 %v8512, %v8524
      %v8526 = vpop.f32.mrf.mxu0
      %8527 = vdwg.mxu0
      %8528 = vmatpush.bf16.msra.mxu0 %v3782
      %8529 = vmatpush.bf16.msra.mxu0 %v3770
      %8530 = vmatpush.bf16.msra.mxu0 %v3758
      %8531 = vmatpush.bf16.msra.mxu0 %v3746
      %8532 = vmatpush.bf16.msra.mxu0 %v3734
      %8533 = vmatpush.bf16.msra.mxu0 %v3722
      %8534 = vmatpush.bf16.msra.mxu0 %v3710
      %8535 = vmatpush.bf16.msra.mxu0 %v3698
      %8536 = vmatmul.bf16.gmra.mxu0 %v7694
      %v8537 = vpop.f32.mrf.mxu0
      %v8538 = vadd.f32 %v8525, %v8537
      %v8539 = vpop.f32.mrf.mxu0
      %8540 = vdwg.mxu0
      %8541 = vmatpush.bf16.msra.mxu0 %v3878
      %8542 = vmatpush.bf16.msra.mxu0 %v3866
      %8543 = vmatpush.bf16.msra.mxu0 %v3854
      %8544 = vmatpush.bf16.msra.mxu0 %v3842
      %8545 = vmatpush.bf16.msra.mxu0 %v3830
      %8546 = vmatpush.bf16.msra.mxu0 %v3818
      %8547 = vmatpush.bf16.msra.mxu0 %v3806
      %8548 = vmatpush.bf16.msra.mxu0 %v3794
      %8549 = vmatmul.bf16.gmra.mxu0 %v7695
      %v8550 = vpop.f32.mrf.mxu0
      %v8551 = vadd.f32 %v8538, %v8550
      %v8552 = vpop.f32.mrf.mxu0
      %8553 = vdwg.mxu0
      %8554 = vmatpush.bf16.msra.mxu0 %v3399
      %8555 = vmatpush.bf16.msra.mxu0 %v3387
      %8556 = vmatpush.bf16.msra.mxu0 %v3375
      %8557 = vmatpush.bf16.msra.mxu0 %v3363
      %8558 = vmatpush.bf16.msra.mxu0 %v3351
      %8559 = vmatpush.bf16.msra.mxu0 %v3339
      %8560 = vmatpush.bf16.msra.mxu0 %v3327
      %8561 = vmatpush.bf16.msra.mxu0 %v3315
      %8562 = vmatmul.bf16.gmra.mxu0 %v7690
      %v8563 = vpop.f32.mrf.mxu0
      %v8564 = vadd.f32 %v1557, %v8563
      %v8565 = vpop.f32.mrf.mxu0
      %8566 = vdwg.mxu0
      %8567 = vmatpush.bf16.msra.mxu0 %v3495
      %8568 = vmatpush.bf16.msra.mxu0 %v3483
      %8569 = vmatpush.bf16.msra.mxu0 %v3471
      %8570 = vmatpush.bf16.msra.mxu0 %v3459
      %8571 = vmatpush.bf16.msra.mxu0 %v3447
      %8572 = vmatpush.bf16.msra.mxu0 %v3435
      %8573 = vmatpush.bf16.msra.mxu0 %v3423
      %8574 = vmatpush.bf16.msra.mxu0 %v3411
      %8575 = vmatmul.bf16.gmra.mxu0 %v7691
      %v8576 = vpop.f32.mrf.mxu0
      %v8577 = vadd.f32 %v8564, %v8576
      %v8578 = vpop.f32.mrf.mxu0
      %8579 = vdwg.mxu0
      %8580 = vmatpush.bf16.msra.mxu0 %v3591
      %8581 = vmatpush.bf16.msra.mxu0 %v3579
      %8582 = vmatpush.bf16.msra.mxu0 %v3567
      %8583 = vmatpush.bf16.msra.mxu0 %v3555
      %8584 = vmatpush.bf16.msra.mxu0 %v3543
      %8585 = vmatpush.bf16.msra.mxu0 %v3531
      %8586 = vmatpush.bf16.msra.mxu0 %v3519
      %8587 = vmatpush.bf16.msra.mxu0 %v3507
      %8588 = vmatmul.bf16.gmra.mxu0 %v7692
      %v8589 = vpop.f32.mrf.mxu0
      %v8590 = vadd.f32 %v8577, %v8589
      %v8591 = vpop.f32.mrf.mxu0
      %8592 = vdwg.mxu0
      %8593 = vmatpush.bf16.msra.mxu0 %v3687
      %8594 = vmatpush.bf16.msra.mxu0 %v3675
      %8595 = vmatpush.bf16.msra.mxu0 %v3663
      %8596 = vmatpush.bf16.msra.mxu0 %v3651
      %8597 = vmatpush.bf16.msra.mxu0 %v3639
      %8598 = vmatpush.bf16.msra.mxu0 %v3627
      %8599 = vmatpush.bf16.msra.mxu0 %v3615
      %8600 = vmatpush.bf16.msra.mxu0 %v3603
      %8601 = vmatmul.bf16.gmra.mxu0 %v7693
      %v8602 = vpop.f32.mrf.mxu0
      %v8603 = vadd.f32 %v8590, %v8602
      %v8604 = vpop.f32.mrf.mxu0
      %8605 = vdwg.mxu0
      %8606 = vmatpush.bf16.msra.mxu0 %v3783
      %8607 = vmatpush.bf16.msra.mxu0 %v3771
      %8608 = vmatpush.bf16.msra.mxu0 %v3759
      %8609 = vmatpush.bf16.msra.mxu0 %v3747
      %8610 = vmatpush.bf16.msra.mxu0 %v3735
      %8611 = vmatpush.bf16.msra.mxu0 %v3723
      %8612 = vmatpush.bf16.msra.mxu0 %v3711
      %8613 = vmatpush.bf16.msra.mxu0 %v3699
      %8614 = vmatmul.bf16.gmra.mxu0 %v7694
      %v8615 = vpop.f32.mrf.mxu0
      %v8616 = vadd.f32 %v8603, %v8615
      %v8617 = vpop.f32.mrf.mxu0
      %8618 = vdwg.mxu0
      %8619 = vmatpush.bf16.msra.mxu0 %v3879
      %8620 = vmatpush.bf16.msra.mxu0 %v3867
      %8621 = vmatpush.bf16.msra.mxu0 %v3855
      %8622 = vmatpush.bf16.msra.mxu0 %v3843
      %8623 = vmatpush.bf16.msra.mxu0 %v3831
      %8624 = vmatpush.bf16.msra.mxu0 %v3819
      %8625 = vmatpush.bf16.msra.mxu0 %v3807
      %8626 = vmatpush.bf16.msra.mxu0 %v3795
      %8627 = vmatmul.bf16.gmra.mxu0 %v7695
      %v8628 = vpop.f32.mrf.mxu0
      %v8629 = vadd.f32 %v8616, %v8628
      %v8630 = vpop.f32.mrf.mxu0
      %8631 = vdwg.mxu0
      %v8632 = vmax.f32 %v7771, 0.0
      %v8633 = vmax.f32 %v7849, 0.0
      %v8634 = vmax.f32 %v7927, 0.0
      %v8635 = vmax.f32 %v8005, 0.0
      %v8636 = vmax.f32 %v8083, 0.0
      %v8637 = vmax.f32 %v8161, 0.0
      %v8638 = vxor.u32 %v8239, 2147483648
      %v8639 = vxor.u32 %v8317, 2147483648
      %v8640 = vxor.u32 %v8395, 2147483648
      %v8641 = vxor.u32 %v8473, 2147483648
      %v8642 = vxor.u32 %v8551, 2147483648
      %v8643 = vxor.u32 %v8629, 2147483648
      %v8644 = vmul.f32 %v8638, 1.442695
      %v8645 = vpow.pop %v8644
      %v8646 = vmul.f32 %v8639, 1.442695
      %v8647 = vpow.pop %v8646
      %v8648 = vmul.f32 %v8640, 1.442695
      %v8649 = vpow.pop %v8648
      %v8650 = vmul.f32 %v8641, 1.442695
      %v8651 = vpow.pop %v8650
      %v8652 = vmul.f32 %v8642, 1.442695
      %v8653 = vpow.pop %v8652
      %v8654 = vmul.f32 %v8643, 1.442695
      %v8655 = vpow.pop %v8654
      %v8656 = vadd.f32 %v8645, 1.0
      %v8657 = vadd.f32 %v8647, 1.0
      %v8658 = vadd.f32 %v8649, 1.0
      %v8659 = vadd.f32 %v8651, 1.0
      %v8660 = vadd.f32 %v8653, 1.0
      %v8661 = vadd.f32 %v8655, 1.0
      %v8662 = vrcp.pop %v8656
      %v8663 = vmul.f32 %v8656, %v8662
      %v8664 = vsub.f32 1.0, %v8663
      %v8665 = vmul.f32 %v8662, %v8664
      %v8666 = vadd.f32 %v8662, %v8665
      %vm8667 = vweird.f32 %v8656
      %vm8668 = vweird.f32 %v8662
      %vm8669 = vmor %vm8667, %vm8668
      %v8670 = vsel %vm8669, %v8662, %v8666
      %v8671 = vand.u32 2147483647, %v8656
      %vm8672 = vcmp.eq.f32.partialorder %v8671, 8.507059e+37
      %v8673 = vand.u32 %v8656, 2147483648
      %v8674 = vor.u32 1.1754944e-38, %v8673
      %v8675 = vsel %vm8672, %v8674, %v8670
      %v8676 = vmul.f32 1.0, %v8675
      %v8677 = vrcp.pop %v8657
      %v8678 = vmul.f32 %v8657, %v8677
      %v8679 = vsub.f32 1.0, %v8678
      %v8680 = vmul.f32 %v8677, %v8679
      %v8681 = vadd.f32 %v8677, %v8680
      %vm8682 = vweird.f32 %v8657
      %vm8683 = vweird.f32 %v8677
      %vm8684 = vmor %vm8682, %vm8683
      %v8685 = vsel %vm8684, %v8677, %v8681
      %v8686 = vand.u32 2147483647, %v8657
      %vm8687 = vcmp.eq.f32.partialorder %v8686, 8.507059e+37
      %v8688 = vand.u32 %v8657, 2147483648
      %v8689 = vor.u32 1.1754944e-38, %v8688
      %v8690 = vsel %vm8687, %v8689, %v8685
      %v8691 = vmul.f32 1.0, %v8690
      %v8692 = vrcp.pop %v8658
      %v8693 = vmul.f32 %v8658, %v8692
      %v8694 = vsub.f32 1.0, %v8693
      %v8695 = vmul.f32 %v8692, %v8694
      %v8696 = vadd.f32 %v8692, %v8695
      %vm8697 = vweird.f32 %v8658
      %vm8698 = vweird.f32 %v8692
      %vm8699 = vmor %vm8697, %vm8698
      %v8700 = vsel %vm8699, %v8692, %v8696
      %v8701 = vand.u32 2147483647, %v8658
      %vm8702 = vcmp.eq.f32.partialorder %v8701, 8.507059e+37
      %v8703 = vand.u32 %v8658, 2147483648
      %v8704 = vor.u32 1.1754944e-38, %v8703
      %v8705 = vsel %vm8702, %v8704, %v8700
      %v8706 = vmul.f32 1.0, %v8705
      %v8707 = vrcp.pop %v8659
      %v8708 = vmul.f32 %v8659, %v8707
      %v8709 = vsub.f32 1.0, %v8708
      %v8710 = vmul.f32 %v8707, %v8709
      %v8711 = vadd.f32 %v8707, %v8710
      %vm8712 = vweird.f32 %v8659
      %vm8713 = vweird.f32 %v8707
      %vm8714 = vmor %vm8712, %vm8713
      %v8715 = vsel %vm8714, %v8707, %v8711
      %v8716 = vand.u32 2147483647, %v8659
      %vm8717 = vcmp.eq.f32.partialorder %v8716, 8.507059e+37
      %v8718 = vand.u32 %v8659, 2147483648
      %v8719 = vor.u32 1.1754944e-38, %v8718
      %v8720 = vsel %vm8717, %v8719, %v8715
      %v8721 = vmul.f32 1.0, %v8720
      %v8722 = vrcp.pop %v8660
      %v8723 = vmul.f32 %v8660, %v8722
      %v8724 = vsub.f32 1.0, %v8723
      %v8725 = vmul.f32 %v8722, %v8724
      %v8726 = vadd.f32 %v8722, %v8725
      %vm8727 = vweird.f32 %v8660
      %vm8728 = vweird.f32 %v8722
      %vm8729 = vmor %vm8727, %vm8728
      %v8730 = vsel %vm8729, %v8722, %v8726
      %v8731 = vand.u32 2147483647, %v8660
      %vm8732 = vcmp.eq.f32.partialorder %v8731, 8.507059e+37
      %v8733 = vand.u32 %v8660, 2147483648
      %v8734 = vor.u32 1.1754944e-38, %v8733
      %v8735 = vsel %vm8732, %v8734, %v8730
      %v8736 = vmul.f32 1.0, %v8735
      %v8737 = vrcp.pop %v8661
      %v8738 = vmul.f32 %v8661, %v8737
      %v8739 = vsub.f32 1.0, %v8738
      %v8740 = vmul.f32 %v8737, %v8739
      %v8741 = vadd.f32 %v8737, %v8740
      %vm8742 = vweird.f32 %v8661
      %vm8743 = vweird.f32 %v8737
      %vm8744 = vmor %vm8742, %vm8743
      %v8745 = vsel %vm8744, %v8737, %v8741
      %v8746 = vand.u32 2147483647, %v8661
      %vm8747 = vcmp.eq.f32.partialorder %v8746, 8.507059e+37
      %v8748 = vand.u32 %v8661, 2147483648
      %v8749 = vor.u32 1.1754944e-38, %v8748
      %v8750 = vsel %vm8747, %v8749, %v8745
      %v8751 = vmul.f32 1.0, %v8750
      %v8752 = vsub.f32 %v8632, %v7684
      %v8753 = vsub.f32 %v8633, %v7685
      %v8754 = vsub.f32 %v8634, %v7686
      %v8755 = vsub.f32 %v8635, %v7687
      %v8756 = vsub.f32 %v8636, %v7688
      %v8757 = vsub.f32 %v8637, %v7689
      %v8758 = vmul.f32 %v8676, %v8752
      %v8759 = vmul.f32 %v8691, %v8753
      %v8760 = vmul.f32 %v8706, %v8754
      %v8761 = vmul.f32 %v8721, %v8755
      %v8762 = vmul.f32 %v8736, %v8756
      %v8763 = vmul.f32 %v8751, %v8757
      %v8764 = vadd.f32 %v7684, %v8758
      %v8765 = vadd.f32 %v7685, %v8759
      %v8766 = vadd.f32 %v7686, %v8760
      %v8767 = vadd.f32 %v7687, %v8761
      %v8768 = vadd.f32 %v7688, %v8762
      %v8769 = vadd.f32 %v7689, %v8763
      %v8770 = vld [vmem:[#allocation12] sm:$0x3f]
      %v8772 = vperm.slane %v8770, 0
      %v8773 = vperm.slane %v8770, 1
      %v8774 = vperm.slane %v8770, 2
      %v8775 = vperm.slane %v8770, 3
      %v8776 = vperm.slane %v8770, 4
      %v8777 = vperm.slane %v8770, 5
      %v8784 = vmul.f32 %v8764, %v8772
      %v8785 = vmul.f32 %v8765, %v8773
      %v8786 = vmul.f32 %v8766, %v8774
      %v8787 = vmul.f32 %v8767, %v8775
      %v8788 = vmul.f32 %v8768, %v8776
      %v8789 = vmul.f32 %v8769, %v8777
      %v8790 = vadd.f32 %v8784, %v8785
      %v8791 = vadd.f32 %v8790, %v8786
      %v8792 = vadd.f32 %v8791, %v8787
      %v8793 = vadd.f32 %v8792, %v8788
      %v8794 = vadd.f32 %v8793, %v8789
      %8795 = vadd.xlane.f32.xlu0 %v8794
      %v8796 = vpop.xlane.xlu0 %8795
      %v8797 = vld [vmem:[#allocation3] sm:$0x1]
      %v8799 = vperm.slane %v8797, 0
      %v8801 = vadd.f32 %v8796, %v8799
      %8803 = vset.pattern.permute.xlu0 0
      %8804 = vperm.xlu0 %8803, %v8801
      %v8805 = vpop.permute.xlu0 %8804
      %8807 = vst [vmem:[#allocation13] sm:$0xff] %v8805
    $region53: #{tpu_custom_call.1} parent=1 // pred_fallthru
      _
    // Predicated region
    $region54: #{tpu_custom_call.1} parent=1 // pred_check
      _
    $region55: #{tpu_custom_call.1} parent=1 // pred_check_branch
      %8809 = sbr.rel (0) target = $region57
    $region56: #{tpu_custom_call.1} parent=1 // pred_region
      %8811 = vsyncadd [#allocation6], 0
      %s8813 = sshll.u32 [#allocation13], 4
      %s8814 = int_to_ptr.vmem [resolvable:$true] %s8813
      %s8815 = sshll.u32 %s6, 4
      %s8816 = int_to_ptr.hbm [resolvable:$true] %s8815
      %8818 = dma.vmem_to_hbm [thread:$0]  %s8814, 128, %s8816, [#allocation6]
    $region57: #{tpu_custom_call.1} parent=1 // pred_fallthru
      _
    // Predicated region
    $region58: #{tpu_custom_call.1} parent=1 // pred_check
      _
    $region59: #{tpu_custom_call.1} parent=1 // pred_check_branch
      %8820 = sbr.rel (0) target = $region61
    $region60: #{tpu_custom_call.1} parent=1 // pred_region
      %8822 = dma.done [#allocation6], 128
    $region61: #{tpu_custom_call.1} parent=1 // pred_fallthru
      _
    %8823 = vsyncpa [#allocation5], 1
    %8824 = vsyncpa [#allocation8], 1
    %8825 = vsyncpa [#allocation11], 1
    %8826 = vsyncpa [#allocation6], 1

</llo_original>
